<compile_context>
chip_gen: v6e
topology: v6e:2x2x1
jax: 0.10.0
libtpu: 0.0.40
codegen_flags: <defaults>
</compile_context>

<pallas_src>
import functools

import jax
import jax.numpy as jnp
from jax.experimental import pallas as pl
from jax.experimental.pallas import tpu as pltpu


def _gelu_tanh(x):
    # tanh-approx GELU (VPU + EUP only, lowers cleanly in Mosaic).
    # TODO(synk): exact-erf nn.GELU of the reference differs by ~1e-3 here.
    c = 0.7978845608028654  # sqrt(2/pi)
    return 0.5 * x * (1.0 + jnp.tanh(c * (x + 0.044715 * (x * x * x))))


# ------------------------------ fused kernel ------------------------------- #

def _iab_fused_kernel(x_ref, w1_ref, b1_ref, dww_ref, bns_ref, bnb_ref,
                      wq_ref, wkT_ref, wv_ref, wo_ref, bo_ref, w3_ref, b3_ref,
                      pw1_ref, pb1_ref, pw2_ref, pb2_ref, gamma_ref,
                      o_ref, oall_scr, *, H, W, heads, dim_head):
    bf16 = jnp.bfloat16
    rd = w1_ref.shape[1]
    HW = H * W

    x = x_ref[0].astype(jnp.float32)                       # (HW, C) residual
    xb = x.astype(bf16)

    # ---- conv1: 1x1 (C -> rd); weights arrive pre-cast to bf16, f32 accumulation ----
    y1 = jnp.dot(xb, w1_ref[...], preferred_element_type=jnp.float32) + b1_ref[...]   # (HW, rd)

    # ---- depthwise 3x3 + folded (eval-mode) BatchNorm + GELU, shift-based ----
    # Zero-fill sublane shifts replace the padded (H+2,W+2,rd) scratch; row boundaries
    # are handled by the zero fill, column wrap by two (HW,1) masks.
    dww = dww_ref[...]                                     # (3,3,rd) f32, hoisted
    col = jax.lax.broadcasted_iota(jnp.int32, (HW, 1), 0) % W
    mask_l = col >= 1                                      # valid when reading column j-1
    mask_r = col <= W - 2                                  # valid when reading column j+1

    def shift_rows(a, s):                                  # b[p] = a[p+s], zero-filled
        if s == 0:
            return a
        z = jnp.zeros((abs(s), a.shape[1]), a.dtype)
        return (jnp.concatenate([a[s:, :], z], axis=0) if s > 0
                else jnp.concatenate([z, a[:s, :]], axis=0))

    acc = jnp.zeros((HW, rd), jnp.float32)
    for di in (-1, 0, 1):
        for dj in (-1, 0, 1):
            t = shift_rows(y1, di * W + dj)
            if dj == -1:
                t = jnp.where(mask_l, t, 0.0)
            elif dj == 1:
                t = jnp.where(mask_r, t, 0.0)
            acc = acc + t * dww[di + 1, dj + 1:dj + 2, :]
    y2 = _gelu_tanh(acc * bns_ref[...] + bnb_ref[...])     # (HW, rd)

    # ---- EfficientAttention: batched projections, per-head softmax(QK^T)V ----
    y2b = y2.astype(bf16)
    y2bT = jnp.transpose(y2).astype(bf16)                  # (rd, HW): one small transpose
    q_all = jnp.dot(y2b, wq_ref[...],                      # scale folded into Wq on host
                    preferred_element_type=jnp.float32).astype(bf16)       # (HW, inner)
    kT_all = jnp.dot(wkT_ref[...], y2bT,
                     preferred_element_type=jnp.float32).astype(bf16)      # (inner, HW)
    v_all = jnp.dot(y2b, wv_ref[...],
                    preferred_element_type=jnp.float32).astype(bf16)       # (HW, inner)

    for h in range(heads):
        lo, hi = h * dim_head, (h + 1) * dim_head
        dots = jnp.dot(q_all[:, lo:hi], kT_all[lo:hi, :],
                       preferred_element_type=jnp.float32)                 # (HW, HW)
        m = jnp.max(dots, axis=-1, keepdims=True)
        p = jnp.exp(dots - m)                              # unnormalized probs (f32)
        l = jnp.sum(p, axis=-1, keepdims=True)
        o_h = jnp.dot(p.astype(bf16), v_all[:, lo:hi],
                      preferred_element_type=jnp.float32)                  # (HW, Dh)
        # normalize post-AV (EUP reciprocal) and park this head in the bf16 scratch
        oall_scr[:, lo:hi] = (o_h * pl.reciprocal(l, approx=True)).astype(bf16)

    # ---- to_out (inner -> rd), then conv3 (rd -> C) ----
    o_rd = jnp.dot(oall_scr[...], wo_ref[...],
                   preferred_element_type=jnp.float32) + bo_ref[...]       # (HW, rd)
    y3 = jnp.dot(o_rd.astype(bf16), w3_ref[...],
                 preferred_element_type=jnp.float32) + b3_ref[...]         # (HW, C)

    # ---- pool branch on the residual, fully in-kernel (x already resident) ----
    pooled = jnp.mean(x, axis=0, keepdims=True)                            # (1, C)
    h1 = _gelu_tanh(jnp.dot(pooled, pw1_ref[...],
                            preferred_element_type=jnp.float32) + pb1_ref[...])   # (1, rd)
    logits = jnp.dot(h1, pw2_ref[...],
                     preferred_element_type=jnp.float32) + pb2_ref[...]            # (1, C)
    gate = jax.nn.sigmoid(logits) * gamma_ref[...]                          # (1, C)

    # ---- sigmoid gate + residual combine ----
    o_ref[0] = (x + y3 * gate).astype(o_ref.dtype)


# ------------------------------ forward pass ------------------------------- #

def _vmem_estimate_bytes(HW, C, rd, inner):
    f32, bf16 = 4, 2
    io = 2 * 2 * HW * C * f32                              # x + out blocks, double-buffered
    scratch = HW * inner * bf16                            # o_all accumulator
    vals = (3 * HW * inner * (f32 + bf16)                  # Q/KT/V (f32 result + bf16 copy)
            + 2 * HW * HW * f32                            # dots + p for one head
            + 12 * HW * rd * f32                           # conv1 / dwconv temporaries
            + 3 * HW * C * f32)                            # residual / y3 / out value
    weights = 2 * (3 * rd * inner * bf16 + inner * rd * bf16
                   + C * rd * (bf16 + f32) + rd * C * (bf16 + f32)
                   + 16 * rd * f32 + 4 * C * f32 + 64)
    return io + scratch + vals + weights


def illumination_aware_block(x_nchw, params, *, heads=4, dim_head=64):
    B, C, H, W = x_nchw.shape
    rd = params["conv1_w"].shape[1]
    HW = H * W
    inner = heads * dim_head
    scale = dim_head ** (-0.5)
    bf16 = jnp.bfloat16

    x = jnp.transpose(x_nchw, (0, 2, 3, 1)).reshape(B, HW, C)              # (B, HW, C)

    # TODO(synk): BatchNorm folded with eval-mode running stats (training-mode
    # batch statistics are not reproduced).
    bn_scale = params["bn_gamma"] / jnp.sqrt(params["bn_var"] + 1e-5)
    bn_shift = params["bn_beta"] + (params["dw_b"] - params["bn_mean"]) * bn_scale

    # Batched qkv weights: attention scale folded into Wq; K pre-transposed so the
    # in-kernel K^T projection is a plain (inner,rd)x(rd,HW) MXU matmul.  All matmul
    # weights pre-cast to bf16 on the host (halves weight DMA, no in-kernel packing).
    qkv_w = params["qkv_w"]                                                # (rd, 3*inner)
    wq_all = (qkv_w[:, :inner] * scale).astype(bf16)                       # (rd, inner)
    wkT_all = jnp.transpose(qkv_w[:, inner:2 * inner]).astype(bf16)        # (inner, rd)
    wv_all = qkv_w[:, 2 * inner:].astype(bf16)                             # (rd, inner)

    row = lambda a: a.reshape(1, -1)
    rep = lambda *s: pl.BlockSpec(s, lambda i, s=s: (0,) * len(s))         # replicated weights

    kern = functools.partial(_iab_fused_kernel, H=H, W=W, heads=heads, dim_head=dim_head)

    vmem_limit = int(min(max(2 * _vmem_estimate_bytes(HW, C, rd, inner),
                             32 * 1024 * 1024), 48 * 1024 * 1024))

    out = pl.pallas_call(
        kern,
        out_shape=jax.ShapeDtypeStruct((B, HW, C), x.dtype),
        grid=(B,),
        in_specs=[
            pl.BlockSpec((1, HW, C), lambda i: (i, 0, 0)),                 # x / residual
            rep(C, rd), rep(1, rd),                                        # conv1 w (bf16), b
            rep(3, 3, rd), rep(1, rd), rep(1, rd),                         # dw w, bn scale/shift
            rep(rd, inner), rep(inner, rd), rep(rd, inner),                # Wq (scaled), Wk^T, Wv
            rep(inner, rd), rep(1, rd),                                    # to_out w, b
            rep(rd, C), rep(1, C),                                         # conv3 w, b
            rep(C, rd), rep(1, rd), rep(rd, C), rep(1, C),                 # pool-branch MLP
            rep(1, 1),                                                     # gamma
        ],
        out_specs=pl.BlockSpec((1, HW, C), lambda i: (i, 0, 0)),
        scratch_shapes=[pltpu.VMEM((HW, inner), bf16)],                    # per-head output slab
        compiler_params=pltpu.CompilerParams(
            dimension_semantics=("parallel",),                             # megacore over batch
            vmem_limit_bytes=vmem_limit),
    )(x,
      params["conv1_w"].astype(bf16), row(params["conv1_b"]),
      params["dw_w"], row(bn_scale), row(bn_shift),
      wq_all, wkT_all, wv_all,
      params["to_out_w"].astype(bf16), row(params["to_out_b"]),
      params["conv3_w"].astype(bf16), row(params["conv3_b"]),
      params["pool_w1"], row(params["pool_b1"]),
      params["pool_w2"], row(params["pool_b2"]),
      params["gamma"].reshape(1, 1))

    return out.reshape(B, H, W, C).transpose(0, 3, 1, 2)                   # back to NCHW


# --------------------------- deterministic params --------------------------- #

def init_params(key, dim, reduction_ratio=4, heads=4, dim_head=64):
    rd = dim // reduction_ratio
    inner = heads * dim_head
    ks = jax.random.split(key, 16)

    def w(k, shape, s=0.05):
        return jax.random.normal(k, shape, jnp.float32) * s

    return dict(
        conv1_w=w(ks[0], (dim, rd)), conv1_b=w(ks[1], (rd,)),
        dw_w=w(ks[2], (3, 3, rd)), dw_b=w(ks[3], (rd,)),
        bn_gamma=jnp.ones((rd,), jnp.float32) + w(ks[4], (rd,), 0.02),
        bn_beta=w(ks[5], (rd,)),
        bn_mean=w(ks[6], (rd,), 0.02),
        bn_var=jnp.ones((rd,), jnp.float32),
        qkv_w=w(ks[7], (rd, 3 * inner)),                     # to_qkv has bias=False
        to_out_w=w(ks[8], (inner, rd)), to_out_b=w(ks[9], (rd,)),
        conv3_w=w(ks[10], (rd, dim)), conv3_b=w(ks[11], (dim,)),
        pool_w1=w(ks[12], (dim, rd)), pool_b1=w(ks[13], (rd,)),
        pool_w2=w(ks[14], (rd, dim)), pool_b2=w(ks[15], (dim,)),
        # nn.Parameter(torch.zeros(1)) in __init__; nonzero so the branch contributes.
        gamma=jnp.full((1,), 0.5, jnp.float32),
    )


if __name__ == "__main__":
    key = jax.random.PRNGKey(0)
    kx, kp = jax.random.split(key)

    B, dim, H, W = 2, 64, 16, 16          # dim divisible by reduction_ratio=4
    x = jax.random.normal(kx, (B, dim, H, W), jnp.float32)   # NCHW, like PyTorch
    params = init_params(kp, dim)

    fwd = jax.jit(illumination_aware_block)
    out = fwd(x, params)
    out = jax.block_until_ready(out)

    assert out.shape == (B, dim, H, W), out.shape
    assert jnp.all(jnp.isfinite(out))
    print("KERNEL_OK")
</pallas_src>

<mosaic_0001>
module attributes {stable_mosaic.version = 11 : i64} {
  func.func @_iab_fused_kernel(%arg0: i32, %arg1: memref<1x256x64xf32, #tpu.memory_space<vmem>>, %arg2: memref<64x16xbf16, #tpu.memory_space<vmem>>, %arg3: memref<1x16xf32, #tpu.memory_space<vmem>>, %arg4: memref<3x3x16xf32, #tpu.memory_space<vmem>>, %arg5: memref<1x16xf32, #tpu.memory_space<vmem>>, %arg6: memref<1x16xf32, #tpu.memory_space<vmem>>, %arg7: memref<16x256xbf16, #tpu.memory_space<vmem>>, %arg8: memref<256x16xbf16, #tpu.memory_space<vmem>>, %arg9: memref<16x256xbf16, #tpu.memory_space<vmem>>, %arg10: memref<256x16xbf16, #tpu.memory_space<vmem>>, %arg11: memref<1x16xf32, #tpu.memory_space<vmem>>, %arg12: memref<16x64xbf16, #tpu.memory_space<vmem>>, %arg13: memref<1x64xf32, #tpu.memory_space<vmem>>, %arg14: memref<64x16xf32, #tpu.memory_space<vmem>>, %arg15: memref<1x16xf32, #tpu.memory_space<vmem>>, %arg16: memref<16x64xf32, #tpu.memory_space<vmem>>, %arg17: memref<1x64xf32, #tpu.memory_space<vmem>>, %arg18: memref<1x1xf32, #tpu.memory_space<vmem>>, %arg19: memref<1x256x64xf32, #tpu.memory_space<vmem>>, %arg20: memref<256x256xbf16, #tpu.memory_space<vmem>>) attributes {dimension_semantics = [#tpu.dimension_semantics<parallel>], iteration_bounds = array<i64: 2>, scalar_prefetch = 0 : i64, scratch_operands = 1 : i64, tpu.core_type = #tpu.core_type<tc>, window_params = [{transform_indices = @transform_0, window_bounds = array<i64: 1, 256, 64>}, {pipeline_mode = #tpu.pipeline_mode<synchronous>, transform_indices = @transform_1, window_bounds = array<i64: 64, 16>}, {pipeline_mode = #tpu.pipeline_mode<synchronous>, transform_indices = @transform_2, window_bounds = array<i64: 1, 16>}, {pipeline_mode = #tpu.pipeline_mode<synchronous>, transform_indices = @transform_3, window_bounds = array<i64: 3, 3, 16>}, {pipeline_mode = #tpu.pipeline_mode<synchronous>, transform_indices = @transform_4, window_bounds = array<i64: 1, 16>}, {pipeline_mode = #tpu.pipeline_mode<synchronous>, transform_indices = @transform_5, window_bounds = array<i64: 1, 16>}, {pipeline_mode = #tpu.pipeline_mode<synchronous>, transform_indices = @transform_6, window_bounds = array<i64: 16, 256>}, {pipeline_mode = #tpu.pipeline_mode<synchronous>, transform_indices = @transform_7, window_bounds = array<i64: 256, 16>}, {pipeline_mode = #tpu.pipeline_mode<synchronous>, transform_indices = @transform_8, window_bounds = array<i64: 16, 256>}, {pipeline_mode = #tpu.pipeline_mode<synchronous>, transform_indices = @transform_9, window_bounds = array<i64: 256, 16>}, {pipeline_mode = #tpu.pipeline_mode<synchronous>, transform_indices = @transform_10, window_bounds = array<i64: 1, 16>}, {pipeline_mode = #tpu.pipeline_mode<synchronous>, transform_indices = @transform_11, window_bounds = array<i64: 16, 64>}, {pipeline_mode = #tpu.pipeline_mode<synchronous>, transform_indices = @transform_12, window_bounds = array<i64: 1, 64>}, {pipeline_mode = #tpu.pipeline_mode<synchronous>, transform_indices = @transform_13, window_bounds = array<i64: 64, 16>}, {pipeline_mode = #tpu.pipeline_mode<synchronous>, transform_indices = @transform_14, window_bounds = array<i64: 1, 16>}, {pipeline_mode = #tpu.pipeline_mode<synchronous>, transform_indices = @transform_15, window_bounds = array<i64: 16, 64>}, {pipeline_mode = #tpu.pipeline_mode<synchronous>, transform_indices = @transform_16, window_bounds = array<i64: 1, 64>}, {pipeline_mode = #tpu.pipeline_mode<synchronous>, transform_indices = @transform_17, window_bounds = array<i64: 1, 1>}, {transform_indices = @transform_18, window_bounds = array<i64: 1, 256, 64>}]} {
    %c0 = arith.constant 0 : index
    %c0_0 = arith.constant 0 : index
    %c0_1 = arith.constant 0 : index
    %0 = vector.load %arg1[%c0, %c0_0, %c0_1] : memref<1x256x64xf32, #tpu.memory_space<vmem>>, vector<1x256x64xf32>
    %1 = vector.shape_cast %0 : vector<1x256x64xf32> to vector<256x64xf32>
    %2 = arith.truncf %1 : vector<256x64xf32> to vector<256x64xbf16>
    %c0_2 = arith.constant 0 : index
    %c0_3 = arith.constant 0 : index
    %3 = vector.load %arg2[%c0_2, %c0_3] : memref<64x16xbf16, #tpu.memory_space<vmem>>, vector<64x16xbf16>
    %cst = arith.constant dense<0.000000e+00> : vector<256x16xf32>
    %4 = tpu.matmul %2, %3, %cst {dimension_numbers = #tpu.dot_dimension_numbers<[1], [0], [0], [1], [0, 0, 1, 1], [], []>} : vector<256x64xbf16>, vector<64x16xbf16>, vector<256x16xf32> -> vector<256x16xf32>
    %c0_4 = arith.constant 0 : index
    %c0_5 = arith.constant 0 : index
    %5 = vector.load %arg3[%c0_4, %c0_5] : memref<1x16xf32, #tpu.memory_space<vmem>>, vector<1x16xf32>
    %6 = vector.broadcast %5 : vector<1x16xf32> to vector<256x16xf32>
    %7 = arith.addf %4, %6 : vector<256x16xf32>
    %c0_6 = arith.constant 0 : index
    %c0_7 = arith.constant 0 : index
    %c0_8 = arith.constant 0 : index
    %8 = vector.load %arg4[%c0_6, %c0_7, %c0_8] : memref<3x3x16xf32, #tpu.memory_space<vmem>>, vector<3x3x16xf32>
    %9 = tpu.iota {dimensions = array<i32: 0>} : vector<256x1xi32>
    %c16_i32 = arith.constant 16 : i32
    %c0_i32 = arith.constant 0 : i32
    %10 = arith.cmpi eq, %c16_i32, %c0_i32 : i32
    %c1_i32 = arith.constant 1 : i32
    %11 = arith.select %10, %c1_i32, %c16_i32 : i32
    %12 = vector.broadcast %11 : i32 to vector<256x1xi32>
    %13 = arith.remsi %9, %12 : vector<256x1xi32>
    %c0_i32_9 = arith.constant 0 : i32
    %14 = vector.broadcast %c0_i32_9 : i32 to vector<256x1xi32>
    %15 = arith.cmpi ne, %13, %14 : vector<256x1xi32>
    %c0_i32_10 = arith.constant 0 : i32
    %16 = vector.broadcast %c0_i32_10 : i32 to vector<256x1xi32>
    %17 = arith.cmpi slt, %13, %16 : vector<256x1xi32>
    %c0_i32_11 = arith.constant 0 : i32
    %18 = arith.cmpi slt, %11, %c0_i32_11 : i32
    %19 = vector.broadcast %18 : i1 to vector<256x1xi1>
    %20 = vector.broadcast %19 : vector<256x1xi1> to vector<256x1xi1>
    %21 = arith.xori %17, %20 : vector<256x1xi1>
    %22 = arith.andi %21, %15 : vector<256x1xi1>
    %23 = vector.broadcast %11 : i32 to vector<256x1xi32>
    %24 = arith.addi %13, %23 : vector<256x1xi32>
    %25 = arith.select %22, %24, %13 : vector<256x1xi1>, vector<256x1xi32>
    %c1_i32_12 = arith.constant 1 : i32
    %26 = vector.broadcast %c1_i32_12 : i32 to vector<256x1xi32>
    %27 = arith.cmpi sge, %25, %26 : vector<256x1xi32>
    %c14_i32 = arith.constant 14 : i32
    %28 = vector.broadcast %c14_i32 : i32 to vector<256x1xi32>
    %29 = arith.cmpi sle, %25, %28 : vector<256x1xi32>
    %cst_13 = arith.constant 0.000000e+00 : f32
    %30 = vector.broadcast %cst_13 : f32 to vector<256x16xf32>
    %cst_14 = arith.constant 0.000000e+00 : f32
    %31 = vector.broadcast %cst_14 : f32 to vector<17x16xf32>
    %32 = vector.extract_strided_slice %7 {offsets = [0, 0], sizes = [239, 16], strides = [1, 1]} : vector<256x16xf32> to vector<239x16xf32>
    %33 = tpu.concatenate %31, %32 in 0 : vector<17x16xf32>, vector<239x16xf32> -> vector<256x16xf32>
    %cst_15 = arith.constant 0.000000e+00 : f32
    %34 = vector.shape_cast %27 : vector<256x1xi1> to vector<256x1xi1>
    %35 = vector.broadcast %34 : vector<256x1xi1> to vector<256x16xi1>
    %36 = vector.broadcast %cst_15 : f32 to vector<256x16xf32>
    %37 = arith.select %35, %33, %36 : vector<256x16xi1>, vector<256x16xf32>
    %38 = vector.extract_strided_slice %8 {offsets = [0, 0, 0], sizes = [1, 1, 16], strides = [1, 1, 1]} : vector<3x3x16xf32> to vector<1x1x16xf32>
    %39 = vector.shape_cast %38 : vector<1x1x16xf32> to vector<1x16xf32>
    %40 = vector.broadcast %39 : vector<1x16xf32> to vector<256x16xf32>
    %41 = arith.mulf %37, %40 : vector<256x16xf32>
    %42 = arith.addf %30, %41 : vector<256x16xf32>
    %cst_16 = arith.constant 0.000000e+00 : f32
    %43 = vector.broadcast %cst_16 : f32 to vector<16x16xf32>
    %44 = vector.extract_strided_slice %7 {offsets = [0, 0], sizes = [240, 16], strides = [1, 1]} : vector<256x16xf32> to vector<240x16xf32>
    %45 = tpu.concatenate %43, %44 in 0 : vector<16x16xf32>, vector<240x16xf32> -> vector<256x16xf32>
    %46 = vector.extract_strided_slice %8 {offsets = [0, 1, 0], sizes = [1, 1, 16], strides = [1, 1, 1]} : vector<3x3x16xf32> to vector<1x1x16xf32>
    %47 = vector.shape_cast %46 : vector<1x1x16xf32> to vector<1x16xf32>
    %48 = vector.broadcast %47 : vector<1x16xf32> to vector<256x16xf32>
    %49 = arith.mulf %45, %48 : vector<256x16xf32>
    %50 = arith.addf %42, %49 : vector<256x16xf32>
    %cst_17 = arith.constant 0.000000e+00 : f32
    %51 = vector.broadcast %cst_17 : f32 to vector<15x16xf32>
    %52 = vector.extract_strided_slice %7 {offsets = [0, 0], sizes = [241, 16], strides = [1, 1]} : vector<256x16xf32> to vector<241x16xf32>
    %53 = tpu.concatenate %51, %52 in 0 : vector<15x16xf32>, vector<241x16xf32> -> vector<256x16xf32>
    %cst_18 = arith.constant 0.000000e+00 : f32
    %54 = vector.shape_cast %29 : vector<256x1xi1> to vector<256x1xi1>
    %55 = vector.broadcast %54 : vector<256x1xi1> to vector<256x16xi1>
    %56 = vector.broadcast %cst_18 : f32 to vector<256x16xf32>
    %57 = arith.select %55, %53, %56 : vector<256x16xi1>, vector<256x16xf32>
    %58 = vector.extract_strided_slice %8 {offsets = [0, 2, 0], sizes = [1, 1, 16], strides = [1, 1, 1]} : vector<3x3x16xf32> to vector<1x1x16xf32>
    %59 = vector.shape_cast %58 : vector<1x1x16xf32> to vector<1x16xf32>
    %60 = vector.broadcast %59 : vector<1x16xf32> to vector<256x16xf32>
    %61 = arith.mulf %57, %60 : vector<256x16xf32>
    %62 = arith.addf %50, %61 : vector<256x16xf32>
    %cst_19 = arith.constant 0.000000e+00 : f32
    %63 = vector.broadcast %cst_19 : f32 to vector<1x16xf32>
    %64 = vector.extract_strided_slice %7 {offsets = [0, 0], sizes = [255, 16], strides = [1, 1]} : vector<256x16xf32> to vector<255x16xf32>
    %65 = tpu.concatenate %63, %64 in 0 : vector<1x16xf32>, vector<255x16xf32> -> vector<256x16xf32>
    %cst_20 = arith.constant 0.000000e+00 : f32
    %66 = vector.shape_cast %27 : vector<256x1xi1> to vector<256x1xi1>
    %67 = vector.broadcast %66 : vector<256x1xi1> to vector<256x16xi1>
    %68 = vector.broadcast %cst_20 : f32 to vector<256x16xf32>
    %69 = arith.select %67, %65, %68 : vector<256x16xi1>, vector<256x16xf32>
    %70 = vector.extract_strided_slice %8 {offsets = [1, 0, 0], sizes = [1, 1, 16], strides = [1, 1, 1]} : vector<3x3x16xf32> to vector<1x1x16xf32>
    %71 = vector.shape_cast %70 : vector<1x1x16xf32> to vector<1x16xf32>
    %72 = vector.broadcast %71 : vector<1x16xf32> to vector<256x16xf32>
    %73 = arith.mulf %69, %72 : vector<256x16xf32>
    %74 = arith.addf %62, %73 : vector<256x16xf32>
    %75 = vector.extract_strided_slice %8 {offsets = [1, 1, 0], sizes = [1, 1, 16], strides = [1, 1, 1]} : vector<3x3x16xf32> to vector<1x1x16xf32>
    %76 = vector.shape_cast %75 : vector<1x1x16xf32> to vector<1x16xf32>
    %77 = vector.broadcast %76 : vector<1x16xf32> to vector<256x16xf32>
    %78 = arith.mulf %7, %77 : vector<256x16xf32>
    %79 = arith.addf %74, %78 : vector<256x16xf32>
    %cst_21 = arith.constant 0.000000e+00 : f32
    %80 = vector.broadcast %cst_21 : f32 to vector<1x16xf32>
    %81 = vector.extract_strided_slice %7 {offsets = [1, 0], sizes = [255, 16], strides = [1, 1]} : vector<256x16xf32> to vector<255x16xf32>
    %82 = tpu.concatenate %81, %80 in 0 : vector<255x16xf32>, vector<1x16xf32> -> vector<256x16xf32>
    %cst_22 = arith.constant 0.000000e+00 : f32
    %83 = vector.shape_cast %29 : vector<256x1xi1> to vector<256x1xi1>
    %84 = vector.broadcast %83 : vector<256x1xi1> to vector<256x16xi1>
    %85 = vector.broadcast %cst_22 : f32 to vector<256x16xf32>
    %86 = arith.select %84, %82, %85 : vector<256x16xi1>, vector<256x16xf32>
    %87 = vector.extract_strided_slice %8 {offsets = [1, 2, 0], sizes = [1, 1, 16], strides = [1, 1, 1]} : vector<3x3x16xf32> to vector<1x1x16xf32>
    %88 = vector.shape_cast %87 : vector<1x1x16xf32> to vector<1x16xf32>
    %89 = vector.broadcast %88 : vector<1x16xf32> to vector<256x16xf32>
    %90 = arith.mulf %86, %89 : vector<256x16xf32>
    %91 = arith.addf %79, %90 : vector<256x16xf32>
    %cst_23 = arith.constant 0.000000e+00 : f32
    %92 = vector.broadcast %cst_23 : f32 to vector<15x16xf32>
    %93 = vector.extract_strided_slice %7 {offsets = [15, 0], sizes = [241, 16], strides = [1, 1]} : vector<256x16xf32> to vector<241x16xf32>
    %94 = tpu.concatenate %93, %92 in 0 : vector<241x16xf32>, vector<15x16xf32> -> vector<256x16xf32>
    %cst_24 = arith.constant 0.000000e+00 : f32
    %95 = vector.shape_cast %27 : vector<256x1xi1> to vector<256x1xi1>
    %96 = vector.broadcast %95 : vector<256x1xi1> to vector<256x16xi1>
    %97 = vector.broadcast %cst_24 : f32 to vector<256x16xf32>
    %98 = arith.select %96, %94, %97 : vector<256x16xi1>, vector<256x16xf32>
    %99 = vector.extract_strided_slice %8 {offsets = [2, 0, 0], sizes = [1, 1, 16], strides = [1, 1, 1]} : vector<3x3x16xf32> to vector<1x1x16xf32>
    %100 = vector.shape_cast %99 : vector<1x1x16xf32> to vector<1x16xf32>
    %101 = vector.broadcast %100 : vector<1x16xf32> to vector<256x16xf32>
    %102 = arith.mulf %98, %101 : vector<256x16xf32>
    %103 = arith.addf %91, %102 : vector<256x16xf32>
    %cst_25 = arith.constant 0.000000e+00 : f32
    %104 = vector.broadcast %cst_25 : f32 to vector<16x16xf32>
    %105 = vector.extract_strided_slice %7 {offsets = [16, 0], sizes = [240, 16], strides = [1, 1]} : vector<256x16xf32> to vector<240x16xf32>
    %106 = tpu.concatenate %105, %104 in 0 : vector<240x16xf32>, vector<16x16xf32> -> vector<256x16xf32>
    %107 = vector.extract_strided_slice %8 {offsets = [2, 1, 0], sizes = [1, 1, 16], strides = [1, 1, 1]} : vector<3x3x16xf32> to vector<1x1x16xf32>
    %108 = vector.shape_cast %107 : vector<1x1x16xf32> to vector<1x16xf32>
    %109 = vector.broadcast %108 : vector<1x16xf32> to vector<256x16xf32>
    %110 = arith.mulf %106, %109 : vector<256x16xf32>
    %111 = arith.addf %103, %110 : vector<256x16xf32>
    %cst_26 = arith.constant 0.000000e+00 : f32
    %112 = vector.broadcast %cst_26 : f32 to vector<17x16xf32>
    %113 = vector.extract_strided_slice %7 {offsets = [17, 0], sizes = [239, 16], strides = [1, 1]} : vector<256x16xf32> to vector<239x16xf32>
    %114 = tpu.concatenate %113, %112 in 0 : vector<239x16xf32>, vector<17x16xf32> -> vector<256x16xf32>
    %cst_27 = arith.constant 0.000000e+00 : f32
    %115 = vector.shape_cast %29 : vector<256x1xi1> to vector<256x1xi1>
    %116 = vector.broadcast %115 : vector<256x1xi1> to vector<256x16xi1>
    %117 = vector.broadcast %cst_27 : f32 to vector<256x16xf32>
    %118 = arith.select %116, %114, %117 : vector<256x16xi1>, vector<256x16xf32>
    %119 = vector.extract_strided_slice %8 {offsets = [2, 2, 0], sizes = [1, 1, 16], strides = [1, 1, 1]} : vector<3x3x16xf32> to vector<1x1x16xf32>
    %120 = vector.shape_cast %119 : vector<1x1x16xf32> to vector<1x16xf32>
    %121 = vector.broadcast %120 : vector<1x16xf32> to vector<256x16xf32>
    %122 = arith.mulf %118, %121 : vector<256x16xf32>
    %123 = arith.addf %111, %122 : vector<256x16xf32>
    %c0_28 = arith.constant 0 : index
    %c0_29 = arith.constant 0 : index
    %124 = vector.load %arg5[%c0_28, %c0_29] : memref<1x16xf32, #tpu.memory_space<vmem>>, vector<1x16xf32>
    %125 = vector.broadcast %124 : vector<1x16xf32> to vector<256x16xf32>
    %126 = arith.mulf %123, %125 : vector<256x16xf32>
    %c0_30 = arith.constant 0 : index
    %c0_31 = arith.constant 0 : index
    %127 = vector.load %arg6[%c0_30, %c0_31] : memref<1x16xf32, #tpu.memory_space<vmem>>, vector<1x16xf32>
    %128 = vector.broadcast %127 : vector<1x16xf32> to vector<256x16xf32>
    %129 = arith.addf %126, %128 : vector<256x16xf32>
    %cst_32 = arith.constant 5.000000e-01 : f32
    %130 = vector.broadcast %cst_32 : f32 to vector<256x16xf32>
    %131 = arith.mulf %130, %129 : vector<256x16xf32>
    %132 = arith.mulf %129, %129 : vector<256x16xf32>
    %133 = arith.mulf %132, %129 : vector<256x16xf32>
    %cst_33 = arith.constant 4.471500e-02 : f32
    %134 = vector.broadcast %cst_33 : f32 to vector<256x16xf32>
    %135 = arith.mulf %134, %133 : vector<256x16xf32>
    %136 = arith.addf %129, %135 : vector<256x16xf32>
    %cst_34 = arith.constant 0.797884583 : f32
    %137 = vector.broadcast %cst_34 : f32 to vector<256x16xf32>
    %138 = arith.mulf %137, %136 : vector<256x16xf32>
    %139 = math.tanh %138 : vector<256x16xf32>
    %cst_35 = arith.constant 1.000000e+00 : f32
    %140 = vector.broadcast %cst_35 : f32 to vector<256x16xf32>
    %141 = arith.addf %140, %139 : vector<256x16xf32>
    %142 = arith.mulf %131, %141 : vector<256x16xf32>
    %143 = arith.truncf %142 : vector<256x16xf32> to vector<256x16xbf16>
    %144 = tpu.transpose %142, [1, 0] : vector<256x16xf32> -> vector<16x256xf32>
    %145 = arith.truncf %144 : vector<16x256xf32> to vector<16x256xbf16>
    %c0_36 = arith.constant 0 : index
    %c0_37 = arith.constant 0 : index
    %146 = vector.load %arg7[%c0_36, %c0_37] : memref<16x256xbf16, #tpu.memory_space<vmem>>, vector<16x256xbf16>
    %cst_38 = arith.constant dense<0.000000e+00> : vector<256x256xf32>
    %147 = tpu.matmul %143, %146, %cst_38 {dimension_numbers = #tpu.dot_dimension_numbers<[1], [0], [0], [1], [0, 0, 1, 1], [], []>} : vector<256x16xbf16>, vector<16x256xbf16>, vector<256x256xf32> -> vector<256x256xf32>
    %148 = arith.truncf %147 : vector<256x256xf32> to vector<256x256xbf16>
    %c0_39 = arith.constant 0 : index
    %c0_40 = arith.constant 0 : index
    %149 = vector.load %arg8[%c0_39, %c0_40] : memref<256x16xbf16, #tpu.memory_space<vmem>>, vector<256x16xbf16>
    %cst_41 = arith.constant dense<0.000000e+00> : vector<256x256xf32>
    %150 = tpu.matmul %149, %145, %cst_41 {dimension_numbers = #tpu.dot_dimension_numbers<[1], [0], [0], [1], [0, 0, 1, 1], [], []>} : vector<256x16xbf16>, vector<16x256xbf16>, vector<256x256xf32> -> vector<256x256xf32>
    %151 = arith.truncf %150 : vector<256x256xf32> to vector<256x256xbf16>
    %c0_42 = arith.constant 0 : index
    %c0_43 = arith.constant 0 : index
    %152 = vector.load %arg9[%c0_42, %c0_43] : memref<16x256xbf16, #tpu.memory_space<vmem>>, vector<16x256xbf16>
    %cst_44 = arith.constant dense<0.000000e+00> : vector<256x256xf32>
    %153 = tpu.matmul %143, %152, %cst_44 {dimension_numbers = #tpu.dot_dimension_numbers<[1], [0], [0], [1], [0, 0, 1, 1], [], []>} : vector<256x16xbf16>, vector<16x256xbf16>, vector<256x256xf32> -> vector<256x256xf32>
    %154 = arith.truncf %153 : vector<256x256xf32> to vector<256x256xbf16>
    %155 = vector.extract_strided_slice %148 {offsets = [0, 0], sizes = [256, 64], strides = [1, 1]} : vector<256x256xbf16> to vector<256x64xbf16>
    %156 = vector.extract_strided_slice %151 {offsets = [0, 0], sizes = [64, 256], strides = [1, 1]} : vector<256x256xbf16> to vector<64x256xbf16>
    %cst_45 = arith.constant dense<0.000000e+00> : vector<256x256xf32>
    %157 = tpu.matmul %155, %156, %cst_45 {dimension_numbers = #tpu.dot_dimension_numbers<[1], [0], [0], [1], [0, 0, 1, 1], [], []>} : vector<256x64xbf16>, vector<64x256xbf16>, vector<256x256xf32> -> vector<256x256xf32>
    %cst_46 = arith.constant dense<0xFF800000> : vector<256xf32>
    %158 = vector.multi_reduction <maximumf>, %157, %cst_46 [1] : vector<256x256xf32> to vector<256xf32>
    %159 = vector.shape_cast %158 : vector<256xf32> to vector<256x1xf32>
    %160 = vector.broadcast %159 : vector<256x1xf32> to vector<256x256xf32>
    %161 = arith.subf %157, %160 : vector<256x256xf32>
    %162 = math.exp %161 : vector<256x256xf32>
    %cst_47 = arith.constant dense<0.000000e+00> : vector<256xf32>
    %163 = vector.multi_reduction <add>, %162, %cst_47 [1] : vector<256x256xf32> to vector<256xf32>
    %164 = vector.shape_cast %163 : vector<256xf32> to vector<256x1xf32>
    %165 = arith.truncf %162 : vector<256x256xf32> to vector<256x256xbf16>
    %166 = vector.extract_strided_slice %154 {offsets = [0, 0], sizes = [256, 64], strides = [1, 1]} : vector<256x256xbf16> to vector<256x64xbf16>
    %cst_48 = arith.constant dense<0.000000e+00> : vector<256x64xf32>
    %167 = tpu.matmul %165, %166, %cst_48 {dimension_numbers = #tpu.dot_dimension_numbers<[1], [0], [0], [1], [0, 0, 1, 1], [], []>} : vector<256x256xbf16>, vector<256x64xbf16>, vector<256x64xf32> -> vector<256x64xf32>
    %168 = tpu.reciprocal %164 {approx = true} : vector<256x1xf32> -> vector<256x1xf32>
    %169 = vector.broadcast %168 : vector<256x1xf32> to vector<256x64xf32>
    %170 = arith.mulf %167, %169 : vector<256x64xf32>
    %171 = arith.truncf %170 : vector<256x64xf32> to vector<256x64xbf16>
    %c0_49 = arith.constant 0 : index
    %c0_50 = arith.constant 0 : index
    %172 = vector.load %arg20[%c0_49, %c0_50] : memref<256x256xbf16, #tpu.memory_space<vmem>>, vector<256x64xbf16>
    tpu.vector_store %arg20[%c0_49, %c0_50], %171 {strides = array<i32>} : memref<256x256xbf16, #tpu.memory_space<vmem>>, vector<256x64xbf16>,
    %173 = vector.extract_strided_slice %148 {offsets = [0, 64], sizes = [256, 64], strides = [1, 1]} : vector<256x256xbf16> to vector<256x64xbf16>
    %174 = vector.extract_strided_slice %151 {offsets = [64, 0], sizes = [64, 256], strides = [1, 1]} : vector<256x256xbf16> to vector<64x256xbf16>
    %cst_51 = arith.constant dense<0.000000e+00> : vector<256x256xf32>
    %175 = tpu.matmul %173, %174, %cst_51 {dimension_numbers = #tpu.dot_dimension_numbers<[1], [0], [0], [1], [0, 0, 1, 1], [], []>} : vector<256x64xbf16>, vector<64x256xbf16>, vector<256x256xf32> -> vector<256x256xf32>
    %cst_52 = arith.constant dense<0xFF800000> : vector<256xf32>
    %176 = vector.multi_reduction <maximumf>, %175, %cst_52 [1] : vector<256x256xf32> to vector<256xf32>
    %177 = vector.shape_cast %176 : vector<256xf32> to vector<256x1xf32>
    %178 = vector.broadcast %177 : vector<256x1xf32> to vector<256x256xf32>
    %179 = arith.subf %175, %178 : vector<256x256xf32>
    %180 = math.exp %179 : vector<256x256xf32>
    %cst_53 = arith.constant dense<0.000000e+00> : vector<256xf32>
    %181 = vector.multi_reduction <add>, %180, %cst_53 [1] : vector<256x256xf32> to vector<256xf32>
    %182 = vector.shape_cast %181 : vector<256xf32> to vector<256x1xf32>
    %183 = arith.truncf %180 : vector<256x256xf32> to vector<256x256xbf16>
    %184 = vector.extract_strided_slice %154 {offsets = [0, 64], sizes = [256, 64], strides = [1, 1]} : vector<256x256xbf16> to vector<256x64xbf16>
    %cst_54 = arith.constant dense<0.000000e+00> : vector<256x64xf32>
    %185 = tpu.matmul %183, %184, %cst_54 {dimension_numbers = #tpu.dot_dimension_numbers<[1], [0], [0], [1], [0, 0, 1, 1], [], []>} : vector<256x256xbf16>, vector<256x64xbf16>, vector<256x64xf32> -> vector<256x64xf32>
    %186 = tpu.reciprocal %182 {approx = true} : vector<256x1xf32> -> vector<256x1xf32>
    %187 = vector.broadcast %186 : vector<256x1xf32> to vector<256x64xf32>
    %188 = arith.mulf %185, %187 : vector<256x64xf32>
    %189 = arith.truncf %188 : vector<256x64xf32> to vector<256x64xbf16>
    %c0_55 = arith.constant 0 : index
    %c64 = arith.constant 64 : index
    %190 = vector.load %arg20[%c0_55, %c64] : memref<256x256xbf16, #tpu.memory_space<vmem>>, vector<256x64xbf16>
    tpu.vector_store %arg20[%c0_55, %c64], %189 {strides = array<i32>} : memref<256x256xbf16, #tpu.memory_space<vmem>>, vector<256x64xbf16>,
    %191 = vector.extract_strided_slice %148 {offsets = [0, 128], sizes = [256, 64], strides = [1, 1]} : vector<256x256xbf16> to vector<256x64xbf16>
    %192 = vector.extract_strided_slice %151 {offsets = [128, 0], sizes = [64, 256], strides = [1, 1]} : vector<256x256xbf16> to vector<64x256xbf16>
    %cst_56 = arith.constant dense<0.000000e+00> : vector<256x256xf32>
    %193 = tpu.matmul %191, %192, %cst_56 {dimension_numbers = #tpu.dot_dimension_numbers<[1], [0], [0], [1], [0, 0, 1, 1], [], []>} : vector<256x64xbf16>, vector<64x256xbf16>, vector<256x256xf32> -> vector<256x256xf32>
    %cst_57 = arith.constant dense<0xFF800000> : vector<256xf32>
    %194 = vector.multi_reduction <maximumf>, %193, %cst_57 [1] : vector<256x256xf32> to vector<256xf32>
    %195 = vector.shape_cast %194 : vector<256xf32> to vector<256x1xf32>
    %196 = vector.broadcast %195 : vector<256x1xf32> to vector<256x256xf32>
    %197 = arith.subf %193, %196 : vector<256x256xf32>
    %198 = math.exp %197 : vector<256x256xf32>
    %cst_58 = arith.constant dense<0.000000e+00> : vector<256xf32>
    %199 = vector.multi_reduction <add>, %198, %cst_58 [1] : vector<256x256xf32> to vector<256xf32>
    %200 = vector.shape_cast %199 : vector<256xf32> to vector<256x1xf32>
    %201 = arith.truncf %198 : vector<256x256xf32> to vector<256x256xbf16>
    %202 = vector.extract_strided_slice %154 {offsets = [0, 128], sizes = [256, 64], strides = [1, 1]} : vector<256x256xbf16> to vector<256x64xbf16>
    %cst_59 = arith.constant dense<0.000000e+00> : vector<256x64xf32>
    %203 = tpu.matmul %201, %202, %cst_59 {dimension_numbers = #tpu.dot_dimension_numbers<[1], [0], [0], [1], [0, 0, 1, 1], [], []>} : vector<256x256xbf16>, vector<256x64xbf16>, vector<256x64xf32> -> vector<256x64xf32>
    %204 = tpu.reciprocal %200 {approx = true} : vector<256x1xf32> -> vector<256x1xf32>
    %205 = vector.broadcast %204 : vector<256x1xf32> to vector<256x64xf32>
    %206 = arith.mulf %203, %205 : vector<256x64xf32>
    %207 = arith.truncf %206 : vector<256x64xf32> to vector<256x64xbf16>
    %c0_60 = arith.constant 0 : index
    %c128 = arith.constant 128 : index
    %208 = vector.load %arg20[%c0_60, %c128] : memref<256x256xbf16, #tpu.memory_space<vmem>>, vector<256x64xbf16>
    tpu.vector_store %arg20[%c0_60, %c128], %207 {strides = array<i32>} : memref<256x256xbf16, #tpu.memory_space<vmem>>, vector<256x64xbf16>,
    %209 = vector.extract_strided_slice %148 {offsets = [0, 192], sizes = [256, 64], strides = [1, 1]} : vector<256x256xbf16> to vector<256x64xbf16>
    %210 = vector.extract_strided_slice %151 {offsets = [192, 0], sizes = [64, 256], strides = [1, 1]} : vector<256x256xbf16> to vector<64x256xbf16>
    %cst_61 = arith.constant dense<0.000000e+00> : vector<256x256xf32>
    %211 = tpu.matmul %209, %210, %cst_61 {dimension_numbers = #tpu.dot_dimension_numbers<[1], [0], [0], [1], [0, 0, 1, 1], [], []>} : vector<256x64xbf16>, vector<64x256xbf16>, vector<256x256xf32> -> vector<256x256xf32>
    %cst_62 = arith.constant dense<0xFF800000> : vector<256xf32>
    %212 = vector.multi_reduction <maximumf>, %211, %cst_62 [1] : vector<256x256xf32> to vector<256xf32>
    %213 = vector.shape_cast %212 : vector<256xf32> to vector<256x1xf32>
    %214 = vector.broadcast %213 : vector<256x1xf32> to vector<256x256xf32>
    %215 = arith.subf %211, %214 : vector<256x256xf32>
    %216 = math.exp %215 : vector<256x256xf32>
    %cst_63 = arith.constant dense<0.000000e+00> : vector<256xf32>
    %217 = vector.multi_reduction <add>, %216, %cst_63 [1] : vector<256x256xf32> to vector<256xf32>
    %218 = vector.shape_cast %217 : vector<256xf32> to vector<256x1xf32>
    %219 = arith.truncf %216 : vector<256x256xf32> to vector<256x256xbf16>
    %220 = vector.extract_strided_slice %154 {offsets = [0, 192], sizes = [256, 64], strides = [1, 1]} : vector<256x256xbf16> to vector<256x64xbf16>
    %cst_64 = arith.constant dense<0.000000e+00> : vector<256x64xf32>
    %221 = tpu.matmul %219, %220, %cst_64 {dimension_numbers = #tpu.dot_dimension_numbers<[1], [0], [0], [1], [0, 0, 1, 1], [], []>} : vector<256x256xbf16>, vector<256x64xbf16>, vector<256x64xf32> -> vector<256x64xf32>
    %222 = tpu.reciprocal %218 {approx = true} : vector<256x1xf32> -> vector<256x1xf32>
    %223 = vector.broadcast %222 : vector<256x1xf32> to vector<256x64xf32>
    %224 = arith.mulf %221, %223 : vector<256x64xf32>
    %225 = arith.truncf %224 : vector<256x64xf32> to vector<256x64xbf16>
    %c0_65 = arith.constant 0 : index
    %c192 = arith.constant 192 : index
    %226 = vector.load %arg20[%c0_65, %c192] : memref<256x256xbf16, #tpu.memory_space<vmem>>, vector<256x64xbf16>
    tpu.vector_store %arg20[%c0_65, %c192], %225 {strides = array<i32>} : memref<256x256xbf16, #tpu.memory_space<vmem>>, vector<256x64xbf16>,
    %c0_66 = arith.constant 0 : index
    %c0_67 = arith.constant 0 : index
    %227 = vector.load %arg20[%c0_66, %c0_67] : memref<256x256xbf16, #tpu.memory_space<vmem>>, vector<256x256xbf16>
    %c0_68 = arith.constant 0 : index
    %c0_69 = arith.constant 0 : index
    %228 = vector.load %arg10[%c0_68, %c0_69] : memref<256x16xbf16, #tpu.memory_space<vmem>>, vector<256x16xbf16>
    %cst_70 = arith.constant dense<0.000000e+00> : vector<256x16xf32>
    %229 = tpu.matmul %227, %228, %cst_70 {dimension_numbers = #tpu.dot_dimension_numbers<[1], [0], [0], [1], [0, 0, 1, 1], [], []>} : vector<256x256xbf16>, vector<256x16xbf16>, vector<256x16xf32> -> vector<256x16xf32>
    %c0_71 = arith.constant 0 : index
    %c0_72 = arith.constant 0 : index
    %230 = vector.load %arg11[%c0_71, %c0_72] : memref<1x16xf32, #tpu.memory_space<vmem>>, vector<1x16xf32>
    %231 = vector.broadcast %230 : vector<1x16xf32> to vector<256x16xf32>
    %232 = arith.addf %229, %231 : vector<256x16xf32>
    %233 = arith.truncf %232 : vector<256x16xf32> to vector<256x16xbf16>
    %c0_73 = arith.constant 0 : index
    %c0_74 = arith.constant 0 : index
    %234 = vector.load %arg12[%c0_73, %c0_74] : memref<16x64xbf16, #tpu.memory_space<vmem>>, vector<16x64xbf16>
    %cst_75 = arith.constant dense<0.000000e+00> : vector<256x64xf32>
    %235 = tpu.matmul %233, %234, %cst_75 {dimension_numbers = #tpu.dot_dimension_numbers<[1], [0], [0], [1], [0, 0, 1, 1], [], []>} : vector<256x16xbf16>, vector<16x64xbf16>, vector<256x64xf32> -> vector<256x64xf32>
    %c0_76 = arith.constant 0 : index
    %c0_77 = arith.constant 0 : index
    %236 = vector.load %arg13[%c0_76, %c0_77] : memref<1x64xf32, #tpu.memory_space<vmem>>, vector<1x64xf32>
    %237 = vector.broadcast %236 : vector<1x64xf32> to vector<256x64xf32>
    %238 = arith.addf %235, %237 : vector<256x64xf32>
    %cst_78 = arith.constant dense<0.000000e+00> : vector<64xf32>
    %239 = vector.multi_reduction <add>, %1, %cst_78 [0] : vector<256x64xf32> to vector<64xf32>
    %240 = vector.shape_cast %239 : vector<64xf32> to vector<1x64xf32>
    %cst_79 = arith.constant 2.560000e+02 : f32
    %241 = vector.broadcast %cst_79 : f32 to vector<1x64xf32>
    %242 = arith.divf %240, %241 : vector<1x64xf32>
    %c0_80 = arith.constant 0 : index
    %c0_81 = arith.constant 0 : index
    %243 = vector.load %arg14[%c0_80, %c0_81] : memref<64x16xf32, #tpu.memory_space<vmem>>, vector<64x16xf32>
    %cst_82 = arith.constant dense<0.000000e+00> : vector<1x16xf32>
    %244 = tpu.matmul %242, %243, %cst_82 {dimension_numbers = #tpu.dot_dimension_numbers<[1], [0], [0], [1], [0, 0, 1, 1], [], []>} : vector<1x64xf32>, vector<64x16xf32>, vector<1x16xf32> -> vector<1x16xf32>
    %c0_83 = arith.constant 0 : index
    %c0_84 = arith.constant 0 : index
    %245 = vector.load %arg15[%c0_83, %c0_84] : memref<1x16xf32, #tpu.memory_space<vmem>>, vector<1x16xf32>
    %246 = arith.addf %244, %245 : vector<1x16xf32>
    %cst_85 = arith.constant 5.000000e-01 : f32
    %247 = vector.broadcast %cst_85 : f32 to vector<1x16xf32>
    %248 = arith.mulf %247, %246 : vector<1x16xf32>
    %249 = arith.mulf %246, %246 : vector<1x16xf32>
    %250 = arith.mulf %249, %246 : vector<1x16xf32>
    %cst_86 = arith.constant 4.471500e-02 : f32
    %251 = vector.broadcast %cst_86 : f32 to vector<1x16xf32>
    %252 = arith.mulf %251, %250 : vector<1x16xf32>
    %253 = arith.addf %246, %252 : vector<1x16xf32>
    %cst_87 = arith.constant 0.797884583 : f32
    %254 = vector.broadcast %cst_87 : f32 to vector<1x16xf32>
    %255 = arith.mulf %254, %253 : vector<1x16xf32>
    %256 = math.tanh %255 : vector<1x16xf32>
    %cst_88 = arith.constant 1.000000e+00 : f32
    %257 = vector.broadcast %cst_88 : f32 to vector<1x16xf32>
    %258 = arith.addf %257, %256 : vector<1x16xf32>
    %259 = arith.mulf %248, %258 : vector<1x16xf32>
    %c0_89 = arith.constant 0 : index
    %c0_90 = arith.constant 0 : index
    %260 = vector.load %arg16[%c0_89, %c0_90] : memref<16x64xf32, #tpu.memory_space<vmem>>, vector<16x64xf32>
    %cst_91 = arith.constant dense<0.000000e+00> : vector<1x64xf32>
    %261 = tpu.matmul %259, %260, %cst_91 {dimension_numbers = #tpu.dot_dimension_numbers<[1], [0], [0], [1], [0, 0, 1, 1], [], []>} : vector<1x16xf32>, vector<16x64xf32>, vector<1x64xf32> -> vector<1x64xf32>
    %c0_92 = arith.constant 0 : index
    %c0_93 = arith.constant 0 : index
    %262 = vector.load %arg17[%c0_92, %c0_93] : memref<1x64xf32, #tpu.memory_space<vmem>>, vector<1x64xf32>
    %263 = arith.addf %261, %262 : vector<1x64xf32>
    %264 = arith.negf %263 : vector<1x64xf32>
    %265 = math.exp %264 : vector<1x64xf32>
    %cst_94 = arith.constant 1.000000e+00 : f32
    %266 = vector.broadcast %cst_94 : f32 to vector<1x64xf32>
    %267 = arith.addf %266, %265 : vector<1x64xf32>
    %268 = arith.divf %266, %267 : vector<1x64xf32>
    %c0_95 = arith.constant 0 : index
    %c0_96 = arith.constant 0 : index
    %269 = vector.load %arg18[%c0_95, %c0_96] : memref<1x1xf32, #tpu.memory_space<vmem>>, vector<1x1xf32>
    %270 = vector.broadcast %269 : vector<1x1xf32> to vector<1x64xf32>
    %271 = arith.mulf %268, %270 : vector<1x64xf32>
    %272 = vector.broadcast %271 : vector<1x64xf32> to vector<256x64xf32>
    %273 = arith.mulf %238, %272 : vector<256x64xf32>
    %274 = arith.addf %1, %273 : vector<256x64xf32>
    %c0_97 = arith.constant 0 : index
    %c0_98 = arith.constant 0 : index
    %c0_99 = arith.constant 0 : index
    %275 = vector.load %arg19[%c0_97, %c0_98, %c0_99] : memref<1x256x64xf32, #tpu.memory_space<vmem>>, vector<1x256x64xf32>
    %276 = vector.shape_cast %275 : vector<1x256x64xf32> to vector<256x64xf32>
    %277 = vector.shape_cast %274 : vector<256x64xf32> to vector<1x256x64xf32>
    tpu.vector_store %arg19[%c0_97, %c0_98, %c0_99], %277 {strides = array<i32>} : memref<1x256x64xf32, #tpu.memory_space<vmem>>, vector<1x256x64xf32>,
    return
  }
  func.func @transform_0(%arg0: i32) -> (i32, i32, i32) {
    %c0_i32 = arith.constant 0 : i32
    %c0_i32_0 = arith.constant 0 : i32
    %c0_i32_1 = arith.constant 0 : i32
    return %arg0, %c0_i32, %c0_i32_0 : i32, i32, i32
  }
  func.func @transform_1(%arg0: i32) -> (i32, i32) {
    %c0_i32 = arith.constant 0 : i32
    %c0_i32_0 = arith.constant 0 : i32
    %c0_i32_1 = arith.constant 0 : i32
    return %c0_i32, %c0_i32_0 : i32, i32
  }
  func.func @transform_2(%arg0: i32) -> (i32, i32) {
    %c0_i32 = arith.constant 0 : i32
    %c0_i32_0 = arith.constant 0 : i32
    %c0_i32_1 = arith.constant 0 : i32
    return %c0_i32, %c0_i32_0 : i32, i32
  }
  func.func @transform_3(%arg0: i32) -> (i32, i32, i32) {
    %c0_i32 = arith.constant 0 : i32
    %c0_i32_0 = arith.constant 0 : i32
    %c0_i32_1 = arith.constant 0 : i32
    %c0_i32_2 = arith.constant 0 : i32
    return %c0_i32, %c0_i32_0, %c0_i32_1 : i32, i32, i32
  }
  func.func @transform_4(%arg0: i32) -> (i32, i32) {
    %c0_i32 = arith.constant 0 : i32
    %c0_i32_0 = arith.constant 0 : i32
    %c0_i32_1 = arith.constant 0 : i32
    return %c0_i32, %c0_i32_0 : i32, i32
  }
  func.func @transform_5(%arg0: i32) -> (i32, i32) {
    %c0_i32 = arith.constant 0 : i32
    %c0_i32_0 = arith.constant 0 : i32
    %c0_i32_1 = arith.constant 0 : i32
    return %c0_i32, %c0_i32_0 : i32, i32
  }
  func.func @transform_6(%arg0: i32) -> (i32, i32) {
    %c0_i32 = arith.constant 0 : i32
    %c0_i32_0 = arith.constant 0 : i32
    %c0_i32_1 = arith.constant 0 : i32
    return %c0_i32, %c0_i32_0 : i32, i32
  }
  func.func @transform_7(%arg0: i32) -> (i32, i32) {
    %c0_i32 = arith.constant 0 : i32
    %c0_i32_0 = arith.constant 0 : i32
    %c0_i32_1 = arith.constant 0 : i32
    return %c0_i32, %c0_i32_0 : i32, i32
  }
  func.func @transform_8(%arg0: i32) -> (i32, i32) {
    %c0_i32 = arith.constant 0 : i32
    %c0_i32_0 = arith.constant 0 : i32
    %c0_i32_1 = arith.constant 0 : i32
    return %c0_i32, %c0_i32_0 : i32, i32
  }
  func.func @transform_9(%arg0: i32) -> (i32, i32) {
    %c0_i32 = arith.constant 0 : i32
    %c0_i32_0 = arith.constant 0 : i32
    %c0_i32_1 = arith.constant 0 : i32
    return %c0_i32, %c0_i32_0 : i32, i32
  }
  func.func @transform_10(%arg0: i32) -> (i32, i32) {
    %c0_i32 = arith.constant 0 : i32
    %c0_i32_0 = arith.constant 0 : i32
    %c0_i32_1 = arith.constant 0 : i32
    return %c0_i32, %c0_i32_0 : i32, i32
  }
  func.func @transform_11(%arg0: i32) -> (i32, i32) {
    %c0_i32 = arith.constant 0 : i32
    %c0_i32_0 = arith.constant 0 : i32
    %c0_i32_1 = arith.constant 0 : i32
    return %c0_i32, %c0_i32_0 : i32, i32
  }
  func.func @transform_12(%arg0: i32) -> (i32, i32) {
    %c0_i32 = arith.constant 0 : i32
    %c0_i32_0 = arith.constant 0 : i32
    %c0_i32_1 = arith.constant 0 : i32
    return %c0_i32, %c0_i32_0 : i32, i32
  }
  func.func @transform_13(%arg0: i32) -> (i32, i32) {
    %c0_i32 = arith.constant 0 : i32
    %c0_i32_0 = arith.constant 0 : i32
    %c0_i32_1 = arith.constant 0 : i32
    return %c0_i32, %c0_i32_0 : i32, i32
  }
  func.func @transform_14(%arg0: i32) -> (i32, i32) {
    %c0_i32 = arith.constant 0 : i32
    %c0_i32_0 = arith.constant 0 : i32
    %c0_i32_1 = arith.constant 0 : i32
    return %c0_i32, %c0_i32_0 : i32, i32
  }
  func.func @transform_15(%arg0: i32) -> (i32, i32) {
    %c0_i32 = arith.constant 0 : i32
    %c0_i32_0 = arith.constant 0 : i32
    %c0_i32_1 = arith.constant 0 : i32
    return %c0_i32, %c0_i32_0 : i32, i32
  }
  func.func @transform_16(%arg0: i32) -> (i32, i32) {
    %c0_i32 = arith.constant 0 : i32
    %c0_i32_0 = arith.constant 0 : i32
    %c0_i32_1 = arith.constant 0 : i32
    return %c0_i32, %c0_i32_0 : i32, i32
  }
  func.func @transform_17(%arg0: i32) -> (i32, i32) {
    %c0_i32 = arith.constant 0 : i32
    %c0_i32_0 = arith.constant 0 : i32
    %c0_i32_1 = arith.constant 0 : i32
    return %c0_i32, %c0_i32_0 : i32, i32
  }
  func.func @transform_18(%arg0: i32) -> (i32, i32, i32) {
    %c0_i32 = arith.constant 0 : i32
    %c0_i32_0 = arith.constant 0 : i32
    %c0_i32_1 = arith.constant 0 : i32
    return %arg0, %c0_i32, %c0_i32_0 : i32, i32, i32
  }
}

</mosaic_0001>

<llo_original>
// kernel: illumination_aware_block.1
$region0: #{illumination_aware_block.1}
  #allocation0 [shape = 'u32[]', space=smem, size = 0x4, offset = 0x4, fixed_abs, tag = 'smem constant byte address 0x4 - core index']
  #allocation1 [shape = 'u32[144,128]{1,0:T(1,128)}', space=vmem, size = 0x12000, scoped, tag = 'internal scratch']
  #allocation2 [shape = 'bf16[256,256]{1,0:T(8,128)(2,1)}', space=vmem, size = 0x20000, scoped, tag = 'scratch operand']
  #allocation3 [shape = 'f32[1,1]{1,0:T(1,128)S(1)}', space=vmem, size = 0x200, scoped, tag = 'scoped memory for illumination_aware_block.1']
  %s0 = inlined_call_operand.vmem [shape: f32[2,256,64], index: 0, kind: input, shape index: {}]
  %s1 = inlined_call_operand.vmem [shape: bf16[64,16], index: 1, kind: input, shape index: {}]
  %s2 = inlined_call_operand.vmem [shape: f32[1,16], index: 2, kind: input, shape index: {}]
  %s3 = inlined_call_operand.vmem [shape: f32[3,3,16], index: 3, kind: input, shape index: {}]
  %s4 = inlined_call_operand.vmem [shape: f32[1,16], index: 4, kind: input, shape index: {}]
  %s5 = inlined_call_operand.vmem [shape: f32[1,16], index: 5, kind: input, shape index: {}]
  %s6 = inlined_call_operand.vmem [shape: bf16[16,256], index: 6, kind: input, shape index: {}]
  %s7 = inlined_call_operand.vmem [shape: bf16[256,16], index: 7, kind: input, shape index: {}]
  %s8 = inlined_call_operand.vmem [shape: bf16[16,256], index: 8, kind: input, shape index: {}]
  %s9 = inlined_call_operand.vmem [shape: bf16[256,16], index: 9, kind: input, shape index: {}]
  %s10 = inlined_call_operand.vmem [shape: f32[1,16], index: 10, kind: input, shape index: {}]
  %s11 = inlined_call_operand.vmem [shape: bf16[16,64], index: 11, kind: input, shape index: {}]
  %s12 = inlined_call_operand.vmem [shape: f32[1,64], index: 12, kind: input, shape index: {}]
  %s13 = inlined_call_operand.vmem [shape: f32[64,16], index: 13, kind: input, shape index: {}]
  %s14 = inlined_call_operand.vmem [shape: f32[1,16], index: 14, kind: input, shape index: {}]
  %s15 = inlined_call_operand.vmem [shape: f32[16,64], index: 15, kind: input, shape index: {}]
  %s16 = inlined_call_operand.vmem [shape: f32[1,64], index: 16, kind: input, shape index: {}]
  %s17 = inlined_call_operand.<no memory space> [shape: f32[1,1], index: 17, kind: input, shape index: {}]
  %s18 = inlined_call_operand.hbm [shape: f32[2,256,64], index: 18, kind: output, shape index: {}]
  %s19 = sld [smem:[#allocation0]]
  $region105: #{illumination_aware_block.1} parent=0
    _
  %s21 = ssub.s32 1, %s19
  %s22 = scalar_select 0, %s21, %s19
  %v23 = vstv %s17
  %24 = vst [vmem:[#allocation3] sm:$0x1] %v23
  $region1: #{illumination_aware_block.1} parent=0
    #allocation4 [shape = 'u8[262144]{0}', space=vmem, size = 0x40000, scoped, tag = 'output window, operand 0']
    #allocation5 [shape = 's32[2]{0}', space=sflag, size = 0x8, scoped, tag = 'scoped memory for illumination_aware_block.1']
    %25 = vsyncpa [#allocation5], 0
    %s26 = scalar_lea.sflag [#allocation5], 1
    %27 = vsyncpa %s26, 0
    loop: start=0, step=1, limit=4
    $region2: #{illumination_aware_block.1} parent=1 // loop_pre_header
      _
    $region3: #{illumination_aware_block.1} parent=1 // loop_header
      %s29 = sphi 0, %s33
      %p30 = scmp.ge.s32.totalorder %s29, 4
      %s39 = sphi 0, %s41
      %s42 = sphi 0, %s39
      %s43 = sphi 0, %s42
      %s59 = sphi 0, %s43
      %s63 = sphi 0, %s63
      %s65 = sphi 0, %s63
      %s66 = sphi 0, %s65
      %s80 = sphi 0, %s66
      %s84 = sphi 0, %s84
      %s86 = sphi 0, %s84
      %s87 = sphi 0, %s86
      %s101 = sphi 0, %s87
      %s105 = sphi 0, %s105
      %s107 = sphi 0, %s105
      %s108 = sphi 0, %s107
      %s122 = sphi 0, %s108
      %s126 = sphi 0, %s126
      %s128 = sphi 0, %s126
      %s129 = sphi 0, %s128
      %s143 = sphi 0, %s129
      %s147 = sphi 0, %s147
      %s149 = sphi 0, %s147
      %s150 = sphi 0, %s149
      %s164 = sphi 0, %s150
      %s168 = sphi 0, %s168
      %s170 = sphi 0, %s168
      %s171 = sphi 0, %s170
      %s185 = sphi 0, %s171
      %s189 = sphi 0, %s189
      %s191 = sphi 0, %s189
      %s192 = sphi 0, %s191
      %s206 = sphi 0, %s192
      %s210 = sphi 0, %s210
      %s212 = sphi 0, %s210
      %s213 = sphi 0, %s212
      %s227 = sphi 0, %s213
      %s231 = sphi 0, %s231
      %s233 = sphi 0, %s231
      %s234 = sphi 0, %s233
      %s248 = sphi 0, %s234
      %s252 = sphi 0, %s252
      %s254 = sphi 0, %s252
      %s255 = sphi 0, %s254
      %s269 = sphi 0, %s255
      %s273 = sphi 0, %s273
      %s275 = sphi 0, %s273
      %s276 = sphi 0, %s275
      %s290 = sphi 0, %s276
      %s294 = sphi 0, %s294
      %s296 = sphi 0, %s294
      %s297 = sphi 0, %s296
      %s311 = sphi 0, %s297
      %s315 = sphi 0, %s315
      %s317 = sphi 0, %s315
      %s318 = sphi 0, %s317
      %s332 = sphi 0, %s318
      %s336 = sphi 0, %s336
      %s338 = sphi 0, %s336
      %s339 = sphi 0, %s338
      %s353 = sphi 0, %s339
      %s357 = sphi 0, %s357
      %s359 = sphi 0, %s357
      %s360 = sphi 0, %s359
      %s374 = sphi 0, %s360
      %s378 = sphi 0, %s378
      %s380 = sphi 0, %s378
      %s381 = sphi 0, %s380
      %s395 = sphi 0, %s381
      %s399 = sphi 0, %s399
      %s401 = sphi 0, %s399
      %s402 = sphi 0, %s401
      %s416 = sphi 0, %s402
      %s422 = sphi 0, %s424
      %s425 = sphi 0, %s422
      %s426 = sphi 0, %s425
      %s442 = sphi 0, %s426
    $region4: #{illumination_aware_block.1} parent=1 // loop_header_branch
      %32 = sbr.rel (%p30) target = $region8
    $region5: #{illumination_aware_block.1} parent=1 // loop_body
      %s34 = ssub.s32 %s29, 1
      %s35 = ssub.s32 %s29, 2
      %s36 = sadd.s32 %s29, 1
      %s37 = ssub.s32 %s29, %s36
      %p38 = scmp.eq.s32.totalorder %s37, 0
      %s40 = sadd.s32 %s39, 1
      %s41 = scalar_select %p38, %s39, %s40
      %p44 = pneg %p38
      %p45 = scmp.eq.s32.totalorder %s29, 1
      %p46 = por %p44, %p45
      %p47 = scmp.ne.s32.totalorder %s39, %s42
      %p48 = scmp.eq.s32.totalorder %s29, 0
      %p49 = por %p47, %p48
      %p50 = scmp.ne.s32.totalorder %s39, %s42
      %p51 = scmp.eq.s32.totalorder %s34, 1
      %p52 = por %p50, %p51
      %p53 = scmp.ne.s32.totalorder %s42, %s43
      %p54 = scmp.eq.s32.totalorder %s34, 0
      %p55 = por %p53, %p54
      %p56 = scmp.ne.s32.totalorder %s42, %s43
      %p57 = scmp.eq.s32.totalorder %s35, 1
      %p58 = por %p56, %p57
      %p60 = scmp.ne.s32.totalorder %s43, %s59
      %p61 = scmp.eq.s32.totalorder %s35, 0
      %p62 = por %p60, %p61
      %s64 = sadd.s32 %s63, 1
      %p67 = scmp.eq.s32.totalorder %s29, 1
      %p68 = scmp.ne.s32.totalorder %s63, %s65
      %p69 = scmp.eq.s32.totalorder %s29, 0
      %p70 = por %p68, %p69
      %p71 = scmp.ne.s32.totalorder %s63, %s65
      %p72 = scmp.eq.s32.totalorder %s34, 1
      %p73 = por %p71, %p72
      %p74 = scmp.ne.s32.totalorder %s65, %s66
      %p75 = scmp.eq.s32.totalorder %s34, 0
      %p76 = por %p74, %p75
      %p77 = scmp.ne.s32.totalorder %s65, %s66
      %p78 = scmp.eq.s32.totalorder %s35, 1
      %p79 = por %p77, %p78
      %p81 = scmp.ne.s32.totalorder %s66, %s80
      %p82 = scmp.eq.s32.totalorder %s35, 0
      %p83 = por %p81, %p82
      %s85 = sadd.s32 %s84, 1
      %p88 = scmp.eq.s32.totalorder %s29, 1
      %p89 = scmp.ne.s32.totalorder %s84, %s86
      %p90 = scmp.eq.s32.totalorder %s29, 0
      %p91 = por %p89, %p90
      %p92 = scmp.ne.s32.totalorder %s84, %s86
      %p93 = scmp.eq.s32.totalorder %s34, 1
      %p94 = por %p92, %p93
      %p95 = scmp.ne.s32.totalorder %s86, %s87
      %p96 = scmp.eq.s32.totalorder %s34, 0
      %p97 = por %p95, %p96
      %p98 = scmp.ne.s32.totalorder %s86, %s87
      %p99 = scmp.eq.s32.totalorder %s35, 1
      %p100 = por %p98, %p99
      %p102 = scmp.ne.s32.totalorder %s87, %s101
      %p103 = scmp.eq.s32.totalorder %s35, 0
      %p104 = por %p102, %p103
      %s106 = sadd.s32 %s105, 1
      %p109 = scmp.eq.s32.totalorder %s29, 1
      %p110 = scmp.ne.s32.totalorder %s105, %s107
      %p111 = scmp.eq.s32.totalorder %s29, 0
      %p112 = por %p110, %p111
      %p113 = scmp.ne.s32.totalorder %s105, %s107
      %p114 = scmp.eq.s32.totalorder %s34, 1
      %p115 = por %p113, %p114
      %p116 = scmp.ne.s32.totalorder %s107, %s108
      %p117 = scmp.eq.s32.totalorder %s34, 0
      %p118 = por %p116, %p117
      %p119 = scmp.ne.s32.totalorder %s107, %s108
      %p120 = scmp.eq.s32.totalorder %s35, 1
      %p121 = por %p119, %p120
      %p123 = scmp.ne.s32.totalorder %s108, %s122
      %p124 = scmp.eq.s32.totalorder %s35, 0
      %p125 = por %p123, %p124
      %s127 = sadd.s32 %s126, 1
      %p130 = scmp.eq.s32.totalorder %s29, 1
      %p131 = scmp.ne.s32.totalorder %s126, %s128
      %p132 = scmp.eq.s32.totalorder %s29, 0
      %p133 = por %p131, %p132
      %p134 = scmp.ne.s32.totalorder %s126, %s128
      %p135 = scmp.eq.s32.totalorder %s34, 1
      %p136 = por %p134, %p135
      %p137 = scmp.ne.s32.totalorder %s128, %s129
      %p138 = scmp.eq.s32.totalorder %s34, 0
      %p139 = por %p137, %p138
      %p140 = scmp.ne.s32.totalorder %s128, %s129
      %p141 = scmp.eq.s32.totalorder %s35, 1
      %p142 = por %p140, %p141
      %p144 = scmp.ne.s32.totalorder %s129, %s143
      %p145 = scmp.eq.s32.totalorder %s35, 0
      %p146 = por %p144, %p145
      %s148 = sadd.s32 %s147, 1
      %p151 = scmp.eq.s32.totalorder %s29, 1
      %p152 = scmp.ne.s32.totalorder %s147, %s149
      %p153 = scmp.eq.s32.totalorder %s29, 0
      %p154 = por %p152, %p153
      %p155 = scmp.ne.s32.totalorder %s147, %s149
      %p156 = scmp.eq.s32.totalorder %s34, 1
      %p157 = por %p155, %p156
      %p158 = scmp.ne.s32.totalorder %s149, %s150
      %p159 = scmp.eq.s32.totalorder %s34, 0
      %p160 = por %p158, %p159
      %p161 = scmp.ne.s32.totalorder %s149, %s150
      %p162 = scmp.eq.s32.totalorder %s35, 1
      %p163 = por %p161, %p162
      %p165 = scmp.ne.s32.totalorder %s150, %s164
      %p166 = scmp.eq.s32.totalorder %s35, 0
      %p167 = por %p165, %p166
      %s169 = sadd.s32 %s168, 1
      %p172 = scmp.eq.s32.totalorder %s29, 1
      %p173 = scmp.ne.s32.totalorder %s168, %s170
      %p174 = scmp.eq.s32.totalorder %s29, 0
      %p175 = por %p173, %p174
      %p176 = scmp.ne.s32.totalorder %s168, %s170
      %p177 = scmp.eq.s32.totalorder %s34, 1
      %p178 = por %p176, %p177
      %p179 = scmp.ne.s32.totalorder %s170, %s171
      %p180 = scmp.eq.s32.totalorder %s34, 0
      %p181 = por %p179, %p180
      %p182 = scmp.ne.s32.totalorder %s170, %s171
      %p183 = scmp.eq.s32.totalorder %s35, 1
      %p184 = por %p182, %p183
      %p186 = scmp.ne.s32.totalorder %s171, %s185
      %p187 = scmp.eq.s32.totalorder %s35, 0
      %p188 = por %p186, %p187
      %s190 = sadd.s32 %s189, 1
      %p193 = scmp.eq.s32.totalorder %s29, 1
      %p194 = scmp.ne.s32.totalorder %s189, %s191
      %p195 = scmp.eq.s32.totalorder %s29, 0
      %p196 = por %p194, %p195
      %p197 = scmp.ne.s32.totalorder %s189, %s191
      %p198 = scmp.eq.s32.totalorder %s34, 1
      %p199 = por %p197, %p198
      %p200 = scmp.ne.s32.totalorder %s191, %s192
      %p201 = scmp.eq.s32.totalorder %s34, 0
      %p202 = por %p200, %p201
      %p203 = scmp.ne.s32.totalorder %s191, %s192
      %p204 = scmp.eq.s32.totalorder %s35, 1
      %p205 = por %p203, %p204
      %p207 = scmp.ne.s32.totalorder %s192, %s206
      %p208 = scmp.eq.s32.totalorder %s35, 0
      %p209 = por %p207, %p208
      %s211 = sadd.s32 %s210, 1
      %p214 = scmp.eq.s32.totalorder %s29, 1
      %p215 = scmp.ne.s32.totalorder %s210, %s212
      %p216 = scmp.eq.s32.totalorder %s29, 0
      %p217 = por %p215, %p216
      %p218 = scmp.ne.s32.totalorder %s210, %s212
      %p219 = scmp.eq.s32.totalorder %s34, 1
      %p220 = por %p218, %p219
      %p221 = scmp.ne.s32.totalorder %s212, %s213
      %p222 = scmp.eq.s32.totalorder %s34, 0
      %p223 = por %p221, %p222
      %p224 = scmp.ne.s32.totalorder %s212, %s213
      %p225 = scmp.eq.s32.totalorder %s35, 1
      %p226 = por %p224, %p225
      %p228 = scmp.ne.s32.totalorder %s213, %s227
      %p229 = scmp.eq.s32.totalorder %s35, 0
      %p230 = por %p228, %p229
      %s232 = sadd.s32 %s231, 1
      %p235 = scmp.eq.s32.totalorder %s29, 1
      %p236 = scmp.ne.s32.totalorder %s231, %s233
      %p237 = scmp.eq.s32.totalorder %s29, 0
      %p238 = por %p236, %p237
      %p239 = scmp.ne.s32.totalorder %s231, %s233
      %p240 = scmp.eq.s32.totalorder %s34, 1
      %p241 = por %p239, %p240
      %p242 = scmp.ne.s32.totalorder %s233, %s234
      %p243 = scmp.eq.s32.totalorder %s34, 0
      %p244 = por %p242, %p243
      %p245 = scmp.ne.s32.totalorder %s233, %s234
      %p246 = scmp.eq.s32.totalorder %s35, 1
      %p247 = por %p245, %p246
      %p249 = scmp.ne.s32.totalorder %s234, %s248
      %p250 = scmp.eq.s32.totalorder %s35, 0
      %p251 = por %p249, %p250
      %s253 = sadd.s32 %s252, 1
      %p256 = scmp.eq.s32.totalorder %s29, 1
      %p257 = scmp.ne.s32.totalorder %s252, %s254
      %p258 = scmp.eq.s32.totalorder %s29, 0
      %p259 = por %p257, %p258
      %p260 = scmp.ne.s32.totalorder %s252, %s254
      %p261 = scmp.eq.s32.totalorder %s34, 1
      %p262 = por %p260, %p261
      %p263 = scmp.ne.s32.totalorder %s254, %s255
      %p264 = scmp.eq.s32.totalorder %s34, 0
      %p265 = por %p263, %p264
      %p266 = scmp.ne.s32.totalorder %s254, %s255
      %p267 = scmp.eq.s32.totalorder %s35, 1
      %p268 = por %p266, %p267
      %p270 = scmp.ne.s32.totalorder %s255, %s269
      %p271 = scmp.eq.s32.totalorder %s35, 0
      %p272 = por %p270, %p271
      %s274 = sadd.s32 %s273, 1
      %p277 = scmp.eq.s32.totalorder %s29, 1
      %p278 = scmp.ne.s32.totalorder %s273, %s275
      %p279 = scmp.eq.s32.totalorder %s29, 0
      %p280 = por %p278, %p279
      %p281 = scmp.ne.s32.totalorder %s273, %s275
      %p282 = scmp.eq.s32.totalorder %s34, 1
      %p283 = por %p281, %p282
      %p284 = scmp.ne.s32.totalorder %s275, %s276
      %p285 = scmp.eq.s32.totalorder %s34, 0
      %p286 = por %p284, %p285
      %p287 = scmp.ne.s32.totalorder %s275, %s276
      %p288 = scmp.eq.s32.totalorder %s35, 1
      %p289 = por %p287, %p288
      %p291 = scmp.ne.s32.totalorder %s276, %s290
      %p292 = scmp.eq.s32.totalorder %s35, 0
      %p293 = por %p291, %p292
      %s295 = sadd.s32 %s294, 1
      %p298 = scmp.eq.s32.totalorder %s29, 1
      %p299 = scmp.ne.s32.totalorder %s294, %s296
      %p300 = scmp.eq.s32.totalorder %s29, 0
      %p301 = por %p299, %p300
      %p302 = scmp.ne.s32.totalorder %s294, %s296
      %p303 = scmp.eq.s32.totalorder %s34, 1
      %p304 = por %p302, %p303
      %p305 = scmp.ne.s32.totalorder %s296, %s297
      %p306 = scmp.eq.s32.totalorder %s34, 0
      %p307 = por %p305, %p306
      %p308 = scmp.ne.s32.totalorder %s296, %s297
      %p309 = scmp.eq.s32.totalorder %s35, 1
      %p310 = por %p308, %p309
      %p312 = scmp.ne.s32.totalorder %s297, %s311
      %p313 = scmp.eq.s32.totalorder %s35, 0
      %p314 = por %p312, %p313
      %s316 = sadd.s32 %s315, 1
      %p319 = scmp.eq.s32.totalorder %s29, 1
      %p320 = scmp.ne.s32.totalorder %s315, %s317
      %p321 = scmp.eq.s32.totalorder %s29, 0
      %p322 = por %p320, %p321
      %p323 = scmp.ne.s32.totalorder %s315, %s317
      %p324 = scmp.eq.s32.totalorder %s34, 1
      %p325 = por %p323, %p324
      %p326 = scmp.ne.s32.totalorder %s317, %s318
      %p327 = scmp.eq.s32.totalorder %s34, 0
      %p328 = por %p326, %p327
      %p329 = scmp.ne.s32.totalorder %s317, %s318
      %p330 = scmp.eq.s32.totalorder %s35, 1
      %p331 = por %p329, %p330
      %p333 = scmp.ne.s32.totalorder %s318, %s332
      %p334 = scmp.eq.s32.totalorder %s35, 0
      %p335 = por %p333, %p334
      %s337 = sadd.s32 %s336, 1
      %p340 = scmp.eq.s32.totalorder %s29, 1
      %p341 = scmp.ne.s32.totalorder %s336, %s338
      %p342 = scmp.eq.s32.totalorder %s29, 0
      %p343 = por %p341, %p342
      %p344 = scmp.ne.s32.totalorder %s336, %s338
      %p345 = scmp.eq.s32.totalorder %s34, 1
      %p346 = por %p344, %p345
      %p347 = scmp.ne.s32.totalorder %s338, %s339
      %p348 = scmp.eq.s32.totalorder %s34, 0
      %p349 = por %p347, %p348
      %p350 = scmp.ne.s32.totalorder %s338, %s339
      %p351 = scmp.eq.s32.totalorder %s35, 1
      %p352 = por %p350, %p351
      %p354 = scmp.ne.s32.totalorder %s339, %s353
      %p355 = scmp.eq.s32.totalorder %s35, 0
      %p356 = por %p354, %p355
      %s358 = sadd.s32 %s357, 1
      %p361 = scmp.eq.s32.totalorder %s29, 1
      %p362 = scmp.ne.s32.totalorder %s357, %s359
      %p363 = scmp.eq.s32.totalorder %s29, 0
      %p364 = por %p362, %p363
      %p365 = scmp.ne.s32.totalorder %s357, %s359
      %p366 = scmp.eq.s32.totalorder %s34, 1
      %p367 = por %p365, %p366
      %p368 = scmp.ne.s32.totalorder %s359, %s360
      %p369 = scmp.eq.s32.totalorder %s34, 0
      %p370 = por %p368, %p369
      %p371 = scmp.ne.s32.totalorder %s359, %s360
      %p372 = scmp.eq.s32.totalorder %s35, 1
      %p373 = por %p371, %p372
      %p375 = scmp.ne.s32.totalorder %s360, %s374
      %p376 = scmp.eq.s32.totalorder %s35, 0
      %p377 = por %p375, %p376
      %s379 = sadd.s32 %s378, 1
      %p382 = scmp.eq.s32.totalorder %s29, 1
      %p383 = scmp.ne.s32.totalorder %s378, %s380
      %p384 = scmp.eq.s32.totalorder %s29, 0
      %p385 = por %p383, %p384
      %p386 = scmp.ne.s32.totalorder %s378, %s380
      %p387 = scmp.eq.s32.totalorder %s34, 1
      %p388 = por %p386, %p387
      %p389 = scmp.ne.s32.totalorder %s380, %s381
      %p390 = scmp.eq.s32.totalorder %s34, 0
      %p391 = por %p389, %p390
      %p392 = scmp.ne.s32.totalorder %s380, %s381
      %p393 = scmp.eq.s32.totalorder %s35, 1
      %p394 = por %p392, %p393
      %p396 = scmp.ne.s32.totalorder %s381, %s395
      %p397 = scmp.eq.s32.totalorder %s35, 0
      %p398 = por %p396, %p397
      %s400 = sadd.s32 %s399, 1
      %p403 = scmp.eq.s32.totalorder %s29, 1
      %p404 = scmp.ne.s32.totalorder %s399, %s401
      %p405 = scmp.eq.s32.totalorder %s29, 0
      %p406 = por %p404, %p405
      %p407 = scmp.ne.s32.totalorder %s399, %s401
      %p408 = scmp.eq.s32.totalorder %s34, 1
      %p409 = por %p407, %p408
      %p410 = scmp.ne.s32.totalorder %s401, %s402
      %p411 = scmp.eq.s32.totalorder %s34, 0
      %p412 = por %p410, %p411
      %p413 = scmp.ne.s32.totalorder %s401, %s402
      %p414 = scmp.eq.s32.totalorder %s35, 1
      %p415 = por %p413, %p414
      %p417 = scmp.ne.s32.totalorder %s402, %s416
      %p418 = scmp.eq.s32.totalorder %s35, 0
      %p419 = por %p417, %p418
      %s420 = ssub.s32 %s29, %s36
      %p421 = scmp.eq.s32.totalorder %s420, 0
      %s423 = sadd.s32 %s422, 1
      %s424 = scalar_select %p421, %s422, %s423
      %p427 = pneg %p421
      %p428 = scmp.eq.s32.totalorder %s29, 1
      %p429 = por %p427, %p428
      %p430 = scmp.ne.s32.totalorder %s422, %s425
      %p431 = scmp.eq.s32.totalorder %s29, 0
      %p432 = por %p430, %p431
      %p433 = scmp.ne.s32.totalorder %s422, %s425
      %p434 = scmp.eq.s32.totalorder %s34, 1
      %p435 = por %p433, %p434
      %p436 = scmp.ne.s32.totalorder %s425, %s426
      %p437 = scmp.eq.s32.totalorder %s34, 0
      %p438 = por %p436, %p437
      %p439 = scmp.ne.s32.totalorder %s425, %s426
      %p440 = scmp.eq.s32.totalorder %s35, 1
      %p441 = por %p439, %p440
      %p443 = scmp.ne.s32.totalorder %s426, %s442
      %p444 = scmp.eq.s32.totalorder %s35, 0
      %p445 = por %p443, %p444
      %p446 = scmp.le.s32.totalorder 1, %s29
      %p447 = scmp.lt.s32.totalorder %s29, 3
      %p448 = pnand %p446, %p447
      %p449 = pneg %p448
      // Predicated region
      $region9: #{illumination_aware_block.1} parent=5 // pred_check
        _
      $region10: #{illumination_aware_block.1} parent=5 // pred_check_branch
        %451 = sbr.rel (%p448) target = $region12
      $region11: #{illumination_aware_block.1} parent=5 // pred_region
        %s452 = ssub.s32 %s29, 1
        // Predicated region
        $region13: #{illumination_aware_block.1} parent=11 // pred_check
          %p453 = pneg %p76
        $region14: #{illumination_aware_block.1} parent=11 // pred_check_branch
          %455 = sbr.rel (%p453) target = $region16
        $region15: #{illumination_aware_block.1} parent=11 // pred_region
          _
        $region16: #{illumination_aware_block.1} parent=11 // pred_fallthru
          _
        // Predicated region
        $region17: #{illumination_aware_block.1} parent=11 // pred_check
          %p456 = pneg %p97
        $region18: #{illumination_aware_block.1} parent=11 // pred_check_branch
          %458 = sbr.rel (%p456) target = $region20
        $region19: #{illumination_aware_block.1} parent=11 // pred_region
          _
        $region20: #{illumination_aware_block.1} parent=11 // pred_fallthru
          _
        // Predicated region
        $region21: #{illumination_aware_block.1} parent=11 // pred_check
          %p459 = pneg %p118
        $region22: #{illumination_aware_block.1} parent=11 // pred_check_branch
          %461 = sbr.rel (%p459) target = $region24
        $region23: #{illumination_aware_block.1} parent=11 // pred_region
          _
        $region24: #{illumination_aware_block.1} parent=11 // pred_fallthru
          _
        // Predicated region
        $region25: #{illumination_aware_block.1} parent=11 // pred_check
          %p462 = pneg %p139
        $region26: #{illumination_aware_block.1} parent=11 // pred_check_branch
          %464 = sbr.rel (%p462) target = $region28
        $region27: #{illumination_aware_block.1} parent=11 // pred_region
          _
        $region28: #{illumination_aware_block.1} parent=11 // pred_fallthru
          _
        // Predicated region
        $region29: #{illumination_aware_block.1} parent=11 // pred_check
          %p465 = pneg %p160
        $region30: #{illumination_aware_block.1} parent=11 // pred_check_branch
          %467 = sbr.rel (%p465) target = $region32
        $region31: #{illumination_aware_block.1} parent=11 // pred_region
          _
        $region32: #{illumination_aware_block.1} parent=11 // pred_fallthru
          _
        // Predicated region
        $region33: #{illumination_aware_block.1} parent=11 // pred_check
          %p468 = pneg %p181
        $region34: #{illumination_aware_block.1} parent=11 // pred_check_branch
          %470 = sbr.rel (%p468) target = $region36
        $region35: #{illumination_aware_block.1} parent=11 // pred_region
          _
        $region36: #{illumination_aware_block.1} parent=11 // pred_fallthru
          _
        // Predicated region
        $region37: #{illumination_aware_block.1} parent=11 // pred_check
          %p471 = pneg %p202
        $region38: #{illumination_aware_block.1} parent=11 // pred_check_branch
          %473 = sbr.rel (%p471) target = $region40
        $region39: #{illumination_aware_block.1} parent=11 // pred_region
          _
        $region40: #{illumination_aware_block.1} parent=11 // pred_fallthru
          _
        // Predicated region
        $region41: #{illumination_aware_block.1} parent=11 // pred_check
          %p474 = pneg %p223
        $region42: #{illumination_aware_block.1} parent=11 // pred_check_branch
          %476 = sbr.rel (%p474) target = $region44
        $region43: #{illumination_aware_block.1} parent=11 // pred_region
          _
        $region44: #{illumination_aware_block.1} parent=11 // pred_fallthru
          _
        // Predicated region
        $region45: #{illumination_aware_block.1} parent=11 // pred_check
          %p477 = pneg %p244
        $region46: #{illumination_aware_block.1} parent=11 // pred_check_branch
          %479 = sbr.rel (%p477) target = $region48
        $region47: #{illumination_aware_block.1} parent=11 // pred_region
          _
        $region48: #{illumination_aware_block.1} parent=11 // pred_fallthru
          _
        // Predicated region
        $region49: #{illumination_aware_block.1} parent=11 // pred_check
          %p480 = pneg %p265
        $region50: #{illumination_aware_block.1} parent=11 // pred_check_branch
          %482 = sbr.rel (%p480) target = $region52
        $region51: #{illumination_aware_block.1} parent=11 // pred_region
          _
        $region52: #{illumination_aware_block.1} parent=11 // pred_fallthru
          _
        // Predicated region
        $region53: #{illumination_aware_block.1} parent=11 // pred_check
          %p483 = pneg %p286
        $region54: #{illumination_aware_block.1} parent=11 // pred_check_branch
          %485 = sbr.rel (%p483) target = $region56
        $region55: #{illumination_aware_block.1} parent=11 // pred_region
          _
        $region56: #{illumination_aware_block.1} parent=11 // pred_fallthru
          _
        // Predicated region
        $region57: #{illumination_aware_block.1} parent=11 // pred_check
          %p486 = pneg %p307
        $region58: #{illumination_aware_block.1} parent=11 // pred_check_branch
          %488 = sbr.rel (%p486) target = $region60
        $region59: #{illumination_aware_block.1} parent=11 // pred_region
          _
        $region60: #{illumination_aware_block.1} parent=11 // pred_fallthru
          _
        // Predicated region
        $region61: #{illumination_aware_block.1} parent=11 // pred_check
          %p489 = pneg %p328
        $region62: #{illumination_aware_block.1} parent=11 // pred_check_branch
          %491 = sbr.rel (%p489) target = $region64
        $region63: #{illumination_aware_block.1} parent=11 // pred_region
          _
        $region64: #{illumination_aware_block.1} parent=11 // pred_fallthru
          _
        // Predicated region
        $region65: #{illumination_aware_block.1} parent=11 // pred_check
          %p492 = pneg %p349
        $region66: #{illumination_aware_block.1} parent=11 // pred_check_branch
          %494 = sbr.rel (%p492) target = $region68
        $region67: #{illumination_aware_block.1} parent=11 // pred_region
          _
        $region68: #{illumination_aware_block.1} parent=11 // pred_fallthru
          _
        // Predicated region
        $region69: #{illumination_aware_block.1} parent=11 // pred_check
          %p495 = pneg %p370
        $region70: #{illumination_aware_block.1} parent=11 // pred_check_branch
          %497 = sbr.rel (%p495) target = $region72
        $region71: #{illumination_aware_block.1} parent=11 // pred_region
          _
        $region72: #{illumination_aware_block.1} parent=11 // pred_fallthru
          _
        // Predicated region
        $region73: #{illumination_aware_block.1} parent=11 // pred_check
          %p498 = pneg %p391
        $region74: #{illumination_aware_block.1} parent=11 // pred_check_branch
          %500 = sbr.rel (%p498) target = $region76
        $region75: #{illumination_aware_block.1} parent=11 // pred_region
          _
        $region76: #{illumination_aware_block.1} parent=11 // pred_fallthru
          _
        // Predicated region
        $region77: #{illumination_aware_block.1} parent=11 // pred_check
          %p501 = pneg %p412
        $region78: #{illumination_aware_block.1} parent=11 // pred_check_branch
          %503 = sbr.rel (%p501) target = $region80
        $region79: #{illumination_aware_block.1} parent=11 // pred_region
          _
        $region80: #{illumination_aware_block.1} parent=11 // pred_fallthru
          _
      $region12: #{illumination_aware_block.1} parent=5 // pred_fallthru
        _
      %p504 = scmp.lt.s32.totalorder %s29, 2
      // Predicated region
      $region81: #{illumination_aware_block.1} parent=5 // pred_check
        %p505 = pneg %p504
      $region82: #{illumination_aware_block.1} parent=5 // pred_check_branch
        %507 = sbr.rel (%p505) target = $region84
      $region83: #{illumination_aware_block.1} parent=5 // pred_region
        // Predicated region
        $region85: #{illumination_aware_block.1} parent=83 // pred_check
          %p508 = pneg %p49
        $region86: #{illumination_aware_block.1} parent=83 // pred_check_branch
          %510 = sbr.rel (%p508) target = $region88
        $region87: #{illumination_aware_block.1} parent=83 // pred_region
          %p511 = scmp.lt.s32.totalorder %s29, 1
          %s512 = scalar_select %p511, %s29, 1
          %s513 = smul.addr %s512, 32
          %s514 = smul.addr %s513, 8
          %s515 = scalar_lea.vmem %s0, %s514
        $region88: #{illumination_aware_block.1} parent=83 // pred_fallthru
          _
      $region84: #{illumination_aware_block.1} parent=5 // pred_fallthru
        _
      %p516 = scmp.le.s32.totalorder 1, %s29
      %p517 = scmp.lt.s32.totalorder %s29, 3
      %p518 = pnand %p516, %p517
      %p519 = pneg %p518
      // Predicated region
      $region89: #{illumination_aware_block.1} parent=5 // pred_check
        _
      $region90: #{illumination_aware_block.1} parent=5 // pred_check_branch
        %521 = sbr.rel (%p518) target = $region92
      $region91: #{illumination_aware_block.1} parent=5 // pred_region
        %s522 = ssub.s32 %s29, 1
        %p523 = scmp.lt.s32.totalorder %s34, 1
        %s524 = scalar_select %p523, %s34, 1
        %s525 = smul.addr %s524, 32
        %s526 = smul.addr %s525, 8
        %s527 = scalar_lea.vmem %s0, %s526
        %p528 = pneg %p55
        %p529 = pneg %p52
        %p530 = pneg %p76
        %p531 = pneg %p73
        %p532 = pneg %p97
        %p533 = pneg %p94
        %p534 = pneg %p118
        %p535 = pneg %p115
        %p536 = pneg %p139
        %p537 = pneg %p136
        %p538 = pneg %p160
        %p539 = pneg %p157
        %p540 = pneg %p181
        %p541 = pneg %p178
        %p542 = pneg %p202
        %p543 = pneg %p199
        %p544 = pneg %p223
        %p545 = pneg %p220
        %p546 = pneg %p244
        %p547 = pneg %p241
        %p548 = pneg %p265
        %p549 = pneg %p262
        %p550 = pneg %p286
        %p551 = pneg %p283
        %p552 = pneg %p307
        %p553 = pneg %p304
        %p554 = pneg %p328
        %p555 = pneg %p325
        %p556 = pneg %p349
        %p557 = pneg %p346
        %p558 = pneg %p370
        %p559 = pneg %p367
        %p560 = pneg %p391
        %p561 = pneg %p388
        %p562 = pneg %p412
        %p563 = pneg %p409
        %p564 = pneg %p438
        %p565 = pneg %p435
        %s566 = sand.u32 %s425, 1
        %s567 = scalar_lea.sflag [#allocation5], %s566
        %s568 = sand.u32 %s425, 1
        %s569 = smul.addr %s568, 256
        %s570 = scalar_lea.vmem [#allocation4], %s569
        %p571 = scmp.lt.s32.totalorder %s34, 1
        %s572 = scalar_select %p571, %s34, 1
        %s573 = smul.addr %s572, 32
        %s574 = smul.addr %s573, 8
        %s575 = scalar_lea.vmem %s0, %s574
        %v577 = vld [vmem:[%s575] sm:$0xff]
        %v578 = vld [vmem:[%s575 + $0x8] sm:$0xff]
        %v579 = vld [vmem:[%s575 + $0x10] sm:$0xff]
        %v580 = vld [vmem:[%s575 + $0x18] sm:$0xff]
        %v581 = vld [vmem:[%s575 + $0x20] sm:$0xff]
        %v582 = vld [vmem:[%s575 + $0x28] sm:$0xff]
        %v583 = vld [vmem:[%s575 + $0x30] sm:$0xff]
        %v584 = vld [vmem:[%s575 + $0x38] sm:$0xff]
        %v585 = vld [vmem:[%s575 + $0x40] sm:$0xff]
        %v586 = vld [vmem:[%s575 + $0x48] sm:$0xff]
        %v587 = vld [vmem:[%s575 + $0x50] sm:$0xff]
        %v588 = vld [vmem:[%s575 + $0x58] sm:$0xff]
        %v589 = vld [vmem:[%s575 + $0x60] sm:$0xff]
        %v590 = vld [vmem:[%s575 + $0x68] sm:$0xff]
        %v591 = vld [vmem:[%s575 + $0x70] sm:$0xff]
        %v592 = vld [vmem:[%s575 + $0x78] sm:$0xff]
        %v593 = vld [vmem:[%s575 + $0x80] sm:$0xff]
        %v594 = vld [vmem:[%s575 + $0x88] sm:$0xff]
        %v595 = vld [vmem:[%s575 + $0x90] sm:$0xff]
        %v596 = vld [vmem:[%s575 + $0x98] sm:$0xff]
        %v597 = vld [vmem:[%s575 + $0xa0] sm:$0xff]
        %v598 = vld [vmem:[%s575 + $0xa8] sm:$0xff]
        %v599 = vld [vmem:[%s575 + $0xb0] sm:$0xff]
        %v600 = vld [vmem:[%s575 + $0xb8] sm:$0xff]
        %v601 = vld [vmem:[%s575 + $0xc0] sm:$0xff]
        %v602 = vld [vmem:[%s575 + $0xc8] sm:$0xff]
        %v603 = vld [vmem:[%s575 + $0xd0] sm:$0xff]
        %v604 = vld [vmem:[%s575 + $0xd8] sm:$0xff]
        %v605 = vld [vmem:[%s575 + $0xe0] sm:$0xff]
        %v606 = vld [vmem:[%s575 + $0xe8] sm:$0xff]
        %v607 = vld [vmem:[%s575 + $0xf0] sm:$0xff]
        %v608 = vld [vmem:[%s575 + $0xf8] sm:$0xff]
        %v609 = vpack.c.bf16 %v578, %v577
        %v610 = vpack.c.bf16 %v580, %v579
        %v611 = vpack.c.bf16 %v582, %v581
        %v612 = vpack.c.bf16 %v584, %v583
        %v613 = vpack.c.bf16 %v586, %v585
        %v614 = vpack.c.bf16 %v588, %v587
        %v615 = vpack.c.bf16 %v590, %v589
        %v616 = vpack.c.bf16 %v592, %v591
        %v617 = vpack.c.bf16 %v594, %v593
        %v618 = vpack.c.bf16 %v596, %v595
        %v619 = vpack.c.bf16 %v598, %v597
        %v620 = vpack.c.bf16 %v600, %v599
        %v621 = vpack.c.bf16 %v602, %v601
        %v622 = vpack.c.bf16 %v604, %v603
        %v623 = vpack.c.bf16 %v606, %v605
        %v624 = vpack.c.bf16 %v608, %v607
        %v625 = vld [vmem:[%s1] sm:$0xf]
        %v626 = vld [vmem:[%s1 + $0x4] sm:$0xf]
        %v627 = vld [vmem:[%s1 + $0x8] sm:$0xf]
        %v628 = vld [vmem:[%s1 + $0xc] sm:$0xf]
        %v629 = vld [vmem:[%s1 + $0x10] sm:$0xf]
        %v630 = vld [vmem:[%s1 + $0x14] sm:$0xf]
        %v631 = vld [vmem:[%s1 + $0x18] sm:$0xf]
        %v632 = vld [vmem:[%s1 + $0x1c] sm:$0xf]
        %v633 = vld [vmem:[%s2] sm:$0x1]
        %v635 = vlaneseq
        %v636 = vshrl.u32 %v635, 7
        %v637 = vsub.s32 0, %v636
        %v638 = vrot.slane %v633, %v637
        %v648 = vunpack.c.l.b16 %v625
        %v649 = vunpack.c.l.b16 %v626
        %v650 = vunpack.c.l.b16 %v627
        %v651 = vunpack.c.l.b16 %v628
        %v652 = vunpack.c.l.b16 %v629
        %v653 = vunpack.c.l.b16 %v630
        %v654 = vunpack.c.l.b16 %v631
        %v655 = vunpack.c.l.b16 %v632
        %v656 = vpack.c.b16 %v649, %v648
        %v657 = vpack.c.b16 %v651, %v650
        %v658 = vpack.c.b16 %v653, %v652
        %v659 = vpack.c.b16 %v655, %v654
        %vm664 = vcmask 523264
        %v666 = vsel %vm664, %v609, 0
        %v669 = vsel %vm664, %v610, 0
        %v672 = vsel %vm664, %v611, 0
        %v675 = vsel %vm664, %v612, 0
        %v678 = vsel %vm664, %v613, 0
        %v681 = vsel %vm664, %v614, 0
        %v684 = vsel %vm664, %v615, 0
        %v687 = vsel %vm664, %v616, 0
        %v690 = vsel %vm664, %v617, 0
        %v693 = vsel %vm664, %v618, 0
        %v696 = vsel %vm664, %v619, 0
        %v699 = vsel %vm664, %v620, 0
        %v702 = vsel %vm664, %v621, 0
        %v705 = vsel %vm664, %v622, 0
        %v708 = vsel %vm664, %v623, 0
        %v711 = vsel %vm664, %v624, 0
        %713 = vmatprep.subr.bf16.mxu0 0
        %714 = vmatpush1.bf16.msra.mxu0 0
        %715 = vmatprep.subr.bf16.mxu0 0
        %716 = vmatpush1.bf16.msra.mxu0 0
        %717 = vmatprep.subr.bf16.mxu0 0
        %718 = vmatpush1.bf16.msra.mxu0 0
        %719 = vmatprep.subr.bf16.mxu0 0
        %720 = vmatpush1.bf16.msra.mxu0 0
        %721 = vmatprep.subr.bf16.mxu0 0
        %722 = vmatpush1.bf16.msra.mxu0 %v659
        %723 = vmatprep.subr.bf16.mxu0 0
        %724 = vmatpush1.bf16.msra.mxu0 %v658
        %725 = vmatprep.subr.bf16.mxu0 0
        %726 = vmatpush1.bf16.msra.mxu0 %v657
        %727 = vmatprep.subr.bf16.mxu0 0
        %728 = vmatpush1.bf16.msra.mxu0 %v656
        %729 = vmatprep.subr.bf16.mxu0 0
        %730 = vmatpush2.bf16.msra.mxu0 0
        %731 = vmatprep.subr.bf16.mxu0 0
        %732 = vmatpush2.bf16.msra.mxu0 0
        %733 = vmatprep.subr.bf16.mxu0 0
        %734 = vmatpush2.bf16.msra.mxu0 0
        %735 = vmatprep.subr.bf16.mxu0 0
        %736 = vmatpush2.bf16.msra.mxu0 0
        %737 = vmatprep.subr.bf16.mxu0 0
        %738 = vmatpush2.bf16.msra.mxu0 0
        %739 = vmatprep.subr.bf16.mxu0 0
        %740 = vmatpush2.bf16.msra.mxu0 0
        %741 = vmatprep.subr.bf16.mxu0 0
        %742 = vmatpush2.bf16.msra.mxu0 0
        %743 = vmatprep.subr.bf16.mxu0 0
        %744 = vmatpush2.bf16.msra.mxu0 0
        %745 = vmatprep.mubr.bf16.mxu0 0
        %746 = vmatmul.mubr.bf16.gmra.mxu0 %v666
        %v747 = vpop.f32.mrf.mxu0
        %v748 = vadd.f32 %v638, %v747
        %v749 = vpop.f32.mrf.mxu0
        %v750 = vpop.f32.mrf.mxu0
        %v751 = vadd.f32 %v638, %v750
        %v752 = vpop.f32.mrf.mxu0
        %753 = vmatprep.mubr.bf16.mxu0 0
        %754 = vmatmul.mubr.bf16.gmra.mxu0 %v669
        %v755 = vpop.f32.mrf.mxu0
        %v756 = vadd.f32 %v638, %v755
        %v757 = vpop.f32.mrf.mxu0
        %v758 = vpop.f32.mrf.mxu0
        %v759 = vadd.f32 %v638, %v758
        %v760 = vpop.f32.mrf.mxu0
        %761 = vmatprep.mubr.bf16.mxu0 0
        %762 = vmatmul.mubr.bf16.gmra.mxu0 %v672
        %v763 = vpop.f32.mrf.mxu0
        %v764 = vadd.f32 %v638, %v763
        %v765 = vpop.f32.mrf.mxu0
        %v766 = vpop.f32.mrf.mxu0
        %v767 = vadd.f32 %v638, %v766
        %v768 = vpop.f32.mrf.mxu0
        %769 = vmatprep.mubr.bf16.mxu0 0
        %770 = vmatmul.mubr.bf16.gmra.mxu0 %v675
        %v771 = vpop.f32.mrf.mxu0
        %v772 = vadd.f32 %v638, %v771
        %v773 = vpop.f32.mrf.mxu0
        %v774 = vpop.f32.mrf.mxu0
        %v775 = vadd.f32 %v638, %v774
        %v776 = vpop.f32.mrf.mxu0
        %777 = vmatprep.mubr.bf16.mxu0 0
        %778 = vmatmul.mubr.bf16.gmra.mxu0 %v678
        %v779 = vpop.f32.mrf.mxu0
        %v780 = vadd.f32 %v638, %v779
        %v781 = vpop.f32.mrf.mxu0
        %v782 = vpop.f32.mrf.mxu0
        %v783 = vadd.f32 %v638, %v782
        %v784 = vpop.f32.mrf.mxu0
        %785 = vmatprep.mubr.bf16.mxu0 0
        %786 = vmatmul.mubr.bf16.gmra.mxu0 %v681
        %v787 = vpop.f32.mrf.mxu0
        %v788 = vadd.f32 %v638, %v787
        %v789 = vpop.f32.mrf.mxu0
        %v790 = vpop.f32.mrf.mxu0
        %v791 = vadd.f32 %v638, %v790
        %v792 = vpop.f32.mrf.mxu0
        %793 = vmatprep.mubr.bf16.mxu0 0
        %794 = vmatmul.mubr.bf16.gmra.mxu0 %v684
        %v795 = vpop.f32.mrf.mxu0
        %v796 = vadd.f32 %v638, %v795
        %v797 = vpop.f32.mrf.mxu0
        %v798 = vpop.f32.mrf.mxu0
        %v799 = vadd.f32 %v638, %v798
        %v800 = vpop.f32.mrf.mxu0
        %801 = vmatprep.mubr.bf16.mxu0 0
        %802 = vmatmul.mubr.bf16.gmra.mxu0 %v687
        %v803 = vpop.f32.mrf.mxu0
        %v804 = vadd.f32 %v638, %v803
        %v805 = vpop.f32.mrf.mxu0
        %v806 = vpop.f32.mrf.mxu0
        %v807 = vadd.f32 %v638, %v806
        %v808 = vpop.f32.mrf.mxu0
        %809 = vmatprep.mubr.bf16.mxu0 0
        %810 = vmatmul.mubr.bf16.gmra.mxu0 %v690
        %v811 = vpop.f32.mrf.mxu0
        %v812 = vadd.f32 %v638, %v811
        %v813 = vpop.f32.mrf.mxu0
        %v814 = vpop.f32.mrf.mxu0
        %v815 = vadd.f32 %v638, %v814
        %v816 = vpop.f32.mrf.mxu0
        %817 = vmatprep.mubr.bf16.mxu0 0
        %818 = vmatmul.mubr.bf16.gmra.mxu0 %v693
        %v819 = vpop.f32.mrf.mxu0
        %v820 = vadd.f32 %v638, %v819
        %v821 = vpop.f32.mrf.mxu0
        %v822 = vpop.f32.mrf.mxu0
        %v823 = vadd.f32 %v638, %v822
        %v824 = vpop.f32.mrf.mxu0
        %825 = vmatprep.mubr.bf16.mxu0 0
        %826 = vmatmul.mubr.bf16.gmra.mxu0 %v696
        %v827 = vpop.f32.mrf.mxu0
        %v828 = vadd.f32 %v638, %v827
        %v829 = vpop.f32.mrf.mxu0
        %v830 = vpop.f32.mrf.mxu0
        %v831 = vadd.f32 %v638, %v830
        %v832 = vpop.f32.mrf.mxu0
        %833 = vmatprep.mubr.bf16.mxu0 0
        %834 = vmatmul.mubr.bf16.gmra.mxu0 %v699
        %v835 = vpop.f32.mrf.mxu0
        %v836 = vadd.f32 %v638, %v835
        %v837 = vpop.f32.mrf.mxu0
        %v838 = vpop.f32.mrf.mxu0
        %v839 = vadd.f32 %v638, %v838
        %v840 = vpop.f32.mrf.mxu0
        %841 = vmatprep.mubr.bf16.mxu0 0
        %842 = vmatmul.mubr.bf16.gmra.mxu0 %v702
        %v843 = vpop.f32.mrf.mxu0
        %v844 = vadd.f32 %v638, %v843
        %v845 = vpop.f32.mrf.mxu0
        %v846 = vpop.f32.mrf.mxu0
        %v847 = vadd.f32 %v638, %v846
        %v848 = vpop.f32.mrf.mxu0
        %849 = vmatprep.mubr.bf16.mxu0 0
        %850 = vmatmul.mubr.bf16.gmra.mxu0 %v705
        %v851 = vpop.f32.mrf.mxu0
        %v852 = vadd.f32 %v638, %v851
        %v853 = vpop.f32.mrf.mxu0
        %v854 = vpop.f32.mrf.mxu0
        %v855 = vadd.f32 %v638, %v854
        %v856 = vpop.f32.mrf.mxu0
        %857 = vmatprep.mubr.bf16.mxu0 0
        %858 = vmatmul.mubr.bf16.gmra.mxu0 %v708
        %v859 = vpop.f32.mrf.mxu0
        %v860 = vadd.f32 %v638, %v859
        %v861 = vpop.f32.mrf.mxu0
        %v862 = vpop.f32.mrf.mxu0
        %v863 = vadd.f32 %v638, %v862
        %v864 = vpop.f32.mrf.mxu0
        %865 = vmatprep.mubr.bf16.mxu0 0
        %866 = vmatmul.mubr.bf16.gmra.mxu0 %v711
        %v867 = vpop.f32.mrf.mxu0
        %v868 = vadd.f32 %v638, %v867
        %v869 = vpop.f32.mrf.mxu0
        %v870 = vpop.f32.mrf.mxu0
        %v871 = vadd.f32 %v638, %v870
        %v872 = vpop.f32.mrf.mxu0
        %873 = vdwg.mxu0
        %v874 = vld [vmem:[%s3] sm:$0x7]
        %v875 = vld [vmem:[%s3 + $0x4] sm:$0x7]
        %v876 = vld [vmem:[%s3 + $0x8] sm:$0x7]
        %v877 = vlaneseq
        %v878 = vshrl.u32 %v877, 7
        %v879 = vadd.s32 %v878, 8
        %v880 = vadd.s32 %v878, 16
        %v881 = vadd.s32 %v878, 24
        %v882 = vadd.s32 %v878, 32
        %v883 = vadd.s32 %v878, 40
        %v884 = vadd.s32 %v878, 48
        %v885 = vadd.s32 %v878, 56
        %v886 = vadd.s32 %v878, 64
        %v887 = vadd.s32 %v878, 72
        %v888 = vadd.s32 %v878, 80
        %v889 = vadd.s32 %v878, 88
        %v890 = vadd.s32 %v878, 96
        %v891 = vadd.s32 %v878, 104
        %v892 = vadd.s32 %v878, 112
        %v893 = vadd.s32 %v878, 120
        %v894 = vadd.s32 %v878, 128
        %v895 = vadd.s32 %v878, 136
        %v896 = vadd.s32 %v878, 144
        %v897 = vadd.s32 %v878, 152
        %v898 = vadd.s32 %v878, 160
        %v899 = vadd.s32 %v878, 168
        %v900 = vadd.s32 %v878, 176
        %v901 = vadd.s32 %v878, 184
        %v902 = vadd.s32 %v878, 192
        %v903 = vadd.s32 %v878, 200
        %v904 = vadd.s32 %v878, 208
        %v905 = vadd.s32 %v878, 216
        %v906 = vadd.s32 %v878, 224
        %v907 = vadd.s32 %v878, 232
        %v908 = vadd.s32 %v878, 240
        %v909 = vadd.s32 %v878, 248
        %vm910 = vcmp.lt.s32.totalorder %v878, 0
        %v911 = vsub.s32 0, %v878
        %v912 = vsel %vm910, %v911, %v878
        %v913 = vshrl.u32 %v912, 4
        %v914 = vand.u32 %v912, 15
        %v915 = vsub.s32 0, %v914
        %v916 = vsel %vm910, %v915, %v914
        %vm917 = vcmp.lt.s32.totalorder %v879, 0
        %v918 = vsub.s32 0, %v879
        %v919 = vsel %vm917, %v918, %v879
        %v920 = vshrl.u32 %v919, 4
        %v921 = vand.u32 %v919, 15
        %v922 = vsub.s32 0, %v921
        %v923 = vsel %vm917, %v922, %v921
        %vm924 = vcmp.lt.s32.totalorder %v880, 0
        %v925 = vsub.s32 0, %v880
        %v926 = vsel %vm924, %v925, %v880
        %v927 = vshrl.u32 %v926, 4
        %v928 = vand.u32 %v926, 15
        %v929 = vsub.s32 0, %v928
        %v930 = vsel %vm924, %v929, %v928
        %vm931 = vcmp.lt.s32.totalorder %v881, 0
        %v932 = vsub.s32 0, %v881
        %v933 = vsel %vm931, %v932, %v881
        %v934 = vshrl.u32 %v933, 4
        %v935 = vand.u32 %v933, 15
        %v936 = vsub.s32 0, %v935
        %v937 = vsel %vm931, %v936, %v935
        %vm938 = vcmp.lt.s32.totalorder %v882, 0
        %v939 = vsub.s32 0, %v882
        %v940 = vsel %vm938, %v939, %v882
        %v941 = vshrl.u32 %v940, 4
        %v942 = vand.u32 %v940, 15
        %v943 = vsub.s32 0, %v942
        %v944 = vsel %vm938, %v943, %v942
        %vm945 = vcmp.lt.s32.totalorder %v883, 0
        %v946 = vsub.s32 0, %v883
        %v947 = vsel %vm945, %v946, %v883
        %v948 = vshrl.u32 %v947, 4
        %v949 = vand.u32 %v947, 15
        %v950 = vsub.s32 0, %v949
        %v951 = vsel %vm945, %v950, %v949
        %vm952 = vcmp.lt.s32.totalorder %v884, 0
        %v953 = vsub.s32 0, %v884
        %v954 = vsel %vm952, %v953, %v884
        %v955 = vshrl.u32 %v954, 4
        %v956 = vand.u32 %v954, 15
        %v957 = vsub.s32 0, %v956
        %v958 = vsel %vm952, %v957, %v956
        %vm959 = vcmp.lt.s32.totalorder %v885, 0
        %v960 = vsub.s32 0, %v885
        %v961 = vsel %vm959, %v960, %v885
        %v962 = vshrl.u32 %v961, 4
        %v963 = vand.u32 %v961, 15
        %v964 = vsub.s32 0, %v963
        %v965 = vsel %vm959, %v964, %v963
        %vm966 = vcmp.lt.s32.totalorder %v886, 0
        %v967 = vsub.s32 0, %v886
        %v968 = vsel %vm966, %v967, %v886
        %v969 = vshrl.u32 %v968, 4
        %v970 = vand.u32 %v968, 15
        %v971 = vsub.s32 0, %v970
        %v972 = vsel %vm966, %v971, %v970
        %vm973 = vcmp.lt.s32.totalorder %v887, 0
        %v974 = vsub.s32 0, %v887
        %v975 = vsel %vm973, %v974, %v887
        %v976 = vshrl.u32 %v975, 4
        %v977 = vand.u32 %v975, 15
        %v978 = vsub.s32 0, %v977
        %v979 = vsel %vm973, %v978, %v977
        %vm980 = vcmp.lt.s32.totalorder %v888, 0
        %v981 = vsub.s32 0, %v888
        %v982 = vsel %vm980, %v981, %v888
        %v983 = vshrl.u32 %v982, 4
        %v984 = vand.u32 %v982, 15
        %v985 = vsub.s32 0, %v984
        %v986 = vsel %vm980, %v985, %v984
        %vm987 = vcmp.lt.s32.totalorder %v889, 0
        %v988 = vsub.s32 0, %v889
        %v989 = vsel %vm987, %v988, %v889
        %v990 = vshrl.u32 %v989, 4
        %v991 = vand.u32 %v989, 15
        %v992 = vsub.s32 0, %v991
        %v993 = vsel %vm987, %v992, %v991
        %vm994 = vcmp.lt.s32.totalorder %v890, 0
        %v995 = vsub.s32 0, %v890
        %v996 = vsel %vm994, %v995, %v890
        %v997 = vshrl.u32 %v996, 4
        %v998 = vand.u32 %v996, 15
        %v999 = vsub.s32 0, %v998
        %v1000 = vsel %vm994, %v999, %v998
        %vm1001 = vcmp.lt.s32.totalorder %v891, 0
        %v1002 = vsub.s32 0, %v891
        %v1003 = vsel %vm1001, %v1002, %v891
        %v1004 = vshrl.u32 %v1003, 4
        %v1005 = vand.u32 %v1003, 15
        %v1006 = vsub.s32 0, %v1005
        %v1007 = vsel %vm1001, %v1006, %v1005
        %vm1008 = vcmp.lt.s32.totalorder %v892, 0
        %v1009 = vsub.s32 0, %v892
        %v1010 = vsel %vm1008, %v1009, %v892
        %v1011 = vshrl.u32 %v1010, 4
        %v1012 = vand.u32 %v1010, 15
        %v1013 = vsub.s32 0, %v1012
        %v1014 = vsel %vm1008, %v1013, %v1012
        %vm1015 = vcmp.lt.s32.totalorder %v893, 0
        %v1016 = vsub.s32 0, %v893
        %v1017 = vsel %vm1015, %v1016, %v893
        %v1018 = vshrl.u32 %v1017, 4
        %v1019 = vand.u32 %v1017, 15
        %v1020 = vsub.s32 0, %v1019
        %v1021 = vsel %vm1015, %v1020, %v1019
        %vm1022 = vcmp.lt.s32.totalorder %v894, 0
        %v1023 = vsub.s32 0, %v894
        %v1024 = vsel %vm1022, %v1023, %v894
        %v1025 = vshrl.u32 %v1024, 4
        %v1026 = vand.u32 %v1024, 15
        %v1027 = vsub.s32 0, %v1026
        %v1028 = vsel %vm1022, %v1027, %v1026
        %vm1029 = vcmp.lt.s32.totalorder %v895, 0
        %v1030 = vsub.s32 0, %v895
        %v1031 = vsel %vm1029, %v1030, %v895
        %v1032 = vshrl.u32 %v1031, 4
        %v1033 = vand.u32 %v1031, 15
        %v1034 = vsub.s32 0, %v1033
        %v1035 = vsel %vm1029, %v1034, %v1033
        %vm1036 = vcmp.lt.s32.totalorder %v896, 0
        %v1037 = vsub.s32 0, %v896
        %v1038 = vsel %vm1036, %v1037, %v896
        %v1039 = vshrl.u32 %v1038, 4
        %v1040 = vand.u32 %v1038, 15
        %v1041 = vsub.s32 0, %v1040
        %v1042 = vsel %vm1036, %v1041, %v1040
        %vm1043 = vcmp.lt.s32.totalorder %v897, 0
        %v1044 = vsub.s32 0, %v897
        %v1045 = vsel %vm1043, %v1044, %v897
        %v1046 = vshrl.u32 %v1045, 4
        %v1047 = vand.u32 %v1045, 15
        %v1048 = vsub.s32 0, %v1047
        %v1049 = vsel %vm1043, %v1048, %v1047
        %vm1050 = vcmp.lt.s32.totalorder %v898, 0
        %v1051 = vsub.s32 0, %v898
        %v1052 = vsel %vm1050, %v1051, %v898
        %v1053 = vshrl.u32 %v1052, 4
        %v1054 = vand.u32 %v1052, 15
        %v1055 = vsub.s32 0, %v1054
        %v1056 = vsel %vm1050, %v1055, %v1054
        %vm1057 = vcmp.lt.s32.totalorder %v899, 0
        %v1058 = vsub.s32 0, %v899
        %v1059 = vsel %vm1057, %v1058, %v899
        %v1060 = vshrl.u32 %v1059, 4
        %v1061 = vand.u32 %v1059, 15
        %v1062 = vsub.s32 0, %v1061
        %v1063 = vsel %vm1057, %v1062, %v1061
        %vm1064 = vcmp.lt.s32.totalorder %v900, 0
        %v1065 = vsub.s32 0, %v900
        %v1066 = vsel %vm1064, %v1065, %v900
        %v1067 = vshrl.u32 %v1066, 4
        %v1068 = vand.u32 %v1066, 15
        %v1069 = vsub.s32 0, %v1068
        %v1070 = vsel %vm1064, %v1069, %v1068
        %vm1071 = vcmp.lt.s32.totalorder %v901, 0
        %v1072 = vsub.s32 0, %v901
        %v1073 = vsel %vm1071, %v1072, %v901
        %v1074 = vshrl.u32 %v1073, 4
        %v1075 = vand.u32 %v1073, 15
        %v1076 = vsub.s32 0, %v1075
        %v1077 = vsel %vm1071, %v1076, %v1075
        %vm1078 = vcmp.lt.s32.totalorder %v902, 0
        %v1079 = vsub.s32 0, %v902
        %v1080 = vsel %vm1078, %v1079, %v902
        %v1081 = vshrl.u32 %v1080, 4
        %v1082 = vand.u32 %v1080, 15
        %v1083 = vsub.s32 0, %v1082
        %v1084 = vsel %vm1078, %v1083, %v1082
        %vm1085 = vcmp.lt.s32.totalorder %v903, 0
        %v1086 = vsub.s32 0, %v903
        %v1087 = vsel %vm1085, %v1086, %v903
        %v1088 = vshrl.u32 %v1087, 4
        %v1089 = vand.u32 %v1087, 15
        %v1090 = vsub.s32 0, %v1089
        %v1091 = vsel %vm1085, %v1090, %v1089
        %vm1092 = vcmp.lt.s32.totalorder %v904, 0
        %v1093 = vsub.s32 0, %v904
        %v1094 = vsel %vm1092, %v1093, %v904
        %v1095 = vshrl.u32 %v1094, 4
        %v1096 = vand.u32 %v1094, 15
        %v1097 = vsub.s32 0, %v1096
        %v1098 = vsel %vm1092, %v1097, %v1096
        %vm1099 = vcmp.lt.s32.totalorder %v905, 0
        %v1100 = vsub.s32 0, %v905
        %v1101 = vsel %vm1099, %v1100, %v905
        %v1102 = vshrl.u32 %v1101, 4
        %v1103 = vand.u32 %v1101, 15
        %v1104 = vsub.s32 0, %v1103
        %v1105 = vsel %vm1099, %v1104, %v1103
        %vm1106 = vcmp.lt.s32.totalorder %v906, 0
        %v1107 = vsub.s32 0, %v906
        %v1108 = vsel %vm1106, %v1107, %v906
        %v1109 = vshrl.u32 %v1108, 4
        %v1110 = vand.u32 %v1108, 15
        %v1111 = vsub.s32 0, %v1110
        %v1112 = vsel %vm1106, %v1111, %v1110
        %vm1113 = vcmp.lt.s32.totalorder %v907, 0
        %v1114 = vsub.s32 0, %v907
        %v1115 = vsel %vm1113, %v1114, %v907
        %v1116 = vshrl.u32 %v1115, 4
        %v1117 = vand.u32 %v1115, 15
        %v1118 = vsub.s32 0, %v1117
        %v1119 = vsel %vm1113, %v1118, %v1117
        %vm1120 = vcmp.lt.s32.totalorder %v908, 0
        %v1121 = vsub.s32 0, %v908
        %v1122 = vsel %vm1120, %v1121, %v908
        %v1123 = vshrl.u32 %v1122, 4
        %v1124 = vand.u32 %v1122, 15
        %v1125 = vsub.s32 0, %v1124
        %v1126 = vsel %vm1120, %v1125, %v1124
        %vm1127 = vcmp.lt.s32.totalorder %v909, 0
        %v1128 = vsub.s32 0, %v909
        %v1129 = vsel %vm1127, %v1128, %v909
        %v1130 = vshrl.u32 %v1129, 4
        %v1131 = vand.u32 %v1129, 15
        %v1132 = vsub.s32 0, %v1131
        %v1133 = vsel %vm1127, %v1132, %v1131
        %vm1134 = vcmp.ne.s32.totalorder %v916, 0
        %vm1135 = vcmp.ne.s32.totalorder %v923, 0
        %vm1136 = vcmp.ne.s32.totalorder %v930, 0
        %vm1137 = vcmp.ne.s32.totalorder %v937, 0
        %vm1138 = vcmp.ne.s32.totalorder %v944, 0
        %vm1139 = vcmp.ne.s32.totalorder %v951, 0
        %vm1140 = vcmp.ne.s32.totalorder %v958, 0
        %vm1141 = vcmp.ne.s32.totalorder %v965, 0
        %vm1142 = vcmp.ne.s32.totalorder %v972, 0
        %vm1143 = vcmp.ne.s32.totalorder %v979, 0
        %vm1144 = vcmp.ne.s32.totalorder %v986, 0
        %vm1145 = vcmp.ne.s32.totalorder %v993, 0
        %vm1146 = vcmp.ne.s32.totalorder %v1000, 0
        %vm1147 = vcmp.ne.s32.totalorder %v1007, 0
        %vm1148 = vcmp.ne.s32.totalorder %v1014, 0
        %vm1149 = vcmp.ne.s32.totalorder %v1021, 0
        %vm1150 = vcmp.ne.s32.totalorder %v1028, 0
        %vm1151 = vcmp.ne.s32.totalorder %v1035, 0
        %vm1152 = vcmp.ne.s32.totalorder %v1042, 0
        %vm1153 = vcmp.ne.s32.totalorder %v1049, 0
        %vm1154 = vcmp.ne.s32.totalorder %v1056, 0
        %vm1155 = vcmp.ne.s32.totalorder %v1063, 0
        %vm1156 = vcmp.ne.s32.totalorder %v1070, 0
        %vm1157 = vcmp.ne.s32.totalorder %v1077, 0
        %vm1158 = vcmp.ne.s32.totalorder %v1084, 0
        %vm1159 = vcmp.ne.s32.totalorder %v1091, 0
        %vm1160 = vcmp.ne.s32.totalorder %v1098, 0
        %vm1161 = vcmp.ne.s32.totalorder %v1105, 0
        %vm1162 = vcmp.ne.s32.totalorder %v1112, 0
        %vm1163 = vcmp.ne.s32.totalorder %v1119, 0
        %vm1164 = vcmp.ne.s32.totalorder %v1126, 0
        %vm1165 = vcmp.ne.s32.totalorder %v1133, 0
        %vm1166 = vcmp.lt.s32.totalorder %v916, 0
        %vm1167 = vcmp.lt.s32.totalorder %v923, 0
        %vm1168 = vcmp.lt.s32.totalorder %v930, 0
        %vm1169 = vcmp.lt.s32.totalorder %v937, 0
        %vm1170 = vcmp.lt.s32.totalorder %v944, 0
        %vm1171 = vcmp.lt.s32.totalorder %v951, 0
        %vm1172 = vcmp.lt.s32.totalorder %v958, 0
        %vm1173 = vcmp.lt.s32.totalorder %v965, 0
        %vm1174 = vcmp.lt.s32.totalorder %v972, 0
        %vm1175 = vcmp.lt.s32.totalorder %v979, 0
        %vm1176 = vcmp.lt.s32.totalorder %v986, 0
        %vm1177 = vcmp.lt.s32.totalorder %v993, 0
        %vm1178 = vcmp.lt.s32.totalorder %v1000, 0
        %vm1179 = vcmp.lt.s32.totalorder %v1007, 0
        %vm1180 = vcmp.lt.s32.totalorder %v1014, 0
        %vm1181 = vcmp.lt.s32.totalorder %v1021, 0
        %vm1182 = vcmp.lt.s32.totalorder %v1028, 0
        %vm1183 = vcmp.lt.s32.totalorder %v1035, 0
        %vm1184 = vcmp.lt.s32.totalorder %v1042, 0
        %vm1185 = vcmp.lt.s32.totalorder %v1049, 0
        %vm1186 = vcmp.lt.s32.totalorder %v1056, 0
        %vm1187 = vcmp.lt.s32.totalorder %v1063, 0
        %vm1188 = vcmp.lt.s32.totalorder %v1070, 0
        %vm1189 = vcmp.lt.s32.totalorder %v1077, 0
        %vm1190 = vcmp.lt.s32.totalorder %v1084, 0
        %vm1191 = vcmp.lt.s32.totalorder %v1091, 0
        %vm1192 = vcmp.lt.s32.totalorder %v1098, 0
        %vm1193 = vcmp.lt.s32.totalorder %v1105, 0
        %vm1194 = vcmp.lt.s32.totalorder %v1112, 0
        %vm1195 = vcmp.lt.s32.totalorder %v1119, 0
        %vm1196 = vcmp.lt.s32.totalorder %v1126, 0
        %vm1197 = vcmp.lt.s32.totalorder %v1133, 0
        %vm1198 = vmand %vm1166, %vm1134
        %vm1199 = vmand %vm1167, %vm1135
        %vm1200 = vmand %vm1168, %vm1136
        %vm1201 = vmand %vm1169, %vm1137
        %vm1202 = vmand %vm1170, %vm1138
        %vm1203 = vmand %vm1171, %vm1139
        %vm1204 = vmand %vm1172, %vm1140
        %vm1205 = vmand %vm1173, %vm1141
        %vm1206 = vmand %vm1174, %vm1142
        %vm1207 = vmand %vm1175, %vm1143
        %vm1208 = vmand %vm1176, %vm1144
        %vm1209 = vmand %vm1177, %vm1145
        %vm1210 = vmand %vm1178, %vm1146
        %vm1211 = vmand %vm1179, %vm1147
        %vm1212 = vmand %vm1180, %vm1148
        %vm1213 = vmand %vm1181, %vm1149
        %vm1214 = vmand %vm1182, %vm1150
        %vm1215 = vmand %vm1183, %vm1151
        %vm1216 = vmand %vm1184, %vm1152
        %vm1217 = vmand %vm1185, %vm1153
        %vm1218 = vmand %vm1186, %vm1154
        %vm1219 = vmand %vm1187, %vm1155
        %vm1220 = vmand %vm1188, %vm1156
        %vm1221 = vmand %vm1189, %vm1157
        %vm1222 = vmand %vm1190, %vm1158
        %vm1223 = vmand %vm1191, %vm1159
        %vm1224 = vmand %vm1192, %vm1160
        %vm1225 = vmand %vm1193, %vm1161
        %vm1226 = vmand %vm1194, %vm1162
        %vm1227 = vmand %vm1195, %vm1163
        %vm1228 = vmand %vm1196, %vm1164
        %vm1229 = vmand %vm1197, %vm1165
        %v1230 = vadd.s32 %v916, 16
        %v1231 = vadd.s32 %v923, 16
        %v1232 = vadd.s32 %v930, 16
        %v1233 = vadd.s32 %v937, 16
        %v1234 = vadd.s32 %v944, 16
        %v1235 = vadd.s32 %v951, 16
        %v1236 = vadd.s32 %v958, 16
        %v1237 = vadd.s32 %v965, 16
        %v1238 = vadd.s32 %v972, 16
        %v1239 = vadd.s32 %v979, 16
        %v1240 = vadd.s32 %v986, 16
        %v1241 = vadd.s32 %v993, 16
        %v1242 = vadd.s32 %v1000, 16
        %v1243 = vadd.s32 %v1007, 16
        %v1244 = vadd.s32 %v1014, 16
        %v1245 = vadd.s32 %v1021, 16
        %v1246 = vadd.s32 %v1028, 16
        %v1247 = vadd.s32 %v1035, 16
        %v1248 = vadd.s32 %v1042, 16
        %v1249 = vadd.s32 %v1049, 16
        %v1250 = vadd.s32 %v1056, 16
        %v1251 = vadd.s32 %v1063, 16
        %v1252 = vadd.s32 %v1070, 16
        %v1253 = vadd.s32 %v1077, 16
        %v1254 = vadd.s32 %v1084, 16
        %v1255 = vadd.s32 %v1091, 16
        %v1256 = vadd.s32 %v1098, 16
        %v1257 = vadd.s32 %v1105, 16
        %v1258 = vadd.s32 %v1112, 16
        %v1259 = vadd.s32 %v1119, 16
        %v1260 = vadd.s32 %v1126, 16
        %v1261 = vadd.s32 %v1133, 16
        %v1262 = vsel %vm1198, %v1230, %v916
        %v1263 = vsel %vm1199, %v1231, %v923
        %v1264 = vsel %vm1200, %v1232, %v930
        %v1265 = vsel %vm1201, %v1233, %v937
        %v1266 = vsel %vm1202, %v1234, %v944
        %v1267 = vsel %vm1203, %v1235, %v951
        %v1268 = vsel %vm1204, %v1236, %v958
        %v1269 = vsel %vm1205, %v1237, %v965
        %v1270 = vsel %vm1206, %v1238, %v972
        %v1271 = vsel %vm1207, %v1239, %v979
        %v1272 = vsel %vm1208, %v1240, %v986
        %v1273 = vsel %vm1209, %v1241, %v993
        %v1274 = vsel %vm1210, %v1242, %v1000
        %v1275 = vsel %vm1211, %v1243, %v1007
        %v1276 = vsel %vm1212, %v1244, %v1014
        %v1277 = vsel %vm1213, %v1245, %v1021
        %v1278 = vsel %vm1214, %v1246, %v1028
        %v1279 = vsel %vm1215, %v1247, %v1035
        %v1280 = vsel %vm1216, %v1248, %v1042
        %v1281 = vsel %vm1217, %v1249, %v1049
        %v1282 = vsel %vm1218, %v1250, %v1056
        %v1283 = vsel %vm1219, %v1251, %v1063
        %v1284 = vsel %vm1220, %v1252, %v1070
        %v1285 = vsel %vm1221, %v1253, %v1077
        %v1286 = vsel %vm1222, %v1254, %v1084
        %v1287 = vsel %vm1223, %v1255, %v1091
        %v1288 = vsel %vm1224, %v1256, %v1098
        %v1289 = vsel %vm1225, %v1257, %v1105
        %v1290 = vsel %vm1226, %v1258, %v1112
        %v1291 = vsel %vm1227, %v1259, %v1119
        %v1292 = vsel %vm1228, %v1260, %v1126
        %v1293 = vsel %vm1229, %v1261, %v1133
        %vm1294 = vcmp.ge.s32.totalorder %v1262, 1
        %vm1295 = vcmp.ge.s32.totalorder %v1263, 1
        %vm1296 = vcmp.ge.s32.totalorder %v1264, 1
        %vm1297 = vcmp.ge.s32.totalorder %v1265, 1
        %vm1298 = vcmp.ge.s32.totalorder %v1266, 1
        %vm1299 = vcmp.ge.s32.totalorder %v1267, 1
        %vm1300 = vcmp.ge.s32.totalorder %v1268, 1
        %vm1301 = vcmp.ge.s32.totalorder %v1269, 1
        %vm1302 = vcmp.ge.s32.totalorder %v1270, 1
        %vm1303 = vcmp.ge.s32.totalorder %v1271, 1
        %vm1304 = vcmp.ge.s32.totalorder %v1272, 1
        %vm1305 = vcmp.ge.s32.totalorder %v1273, 1
        %vm1306 = vcmp.ge.s32.totalorder %v1274, 1
        %vm1307 = vcmp.ge.s32.totalorder %v1275, 1
        %vm1308 = vcmp.ge.s32.totalorder %v1276, 1
        %vm1309 = vcmp.ge.s32.totalorder %v1277, 1
        %vm1310 = vcmp.ge.s32.totalorder %v1278, 1
        %vm1311 = vcmp.ge.s32.totalorder %v1279, 1
        %vm1312 = vcmp.ge.s32.totalorder %v1280, 1
        %vm1313 = vcmp.ge.s32.totalorder %v1281, 1
        %vm1314 = vcmp.ge.s32.totalorder %v1282, 1
        %vm1315 = vcmp.ge.s32.totalorder %v1283, 1
        %vm1316 = vcmp.ge.s32.totalorder %v1284, 1
        %vm1317 = vcmp.ge.s32.totalorder %v1285, 1
        %vm1318 = vcmp.ge.s32.totalorder %v1286, 1
        %vm1319 = vcmp.ge.s32.totalorder %v1287, 1
        %vm1320 = vcmp.ge.s32.totalorder %v1288, 1
        %vm1321 = vcmp.ge.s32.totalorder %v1289, 1
        %vm1322 = vcmp.ge.s32.totalorder %v1290, 1
        %vm1323 = vcmp.ge.s32.totalorder %v1291, 1
        %vm1324 = vcmp.ge.s32.totalorder %v1292, 1
        %vm1325 = vcmp.ge.s32.totalorder %v1293, 1
        %vm1326 = vcmp.le.s32.totalorder %v1262, 14
        %vm1327 = vcmp.le.s32.totalorder %v1263, 14
        %vm1328 = vcmp.le.s32.totalorder %v1264, 14
        %vm1329 = vcmp.le.s32.totalorder %v1265, 14
        %vm1330 = vcmp.le.s32.totalorder %v1266, 14
        %vm1331 = vcmp.le.s32.totalorder %v1267, 14
        %vm1332 = vcmp.le.s32.totalorder %v1268, 14
        %vm1333 = vcmp.le.s32.totalorder %v1269, 14
        %vm1334 = vcmp.le.s32.totalorder %v1270, 14
        %vm1335 = vcmp.le.s32.totalorder %v1271, 14
        %vm1336 = vcmp.le.s32.totalorder %v1272, 14
        %vm1337 = vcmp.le.s32.totalorder %v1273, 14
        %vm1338 = vcmp.le.s32.totalorder %v1274, 14
        %vm1339 = vcmp.le.s32.totalorder %v1275, 14
        %vm1340 = vcmp.le.s32.totalorder %v1276, 14
        %vm1341 = vcmp.le.s32.totalorder %v1277, 14
        %vm1342 = vcmp.le.s32.totalorder %v1278, 14
        %vm1343 = vcmp.le.s32.totalorder %v1279, 14
        %vm1344 = vcmp.le.s32.totalorder %v1280, 14
        %vm1345 = vcmp.le.s32.totalorder %v1281, 14
        %vm1346 = vcmp.le.s32.totalorder %v1282, 14
        %vm1347 = vcmp.le.s32.totalorder %v1283, 14
        %vm1348 = vcmp.le.s32.totalorder %v1284, 14
        %vm1349 = vcmp.le.s32.totalorder %v1285, 14
        %vm1350 = vcmp.le.s32.totalorder %v1286, 14
        %vm1351 = vcmp.le.s32.totalorder %v1287, 14
        %vm1352 = vcmp.le.s32.totalorder %v1288, 14
        %vm1353 = vcmp.le.s32.totalorder %v1289, 14
        %vm1354 = vcmp.le.s32.totalorder %v1290, 14
        %vm1355 = vcmp.le.s32.totalorder %v1291, 14
        %vm1356 = vcmp.le.s32.totalorder %v1292, 14
        %vm1357 = vcmp.le.s32.totalorder %v1293, 14
        %vm1388 = vcmask 1040384
        %v1389 = vrot.slane %v748, 7
        %v1390 = vrot.slane %v751, 7
        %v1391 = vsel %vm1388, %v1389, %v1390
        %v1392 = vrot.slane %v756, 7
        %v1393 = vsel %vm1388, %v1390, %v1392
        %v1394 = vrot.slane %v759, 7
        %v1395 = vsel %vm1388, %v1392, %v1394
        %v1396 = vrot.slane %v764, 7
        %v1397 = vsel %vm1388, %v1394, %v1396
        %v1398 = vrot.slane %v767, 7
        %v1399 = vsel %vm1388, %v1396, %v1398
        %v1400 = vrot.slane %v772, 7
        %v1401 = vsel %vm1388, %v1398, %v1400
        %v1402 = vrot.slane %v775, 7
        %v1403 = vsel %vm1388, %v1400, %v1402
        %v1404 = vrot.slane %v780, 7
        %v1405 = vsel %vm1388, %v1402, %v1404
        %v1406 = vrot.slane %v783, 7
        %v1407 = vsel %vm1388, %v1404, %v1406
        %v1408 = vrot.slane %v788, 7
        %v1409 = vsel %vm1388, %v1406, %v1408
        %v1410 = vrot.slane %v791, 7
        %v1411 = vsel %vm1388, %v1408, %v1410
        %v1412 = vrot.slane %v796, 7
        %v1413 = vsel %vm1388, %v1410, %v1412
        %v1414 = vrot.slane %v799, 7
        %v1415 = vsel %vm1388, %v1412, %v1414
        %v1416 = vrot.slane %v804, 7
        %v1417 = vsel %vm1388, %v1414, %v1416
        %v1418 = vrot.slane %v807, 7
        %v1419 = vsel %vm1388, %v1416, %v1418
        %v1420 = vrot.slane %v812, 7
        %v1421 = vsel %vm1388, %v1418, %v1420
        %v1422 = vrot.slane %v815, 7
        %v1423 = vsel %vm1388, %v1420, %v1422
        %v1424 = vrot.slane %v820, 7
        %v1425 = vsel %vm1388, %v1422, %v1424
        %v1426 = vrot.slane %v823, 7
        %v1427 = vsel %vm1388, %v1424, %v1426
        %v1428 = vrot.slane %v828, 7
        %v1429 = vsel %vm1388, %v1426, %v1428
        %v1430 = vrot.slane %v831, 7
        %v1431 = vsel %vm1388, %v1428, %v1430
        %v1432 = vrot.slane %v836, 7
        %v1433 = vsel %vm1388, %v1430, %v1432
        %v1434 = vrot.slane %v839, 7
        %v1435 = vsel %vm1388, %v1432, %v1434
        %v1436 = vrot.slane %v844, 7
        %v1437 = vsel %vm1388, %v1434, %v1436
        %v1438 = vrot.slane %v847, 7
        %v1439 = vsel %vm1388, %v1436, %v1438
        %v1440 = vrot.slane %v852, 7
        %v1441 = vsel %vm1388, %v1438, %v1440
        %v1442 = vrot.slane %v855, 7
        %v1443 = vsel %vm1388, %v1440, %v1442
        %v1444 = vrot.slane %v860, 7
        %v1445 = vsel %vm1388, %v1442, %v1444
        %v1446 = vrot.slane %v863, 7
        %v1447 = vsel %vm1388, %v1444, %v1446
        %v1478 = vsel %vm1388, 0.0, %v1389
        %v1479 = vsel %vm1294, 1, 0
        %v1480 = vsel %vm1295, 1, 0
        %v1481 = vsel %vm1296, 1, 0
        %v1482 = vsel %vm1297, 1, 0
        %v1483 = vsel %vm1298, 1, 0
        %v1484 = vsel %vm1299, 1, 0
        %v1485 = vsel %vm1300, 1, 0
        %v1486 = vsel %vm1301, 1, 0
        %v1487 = vsel %vm1302, 1, 0
        %v1488 = vsel %vm1303, 1, 0
        %v1489 = vsel %vm1304, 1, 0
        %v1490 = vsel %vm1305, 1, 0
        %v1491 = vsel %vm1306, 1, 0
        %v1492 = vsel %vm1307, 1, 0
        %v1493 = vsel %vm1308, 1, 0
        %v1494 = vsel %vm1309, 1, 0
        %v1495 = vsel %vm1310, 1, 0
        %v1496 = vsel %vm1311, 1, 0
        %v1497 = vsel %vm1312, 1, 0
        %v1498 = vsel %vm1313, 1, 0
        %v1499 = vsel %vm1314, 1, 0
        %v1500 = vsel %vm1315, 1, 0
        %v1501 = vsel %vm1316, 1, 0
        %v1502 = vsel %vm1317, 1, 0
        %v1503 = vsel %vm1318, 1, 0
        %v1504 = vsel %vm1319, 1, 0
        %v1505 = vsel %vm1320, 1, 0
        %v1506 = vsel %vm1321, 1, 0
        %v1507 = vsel %vm1322, 1, 0
        %v1508 = vsel %vm1323, 1, 0
        %v1509 = vsel %vm1324, 1, 0
        %v1510 = vsel %vm1325, 1, 0
        %vm1511 = vcmp.eq.s32.totalorder %v1479, 1
        %vm1512 = vcmp.eq.s32.totalorder %v1480, 1
        %vm1513 = vcmp.eq.s32.totalorder %v1481, 1
        %vm1514 = vcmp.eq.s32.totalorder %v1482, 1
        %vm1515 = vcmp.eq.s32.totalorder %v1483, 1
        %vm1516 = vcmp.eq.s32.totalorder %v1484, 1
        %vm1517 = vcmp.eq.s32.totalorder %v1485, 1
        %vm1518 = vcmp.eq.s32.totalorder %v1486, 1
        %vm1519 = vcmp.eq.s32.totalorder %v1487, 1
        %vm1520 = vcmp.eq.s32.totalorder %v1488, 1
        %vm1521 = vcmp.eq.s32.totalorder %v1489, 1
        %vm1522 = vcmp.eq.s32.totalorder %v1490, 1
        %vm1523 = vcmp.eq.s32.totalorder %v1491, 1
        %vm1524 = vcmp.eq.s32.totalorder %v1492, 1
        %vm1525 = vcmp.eq.s32.totalorder %v1493, 1
        %vm1526 = vcmp.eq.s32.totalorder %v1494, 1
        %vm1527 = vcmp.eq.s32.totalorder %v1495, 1
        %vm1528 = vcmp.eq.s32.totalorder %v1496, 1
        %vm1529 = vcmp.eq.s32.totalorder %v1497, 1
        %vm1530 = vcmp.eq.s32.totalorder %v1498, 1
        %vm1531 = vcmp.eq.s32.totalorder %v1499, 1
        %vm1532 = vcmp.eq.s32.totalorder %v1500, 1
        %vm1533 = vcmp.eq.s32.totalorder %v1501, 1
        %vm1534 = vcmp.eq.s32.totalorder %v1502, 1
        %vm1535 = vcmp.eq.s32.totalorder %v1503, 1
        %vm1536 = vcmp.eq.s32.totalorder %v1504, 1
        %vm1537 = vcmp.eq.s32.totalorder %v1505, 1
        %vm1538 = vcmp.eq.s32.totalorder %v1506, 1
        %vm1539 = vcmp.eq.s32.totalorder %v1507, 1
        %vm1540 = vcmp.eq.s32.totalorder %v1508, 1
        %vm1541 = vcmp.eq.s32.totalorder %v1509, 1
        %vm1542 = vcmp.eq.s32.totalorder %v1510, 1
        %v1543 = vsel %vm1513, %v1478, 0.0
        %v1544 = vsel %vm1514, %v1391, 0.0
        %v1545 = vsel %vm1515, %v1393, 0.0
        %v1546 = vsel %vm1516, %v1395, 0.0
        %v1547 = vsel %vm1517, %v1397, 0.0
        %v1548 = vsel %vm1518, %v1399, 0.0
        %v1549 = vsel %vm1519, %v1401, 0.0
        %v1550 = vsel %vm1520, %v1403, 0.0
        %v1551 = vsel %vm1521, %v1405, 0.0
        %v1552 = vsel %vm1522, %v1407, 0.0
        %v1553 = vsel %vm1523, %v1409, 0.0
        %v1554 = vsel %vm1524, %v1411, 0.0
        %v1555 = vsel %vm1525, %v1413, 0.0
        %v1556 = vsel %vm1526, %v1415, 0.0
        %v1557 = vsel %vm1527, %v1417, 0.0
        %v1558 = vsel %vm1528, %v1419, 0.0
        %v1559 = vsel %vm1529, %v1421, 0.0
        %v1560 = vsel %vm1530, %v1423, 0.0
        %v1561 = vsel %vm1531, %v1425, 0.0
        %v1562 = vsel %vm1532, %v1427, 0.0
        %v1563 = vsel %vm1533, %v1429, 0.0
        %v1564 = vsel %vm1534, %v1431, 0.0
        %v1565 = vsel %vm1535, %v1433, 0.0
        %v1566 = vsel %vm1536, %v1435, 0.0
        %v1567 = vsel %vm1537, %v1437, 0.0
        %v1568 = vsel %vm1538, %v1439, 0.0
        %v1569 = vsel %vm1539, %v1441, 0.0
        %v1570 = vsel %vm1540, %v1443, 0.0
        %v1571 = vsel %vm1541, %v1445, 0.0
        %v1572 = vsel %vm1542, %v1447, 0.0
        %v1573 = vlaneseq
        %v1574 = vshrl.u32 %v1573, 7
        %v1575 = vsub.s32 0, %v1574
        %v1576 = vrot.slane %v874, %v1575
        %v1577 = vmul.f32 %v1576, 0.0
        %v1578 = vmul.f32 %v1543, %v1576
        %v1579 = vmul.f32 %v1544, %v1576
        %v1580 = vmul.f32 %v1545, %v1576
        %v1581 = vmul.f32 %v1546, %v1576
        %v1582 = vmul.f32 %v1547, %v1576
        %v1583 = vmul.f32 %v1548, %v1576
        %v1584 = vmul.f32 %v1549, %v1576
        %v1585 = vmul.f32 %v1550, %v1576
        %v1586 = vmul.f32 %v1551, %v1576
        %v1587 = vmul.f32 %v1552, %v1576
        %v1588 = vmul.f32 %v1553, %v1576
        %v1589 = vmul.f32 %v1554, %v1576
        %v1590 = vmul.f32 %v1555, %v1576
        %v1591 = vmul.f32 %v1556, %v1576
        %v1592 = vmul.f32 %v1557, %v1576
        %v1593 = vmul.f32 %v1558, %v1576
        %v1594 = vmul.f32 %v1559, %v1576
        %v1595 = vmul.f32 %v1560, %v1576
        %v1596 = vmul.f32 %v1561, %v1576
        %v1597 = vmul.f32 %v1562, %v1576
        %v1598 = vmul.f32 %v1563, %v1576
        %v1599 = vmul.f32 %v1564, %v1576
        %v1600 = vmul.f32 %v1565, %v1576
        %v1601 = vmul.f32 %v1566, %v1576
        %v1602 = vmul.f32 %v1567, %v1576
        %v1603 = vmul.f32 %v1568, %v1576
        %v1604 = vmul.f32 %v1569, %v1576
        %v1605 = vmul.f32 %v1570, %v1576
        %v1606 = vmul.f32 %v1571, %v1576
        %v1607 = vmul.f32 %v1572, %v1576
        %v1608 = vadd.f32 %v1577, 0.0
        %v1609 = vadd.f32 %v1578, 0.0
        %v1610 = vadd.f32 %v1579, 0.0
        %v1611 = vadd.f32 %v1580, 0.0
        %v1612 = vadd.f32 %v1581, 0.0
        %v1613 = vadd.f32 %v1582, 0.0
        %v1614 = vadd.f32 %v1583, 0.0
        %v1615 = vadd.f32 %v1584, 0.0
        %v1616 = vadd.f32 %v1585, 0.0
        %v1617 = vadd.f32 %v1586, 0.0
        %v1618 = vadd.f32 %v1587, 0.0
        %v1619 = vadd.f32 %v1588, 0.0
        %v1620 = vadd.f32 %v1589, 0.0
        %v1621 = vadd.f32 %v1590, 0.0
        %v1622 = vadd.f32 %v1591, 0.0
        %v1623 = vadd.f32 %v1592, 0.0
        %v1624 = vadd.f32 %v1593, 0.0
        %v1625 = vadd.f32 %v1594, 0.0
        %v1626 = vadd.f32 %v1595, 0.0
        %v1627 = vadd.f32 %v1596, 0.0
        %v1628 = vadd.f32 %v1597, 0.0
        %v1629 = vadd.f32 %v1598, 0.0
        %v1630 = vadd.f32 %v1599, 0.0
        %v1631 = vadd.f32 %v1600, 0.0
        %v1632 = vadd.f32 %v1601, 0.0
        %v1633 = vadd.f32 %v1602, 0.0
        %v1634 = vadd.f32 %v1603, 0.0
        %v1635 = vadd.f32 %v1604, 0.0
        %v1636 = vadd.f32 %v1605, 0.0
        %v1637 = vadd.f32 %v1606, 0.0
        %v1638 = vadd.f32 %v1607, 0.0
        %v1639 = vlaneseq
        %v1640 = vshrl.u32 %v1639, 7
        %v1641 = vsub.s32 1, %v1640
        %v1642 = vrot.slane %v874, %v1641
        %v1643 = vmul.f32 %v1642, 0.0
        %v1644 = vmul.f32 %v748, %v1642
        %v1645 = vmul.f32 %v751, %v1642
        %v1646 = vmul.f32 %v756, %v1642
        %v1647 = vmul.f32 %v759, %v1642
        %v1648 = vmul.f32 %v764, %v1642
        %v1649 = vmul.f32 %v767, %v1642
        %v1650 = vmul.f32 %v772, %v1642
        %v1651 = vmul.f32 %v775, %v1642
        %v1652 = vmul.f32 %v780, %v1642
        %v1653 = vmul.f32 %v783, %v1642
        %v1654 = vmul.f32 %v788, %v1642
        %v1655 = vmul.f32 %v791, %v1642
        %v1656 = vmul.f32 %v796, %v1642
        %v1657 = vmul.f32 %v799, %v1642
        %v1658 = vmul.f32 %v804, %v1642
        %v1659 = vmul.f32 %v807, %v1642
        %v1660 = vmul.f32 %v812, %v1642
        %v1661 = vmul.f32 %v815, %v1642
        %v1662 = vmul.f32 %v820, %v1642
        %v1663 = vmul.f32 %v823, %v1642
        %v1664 = vmul.f32 %v828, %v1642
        %v1665 = vmul.f32 %v831, %v1642
        %v1666 = vmul.f32 %v836, %v1642
        %v1667 = vmul.f32 %v839, %v1642
        %v1668 = vmul.f32 %v844, %v1642
        %v1669 = vmul.f32 %v847, %v1642
        %v1670 = vmul.f32 %v852, %v1642
        %v1671 = vmul.f32 %v855, %v1642
        %v1672 = vmul.f32 %v860, %v1642
        %v1673 = vmul.f32 %v863, %v1642
        %v1674 = vadd.f32 %v1608, %v1643
        %v1675 = vadd.f32 %v1609, %v1644
        %v1676 = vadd.f32 %v1610, %v1645
        %v1677 = vadd.f32 %v1611, %v1646
        %v1678 = vadd.f32 %v1612, %v1647
        %v1679 = vadd.f32 %v1613, %v1648
        %v1680 = vadd.f32 %v1614, %v1649
        %v1681 = vadd.f32 %v1615, %v1650
        %v1682 = vadd.f32 %v1616, %v1651
        %v1683 = vadd.f32 %v1617, %v1652
        %v1684 = vadd.f32 %v1618, %v1653
        %v1685 = vadd.f32 %v1619, %v1654
        %v1686 = vadd.f32 %v1620, %v1655
        %v1687 = vadd.f32 %v1621, %v1656
        %v1688 = vadd.f32 %v1622, %v1657
        %v1689 = vadd.f32 %v1623, %v1658
        %v1690 = vadd.f32 %v1624, %v1659
        %v1691 = vadd.f32 %v1625, %v1660
        %v1692 = vadd.f32 %v1626, %v1661
        %v1693 = vadd.f32 %v1627, %v1662
        %v1694 = vadd.f32 %v1628, %v1663
        %v1695 = vadd.f32 %v1629, %v1664
        %v1696 = vadd.f32 %v1630, %v1665
        %v1697 = vadd.f32 %v1631, %v1666
        %v1698 = vadd.f32 %v1632, %v1667
        %v1699 = vadd.f32 %v1633, %v1668
        %v1700 = vadd.f32 %v1634, %v1669
        %v1701 = vadd.f32 %v1635, %v1670
        %v1702 = vadd.f32 %v1636, %v1671
        %v1703 = vadd.f32 %v1637, %v1672
        %v1704 = vadd.f32 %v1638, %v1673
        %vm1706 = vcmask 1046528
        %v1707 = vrot.slane %v748, 1
        %v1708 = vrot.slane %v751, 1
        %v1709 = vsel %vm1706, %v1707, %v1708
        %v1710 = vrot.slane %v756, 1
        %v1711 = vsel %vm1706, %v1708, %v1710
        %v1712 = vrot.slane %v759, 1
        %v1713 = vsel %vm1706, %v1710, %v1712
        %v1714 = vrot.slane %v764, 1
        %v1715 = vsel %vm1706, %v1712, %v1714
        %v1716 = vrot.slane %v767, 1
        %v1717 = vsel %vm1706, %v1714, %v1716
        %v1718 = vrot.slane %v772, 1
        %v1719 = vsel %vm1706, %v1716, %v1718
        %v1720 = vrot.slane %v775, 1
        %v1721 = vsel %vm1706, %v1718, %v1720
        %v1722 = vrot.slane %v780, 1
        %v1723 = vsel %vm1706, %v1720, %v1722
        %v1724 = vrot.slane %v783, 1
        %v1725 = vsel %vm1706, %v1722, %v1724
        %v1726 = vrot.slane %v788, 1
        %v1727 = vsel %vm1706, %v1724, %v1726
        %v1728 = vrot.slane %v791, 1
        %v1729 = vsel %vm1706, %v1726, %v1728
        %v1730 = vrot.slane %v796, 1
        %v1731 = vsel %vm1706, %v1728, %v1730
        %v1732 = vrot.slane %v799, 1
        %v1733 = vsel %vm1706, %v1730, %v1732
        %v1734 = vrot.slane %v804, 1
        %v1735 = vsel %vm1706, %v1732, %v1734
        %v1736 = vrot.slane %v807, 1
        %v1737 = vsel %vm1706, %v1734, %v1736
        %v1738 = vrot.slane %v812, 1
        %v1739 = vsel %vm1706, %v1736, %v1738
        %v1740 = vrot.slane %v815, 1
        %v1741 = vsel %vm1706, %v1738, %v1740
        %v1742 = vrot.slane %v820, 1
        %v1743 = vsel %vm1706, %v1740, %v1742
        %v1744 = vrot.slane %v823, 1
        %v1745 = vsel %vm1706, %v1742, %v1744
        %v1746 = vrot.slane %v828, 1
        %v1747 = vsel %vm1706, %v1744, %v1746
        %v1748 = vrot.slane %v831, 1
        %v1749 = vsel %vm1706, %v1746, %v1748
        %v1750 = vrot.slane %v836, 1
        %v1751 = vsel %vm1706, %v1748, %v1750
        %v1752 = vrot.slane %v839, 1
        %v1753 = vsel %vm1706, %v1750, %v1752
        %v1754 = vrot.slane %v844, 1
        %v1755 = vsel %vm1706, %v1752, %v1754
        %v1756 = vrot.slane %v847, 1
        %v1757 = vsel %vm1706, %v1754, %v1756
        %v1758 = vrot.slane %v852, 1
        %v1759 = vsel %vm1706, %v1756, %v1758
        %v1760 = vrot.slane %v855, 1
        %v1761 = vsel %vm1706, %v1758, %v1760
        %v1762 = vrot.slane %v860, 1
        %v1763 = vsel %vm1706, %v1760, %v1762
        %v1764 = vrot.slane %v863, 1
        %v1765 = vsel %vm1706, %v1762, %v1764
        %v1766 = vrot.slane %v868, 1
        %v1767 = vsel %vm1706, %v1764, %v1766
        %v1799 = vsel %vm1706, 0.0, %v1707
        %v1800 = vsel %vm1326, 1, 0
        %v1801 = vsel %vm1327, 1, 0
        %v1802 = vsel %vm1328, 1, 0
        %v1803 = vsel %vm1329, 1, 0
        %v1804 = vsel %vm1330, 1, 0
        %v1805 = vsel %vm1331, 1, 0
        %v1806 = vsel %vm1332, 1, 0
        %v1807 = vsel %vm1333, 1, 0
        %v1808 = vsel %vm1334, 1, 0
        %v1809 = vsel %vm1335, 1, 0
        %v1810 = vsel %vm1336, 1, 0
        %v1811 = vsel %vm1337, 1, 0
        %v1812 = vsel %vm1338, 1, 0
        %v1813 = vsel %vm1339, 1, 0
        %v1814 = vsel %vm1340, 1, 0
        %v1815 = vsel %vm1341, 1, 0
        %v1816 = vsel %vm1342, 1, 0
        %v1817 = vsel %vm1343, 1, 0
        %v1818 = vsel %vm1344, 1, 0
        %v1819 = vsel %vm1345, 1, 0
        %v1820 = vsel %vm1346, 1, 0
        %v1821 = vsel %vm1347, 1, 0
        %v1822 = vsel %vm1348, 1, 0
        %v1823 = vsel %vm1349, 1, 0
        %v1824 = vsel %vm1350, 1, 0
        %v1825 = vsel %vm1351, 1, 0
        %v1826 = vsel %vm1352, 1, 0
        %v1827 = vsel %vm1353, 1, 0
        %v1828 = vsel %vm1354, 1, 0
        %v1829 = vsel %vm1355, 1, 0
        %v1830 = vsel %vm1356, 1, 0
        %v1831 = vsel %vm1357, 1, 0
        %vm1832 = vcmp.eq.s32.totalorder %v1800, 1
        %vm1833 = vcmp.eq.s32.totalorder %v1801, 1
        %vm1834 = vcmp.eq.s32.totalorder %v1802, 1
        %vm1835 = vcmp.eq.s32.totalorder %v1803, 1
        %vm1836 = vcmp.eq.s32.totalorder %v1804, 1
        %vm1837 = vcmp.eq.s32.totalorder %v1805, 1
        %vm1838 = vcmp.eq.s32.totalorder %v1806, 1
        %vm1839 = vcmp.eq.s32.totalorder %v1807, 1
        %vm1840 = vcmp.eq.s32.totalorder %v1808, 1
        %vm1841 = vcmp.eq.s32.totalorder %v1809, 1
        %vm1842 = vcmp.eq.s32.totalorder %v1810, 1
        %vm1843 = vcmp.eq.s32.totalorder %v1811, 1
        %vm1844 = vcmp.eq.s32.totalorder %v1812, 1
        %vm1845 = vcmp.eq.s32.totalorder %v1813, 1
        %vm1846 = vcmp.eq.s32.totalorder %v1814, 1
        %vm1847 = vcmp.eq.s32.totalorder %v1815, 1
        %vm1848 = vcmp.eq.s32.totalorder %v1816, 1
        %vm1849 = vcmp.eq.s32.totalorder %v1817, 1
        %vm1850 = vcmp.eq.s32.totalorder %v1818, 1
        %vm1851 = vcmp.eq.s32.totalorder %v1819, 1
        %vm1852 = vcmp.eq.s32.totalorder %v1820, 1
        %vm1853 = vcmp.eq.s32.totalorder %v1821, 1
        %vm1854 = vcmp.eq.s32.totalorder %v1822, 1
        %vm1855 = vcmp.eq.s32.totalorder %v1823, 1
        %vm1856 = vcmp.eq.s32.totalorder %v1824, 1
        %vm1857 = vcmp.eq.s32.totalorder %v1825, 1
        %vm1858 = vcmp.eq.s32.totalorder %v1826, 1
        %vm1859 = vcmp.eq.s32.totalorder %v1827, 1
        %vm1860 = vcmp.eq.s32.totalorder %v1828, 1
        %vm1861 = vcmp.eq.s32.totalorder %v1829, 1
        %vm1862 = vcmp.eq.s32.totalorder %v1830, 1
        %vm1863 = vcmp.eq.s32.totalorder %v1831, 1
        %v1864 = vsel %vm1833, %v1799, 0.0
        %v1865 = vsel %vm1834, %v1709, 0.0
        %v1866 = vsel %vm1835, %v1711, 0.0
        %v1867 = vsel %vm1836, %v1713, 0.0
        %v1868 = vsel %vm1837, %v1715, 0.0
        %v1869 = vsel %vm1838, %v1717, 0.0
        %v1870 = vsel %vm1839, %v1719, 0.0
        %v1871 = vsel %vm1840, %v1721, 0.0
        %v1872 = vsel %vm1841, %v1723, 0.0
        %v1873 = vsel %vm1842, %v1725, 0.0
        %v1874 = vsel %vm1843, %v1727, 0.0
        %v1875 = vsel %vm1844, %v1729, 0.0
        %v1876 = vsel %vm1845, %v1731, 0.0
        %v1877 = vsel %vm1846, %v1733, 0.0
        %v1878 = vsel %vm1847, %v1735, 0.0
        %v1879 = vsel %vm1848, %v1737, 0.0
        %v1880 = vsel %vm1849, %v1739, 0.0
        %v1881 = vsel %vm1850, %v1741, 0.0
        %v1882 = vsel %vm1851, %v1743, 0.0
        %v1883 = vsel %vm1852, %v1745, 0.0
        %v1884 = vsel %vm1853, %v1747, 0.0
        %v1885 = vsel %vm1854, %v1749, 0.0
        %v1886 = vsel %vm1855, %v1751, 0.0
        %v1887 = vsel %vm1856, %v1753, 0.0
        %v1888 = vsel %vm1857, %v1755, 0.0
        %v1889 = vsel %vm1858, %v1757, 0.0
        %v1890 = vsel %vm1859, %v1759, 0.0
        %v1891 = vsel %vm1860, %v1761, 0.0
        %v1892 = vsel %vm1861, %v1763, 0.0
        %v1893 = vsel %vm1862, %v1765, 0.0
        %v1894 = vsel %vm1863, %v1767, 0.0
        %v1895 = vlaneseq
        %v1896 = vshrl.u32 %v1895, 7
        %v1897 = vsub.s32 2, %v1896
        %v1898 = vrot.slane %v874, %v1897
        %v1899 = vmul.f32 %v1898, 0.0
        %v1900 = vmul.f32 %v1864, %v1898
        %v1901 = vmul.f32 %v1865, %v1898
        %v1902 = vmul.f32 %v1866, %v1898
        %v1903 = vmul.f32 %v1867, %v1898
        %v1904 = vmul.f32 %v1868, %v1898
        %v1905 = vmul.f32 %v1869, %v1898
        %v1906 = vmul.f32 %v1870, %v1898
        %v1907 = vmul.f32 %v1871, %v1898
        %v1908 = vmul.f32 %v1872, %v1898
        %v1909 = vmul.f32 %v1873, %v1898
        %v1910 = vmul.f32 %v1874, %v1898
        %v1911 = vmul.f32 %v1875, %v1898
        %v1912 = vmul.f32 %v1876, %v1898
        %v1913 = vmul.f32 %v1877, %v1898
        %v1914 = vmul.f32 %v1878, %v1898
        %v1915 = vmul.f32 %v1879, %v1898
        %v1916 = vmul.f32 %v1880, %v1898
        %v1917 = vmul.f32 %v1881, %v1898
        %v1918 = vmul.f32 %v1882, %v1898
        %v1919 = vmul.f32 %v1883, %v1898
        %v1920 = vmul.f32 %v1884, %v1898
        %v1921 = vmul.f32 %v1885, %v1898
        %v1922 = vmul.f32 %v1886, %v1898
        %v1923 = vmul.f32 %v1887, %v1898
        %v1924 = vmul.f32 %v1888, %v1898
        %v1925 = vmul.f32 %v1889, %v1898
        %v1926 = vmul.f32 %v1890, %v1898
        %v1927 = vmul.f32 %v1891, %v1898
        %v1928 = vmul.f32 %v1892, %v1898
        %v1929 = vmul.f32 %v1893, %v1898
        %v1930 = vmul.f32 %v1894, %v1898
        %v1931 = vadd.f32 %v1674, %v1899
        %v1932 = vadd.f32 %v1674, %v1900
        %v1933 = vadd.f32 %v1675, %v1901
        %v1934 = vadd.f32 %v1676, %v1902
        %v1935 = vadd.f32 %v1677, %v1903
        %v1936 = vadd.f32 %v1678, %v1904
        %v1937 = vadd.f32 %v1679, %v1905
        %v1938 = vadd.f32 %v1680, %v1906
        %v1939 = vadd.f32 %v1681, %v1907
        %v1940 = vadd.f32 %v1682, %v1908
        %v1941 = vadd.f32 %v1683, %v1909
        %v1942 = vadd.f32 %v1684, %v1910
        %v1943 = vadd.f32 %v1685, %v1911
        %v1944 = vadd.f32 %v1686, %v1912
        %v1945 = vadd.f32 %v1687, %v1913
        %v1946 = vadd.f32 %v1688, %v1914
        %v1947 = vadd.f32 %v1689, %v1915
        %v1948 = vadd.f32 %v1690, %v1916
        %v1949 = vadd.f32 %v1691, %v1917
        %v1950 = vadd.f32 %v1692, %v1918
        %v1951 = vadd.f32 %v1693, %v1919
        %v1952 = vadd.f32 %v1694, %v1920
        %v1953 = vadd.f32 %v1695, %v1921
        %v1954 = vadd.f32 %v1696, %v1922
        %v1955 = vadd.f32 %v1697, %v1923
        %v1956 = vadd.f32 %v1698, %v1924
        %v1957 = vadd.f32 %v1699, %v1925
        %v1958 = vadd.f32 %v1700, %v1926
        %v1959 = vadd.f32 %v1701, %v1927
        %v1960 = vadd.f32 %v1702, %v1928
        %v1961 = vadd.f32 %v1703, %v1929
        %v1962 = vadd.f32 %v1704, %v1930
        %v1964 = vrot.slane %v868, 7
        %v1965 = vsel %vm1388, %v1446, %v1964
        %v1966 = vrot.slane %v871, 7
        %v1967 = vsel %vm1388, %v1964, %v1966
        %v1970 = vsel %vm1511, %v1478, 0.0
        %v1971 = vsel %vm1512, %v1391, 0.0
        %v1972 = vsel %vm1513, %v1393, 0.0
        %v1973 = vsel %vm1514, %v1395, 0.0
        %v1974 = vsel %vm1515, %v1397, 0.0
        %v1975 = vsel %vm1516, %v1399, 0.0
        %v1976 = vsel %vm1517, %v1401, 0.0
        %v1977 = vsel %vm1518, %v1403, 0.0
        %v1978 = vsel %vm1519, %v1405, 0.0
        %v1979 = vsel %vm1520, %v1407, 0.0
        %v1980 = vsel %vm1521, %v1409, 0.0
        %v1981 = vsel %vm1522, %v1411, 0.0
        %v1982 = vsel %vm1523, %v1413, 0.0
        %v1983 = vsel %vm1524, %v1415, 0.0
        %v1984 = vsel %vm1525, %v1417, 0.0
        %v1985 = vsel %vm1526, %v1419, 0.0
        %v1986 = vsel %vm1527, %v1421, 0.0
        %v1987 = vsel %vm1528, %v1423, 0.0
        %v1988 = vsel %vm1529, %v1425, 0.0
        %v1989 = vsel %vm1530, %v1427, 0.0
        %v1990 = vsel %vm1531, %v1429, 0.0
        %v1991 = vsel %vm1532, %v1431, 0.0
        %v1992 = vsel %vm1533, %v1433, 0.0
        %v1993 = vsel %vm1534, %v1435, 0.0
        %v1994 = vsel %vm1535, %v1437, 0.0
        %v1995 = vsel %vm1536, %v1439, 0.0
        %v1996 = vsel %vm1537, %v1441, 0.0
        %v1997 = vsel %vm1538, %v1443, 0.0
        %v1998 = vsel %vm1539, %v1445, 0.0
        %v1999 = vsel %vm1540, %v1447, 0.0
        %v2000 = vsel %vm1541, %v1965, 0.0
        %v2001 = vsel %vm1542, %v1967, 0.0
        %v2002 = vlaneseq
        %v2003 = vshrl.u32 %v2002, 7
        %v2004 = vsub.s32 0, %v2003
        %v2005 = vrot.slane %v875, %v2004
        %v2006 = vmul.f32 %v1970, %v2005
        %v2007 = vmul.f32 %v1971, %v2005
        %v2008 = vmul.f32 %v1972, %v2005
        %v2009 = vmul.f32 %v1973, %v2005
        %v2010 = vmul.f32 %v1974, %v2005
        %v2011 = vmul.f32 %v1975, %v2005
        %v2012 = vmul.f32 %v1976, %v2005
        %v2013 = vmul.f32 %v1977, %v2005
        %v2014 = vmul.f32 %v1978, %v2005
        %v2015 = vmul.f32 %v1979, %v2005
        %v2016 = vmul.f32 %v1980, %v2005
        %v2017 = vmul.f32 %v1981, %v2005
        %v2018 = vmul.f32 %v1982, %v2005
        %v2019 = vmul.f32 %v1983, %v2005
        %v2020 = vmul.f32 %v1984, %v2005
        %v2021 = vmul.f32 %v1985, %v2005
        %v2022 = vmul.f32 %v1986, %v2005
        %v2023 = vmul.f32 %v1987, %v2005
        %v2024 = vmul.f32 %v1988, %v2005
        %v2025 = vmul.f32 %v1989, %v2005
        %v2026 = vmul.f32 %v1990, %v2005
        %v2027 = vmul.f32 %v1991, %v2005
        %v2028 = vmul.f32 %v1992, %v2005
        %v2029 = vmul.f32 %v1993, %v2005
        %v2030 = vmul.f32 %v1994, %v2005
        %v2031 = vmul.f32 %v1995, %v2005
        %v2032 = vmul.f32 %v1996, %v2005
        %v2033 = vmul.f32 %v1997, %v2005
        %v2034 = vmul.f32 %v1998, %v2005
        %v2035 = vmul.f32 %v1999, %v2005
        %v2036 = vmul.f32 %v2000, %v2005
        %v2037 = vmul.f32 %v2001, %v2005
        %v2038 = vadd.f32 %v1931, %v2006
        %v2039 = vadd.f32 %v1932, %v2007
        %v2040 = vadd.f32 %v1933, %v2008
        %v2041 = vadd.f32 %v1934, %v2009
        %v2042 = vadd.f32 %v1935, %v2010
        %v2043 = vadd.f32 %v1936, %v2011
        %v2044 = vadd.f32 %v1937, %v2012
        %v2045 = vadd.f32 %v1938, %v2013
        %v2046 = vadd.f32 %v1939, %v2014
        %v2047 = vadd.f32 %v1940, %v2015
        %v2048 = vadd.f32 %v1941, %v2016
        %v2049 = vadd.f32 %v1942, %v2017
        %v2050 = vadd.f32 %v1943, %v2018
        %v2051 = vadd.f32 %v1944, %v2019
        %v2052 = vadd.f32 %v1945, %v2020
        %v2053 = vadd.f32 %v1946, %v2021
        %v2054 = vadd.f32 %v1947, %v2022
        %v2055 = vadd.f32 %v1948, %v2023
        %v2056 = vadd.f32 %v1949, %v2024
        %v2057 = vadd.f32 %v1950, %v2025
        %v2058 = vadd.f32 %v1951, %v2026
        %v2059 = vadd.f32 %v1952, %v2027
        %v2060 = vadd.f32 %v1953, %v2028
        %v2061 = vadd.f32 %v1954, %v2029
        %v2062 = vadd.f32 %v1955, %v2030
        %v2063 = vadd.f32 %v1956, %v2031
        %v2064 = vadd.f32 %v1957, %v2032
        %v2065 = vadd.f32 %v1958, %v2033
        %v2066 = vadd.f32 %v1959, %v2034
        %v2067 = vadd.f32 %v1960, %v2035
        %v2068 = vadd.f32 %v1961, %v2036
        %v2069 = vadd.f32 %v1962, %v2037
        %v2070 = vlaneseq
        %v2071 = vshrl.u32 %v2070, 7
        %v2072 = vsub.s32 1, %v2071
        %v2073 = vrot.slane %v875, %v2072
        %v2074 = vmul.f32 %v748, %v2073
        %v2075 = vmul.f32 %v751, %v2073
        %v2076 = vmul.f32 %v756, %v2073
        %v2077 = vmul.f32 %v759, %v2073
        %v2078 = vmul.f32 %v764, %v2073
        %v2079 = vmul.f32 %v767, %v2073
        %v2080 = vmul.f32 %v772, %v2073
        %v2081 = vmul.f32 %v775, %v2073
        %v2082 = vmul.f32 %v780, %v2073
        %v2083 = vmul.f32 %v783, %v2073
        %v2084 = vmul.f32 %v788, %v2073
        %v2085 = vmul.f32 %v791, %v2073
        %v2086 = vmul.f32 %v796, %v2073
        %v2087 = vmul.f32 %v799, %v2073
        %v2088 = vmul.f32 %v804, %v2073
        %v2089 = vmul.f32 %v807, %v2073
        %v2090 = vmul.f32 %v812, %v2073
        %v2091 = vmul.f32 %v815, %v2073
        %v2092 = vmul.f32 %v820, %v2073
        %v2093 = vmul.f32 %v823, %v2073
        %v2094 = vmul.f32 %v828, %v2073
        %v2095 = vmul.f32 %v831, %v2073
        %v2096 = vmul.f32 %v836, %v2073
        %v2097 = vmul.f32 %v839, %v2073
        %v2098 = vmul.f32 %v844, %v2073
        %v2099 = vmul.f32 %v847, %v2073
        %v2100 = vmul.f32 %v852, %v2073
        %v2101 = vmul.f32 %v855, %v2073
        %v2102 = vmul.f32 %v860, %v2073
        %v2103 = vmul.f32 %v863, %v2073
        %v2104 = vmul.f32 %v868, %v2073
        %v2105 = vmul.f32 %v871, %v2073
        %v2106 = vadd.f32 %v2038, %v2074
        %v2107 = vadd.f32 %v2039, %v2075
        %v2108 = vadd.f32 %v2040, %v2076
        %v2109 = vadd.f32 %v2041, %v2077
        %v2110 = vadd.f32 %v2042, %v2078
        %v2111 = vadd.f32 %v2043, %v2079
        %v2112 = vadd.f32 %v2044, %v2080
        %v2113 = vadd.f32 %v2045, %v2081
        %v2114 = vadd.f32 %v2046, %v2082
        %v2115 = vadd.f32 %v2047, %v2083
        %v2116 = vadd.f32 %v2048, %v2084
        %v2117 = vadd.f32 %v2049, %v2085
        %v2118 = vadd.f32 %v2050, %v2086
        %v2119 = vadd.f32 %v2051, %v2087
        %v2120 = vadd.f32 %v2052, %v2088
        %v2121 = vadd.f32 %v2053, %v2089
        %v2122 = vadd.f32 %v2054, %v2090
        %v2123 = vadd.f32 %v2055, %v2091
        %v2124 = vadd.f32 %v2056, %v2092
        %v2125 = vadd.f32 %v2057, %v2093
        %v2126 = vadd.f32 %v2058, %v2094
        %v2127 = vadd.f32 %v2059, %v2095
        %v2128 = vadd.f32 %v2060, %v2096
        %v2129 = vadd.f32 %v2061, %v2097
        %v2130 = vadd.f32 %v2062, %v2098
        %v2131 = vadd.f32 %v2063, %v2099
        %v2132 = vadd.f32 %v2064, %v2100
        %v2133 = vadd.f32 %v2065, %v2101
        %v2134 = vadd.f32 %v2066, %v2102
        %v2135 = vadd.f32 %v2067, %v2103
        %v2136 = vadd.f32 %v2068, %v2104
        %v2137 = vadd.f32 %v2069, %v2105
        %v2138 = vrot.slane %v871, 1
        %v2139 = vsel %vm1706, %v1766, %v2138
        %v2142 = vsel %vm1706, %v2138, 0.0
        %v2143 = vsel %vm1832, %v1709, 0.0
        %v2144 = vsel %vm1833, %v1711, 0.0
        %v2145 = vsel %vm1834, %v1713, 0.0
        %v2146 = vsel %vm1835, %v1715, 0.0
        %v2147 = vsel %vm1836, %v1717, 0.0
        %v2148 = vsel %vm1837, %v1719, 0.0
        %v2149 = vsel %vm1838, %v1721, 0.0
        %v2150 = vsel %vm1839, %v1723, 0.0
        %v2151 = vsel %vm1840, %v1725, 0.0
        %v2152 = vsel %vm1841, %v1727, 0.0
        %v2153 = vsel %vm1842, %v1729, 0.0
        %v2154 = vsel %vm1843, %v1731, 0.0
        %v2155 = vsel %vm1844, %v1733, 0.0
        %v2156 = vsel %vm1845, %v1735, 0.0
        %v2157 = vsel %vm1846, %v1737, 0.0
        %v2158 = vsel %vm1847, %v1739, 0.0
        %v2159 = vsel %vm1848, %v1741, 0.0
        %v2160 = vsel %vm1849, %v1743, 0.0
        %v2161 = vsel %vm1850, %v1745, 0.0
        %v2162 = vsel %vm1851, %v1747, 0.0
        %v2163 = vsel %vm1852, %v1749, 0.0
        %v2164 = vsel %vm1853, %v1751, 0.0
        %v2165 = vsel %vm1854, %v1753, 0.0
        %v2166 = vsel %vm1855, %v1755, 0.0
        %v2167 = vsel %vm1856, %v1757, 0.0
        %v2168 = vsel %vm1857, %v1759, 0.0
        %v2169 = vsel %vm1858, %v1761, 0.0
        %v2170 = vsel %vm1859, %v1763, 0.0
        %v2171 = vsel %vm1860, %v1765, 0.0
        %v2172 = vsel %vm1861, %v1767, 0.0
        %v2173 = vsel %vm1862, %v2139, 0.0
        %v2174 = vsel %vm1863, %v2142, 0.0
        %v2175 = vlaneseq
        %v2176 = vshrl.u32 %v2175, 7
        %v2177 = vsub.s32 2, %v2176
        %v2178 = vrot.slane %v875, %v2177
        %v2179 = vmul.f32 %v2143, %v2178
        %v2180 = vmul.f32 %v2144, %v2178
        %v2181 = vmul.f32 %v2145, %v2178
        %v2182 = vmul.f32 %v2146, %v2178
        %v2183 = vmul.f32 %v2147, %v2178
        %v2184 = vmul.f32 %v2148, %v2178
        %v2185 = vmul.f32 %v2149, %v2178
        %v2186 = vmul.f32 %v2150, %v2178
        %v2187 = vmul.f32 %v2151, %v2178
        %v2188 = vmul.f32 %v2152, %v2178
        %v2189 = vmul.f32 %v2153, %v2178
        %v2190 = vmul.f32 %v2154, %v2178
        %v2191 = vmul.f32 %v2155, %v2178
        %v2192 = vmul.f32 %v2156, %v2178
        %v2193 = vmul.f32 %v2157, %v2178
        %v2194 = vmul.f32 %v2158, %v2178
        %v2195 = vmul.f32 %v2159, %v2178
        %v2196 = vmul.f32 %v2160, %v2178
        %v2197 = vmul.f32 %v2161, %v2178
        %v2198 = vmul.f32 %v2162, %v2178
        %v2199 = vmul.f32 %v2163, %v2178
        %v2200 = vmul.f32 %v2164, %v2178
        %v2201 = vmul.f32 %v2165, %v2178
        %v2202 = vmul.f32 %v2166, %v2178
        %v2203 = vmul.f32 %v2167, %v2178
        %v2204 = vmul.f32 %v2168, %v2178
        %v2205 = vmul.f32 %v2169, %v2178
        %v2206 = vmul.f32 %v2170, %v2178
        %v2207 = vmul.f32 %v2171, %v2178
        %v2208 = vmul.f32 %v2172, %v2178
        %v2209 = vmul.f32 %v2173, %v2178
        %v2210 = vmul.f32 %v2174, %v2178
        %v2211 = vadd.f32 %v2106, %v2179
        %v2212 = vadd.f32 %v2107, %v2180
        %v2213 = vadd.f32 %v2108, %v2181
        %v2214 = vadd.f32 %v2109, %v2182
        %v2215 = vadd.f32 %v2110, %v2183
        %v2216 = vadd.f32 %v2111, %v2184
        %v2217 = vadd.f32 %v2112, %v2185
        %v2218 = vadd.f32 %v2113, %v2186
        %v2219 = vadd.f32 %v2114, %v2187
        %v2220 = vadd.f32 %v2115, %v2188
        %v2221 = vadd.f32 %v2116, %v2189
        %v2222 = vadd.f32 %v2117, %v2190
        %v2223 = vadd.f32 %v2118, %v2191
        %v2224 = vadd.f32 %v2119, %v2192
        %v2225 = vadd.f32 %v2120, %v2193
        %v2226 = vadd.f32 %v2121, %v2194
        %v2227 = vadd.f32 %v2122, %v2195
        %v2228 = vadd.f32 %v2123, %v2196
        %v2229 = vadd.f32 %v2124, %v2197
        %v2230 = vadd.f32 %v2125, %v2198
        %v2231 = vadd.f32 %v2126, %v2199
        %v2232 = vadd.f32 %v2127, %v2200
        %v2233 = vadd.f32 %v2128, %v2201
        %v2234 = vadd.f32 %v2129, %v2202
        %v2235 = vadd.f32 %v2130, %v2203
        %v2236 = vadd.f32 %v2131, %v2204
        %v2237 = vadd.f32 %v2132, %v2205
        %v2238 = vadd.f32 %v2133, %v2206
        %v2239 = vadd.f32 %v2134, %v2207
        %v2240 = vadd.f32 %v2135, %v2208
        %v2241 = vadd.f32 %v2136, %v2209
        %v2242 = vadd.f32 %v2137, %v2210
        %v2244 = vsel %vm1388, %v1966, 0.0
        %v2245 = vsel %vm1511, %v1393, 0.0
        %v2246 = vsel %vm1512, %v1395, 0.0
        %v2247 = vsel %vm1513, %v1397, 0.0
        %v2248 = vsel %vm1514, %v1399, 0.0
        %v2249 = vsel %vm1515, %v1401, 0.0
        %v2250 = vsel %vm1516, %v1403, 0.0
        %v2251 = vsel %vm1517, %v1405, 0.0
        %v2252 = vsel %vm1518, %v1407, 0.0
        %v2253 = vsel %vm1519, %v1409, 0.0
        %v2254 = vsel %vm1520, %v1411, 0.0
        %v2255 = vsel %vm1521, %v1413, 0.0
        %v2256 = vsel %vm1522, %v1415, 0.0
        %v2257 = vsel %vm1523, %v1417, 0.0
        %v2258 = vsel %vm1524, %v1419, 0.0
        %v2259 = vsel %vm1525, %v1421, 0.0
        %v2260 = vsel %vm1526, %v1423, 0.0
        %v2261 = vsel %vm1527, %v1425, 0.0
        %v2262 = vsel %vm1528, %v1427, 0.0
        %v2263 = vsel %vm1529, %v1429, 0.0
        %v2264 = vsel %vm1530, %v1431, 0.0
        %v2265 = vsel %vm1531, %v1433, 0.0
        %v2266 = vsel %vm1532, %v1435, 0.0
        %v2267 = vsel %vm1533, %v1437, 0.0
        %v2268 = vsel %vm1534, %v1439, 0.0
        %v2269 = vsel %vm1535, %v1441, 0.0
        %v2270 = vsel %vm1536, %v1443, 0.0
        %v2271 = vsel %vm1537, %v1445, 0.0
        %v2272 = vsel %vm1538, %v1447, 0.0
        %v2273 = vsel %vm1539, %v1965, 0.0
        %v2274 = vsel %vm1540, %v1967, 0.0
        %v2275 = vsel %vm1541, %v2244, 0.0
        %v2276 = vlaneseq
        %v2277 = vshrl.u32 %v2276, 7
        %v2278 = vsub.s32 0, %v2277
        %v2279 = vrot.slane %v876, %v2278
        %v2280 = vmul.f32 %v2245, %v2279
        %v2281 = vmul.f32 %v2246, %v2279
        %v2282 = vmul.f32 %v2247, %v2279
        %v2283 = vmul.f32 %v2248, %v2279
        %v2284 = vmul.f32 %v2249, %v2279
        %v2285 = vmul.f32 %v2250, %v2279
        %v2286 = vmul.f32 %v2251, %v2279
        %v2287 = vmul.f32 %v2252, %v2279
        %v2288 = vmul.f32 %v2253, %v2279
        %v2289 = vmul.f32 %v2254, %v2279
        %v2290 = vmul.f32 %v2255, %v2279
        %v2291 = vmul.f32 %v2256, %v2279
        %v2292 = vmul.f32 %v2257, %v2279
        %v2293 = vmul.f32 %v2258, %v2279
        %v2294 = vmul.f32 %v2259, %v2279
        %v2295 = vmul.f32 %v2260, %v2279
        %v2296 = vmul.f32 %v2261, %v2279
        %v2297 = vmul.f32 %v2262, %v2279
        %v2298 = vmul.f32 %v2263, %v2279
        %v2299 = vmul.f32 %v2264, %v2279
        %v2300 = vmul.f32 %v2265, %v2279
        %v2301 = vmul.f32 %v2266, %v2279
        %v2302 = vmul.f32 %v2267, %v2279
        %v2303 = vmul.f32 %v2268, %v2279
        %v2304 = vmul.f32 %v2269, %v2279
        %v2305 = vmul.f32 %v2270, %v2279
        %v2306 = vmul.f32 %v2271, %v2279
        %v2307 = vmul.f32 %v2272, %v2279
        %v2308 = vmul.f32 %v2273, %v2279
        %v2309 = vmul.f32 %v2274, %v2279
        %v2310 = vmul.f32 %v2275, %v2279
        %v2311 = vmul.f32 %v2279, 0.0
        %v2312 = vadd.f32 %v2211, %v2280
        %v2313 = vadd.f32 %v2212, %v2281
        %v2314 = vadd.f32 %v2213, %v2282
        %v2315 = vadd.f32 %v2214, %v2283
        %v2316 = vadd.f32 %v2215, %v2284
        %v2317 = vadd.f32 %v2216, %v2285
        %v2318 = vadd.f32 %v2217, %v2286
        %v2319 = vadd.f32 %v2218, %v2287
        %v2320 = vadd.f32 %v2219, %v2288
        %v2321 = vadd.f32 %v2220, %v2289
        %v2322 = vadd.f32 %v2221, %v2290
        %v2323 = vadd.f32 %v2222, %v2291
        %v2324 = vadd.f32 %v2223, %v2292
        %v2325 = vadd.f32 %v2224, %v2293
        %v2326 = vadd.f32 %v2225, %v2294
        %v2327 = vadd.f32 %v2226, %v2295
        %v2328 = vadd.f32 %v2227, %v2296
        %v2329 = vadd.f32 %v2228, %v2297
        %v2330 = vadd.f32 %v2229, %v2298
        %v2331 = vadd.f32 %v2230, %v2299
        %v2332 = vadd.f32 %v2231, %v2300
        %v2333 = vadd.f32 %v2232, %v2301
        %v2334 = vadd.f32 %v2233, %v2302
        %v2335 = vadd.f32 %v2234, %v2303
        %v2336 = vadd.f32 %v2235, %v2304
        %v2337 = vadd.f32 %v2236, %v2305
        %v2338 = vadd.f32 %v2237, %v2306
        %v2339 = vadd.f32 %v2238, %v2307
        %v2340 = vadd.f32 %v2239, %v2308
        %v2341 = vadd.f32 %v2240, %v2309
        %v2342 = vadd.f32 %v2241, %v2310
        %v2343 = vadd.f32 %v2242, %v2311
        %v2344 = vlaneseq
        %v2345 = vshrl.u32 %v2344, 7
        %v2346 = vsub.s32 1, %v2345
        %v2347 = vrot.slane %v876, %v2346
        %v2348 = vmul.f32 %v756, %v2347
        %v2349 = vmul.f32 %v759, %v2347
        %v2350 = vmul.f32 %v764, %v2347
        %v2351 = vmul.f32 %v767, %v2347
        %v2352 = vmul.f32 %v772, %v2347
        %v2353 = vmul.f32 %v775, %v2347
        %v2354 = vmul.f32 %v780, %v2347
        %v2355 = vmul.f32 %v783, %v2347
        %v2356 = vmul.f32 %v788, %v2347
        %v2357 = vmul.f32 %v791, %v2347
        %v2358 = vmul.f32 %v796, %v2347
        %v2359 = vmul.f32 %v799, %v2347
        %v2360 = vmul.f32 %v804, %v2347
        %v2361 = vmul.f32 %v807, %v2347
        %v2362 = vmul.f32 %v812, %v2347
        %v2363 = vmul.f32 %v815, %v2347
        %v2364 = vmul.f32 %v820, %v2347
        %v2365 = vmul.f32 %v823, %v2347
        %v2366 = vmul.f32 %v828, %v2347
        %v2367 = vmul.f32 %v831, %v2347
        %v2368 = vmul.f32 %v836, %v2347
        %v2369 = vmul.f32 %v839, %v2347
        %v2370 = vmul.f32 %v844, %v2347
        %v2371 = vmul.f32 %v847, %v2347
        %v2372 = vmul.f32 %v852, %v2347
        %v2373 = vmul.f32 %v855, %v2347
        %v2374 = vmul.f32 %v860, %v2347
        %v2375 = vmul.f32 %v863, %v2347
        %v2376 = vmul.f32 %v868, %v2347
        %v2377 = vmul.f32 %v871, %v2347
        %v2378 = vmul.f32 %v2347, 0.0
        %v2379 = vadd.f32 %v2312, %v2348
        %v2380 = vadd.f32 %v2313, %v2349
        %v2381 = vadd.f32 %v2314, %v2350
        %v2382 = vadd.f32 %v2315, %v2351
        %v2383 = vadd.f32 %v2316, %v2352
        %v2384 = vadd.f32 %v2317, %v2353
        %v2385 = vadd.f32 %v2318, %v2354
        %v2386 = vadd.f32 %v2319, %v2355
        %v2387 = vadd.f32 %v2320, %v2356
        %v2388 = vadd.f32 %v2321, %v2357
        %v2389 = vadd.f32 %v2322, %v2358
        %v2390 = vadd.f32 %v2323, %v2359
        %v2391 = vadd.f32 %v2324, %v2360
        %v2392 = vadd.f32 %v2325, %v2361
        %v2393 = vadd.f32 %v2326, %v2362
        %v2394 = vadd.f32 %v2327, %v2363
        %v2395 = vadd.f32 %v2328, %v2364
        %v2396 = vadd.f32 %v2329, %v2365
        %v2397 = vadd.f32 %v2330, %v2366
        %v2398 = vadd.f32 %v2331, %v2367
        %v2399 = vadd.f32 %v2332, %v2368
        %v2400 = vadd.f32 %v2333, %v2369
        %v2401 = vadd.f32 %v2334, %v2370
        %v2402 = vadd.f32 %v2335, %v2371
        %v2403 = vadd.f32 %v2336, %v2372
        %v2404 = vadd.f32 %v2337, %v2373
        %v2405 = vadd.f32 %v2338, %v2374
        %v2406 = vadd.f32 %v2339, %v2375
        %v2407 = vadd.f32 %v2340, %v2376
        %v2408 = vadd.f32 %v2341, %v2377
        %v2409 = vadd.f32 %v2342, %v2378
        %v2410 = vadd.f32 %v2343, %v2378
        %v2411 = vsel %vm1832, %v1713, 0.0
        %v2412 = vsel %vm1833, %v1715, 0.0
        %v2413 = vsel %vm1834, %v1717, 0.0
        %v2414 = vsel %vm1835, %v1719, 0.0
        %v2415 = vsel %vm1836, %v1721, 0.0
        %v2416 = vsel %vm1837, %v1723, 0.0
        %v2417 = vsel %vm1838, %v1725, 0.0
        %v2418 = vsel %vm1839, %v1727, 0.0
        %v2419 = vsel %vm1840, %v1729, 0.0
        %v2420 = vsel %vm1841, %v1731, 0.0
        %v2421 = vsel %vm1842, %v1733, 0.0
        %v2422 = vsel %vm1843, %v1735, 0.0
        %v2423 = vsel %vm1844, %v1737, 0.0
        %v2424 = vsel %vm1845, %v1739, 0.0
        %v2425 = vsel %vm1846, %v1741, 0.0
        %v2426 = vsel %vm1847, %v1743, 0.0
        %v2427 = vsel %vm1848, %v1745, 0.0
        %v2428 = vsel %vm1849, %v1747, 0.0
        %v2429 = vsel %vm1850, %v1749, 0.0
        %v2430 = vsel %vm1851, %v1751, 0.0
        %v2431 = vsel %vm1852, %v1753, 0.0
        %v2432 = vsel %vm1853, %v1755, 0.0
        %v2433 = vsel %vm1854, %v1757, 0.0
        %v2434 = vsel %vm1855, %v1759, 0.0
        %v2435 = vsel %vm1856, %v1761, 0.0
        %v2436 = vsel %vm1857, %v1763, 0.0
        %v2437 = vsel %vm1858, %v1765, 0.0
        %v2438 = vsel %vm1859, %v1767, 0.0
        %v2439 = vsel %vm1860, %v2139, 0.0
        %v2440 = vsel %vm1861, %v2142, 0.0
        %v2441 = vlaneseq
        %v2442 = vshrl.u32 %v2441, 7
        %v2443 = vsub.s32 2, %v2442
        %v2444 = vrot.slane %v876, %v2443
        %v2445 = vmul.f32 %v2411, %v2444
        %v2446 = vmul.f32 %v2412, %v2444
        %v2447 = vmul.f32 %v2413, %v2444
        %v2448 = vmul.f32 %v2414, %v2444
        %v2449 = vmul.f32 %v2415, %v2444
        %v2450 = vmul.f32 %v2416, %v2444
        %v2451 = vmul.f32 %v2417, %v2444
        %v2452 = vmul.f32 %v2418, %v2444
        %v2453 = vmul.f32 %v2419, %v2444
        %v2454 = vmul.f32 %v2420, %v2444
        %v2455 = vmul.f32 %v2421, %v2444
        %v2456 = vmul.f32 %v2422, %v2444
        %v2457 = vmul.f32 %v2423, %v2444
        %v2458 = vmul.f32 %v2424, %v2444
        %v2459 = vmul.f32 %v2425, %v2444
        %v2460 = vmul.f32 %v2426, %v2444
        %v2461 = vmul.f32 %v2427, %v2444
        %v2462 = vmul.f32 %v2428, %v2444
        %v2463 = vmul.f32 %v2429, %v2444
        %v2464 = vmul.f32 %v2430, %v2444
        %v2465 = vmul.f32 %v2431, %v2444
        %v2466 = vmul.f32 %v2432, %v2444
        %v2467 = vmul.f32 %v2433, %v2444
        %v2468 = vmul.f32 %v2434, %v2444
        %v2469 = vmul.f32 %v2435, %v2444
        %v2470 = vmul.f32 %v2436, %v2444
        %v2471 = vmul.f32 %v2437, %v2444
        %v2472 = vmul.f32 %v2438, %v2444
        %v2473 = vmul.f32 %v2439, %v2444
        %v2474 = vmul.f32 %v2440, %v2444
        %v2475 = vmul.f32 %v2444, 0.0
        %v2476 = vadd.f32 %v2379, %v2445
        %v2477 = vadd.f32 %v2380, %v2446
        %v2478 = vadd.f32 %v2381, %v2447
        %v2479 = vadd.f32 %v2382, %v2448
        %v2480 = vadd.f32 %v2383, %v2449
        %v2481 = vadd.f32 %v2384, %v2450
        %v2482 = vadd.f32 %v2385, %v2451
        %v2483 = vadd.f32 %v2386, %v2452
        %v2484 = vadd.f32 %v2387, %v2453
        %v2485 = vadd.f32 %v2388, %v2454
        %v2486 = vadd.f32 %v2389, %v2455
        %v2487 = vadd.f32 %v2390, %v2456
        %v2488 = vadd.f32 %v2391, %v2457
        %v2489 = vadd.f32 %v2392, %v2458
        %v2490 = vadd.f32 %v2393, %v2459
        %v2491 = vadd.f32 %v2394, %v2460
        %v2492 = vadd.f32 %v2395, %v2461
        %v2493 = vadd.f32 %v2396, %v2462
        %v2494 = vadd.f32 %v2397, %v2463
        %v2495 = vadd.f32 %v2398, %v2464
        %v2496 = vadd.f32 %v2399, %v2465
        %v2497 = vadd.f32 %v2400, %v2466
        %v2498 = vadd.f32 %v2401, %v2467
        %v2499 = vadd.f32 %v2402, %v2468
        %v2500 = vadd.f32 %v2403, %v2469
        %v2501 = vadd.f32 %v2404, %v2470
        %v2502 = vadd.f32 %v2405, %v2471
        %v2503 = vadd.f32 %v2406, %v2472
        %v2504 = vadd.f32 %v2407, %v2473
        %v2505 = vadd.f32 %v2408, %v2474
        %v2506 = vadd.f32 %v2409, %v2475
        %v2507 = vadd.f32 %v2410, %v2475
        %v2508 = vld [vmem:[%s4] sm:$0x1]
        %v2510 = vlaneseq
        %v2511 = vshrl.u32 %v2510, 7
        %v2512 = vsub.s32 0, %v2511
        %v2513 = vrot.slane %v2508, %v2512
        %v2515 = vmul.f32 %v2476, %v2513
        %v2516 = vmul.f32 %v2477, %v2513
        %v2517 = vmul.f32 %v2478, %v2513
        %v2518 = vmul.f32 %v2479, %v2513
        %v2519 = vmul.f32 %v2480, %v2513
        %v2520 = vmul.f32 %v2481, %v2513
        %v2521 = vmul.f32 %v2482, %v2513
        %v2522 = vmul.f32 %v2483, %v2513
        %v2523 = vmul.f32 %v2484, %v2513
        %v2524 = vmul.f32 %v2485, %v2513
        %v2525 = vmul.f32 %v2486, %v2513
        %v2526 = vmul.f32 %v2487, %v2513
        %v2527 = vmul.f32 %v2488, %v2513
        %v2528 = vmul.f32 %v2489, %v2513
        %v2529 = vmul.f32 %v2490, %v2513
        %v2530 = vmul.f32 %v2491, %v2513
        %v2531 = vmul.f32 %v2492, %v2513
        %v2532 = vmul.f32 %v2493, %v2513
        %v2533 = vmul.f32 %v2494, %v2513
        %v2534 = vmul.f32 %v2495, %v2513
        %v2535 = vmul.f32 %v2496, %v2513
        %v2536 = vmul.f32 %v2497, %v2513
        %v2537 = vmul.f32 %v2498, %v2513
        %v2538 = vmul.f32 %v2499, %v2513
        %v2539 = vmul.f32 %v2500, %v2513
        %v2540 = vmul.f32 %v2501, %v2513
        %v2541 = vmul.f32 %v2502, %v2513
        %v2542 = vmul.f32 %v2503, %v2513
        %v2543 = vmul.f32 %v2504, %v2513
        %v2544 = vmul.f32 %v2505, %v2513
        %v2545 = vmul.f32 %v2506, %v2513
        %v2546 = vmul.f32 %v2507, %v2513
        %v2547 = vld [vmem:[%s5] sm:$0x1]
        %v2549 = vlaneseq
        %v2550 = vshrl.u32 %v2549, 7
        %v2551 = vsub.s32 0, %v2550
        %v2552 = vrot.slane %v2547, %v2551
        %v2554 = vadd.f32 %v2515, %v2552
        %v2555 = vadd.f32 %v2516, %v2552
        %v2556 = vadd.f32 %v2517, %v2552
        %v2557 = vadd.f32 %v2518, %v2552
        %v2558 = vadd.f32 %v2519, %v2552
        %v2559 = vadd.f32 %v2520, %v2552
        %v2560 = vadd.f32 %v2521, %v2552
        %v2561 = vadd.f32 %v2522, %v2552
        %v2562 = vadd.f32 %v2523, %v2552
        %v2563 = vadd.f32 %v2524, %v2552
        %v2564 = vadd.f32 %v2525, %v2552
        %v2565 = vadd.f32 %v2526, %v2552
        %v2566 = vadd.f32 %v2527, %v2552
        %v2567 = vadd.f32 %v2528, %v2552
        %v2568 = vadd.f32 %v2529, %v2552
        %v2569 = vadd.f32 %v2530, %v2552
        %v2570 = vadd.f32 %v2531, %v2552
        %v2571 = vadd.f32 %v2532, %v2552
        %v2572 = vadd.f32 %v2533, %v2552
        %v2573 = vadd.f32 %v2534, %v2552
        %v2574 = vadd.f32 %v2535, %v2552
        %v2575 = vadd.f32 %v2536, %v2552
        %v2576 = vadd.f32 %v2537, %v2552
        %v2577 = vadd.f32 %v2538, %v2552
        %v2578 = vadd.f32 %v2539, %v2552
        %v2579 = vadd.f32 %v2540, %v2552
        %v2580 = vadd.f32 %v2541, %v2552
        %v2581 = vadd.f32 %v2542, %v2552
        %v2582 = vadd.f32 %v2543, %v2552
        %v2583 = vadd.f32 %v2544, %v2552
        %v2584 = vadd.f32 %v2545, %v2552
        %v2585 = vadd.f32 %v2546, %v2552
        %v2586 = vmul.f32 %v2554, 0.5
        %v2587 = vmul.f32 %v2555, 0.5
        %v2588 = vmul.f32 %v2556, 0.5
        %v2589 = vmul.f32 %v2557, 0.5
        %v2590 = vmul.f32 %v2558, 0.5
        %v2591 = vmul.f32 %v2559, 0.5
        %v2592 = vmul.f32 %v2560, 0.5
        %v2593 = vmul.f32 %v2561, 0.5
        %v2594 = vmul.f32 %v2562, 0.5
        %v2595 = vmul.f32 %v2563, 0.5
        %v2596 = vmul.f32 %v2564, 0.5
        %v2597 = vmul.f32 %v2565, 0.5
        %v2598 = vmul.f32 %v2566, 0.5
        %v2599 = vmul.f32 %v2567, 0.5
        %v2600 = vmul.f32 %v2568, 0.5
        %v2601 = vmul.f32 %v2569, 0.5
        %v2602 = vmul.f32 %v2570, 0.5
        %v2603 = vmul.f32 %v2571, 0.5
        %v2604 = vmul.f32 %v2572, 0.5
        %v2605 = vmul.f32 %v2573, 0.5
        %v2606 = vmul.f32 %v2574, 0.5
        %v2607 = vmul.f32 %v2575, 0.5
        %v2608 = vmul.f32 %v2576, 0.5
        %v2609 = vmul.f32 %v2577, 0.5
        %v2610 = vmul.f32 %v2578, 0.5
        %v2611 = vmul.f32 %v2579, 0.5
        %v2612 = vmul.f32 %v2580, 0.5
        %v2613 = vmul.f32 %v2581, 0.5
        %v2614 = vmul.f32 %v2582, 0.5
        %v2615 = vmul.f32 %v2583, 0.5
        %v2616 = vmul.f32 %v2584, 0.5
        %v2617 = vmul.f32 %v2585, 0.5
        %v2618 = vmul.f32 %v2554, %v2554
        %v2619 = vmul.f32 %v2555, %v2555
        %v2620 = vmul.f32 %v2556, %v2556
        %v2621 = vmul.f32 %v2557, %v2557
        %v2622 = vmul.f32 %v2558, %v2558
        %v2623 = vmul.f32 %v2559, %v2559
        %v2624 = vmul.f32 %v2560, %v2560
        %v2625 = vmul.f32 %v2561, %v2561
        %v2626 = vmul.f32 %v2562, %v2562
        %v2627 = vmul.f32 %v2563, %v2563
        %v2628 = vmul.f32 %v2564, %v2564
        %v2629 = vmul.f32 %v2565, %v2565
        %v2630 = vmul.f32 %v2566, %v2566
        %v2631 = vmul.f32 %v2567, %v2567
        %v2632 = vmul.f32 %v2568, %v2568
        %v2633 = vmul.f32 %v2569, %v2569
        %v2634 = vmul.f32 %v2570, %v2570
        %v2635 = vmul.f32 %v2571, %v2571
        %v2636 = vmul.f32 %v2572, %v2572
        %v2637 = vmul.f32 %v2573, %v2573
        %v2638 = vmul.f32 %v2574, %v2574
        %v2639 = vmul.f32 %v2575, %v2575
        %v2640 = vmul.f32 %v2576, %v2576
        %v2641 = vmul.f32 %v2577, %v2577
        %v2642 = vmul.f32 %v2578, %v2578
        %v2643 = vmul.f32 %v2579, %v2579
        %v2644 = vmul.f32 %v2580, %v2580
        %v2645 = vmul.f32 %v2581, %v2581
        %v2646 = vmul.f32 %v2582, %v2582
        %v2647 = vmul.f32 %v2583, %v2583
        %v2648 = vmul.f32 %v2584, %v2584
        %v2649 = vmul.f32 %v2585, %v2585
        %v2650 = vmul.f32 %v2618, %v2554
        %v2651 = vmul.f32 %v2619, %v2555
        %v2652 = vmul.f32 %v2620, %v2556
        %v2653 = vmul.f32 %v2621, %v2557
        %v2654 = vmul.f32 %v2622, %v2558
        %v2655 = vmul.f32 %v2623, %v2559
        %v2656 = vmul.f32 %v2624, %v2560
        %v2657 = vmul.f32 %v2625, %v2561
        %v2658 = vmul.f32 %v2626, %v2562
        %v2659 = vmul.f32 %v2627, %v2563
        %v2660 = vmul.f32 %v2628, %v2564
        %v2661 = vmul.f32 %v2629, %v2565
        %v2662 = vmul.f32 %v2630, %v2566
        %v2663 = vmul.f32 %v2631, %v2567
        %v2664 = vmul.f32 %v2632, %v2568
        %v2665 = vmul.f32 %v2633, %v2569
        %v2666 = vmul.f32 %v2634, %v2570
        %v2667 = vmul.f32 %v2635, %v2571
        %v2668 = vmul.f32 %v2636, %v2572
        %v2669 = vmul.f32 %v2637, %v2573
        %v2670 = vmul.f32 %v2638, %v2574
        %v2671 = vmul.f32 %v2639, %v2575
        %v2672 = vmul.f32 %v2640, %v2576
        %v2673 = vmul.f32 %v2641, %v2577
        %v2674 = vmul.f32 %v2642, %v2578
        %v2675 = vmul.f32 %v2643, %v2579
        %v2676 = vmul.f32 %v2644, %v2580
        %v2677 = vmul.f32 %v2645, %v2581
        %v2678 = vmul.f32 %v2646, %v2582
        %v2679 = vmul.f32 %v2647, %v2583
        %v2680 = vmul.f32 %v2648, %v2584
        %v2681 = vmul.f32 %v2649, %v2585
        %v2682 = vmul.f32 %v2650, 0.044715
        %v2683 = vmul.f32 %v2651, 0.044715
        %v2684 = vmul.f32 %v2652, 0.044715
        %v2685 = vmul.f32 %v2653, 0.044715
        %v2686 = vmul.f32 %v2654, 0.044715
        %v2687 = vmul.f32 %v2655, 0.044715
        %v2688 = vmul.f32 %v2656, 0.044715
        %v2689 = vmul.f32 %v2657, 0.044715
        %v2690 = vmul.f32 %v2658, 0.044715
        %v2691 = vmul.f32 %v2659, 0.044715
        %v2692 = vmul.f32 %v2660, 0.044715
        %v2693 = vmul.f32 %v2661, 0.044715
        %v2694 = vmul.f32 %v2662, 0.044715
        %v2695 = vmul.f32 %v2663, 0.044715
        %v2696 = vmul.f32 %v2664, 0.044715
        %v2697 = vmul.f32 %v2665, 0.044715
        %v2698 = vmul.f32 %v2666, 0.044715
        %v2699 = vmul.f32 %v2667, 0.044715
        %v2700 = vmul.f32 %v2668, 0.044715
        %v2701 = vmul.f32 %v2669, 0.044715
        %v2702 = vmul.f32 %v2670, 0.044715
        %v2703 = vmul.f32 %v2671, 0.044715
        %v2704 = vmul.f32 %v2672, 0.044715
        %v2705 = vmul.f32 %v2673, 0.044715
        %v2706 = vmul.f32 %v2674, 0.044715
        %v2707 = vmul.f32 %v2675, 0.044715
        %v2708 = vmul.f32 %v2676, 0.044715
        %v2709 = vmul.f32 %v2677, 0.044715
        %v2710 = vmul.f32 %v2678, 0.044715
        %v2711 = vmul.f32 %v2679, 0.044715
        %v2712 = vmul.f32 %v2680, 0.044715
        %v2713 = vmul.f32 %v2681, 0.044715
        %v2714 = vadd.f32 %v2554, %v2682
        %v2715 = vadd.f32 %v2555, %v2683
        %v2716 = vadd.f32 %v2556, %v2684
        %v2717 = vadd.f32 %v2557, %v2685
        %v2718 = vadd.f32 %v2558, %v2686
        %v2719 = vadd.f32 %v2559, %v2687
        %v2720 = vadd.f32 %v2560, %v2688
        %v2721 = vadd.f32 %v2561, %v2689
        %v2722 = vadd.f32 %v2562, %v2690
        %v2723 = vadd.f32 %v2563, %v2691
        %v2724 = vadd.f32 %v2564, %v2692
        %v2725 = vadd.f32 %v2565, %v2693
        %v2726 = vadd.f32 %v2566, %v2694
        %v2727 = vadd.f32 %v2567, %v2695
        %v2728 = vadd.f32 %v2568, %v2696
        %v2729 = vadd.f32 %v2569, %v2697
        %v2730 = vadd.f32 %v2570, %v2698
        %v2731 = vadd.f32 %v2571, %v2699
        %v2732 = vadd.f32 %v2572, %v2700
        %v2733 = vadd.f32 %v2573, %v2701
        %v2734 = vadd.f32 %v2574, %v2702
        %v2735 = vadd.f32 %v2575, %v2703
        %v2736 = vadd.f32 %v2576, %v2704
        %v2737 = vadd.f32 %v2577, %v2705
        %v2738 = vadd.f32 %v2578, %v2706
        %v2739 = vadd.f32 %v2579, %v2707
        %v2740 = vadd.f32 %v2580, %v2708
        %v2741 = vadd.f32 %v2581, %v2709
        %v2742 = vadd.f32 %v2582, %v2710
        %v2743 = vadd.f32 %v2583, %v2711
        %v2744 = vadd.f32 %v2584, %v2712
        %v2745 = vadd.f32 %v2585, %v2713
        %v2746 = vmul.f32 %v2714, 0.7978846
        %v2747 = vmul.f32 %v2715, 0.7978846
        %v2748 = vmul.f32 %v2716, 0.7978846
        %v2749 = vmul.f32 %v2717, 0.7978846
        %v2750 = vmul.f32 %v2718, 0.7978846
        %v2751 = vmul.f32 %v2719, 0.7978846
        %v2752 = vmul.f32 %v2720, 0.7978846
        %v2753 = vmul.f32 %v2721, 0.7978846
        %v2754 = vmul.f32 %v2722, 0.7978846
        %v2755 = vmul.f32 %v2723, 0.7978846
        %v2756 = vmul.f32 %v2724, 0.7978846
        %v2757 = vmul.f32 %v2725, 0.7978846
        %v2758 = vmul.f32 %v2726, 0.7978846
        %v2759 = vmul.f32 %v2727, 0.7978846
        %v2760 = vmul.f32 %v2728, 0.7978846
        %v2761 = vmul.f32 %v2729, 0.7978846
        %v2762 = vmul.f32 %v2730, 0.7978846
        %v2763 = vmul.f32 %v2731, 0.7978846
        %v2764 = vmul.f32 %v2732, 0.7978846
        %v2765 = vmul.f32 %v2733, 0.7978846
        %v2766 = vmul.f32 %v2734, 0.7978846
        %v2767 = vmul.f32 %v2735, 0.7978846
        %v2768 = vmul.f32 %v2736, 0.7978846
        %v2769 = vmul.f32 %v2737, 0.7978846
        %v2770 = vmul.f32 %v2738, 0.7978846
        %v2771 = vmul.f32 %v2739, 0.7978846
        %v2772 = vmul.f32 %v2740, 0.7978846
        %v2773 = vmul.f32 %v2741, 0.7978846
        %v2774 = vmul.f32 %v2742, 0.7978846
        %v2775 = vmul.f32 %v2743, 0.7978846
        %v2776 = vmul.f32 %v2744, 0.7978846
        %v2777 = vmul.f32 %v2745, 0.7978846
        %v2778 = vtanh.pop %v2746
        %v2779 = vtanh.pop %v2747
        %v2780 = vtanh.pop %v2748
        %v2781 = vtanh.pop %v2749
        %v2782 = vtanh.pop %v2750
        %v2783 = vtanh.pop %v2751
        %v2784 = vtanh.pop %v2752
        %v2785 = vtanh.pop %v2753
        %v2786 = vtanh.pop %v2754
        %v2787 = vtanh.pop %v2755
        %v2788 = vtanh.pop %v2756
        %v2789 = vtanh.pop %v2757
        %v2790 = vtanh.pop %v2758
        %v2791 = vtanh.pop %v2759
        %v2792 = vtanh.pop %v2760
        %v2793 = vtanh.pop %v2761
        %v2794 = vtanh.pop %v2762
        %v2795 = vtanh.pop %v2763
        %v2796 = vtanh.pop %v2764
        %v2797 = vtanh.pop %v2765
        %v2798 = vtanh.pop %v2766
        %v2799 = vtanh.pop %v2767
        %v2800 = vtanh.pop %v2768
        %v2801 = vtanh.pop %v2769
        %v2802 = vtanh.pop %v2770
        %v2803 = vtanh.pop %v2771
        %v2804 = vtanh.pop %v2772
        %v2805 = vtanh.pop %v2773
        %v2806 = vtanh.pop %v2774
        %v2807 = vtanh.pop %v2775
        %v2808 = vtanh.pop %v2776
        %v2809 = vtanh.pop %v2777
        %v2810 = vadd.f32 %v2778, 1.0
        %v2811 = vadd.f32 %v2779, 1.0
        %v2812 = vadd.f32 %v2780, 1.0
        %v2813 = vadd.f32 %v2781, 1.0
        %v2814 = vadd.f32 %v2782, 1.0
        %v2815 = vadd.f32 %v2783, 1.0
        %v2816 = vadd.f32 %v2784, 1.0
        %v2817 = vadd.f32 %v2785, 1.0
        %v2818 = vadd.f32 %v2786, 1.0
        %v2819 = vadd.f32 %v2787, 1.0
        %v2820 = vadd.f32 %v2788, 1.0
        %v2821 = vadd.f32 %v2789, 1.0
        %v2822 = vadd.f32 %v2790, 1.0
        %v2823 = vadd.f32 %v2791, 1.0
        %v2824 = vadd.f32 %v2792, 1.0
        %v2825 = vadd.f32 %v2793, 1.0
        %v2826 = vadd.f32 %v2794, 1.0
        %v2827 = vadd.f32 %v2795, 1.0
        %v2828 = vadd.f32 %v2796, 1.0
        %v2829 = vadd.f32 %v2797, 1.0
        %v2830 = vadd.f32 %v2798, 1.0
        %v2831 = vadd.f32 %v2799, 1.0
        %v2832 = vadd.f32 %v2800, 1.0
        %v2833 = vadd.f32 %v2801, 1.0
        %v2834 = vadd.f32 %v2802, 1.0
        %v2835 = vadd.f32 %v2803, 1.0
        %v2836 = vadd.f32 %v2804, 1.0
        %v2837 = vadd.f32 %v2805, 1.0
        %v2838 = vadd.f32 %v2806, 1.0
        %v2839 = vadd.f32 %v2807, 1.0
        %v2840 = vadd.f32 %v2808, 1.0
        %v2841 = vadd.f32 %v2809, 1.0
        %v2842 = vmul.f32 %v2586, %v2810
        %v2843 = vmul.f32 %v2587, %v2811
        %v2844 = vmul.f32 %v2588, %v2812
        %v2845 = vmul.f32 %v2589, %v2813
        %v2846 = vmul.f32 %v2590, %v2814
        %v2847 = vmul.f32 %v2591, %v2815
        %v2848 = vmul.f32 %v2592, %v2816
        %v2849 = vmul.f32 %v2593, %v2817
        %v2850 = vmul.f32 %v2594, %v2818
        %v2851 = vmul.f32 %v2595, %v2819
        %v2852 = vmul.f32 %v2596, %v2820
        %v2853 = vmul.f32 %v2597, %v2821
        %v2854 = vmul.f32 %v2598, %v2822
        %v2855 = vmul.f32 %v2599, %v2823
        %v2856 = vmul.f32 %v2600, %v2824
        %v2857 = vmul.f32 %v2601, %v2825
        %v2858 = vmul.f32 %v2602, %v2826
        %v2859 = vmul.f32 %v2603, %v2827
        %v2860 = vmul.f32 %v2604, %v2828
        %v2861 = vmul.f32 %v2605, %v2829
        %v2862 = vmul.f32 %v2606, %v2830
        %v2863 = vmul.f32 %v2607, %v2831
        %v2864 = vmul.f32 %v2608, %v2832
        %v2865 = vmul.f32 %v2609, %v2833
        %v2866 = vmul.f32 %v2610, %v2834
        %v2867 = vmul.f32 %v2611, %v2835
        %v2868 = vmul.f32 %v2612, %v2836
        %v2869 = vmul.f32 %v2613, %v2837
        %v2870 = vmul.f32 %v2614, %v2838
        %v2871 = vmul.f32 %v2615, %v2839
        %v2872 = vmul.f32 %v2616, %v2840
        %v2873 = vmul.f32 %v2617, %v2841
        %v2874 = vpack.c.bf16 %v2843, %v2842
        %v2875 = vpack.c.bf16 %v2845, %v2844
        %v2876 = vpack.c.bf16 %v2847, %v2846
        %v2877 = vpack.c.bf16 %v2849, %v2848
        %v2878 = vpack.c.bf16 %v2851, %v2850
        %v2879 = vpack.c.bf16 %v2853, %v2852
        %v2880 = vpack.c.bf16 %v2855, %v2854
        %v2881 = vpack.c.bf16 %v2857, %v2856
        %v2882 = vpack.c.bf16 %v2859, %v2858
        %v2883 = vpack.c.bf16 %v2861, %v2860
        %v2884 = vpack.c.bf16 %v2863, %v2862
        %v2885 = vpack.c.bf16 %v2865, %v2864
        %v2886 = vpack.c.bf16 %v2867, %v2866
        %v2887 = vpack.c.bf16 %v2869, %v2868
        %v2888 = vpack.c.bf16 %v2871, %v2870
        %v2889 = vpack.c.bf16 %v2873, %v2872
        %2890 = vxpose.xlu0.b32.start [1/16] %v2842, 128
        %2891 = vxpose.xlu0.b32.cont [2/16] %v2843, 128
        %2892 = vxpose.xlu0.b32.cont [3/16] %v2844, 128
        %2893 = vxpose.xlu0.b32.cont [4/16] %v2845, 128
        %2894 = vxpose.xlu0.b32.cont [5/16] %v2846, 128
        %2895 = vxpose.xlu0.b32.cont [6/16] %v2847, 128
        %2896 = vxpose.xlu0.b32.cont [7/16] %v2848, 128
        %2897 = vxpose.xlu0.b32.cont [8/16] %v2849, 128
        %2898 = vxpose.xlu0.b32.cont [9/16] %v2850, 128
        %2899 = vxpose.xlu0.b32.cont [10/16] %v2851, 128
        %2900 = vxpose.xlu0.b32.cont [11/16] %v2852, 128
        %2901 = vxpose.xlu0.b32.cont [12/16] %v2853, 128
        %2902 = vxpose.xlu0.b32.cont [13/16] %v2854, 128
        %2903 = vxpose.xlu0.b32.cont [14/16] %v2855, 128
        %2904 = vxpose.xlu0.b32.cont [15/16] %v2856, 128
        %2905 = vxpose.xlu0.b32.end [16/16] %v2857, 128
        %v2906 = vpop.trf.xlu0
        %v2907 = vpop.trf.xlu0
        %v2908 = vpop.trf.xlu0
        %v2909 = vpop.trf.xlu0
        %v2910 = vpop.trf.xlu0
        %v2911 = vpop.trf.xlu0
        %v2912 = vpop.trf.xlu0
        %v2913 = vpop.trf.xlu0
        %v2914 = vpop.trf.xlu0
        %v2915 = vpop.trf.xlu0
        %v2916 = vpop.trf.xlu0
        %v2917 = vpop.trf.xlu0
        %v2918 = vpop.trf.xlu0
        %v2919 = vpop.trf.xlu0
        %v2920 = vpop.trf.xlu0
        %v2921 = vpop.trf.xlu0
        %2922 = vxpose.xlu0.b32.start [1/16] %v2858, 128
        %2923 = vxpose.xlu0.b32.cont [2/16] %v2859, 128
        %2924 = vxpose.xlu0.b32.cont [3/16] %v2860, 128
        %2925 = vxpose.xlu0.b32.cont [4/16] %v2861, 128
        %2926 = vxpose.xlu0.b32.cont [5/16] %v2862, 128
        %2927 = vxpose.xlu0.b32.cont [6/16] %v2863, 128
        %2928 = vxpose.xlu0.b32.cont [7/16] %v2864, 128
        %2929 = vxpose.xlu0.b32.cont [8/16] %v2865, 128
        %2930 = vxpose.xlu0.b32.cont [9/16] %v2866, 128
        %2931 = vxpose.xlu0.b32.cont [10/16] %v2867, 128
        %2932 = vxpose.xlu0.b32.cont [11/16] %v2868, 128
        %2933 = vxpose.xlu0.b32.cont [12/16] %v2869, 128
        %2934 = vxpose.xlu0.b32.cont [13/16] %v2870, 128
        %2935 = vxpose.xlu0.b32.cont [14/16] %v2871, 128
        %2936 = vxpose.xlu0.b32.cont [15/16] %v2872, 128
        %2937 = vxpose.xlu0.b32.end [16/16] %v2873, 128
        %v2938 = vpop.trf.xlu0
        %v2939 = vpop.trf.xlu0
        %v2940 = vpop.trf.xlu0
        %v2941 = vpop.trf.xlu0
        %v2942 = vpop.trf.xlu0
        %v2943 = vpop.trf.xlu0
        %v2944 = vpop.trf.xlu0
        %v2945 = vpop.trf.xlu0
        %v2946 = vpop.trf.xlu0
        %v2947 = vpop.trf.xlu0
        %v2948 = vpop.trf.xlu0
        %v2949 = vpop.trf.xlu0
        %v2950 = vpop.trf.xlu0
        %v2951 = vpop.trf.xlu0
        %v2952 = vpop.trf.xlu0
        %v2953 = vpop.trf.xlu0
        %v2954 = vpack.c.bf16 %v2907, %v2906
        %v2955 = vpack.c.bf16 %v2939, %v2938
        %v2956 = vld [vmem:[%s6] sm:$0xff]
        %v2957 = vld [vmem:[%s6 + $0x8] sm:$0xff]
        %v2960 = vunpack.c.l.b16 %v2956
        %v2961 = vunpack.c.h.b16 %v2956
        %v2962 = vunpack.c.l.b16 %v2957
        %v2963 = vunpack.c.h.b16 %v2957
        %v2964 = vpack.c.b16 %v2962, %v2960
        %v2965 = vpack.c.b16 %v2963, %v2961
        %vm2968 = vcmask 130048
        %v2970 = vsel %vm2968, %v2874, 0
        %v2973 = vsel %vm2968, %v2875, 0
        %v2976 = vsel %vm2968, %v2876, 0
        %v2979 = vsel %vm2968, %v2877, 0
        %v2982 = vsel %vm2968, %v2878, 0
        %v2985 = vsel %vm2968, %v2879, 0
        %v2988 = vsel %vm2968, %v2880, 0
        %v2991 = vsel %vm2968, %v2881, 0
        %v2994 = vsel %vm2968, %v2882, 0
        %v2997 = vsel %vm2968, %v2883, 0
        %v3000 = vsel %vm2968, %v2884, 0
        %v3003 = vsel %vm2968, %v2885, 0
        %v3006 = vsel %vm2968, %v2886, 0
        %v3009 = vsel %vm2968, %v2887, 0
        %v3012 = vsel %vm2968, %v2888, 0
        %v3015 = vsel %vm2968, %v2889, 0
        %3017 = vmatprep.subr.bf16.mxu0 0
        %3018 = vmatpush1.bf16.msra.mxu0 0
        %3019 = vmatprep.subr.bf16.mxu0 0
        %3020 = vmatpush1.bf16.msra.mxu0 0
        %3021 = vmatprep.subr.bf16.mxu0 0
        %3022 = vmatpush1.bf16.msra.mxu0 0
        %3023 = vmatprep.subr.bf16.mxu0 0
        %3024 = vmatpush1.bf16.msra.mxu0 0
        %3025 = vmatprep.subr.bf16.mxu0 0
        %3026 = vmatpush1.bf16.msra.mxu0 0
        %3027 = vmatprep.subr.bf16.mxu0 0
        %3028 = vmatpush1.bf16.msra.mxu0 0
        %3029 = vmatprep.subr.bf16.mxu0 0
        %3030 = vmatpush1.bf16.msra.mxu0 0
        %3031 = vmatprep.subr.bf16.mxu0 %v2965
        %3032 = vmatpush1.bf16.msra.mxu0 %v2964
        %3033 = vmatprep.subr.bf16.mxu0 0
        %3034 = vmatpush2.bf16.msra.mxu0 0
        %3035 = vmatprep.subr.bf16.mxu0 0
        %3036 = vmatpush2.bf16.msra.mxu0 0
        %3037 = vmatprep.subr.bf16.mxu0 0
        %3038 = vmatpush2.bf16.msra.mxu0 0
        %3039 = vmatprep.subr.bf16.mxu0 0
        %3040 = vmatpush2.bf16.msra.mxu0 0
        %3041 = vmatprep.subr.bf16.mxu0 0
        %3042 = vmatpush2.bf16.msra.mxu0 0
        %3043 = vmatprep.subr.bf16.mxu0 0
        %3044 = vmatpush2.bf16.msra.mxu0 0
        %3045 = vmatprep.subr.bf16.mxu0 0
        %3046 = vmatpush2.bf16.msra.mxu0 0
        %3047 = vmatprep.subr.bf16.mxu0 0
        %3048 = vmatpush2.bf16.msra.mxu0 0
        %3049 = vmatprep.mubr.bf16.mxu0 0
        %3050 = vmatmul.mubr.bf16.gmra.mxu0 %v2970
        %v3051 = vpop.f32.mrf.mxu0
        %v3052 = vadd.f32 0.0, %v3051
        %v3053 = vpop.f32.mrf.mxu0
        %v3054 = vadd.f32 0.0, %v3053
        %v3055 = vpop.f32.mrf.mxu0
        %v3056 = vadd.f32 0.0, %v3055
        %v3057 = vpop.f32.mrf.mxu0
        %v3058 = vadd.f32 0.0, %v3057
        %3059 = vmatprep.mubr.bf16.mxu0 0
        %3060 = vmatmul.mubr.bf16.gmra.mxu0 %v2973
        %v3061 = vpop.f32.mrf.mxu0
        %v3062 = vadd.f32 0.0, %v3061
        %v3063 = vpop.f32.mrf.mxu0
        %v3064 = vadd.f32 0.0, %v3063
        %v3065 = vpop.f32.mrf.mxu0
        %v3066 = vadd.f32 0.0, %v3065
        %v3067 = vpop.f32.mrf.mxu0
        %v3068 = vadd.f32 0.0, %v3067
        %3069 = vmatprep.mubr.bf16.mxu0 0
        %3070 = vmatmul.mubr.bf16.gmra.mxu0 %v2976
        %v3071 = vpop.f32.mrf.mxu0
        %v3072 = vadd.f32 0.0, %v3071
        %v3073 = vpop.f32.mrf.mxu0
        %v3074 = vadd.f32 0.0, %v3073
        %v3075 = vpop.f32.mrf.mxu0
        %v3076 = vadd.f32 0.0, %v3075
        %v3077 = vpop.f32.mrf.mxu0
        %v3078 = vadd.f32 0.0, %v3077
        %3079 = vmatprep.mubr.bf16.mxu0 0
        %3080 = vmatmul.mubr.bf16.gmra.mxu0 %v2979
        %v3081 = vpop.f32.mrf.mxu0
        %v3082 = vadd.f32 0.0, %v3081
        %v3083 = vpop.f32.mrf.mxu0
        %v3084 = vadd.f32 0.0, %v3083
        %v3085 = vpop.f32.mrf.mxu0
        %v3086 = vadd.f32 0.0, %v3085
        %v3087 = vpop.f32.mrf.mxu0
        %v3088 = vadd.f32 0.0, %v3087
        %3089 = vmatprep.mubr.bf16.mxu0 0
        %3090 = vmatmul.mubr.bf16.gmra.mxu0 %v2982
        %v3091 = vpop.f32.mrf.mxu0
        %v3092 = vadd.f32 0.0, %v3091
        %v3093 = vpop.f32.mrf.mxu0
        %v3094 = vadd.f32 0.0, %v3093
        %v3095 = vpop.f32.mrf.mxu0
        %v3096 = vadd.f32 0.0, %v3095
        %v3097 = vpop.f32.mrf.mxu0
        %v3098 = vadd.f32 0.0, %v3097
        %3099 = vmatprep.mubr.bf16.mxu0 0
        %3100 = vmatmul.mubr.bf16.gmra.mxu0 %v2985
        %v3101 = vpop.f32.mrf.mxu0
        %v3102 = vadd.f32 0.0, %v3101
        %v3103 = vpop.f32.mrf.mxu0
        %v3104 = vadd.f32 0.0, %v3103
        %v3105 = vpop.f32.mrf.mxu0
        %v3106 = vadd.f32 0.0, %v3105
        %v3107 = vpop.f32.mrf.mxu0
        %v3108 = vadd.f32 0.0, %v3107
        %3109 = vmatprep.mubr.bf16.mxu0 0
        %3110 = vmatmul.mubr.bf16.gmra.mxu0 %v2988
        %v3111 = vpop.f32.mrf.mxu0
        %v3112 = vadd.f32 0.0, %v3111
        %v3113 = vpop.f32.mrf.mxu0
        %v3114 = vadd.f32 0.0, %v3113
        %v3115 = vpop.f32.mrf.mxu0
        %v3116 = vadd.f32 0.0, %v3115
        %v3117 = vpop.f32.mrf.mxu0
        %v3118 = vadd.f32 0.0, %v3117
        %3119 = vmatprep.mubr.bf16.mxu0 0
        %3120 = vmatmul.mubr.bf16.gmra.mxu0 %v2991
        %v3121 = vpop.f32.mrf.mxu0
        %v3122 = vadd.f32 0.0, %v3121
        %v3123 = vpop.f32.mrf.mxu0
        %v3124 = vadd.f32 0.0, %v3123
        %v3125 = vpop.f32.mrf.mxu0
        %v3126 = vadd.f32 0.0, %v3125
        %v3127 = vpop.f32.mrf.mxu0
        %v3128 = vadd.f32 0.0, %v3127
        %3129 = vmatprep.mubr.bf16.mxu0 0
        %3130 = vmatmul.mubr.bf16.gmra.mxu0 %v2994
        %v3131 = vpop.f32.mrf.mxu0
        %v3132 = vadd.f32 0.0, %v3131
        %v3133 = vpop.f32.mrf.mxu0
        %v3134 = vadd.f32 0.0, %v3133
        %v3135 = vpop.f32.mrf.mxu0
        %v3136 = vadd.f32 0.0, %v3135
        %v3137 = vpop.f32.mrf.mxu0
        %v3138 = vadd.f32 0.0, %v3137
        %3139 = vmatprep.mubr.bf16.mxu0 0
        %3140 = vmatmul.mubr.bf16.gmra.mxu0 %v2997
        %v3141 = vpop.f32.mrf.mxu0
        %v3142 = vadd.f32 0.0, %v3141
        %v3143 = vpop.f32.mrf.mxu0
        %v3144 = vadd.f32 0.0, %v3143
        %v3145 = vpop.f32.mrf.mxu0
        %v3146 = vadd.f32 0.0, %v3145
        %v3147 = vpop.f32.mrf.mxu0
        %v3148 = vadd.f32 0.0, %v3147
        %3149 = vmatprep.mubr.bf16.mxu0 0
        %3150 = vmatmul.mubr.bf16.gmra.mxu0 %v3000
        %v3151 = vpop.f32.mrf.mxu0
        %v3152 = vadd.f32 0.0, %v3151
        %v3153 = vpop.f32.mrf.mxu0
        %v3154 = vadd.f32 0.0, %v3153
        %v3155 = vpop.f32.mrf.mxu0
        %v3156 = vadd.f32 0.0, %v3155
        %v3157 = vpop.f32.mrf.mxu0
        %v3158 = vadd.f32 0.0, %v3157
        %3159 = vmatprep.mubr.bf16.mxu0 0
        %3160 = vmatmul.mubr.bf16.gmra.mxu0 %v3003
        %v3161 = vpop.f32.mrf.mxu0
        %v3162 = vadd.f32 0.0, %v3161
        %v3163 = vpop.f32.mrf.mxu0
        %v3164 = vadd.f32 0.0, %v3163
        %v3165 = vpop.f32.mrf.mxu0
        %v3166 = vadd.f32 0.0, %v3165
        %v3167 = vpop.f32.mrf.mxu0
        %v3168 = vadd.f32 0.0, %v3167
        %3169 = vmatprep.mubr.bf16.mxu0 0
        %3170 = vmatmul.mubr.bf16.gmra.mxu0 %v3006
        %v3171 = vpop.f32.mrf.mxu0
        %v3172 = vadd.f32 0.0, %v3171
        %v3173 = vpop.f32.mrf.mxu0
        %v3174 = vadd.f32 0.0, %v3173
        %v3175 = vpop.f32.mrf.mxu0
        %v3176 = vadd.f32 0.0, %v3175
        %v3177 = vpop.f32.mrf.mxu0
        %v3178 = vadd.f32 0.0, %v3177
        %3179 = vmatprep.mubr.bf16.mxu0 0
        %3180 = vmatmul.mubr.bf16.gmra.mxu0 %v3009
        %v3181 = vpop.f32.mrf.mxu0
        %v3182 = vadd.f32 0.0, %v3181
        %v3183 = vpop.f32.mrf.mxu0
        %v3184 = vadd.f32 0.0, %v3183
        %v3185 = vpop.f32.mrf.mxu0
        %v3186 = vadd.f32 0.0, %v3185
        %v3187 = vpop.f32.mrf.mxu0
        %v3188 = vadd.f32 0.0, %v3187
        %3189 = vmatprep.mubr.bf16.mxu0 0
        %3190 = vmatmul.mubr.bf16.gmra.mxu0 %v3012
        %v3191 = vpop.f32.mrf.mxu0
        %v3192 = vadd.f32 0.0, %v3191
        %v3193 = vpop.f32.mrf.mxu0
        %v3194 = vadd.f32 0.0, %v3193
        %v3195 = vpop.f32.mrf.mxu0
        %v3196 = vadd.f32 0.0, %v3195
        %v3197 = vpop.f32.mrf.mxu0
        %v3198 = vadd.f32 0.0, %v3197
        %3199 = vmatprep.mubr.bf16.mxu0 0
        %3200 = vmatmul.mubr.bf16.gmra.mxu0 %v3015
        %v3201 = vpop.f32.mrf.mxu0
        %v3202 = vadd.f32 0.0, %v3201
        %v3203 = vpop.f32.mrf.mxu0
        %v3204 = vadd.f32 0.0, %v3203
        %v3205 = vpop.f32.mrf.mxu0
        %v3206 = vadd.f32 0.0, %v3205
        %v3207 = vpop.f32.mrf.mxu0
        %v3208 = vadd.f32 0.0, %v3207
        %3209 = vdwg.mxu0
        %v3210 = vpack.c.bf16 %v3056, %v3052
        %v3211 = vpack.c.bf16 %v3058, %v3054
        %v3212 = vpack.c.bf16 %v3066, %v3062
        %v3213 = vpack.c.bf16 %v3068, %v3064
        %v3214 = vpack.c.bf16 %v3076, %v3072
        %v3215 = vpack.c.bf16 %v3078, %v3074
        %v3216 = vpack.c.bf16 %v3086, %v3082
        %v3217 = vpack.c.bf16 %v3088, %v3084
        %v3218 = vpack.c.bf16 %v3096, %v3092
        %v3219 = vpack.c.bf16 %v3098, %v3094
        %v3220 = vpack.c.bf16 %v3106, %v3102
        %v3221 = vpack.c.bf16 %v3108, %v3104
        %v3222 = vpack.c.bf16 %v3116, %v3112
        %v3223 = vpack.c.bf16 %v3118, %v3114
        %v3224 = vpack.c.bf16 %v3126, %v3122
        %v3225 = vpack.c.bf16 %v3128, %v3124
        %v3226 = vpack.c.bf16 %v3136, %v3132
        %v3227 = vpack.c.bf16 %v3138, %v3134
        %v3228 = vpack.c.bf16 %v3146, %v3142
        %v3229 = vpack.c.bf16 %v3148, %v3144
        %v3230 = vpack.c.bf16 %v3156, %v3152
        %v3231 = vpack.c.bf16 %v3158, %v3154
        %v3232 = vpack.c.bf16 %v3166, %v3162
        %v3233 = vpack.c.bf16 %v3168, %v3164
        %v3234 = vpack.c.bf16 %v3176, %v3172
        %v3235 = vpack.c.bf16 %v3178, %v3174
        %v3236 = vpack.c.bf16 %v3186, %v3182
        %v3237 = vpack.c.bf16 %v3188, %v3184
        %v3238 = vpack.c.bf16 %v3196, %v3192
        %v3239 = vpack.c.bf16 %v3198, %v3194
        %v3240 = vpack.c.bf16 %v3206, %v3202
        %v3241 = vpack.c.bf16 %v3208, %v3204
        %v3242 = vld [vmem:[%s7] sm:$0xf]
        %v3243 = vld [vmem:[%s7 + $0x4] sm:$0xf]
        %v3244 = vld [vmem:[%s7 + $0x8] sm:$0xf]
        %v3245 = vld [vmem:[%s7 + $0xc] sm:$0xf]
        %v3246 = vld [vmem:[%s7 + $0x10] sm:$0xf]
        %v3247 = vld [vmem:[%s7 + $0x14] sm:$0xf]
        %v3248 = vld [vmem:[%s7 + $0x18] sm:$0xf]
        %v3249 = vld [vmem:[%s7 + $0x1c] sm:$0xf]
        %v3250 = vld [vmem:[%s7 + $0x20] sm:$0xf]
        %v3251 = vld [vmem:[%s7 + $0x24] sm:$0xf]
        %v3252 = vld [vmem:[%s7 + $0x28] sm:$0xf]
        %v3253 = vld [vmem:[%s7 + $0x2c] sm:$0xf]
        %v3254 = vld [vmem:[%s7 + $0x30] sm:$0xf]
        %v3255 = vld [vmem:[%s7 + $0x34] sm:$0xf]
        %v3256 = vld [vmem:[%s7 + $0x38] sm:$0xf]
        %v3257 = vld [vmem:[%s7 + $0x3c] sm:$0xf]
        %v3258 = vld [vmem:[%s7 + $0x40] sm:$0xf]
        %v3259 = vld [vmem:[%s7 + $0x44] sm:$0xf]
        %v3260 = vld [vmem:[%s7 + $0x48] sm:$0xf]
        %v3261 = vld [vmem:[%s7 + $0x4c] sm:$0xf]
        %v3262 = vld [vmem:[%s7 + $0x50] sm:$0xf]
        %v3263 = vld [vmem:[%s7 + $0x54] sm:$0xf]
        %v3264 = vld [vmem:[%s7 + $0x58] sm:$0xf]
        %v3265 = vld [vmem:[%s7 + $0x5c] sm:$0xf]
        %v3266 = vld [vmem:[%s7 + $0x60] sm:$0xf]
        %v3267 = vld [vmem:[%s7 + $0x64] sm:$0xf]
        %v3268 = vld [vmem:[%s7 + $0x68] sm:$0xf]
        %v3269 = vld [vmem:[%s7 + $0x6c] sm:$0xf]
        %v3270 = vld [vmem:[%s7 + $0x70] sm:$0xf]
        %v3271 = vld [vmem:[%s7 + $0x74] sm:$0xf]
        %v3272 = vld [vmem:[%s7 + $0x78] sm:$0xf]
        %v3273 = vld [vmem:[%s7 + $0x7c] sm:$0xf]
        %v3306 = vunpack.c.l.b16 %v3242
        %v3307 = vunpack.c.l.b16 %v3243
        %v3308 = vunpack.c.l.b16 %v3244
        %v3309 = vunpack.c.l.b16 %v3245
        %v3310 = vunpack.c.l.b16 %v3246
        %v3311 = vunpack.c.l.b16 %v3247
        %v3312 = vunpack.c.l.b16 %v3248
        %v3313 = vunpack.c.l.b16 %v3249
        %v3314 = vunpack.c.l.b16 %v3250
        %v3315 = vunpack.c.l.b16 %v3251
        %v3316 = vunpack.c.l.b16 %v3252
        %v3317 = vunpack.c.l.b16 %v3253
        %v3318 = vunpack.c.l.b16 %v3254
        %v3319 = vunpack.c.l.b16 %v3255
        %v3320 = vunpack.c.l.b16 %v3256
        %v3321 = vunpack.c.l.b16 %v3257
        %v3322 = vunpack.c.l.b16 %v3258
        %v3323 = vunpack.c.l.b16 %v3259
        %v3324 = vunpack.c.l.b16 %v3260
        %v3325 = vunpack.c.l.b16 %v3261
        %v3326 = vunpack.c.l.b16 %v3262
        %v3327 = vunpack.c.l.b16 %v3263
        %v3328 = vunpack.c.l.b16 %v3264
        %v3329 = vunpack.c.l.b16 %v3265
        %v3330 = vunpack.c.l.b16 %v3266
        %v3331 = vunpack.c.l.b16 %v3267
        %v3332 = vunpack.c.l.b16 %v3268
        %v3333 = vunpack.c.l.b16 %v3269
        %v3334 = vunpack.c.l.b16 %v3270
        %v3335 = vunpack.c.l.b16 %v3271
        %v3336 = vunpack.c.l.b16 %v3272
        %v3337 = vunpack.c.l.b16 %v3273
        %v3338 = vpack.c.b16 %v3307, %v3306
        %v3339 = vpack.c.b16 %v3309, %v3308
        %v3340 = vpack.c.b16 %v3311, %v3310
        %v3341 = vpack.c.b16 %v3313, %v3312
        %v3342 = vpack.c.b16 %v3315, %v3314
        %v3343 = vpack.c.b16 %v3317, %v3316
        %v3344 = vpack.c.b16 %v3319, %v3318
        %v3345 = vpack.c.b16 %v3321, %v3320
        %v3346 = vpack.c.b16 %v3323, %v3322
        %v3347 = vpack.c.b16 %v3325, %v3324
        %v3348 = vpack.c.b16 %v3327, %v3326
        %v3349 = vpack.c.b16 %v3329, %v3328
        %v3350 = vpack.c.b16 %v3331, %v3330
        %v3351 = vpack.c.b16 %v3333, %v3332
        %v3352 = vpack.c.b16 %v3335, %v3334
        %v3353 = vpack.c.b16 %v3337, %v3336
        %v3355 = vsel %vm2968, %v3338, 0
        %v3358 = vsel %vm2968, %v3339, 0
        %v3361 = vsel %vm2968, %v3340, 0
        %v3364 = vsel %vm2968, %v3341, 0
        %v3367 = vsel %vm2968, %v3342, 0
        %v3370 = vsel %vm2968, %v3343, 0
        %v3373 = vsel %vm2968, %v3344, 0
        %v3376 = vsel %vm2968, %v3345, 0
        %v3379 = vsel %vm2968, %v3346, 0
        %v3382 = vsel %vm2968, %v3347, 0
        %v3385 = vsel %vm2968, %v3348, 0
        %v3388 = vsel %vm2968, %v3349, 0
        %v3391 = vsel %vm2968, %v3350, 0
        %v3394 = vsel %vm2968, %v3351, 0
        %v3397 = vsel %vm2968, %v3352, 0
        %v3400 = vsel %vm2968, %v3353, 0
        %3402 = vmatprep.subr.bf16.mxu0 0
        %3403 = vmatpush1.bf16.msra.mxu0 0
        %3404 = vmatprep.subr.bf16.mxu0 0
        %3405 = vmatpush1.bf16.msra.mxu0 0
        %3406 = vmatprep.subr.bf16.mxu0 0
        %3407 = vmatpush1.bf16.msra.mxu0 0
        %3408 = vmatprep.subr.bf16.mxu0 0
        %3409 = vmatpush1.bf16.msra.mxu0 0
        %3410 = vmatprep.subr.bf16.mxu0 0
        %3411 = vmatpush1.bf16.msra.mxu0 0
        %3412 = vmatprep.subr.bf16.mxu0 0
        %3413 = vmatpush1.bf16.msra.mxu0 0
        %3414 = vmatprep.subr.bf16.mxu0 0
        %3415 = vmatpush1.bf16.msra.mxu0 0
        %3416 = vmatprep.subr.bf16.mxu0 %v2955
        %3417 = vmatpush1.bf16.msra.mxu0 %v2954
        %3418 = vmatprep.subr.bf16.mxu0 0
        %3419 = vmatpush2.bf16.msra.mxu0 0
        %3420 = vmatprep.subr.bf16.mxu0 0
        %3421 = vmatpush2.bf16.msra.mxu0 0
        %3422 = vmatprep.subr.bf16.mxu0 0
        %3423 = vmatpush2.bf16.msra.mxu0 0
        %3424 = vmatprep.subr.bf16.mxu0 0
        %3425 = vmatpush2.bf16.msra.mxu0 0
        %3426 = vmatprep.subr.bf16.mxu0 0
        %3427 = vmatpush2.bf16.msra.mxu0 0
        %3428 = vmatprep.subr.bf16.mxu0 0
        %3429 = vmatpush2.bf16.msra.mxu0 0
        %3430 = vmatprep.subr.bf16.mxu0 0
        %3431 = vmatpush2.bf16.msra.mxu0 0
        %3432 = vmatprep.subr.bf16.mxu0 0
        %3433 = vmatpush2.bf16.msra.mxu0 0
        %3434 = vmatprep.mubr.bf16.mxu0 0
        %3435 = vmatmul.mubr.bf16.gmra.mxu0 %v3355
        %v3436 = vpop.f32.mrf.mxu0
        %v3437 = vadd.f32 0.0, %v3436
        %v3438 = vpop.f32.mrf.mxu0
        %v3439 = vadd.f32 0.0, %v3438
        %v3440 = vpop.f32.mrf.mxu0
        %v3441 = vadd.f32 0.0, %v3440
        %v3442 = vpop.f32.mrf.mxu0
        %v3443 = vadd.f32 0.0, %v3442
        %3444 = vmatprep.mubr.bf16.mxu0 0
        %3445 = vmatmul.mubr.bf16.gmra.mxu0 %v3358
        %v3446 = vpop.f32.mrf.mxu0
        %v3447 = vadd.f32 0.0, %v3446
        %v3448 = vpop.f32.mrf.mxu0
        %v3449 = vadd.f32 0.0, %v3448
        %v3450 = vpop.f32.mrf.mxu0
        %v3451 = vadd.f32 0.0, %v3450
        %v3452 = vpop.f32.mrf.mxu0
        %v3453 = vadd.f32 0.0, %v3452
        %3454 = vmatprep.mubr.bf16.mxu0 0
        %3455 = vmatmul.mubr.bf16.gmra.mxu0 %v3361
        %v3456 = vpop.f32.mrf.mxu0
        %v3457 = vadd.f32 0.0, %v3456
        %v3458 = vpop.f32.mrf.mxu0
        %v3459 = vadd.f32 0.0, %v3458
        %v3460 = vpop.f32.mrf.mxu0
        %v3461 = vadd.f32 0.0, %v3460
        %v3462 = vpop.f32.mrf.mxu0
        %v3463 = vadd.f32 0.0, %v3462
        %3464 = vmatprep.mubr.bf16.mxu0 0
        %3465 = vmatmul.mubr.bf16.gmra.mxu0 %v3364
        %v3466 = vpop.f32.mrf.mxu0
        %v3467 = vadd.f32 0.0, %v3466
        %v3468 = vpop.f32.mrf.mxu0
        %v3469 = vadd.f32 0.0, %v3468
        %v3470 = vpop.f32.mrf.mxu0
        %v3471 = vadd.f32 0.0, %v3470
        %v3472 = vpop.f32.mrf.mxu0
        %v3473 = vadd.f32 0.0, %v3472
        %3474 = vmatprep.mubr.bf16.mxu0 0
        %3475 = vmatmul.mubr.bf16.gmra.mxu0 %v3367
        %v3476 = vpop.f32.mrf.mxu0
        %v3477 = vadd.f32 0.0, %v3476
        %v3478 = vpop.f32.mrf.mxu0
        %v3479 = vadd.f32 0.0, %v3478
        %v3480 = vpop.f32.mrf.mxu0
        %v3481 = vadd.f32 0.0, %v3480
        %v3482 = vpop.f32.mrf.mxu0
        %v3483 = vadd.f32 0.0, %v3482
        %3484 = vmatprep.mubr.bf16.mxu0 0
        %3485 = vmatmul.mubr.bf16.gmra.mxu0 %v3370
        %v3486 = vpop.f32.mrf.mxu0
        %v3487 = vadd.f32 0.0, %v3486
        %v3488 = vpop.f32.mrf.mxu0
        %v3489 = vadd.f32 0.0, %v3488
        %v3490 = vpop.f32.mrf.mxu0
        %v3491 = vadd.f32 0.0, %v3490
        %v3492 = vpop.f32.mrf.mxu0
        %v3493 = vadd.f32 0.0, %v3492
        %3494 = vmatprep.mubr.bf16.mxu0 0
        %3495 = vmatmul.mubr.bf16.gmra.mxu0 %v3373
        %v3496 = vpop.f32.mrf.mxu0
        %v3497 = vadd.f32 0.0, %v3496
        %v3498 = vpop.f32.mrf.mxu0
        %v3499 = vadd.f32 0.0, %v3498
        %v3500 = vpop.f32.mrf.mxu0
        %v3501 = vadd.f32 0.0, %v3500
        %v3502 = vpop.f32.mrf.mxu0
        %v3503 = vadd.f32 0.0, %v3502
        %3504 = vmatprep.mubr.bf16.mxu0 0
        %3505 = vmatmul.mubr.bf16.gmra.mxu0 %v3376
        %v3506 = vpop.f32.mrf.mxu0
        %v3507 = vadd.f32 0.0, %v3506
        %v3508 = vpop.f32.mrf.mxu0
        %v3509 = vadd.f32 0.0, %v3508
        %v3510 = vpop.f32.mrf.mxu0
        %v3511 = vadd.f32 0.0, %v3510
        %v3512 = vpop.f32.mrf.mxu0
        %v3513 = vadd.f32 0.0, %v3512
        %3514 = vmatprep.mubr.bf16.mxu0 0
        %3515 = vmatmul.mubr.bf16.gmra.mxu0 %v3379
        %v3516 = vpop.f32.mrf.mxu0
        %v3517 = vadd.f32 0.0, %v3516
        %v3518 = vpop.f32.mrf.mxu0
        %v3519 = vadd.f32 0.0, %v3518
        %v3520 = vpop.f32.mrf.mxu0
        %v3521 = vadd.f32 0.0, %v3520
        %v3522 = vpop.f32.mrf.mxu0
        %v3523 = vadd.f32 0.0, %v3522
        %3524 = vmatprep.mubr.bf16.mxu0 0
        %3525 = vmatmul.mubr.bf16.gmra.mxu0 %v3382
        %v3526 = vpop.f32.mrf.mxu0
        %v3527 = vadd.f32 0.0, %v3526
        %v3528 = vpop.f32.mrf.mxu0
        %v3529 = vadd.f32 0.0, %v3528
        %v3530 = vpop.f32.mrf.mxu0
        %v3531 = vadd.f32 0.0, %v3530
        %v3532 = vpop.f32.mrf.mxu0
        %v3533 = vadd.f32 0.0, %v3532
        %3534 = vmatprep.mubr.bf16.mxu0 0
        %3535 = vmatmul.mubr.bf16.gmra.mxu0 %v3385
        %v3536 = vpop.f32.mrf.mxu0
        %v3537 = vadd.f32 0.0, %v3536
        %v3538 = vpop.f32.mrf.mxu0
        %v3539 = vadd.f32 0.0, %v3538
        %v3540 = vpop.f32.mrf.mxu0
        %v3541 = vadd.f32 0.0, %v3540
        %v3542 = vpop.f32.mrf.mxu0
        %v3543 = vadd.f32 0.0, %v3542
        %3544 = vmatprep.mubr.bf16.mxu0 0
        %3545 = vmatmul.mubr.bf16.gmra.mxu0 %v3388
        %v3546 = vpop.f32.mrf.mxu0
        %v3547 = vadd.f32 0.0, %v3546
        %v3548 = vpop.f32.mrf.mxu0
        %v3549 = vadd.f32 0.0, %v3548
        %v3550 = vpop.f32.mrf.mxu0
        %v3551 = vadd.f32 0.0, %v3550
        %v3552 = vpop.f32.mrf.mxu0
        %v3553 = vadd.f32 0.0, %v3552
        %3554 = vmatprep.mubr.bf16.mxu0 0
        %3555 = vmatmul.mubr.bf16.gmra.mxu0 %v3391
        %v3556 = vpop.f32.mrf.mxu0
        %v3557 = vadd.f32 0.0, %v3556
        %v3558 = vpop.f32.mrf.mxu0
        %v3559 = vadd.f32 0.0, %v3558
        %v3560 = vpop.f32.mrf.mxu0
        %v3561 = vadd.f32 0.0, %v3560
        %v3562 = vpop.f32.mrf.mxu0
        %v3563 = vadd.f32 0.0, %v3562
        %3564 = vmatprep.mubr.bf16.mxu0 0
        %3565 = vmatmul.mubr.bf16.gmra.mxu0 %v3394
        %v3566 = vpop.f32.mrf.mxu0
        %v3567 = vadd.f32 0.0, %v3566
        %v3568 = vpop.f32.mrf.mxu0
        %v3569 = vadd.f32 0.0, %v3568
        %v3570 = vpop.f32.mrf.mxu0
        %v3571 = vadd.f32 0.0, %v3570
        %v3572 = vpop.f32.mrf.mxu0
        %v3573 = vadd.f32 0.0, %v3572
        %3574 = vmatprep.mubr.bf16.mxu0 0
        %3575 = vmatmul.mubr.bf16.gmra.mxu0 %v3397
        %v3576 = vpop.f32.mrf.mxu0
        %v3577 = vadd.f32 0.0, %v3576
        %v3578 = vpop.f32.mrf.mxu0
        %v3579 = vadd.f32 0.0, %v3578
        %v3580 = vpop.f32.mrf.mxu0
        %v3581 = vadd.f32 0.0, %v3580
        %v3582 = vpop.f32.mrf.mxu0
        %v3583 = vadd.f32 0.0, %v3582
        %3584 = vmatprep.mubr.bf16.mxu0 0
        %3585 = vmatmul.mubr.bf16.gmra.mxu0 %v3400
        %v3586 = vpop.f32.mrf.mxu0
        %v3587 = vadd.f32 0.0, %v3586
        %v3588 = vpop.f32.mrf.mxu0
        %v3589 = vadd.f32 0.0, %v3588
        %v3590 = vpop.f32.mrf.mxu0
        %v3591 = vadd.f32 0.0, %v3590
        %v3592 = vpop.f32.mrf.mxu0
        %v3593 = vadd.f32 0.0, %v3592
        %3594 = vdwg.mxu0
        %v3595 = vpack.c.bf16 %v3441, %v3437
        %v3596 = vpack.c.bf16 %v3443, %v3439
        %v3597 = vpack.c.bf16 %v3451, %v3447
        %v3598 = vpack.c.bf16 %v3453, %v3449
        %v3599 = vpack.c.bf16 %v3461, %v3457
        %v3600 = vpack.c.bf16 %v3463, %v3459
        %v3601 = vpack.c.bf16 %v3471, %v3467
        %v3602 = vpack.c.bf16 %v3473, %v3469
        %v3603 = vpack.c.bf16 %v3481, %v3477
        %v3604 = vpack.c.bf16 %v3483, %v3479
        %v3605 = vpack.c.bf16 %v3491, %v3487
        %v3606 = vpack.c.bf16 %v3493, %v3489
        %v3607 = vpack.c.bf16 %v3501, %v3497
        %v3608 = vpack.c.bf16 %v3503, %v3499
        %v3609 = vpack.c.bf16 %v3511, %v3507
        %v3610 = vpack.c.bf16 %v3513, %v3509
        %v3611 = vpack.c.bf16 %v3521, %v3517
        %v3612 = vpack.c.bf16 %v3523, %v3519
        %v3613 = vpack.c.bf16 %v3531, %v3527
        %v3614 = vpack.c.bf16 %v3533, %v3529
        %v3615 = vpack.c.bf16 %v3541, %v3537
        %v3616 = vpack.c.bf16 %v3543, %v3539
        %v3617 = vpack.c.bf16 %v3551, %v3547
        %v3618 = vpack.c.bf16 %v3553, %v3549
        %v3619 = vpack.c.bf16 %v3561, %v3557
        %v3620 = vpack.c.bf16 %v3563, %v3559
        %v3621 = vpack.c.bf16 %v3571, %v3567
        %v3622 = vpack.c.bf16 %v3573, %v3569
        %v3623 = vpack.c.bf16 %v3581, %v3577
        %v3624 = vpack.c.bf16 %v3583, %v3579
        %v3625 = vpack.c.bf16 %v3591, %v3587
        %v3626 = vpack.c.bf16 %v3593, %v3589
        %v3627 = vld [vmem:[%s8] sm:$0xff]
        %v3628 = vld [vmem:[%s8 + $0x8] sm:$0xff]
        %v3631 = vunpack.c.l.b16 %v3627
        %v3632 = vunpack.c.h.b16 %v3627
        %v3633 = vunpack.c.l.b16 %v3628
        %v3634 = vunpack.c.h.b16 %v3628
        %v3635 = vpack.c.b16 %v3633, %v3631
        %v3636 = vpack.c.b16 %v3634, %v3632
        %3639 = vmatprep.subr.bf16.mxu0 0
        %3640 = vmatpush1.bf16.msra.mxu0 0
        %3641 = vmatprep.subr.bf16.mxu0 0
        %3642 = vmatpush1.bf16.msra.mxu0 0
        %3643 = vmatprep.subr.bf16.mxu0 0
        %3644 = vmatpush1.bf16.msra.mxu0 0
        %3645 = vmatprep.subr.bf16.mxu0 0
        %3646 = vmatpush1.bf16.msra.mxu0 0
        %3647 = vmatprep.subr.bf16.mxu0 0
        %3648 = vmatpush1.bf16.msra.mxu0 0
        %3649 = vmatprep.subr.bf16.mxu0 0
        %3650 = vmatpush1.bf16.msra.mxu0 0
        %3651 = vmatprep.subr.bf16.mxu0 0
        %3652 = vmatpush1.bf16.msra.mxu0 0
        %3653 = vmatprep.subr.bf16.mxu0 %v3636
        %3654 = vmatpush1.bf16.msra.mxu0 %v3635
        %3655 = vmatprep.subr.bf16.mxu0 0
        %3656 = vmatpush2.bf16.msra.mxu0 0
        %3657 = vmatprep.subr.bf16.mxu0 0
        %3658 = vmatpush2.bf16.msra.mxu0 0
        %3659 = vmatprep.subr.bf16.mxu0 0
        %3660 = vmatpush2.bf16.msra.mxu0 0
        %3661 = vmatprep.subr.bf16.mxu0 0
        %3662 = vmatpush2.bf16.msra.mxu0 0
        %3663 = vmatprep.subr.bf16.mxu0 0
        %3664 = vmatpush2.bf16.msra.mxu0 0
        %3665 = vmatprep.subr.bf16.mxu0 0
        %3666 = vmatpush2.bf16.msra.mxu0 0
        %3667 = vmatprep.subr.bf16.mxu0 0
        %3668 = vmatpush2.bf16.msra.mxu0 0
        %3669 = vmatprep.subr.bf16.mxu0 0
        %3670 = vmatpush2.bf16.msra.mxu0 0
        %3671 = vmatprep.mubr.bf16.mxu0 0
        %3672 = vmatmul.mubr.bf16.gmra.mxu0 %v2970
        %v3673 = vpop.f32.mrf.mxu0
        %v3674 = vadd.f32 0.0, %v3673
        %v3675 = vpop.f32.mrf.mxu0
        %v3676 = vadd.f32 0.0, %v3675
        %v3677 = vpop.f32.mrf.mxu0
        %v3678 = vadd.f32 0.0, %v3677
        %v3679 = vpop.f32.mrf.mxu0
        %v3680 = vadd.f32 0.0, %v3679
        %3681 = vmatprep.mubr.bf16.mxu0 0
        %3682 = vmatmul.mubr.bf16.gmra.mxu0 %v2973
        %v3683 = vpop.f32.mrf.mxu0
        %v3684 = vadd.f32 0.0, %v3683
        %v3685 = vpop.f32.mrf.mxu0
        %v3686 = vadd.f32 0.0, %v3685
        %v3687 = vpop.f32.mrf.mxu0
        %v3688 = vadd.f32 0.0, %v3687
        %v3689 = vpop.f32.mrf.mxu0
        %v3690 = vadd.f32 0.0, %v3689
        %3691 = vmatprep.mubr.bf16.mxu0 0
        %3692 = vmatmul.mubr.bf16.gmra.mxu0 %v2976
        %v3693 = vpop.f32.mrf.mxu0
        %v3694 = vadd.f32 0.0, %v3693
        %v3695 = vpop.f32.mrf.mxu0
        %v3696 = vadd.f32 0.0, %v3695
        %v3697 = vpop.f32.mrf.mxu0
        %v3698 = vadd.f32 0.0, %v3697
        %v3699 = vpop.f32.mrf.mxu0
        %v3700 = vadd.f32 0.0, %v3699
        %3701 = vmatprep.mubr.bf16.mxu0 0
        %3702 = vmatmul.mubr.bf16.gmra.mxu0 %v2979
        %v3703 = vpop.f32.mrf.mxu0
        %v3704 = vadd.f32 0.0, %v3703
        %v3705 = vpop.f32.mrf.mxu0
        %v3706 = vadd.f32 0.0, %v3705
        %v3707 = vpop.f32.mrf.mxu0
        %v3708 = vadd.f32 0.0, %v3707
        %v3709 = vpop.f32.mrf.mxu0
        %v3710 = vadd.f32 0.0, %v3709
        %3711 = vmatprep.mubr.bf16.mxu0 0
        %3712 = vmatmul.mubr.bf16.gmra.mxu0 %v2982
        %v3713 = vpop.f32.mrf.mxu0
        %v3714 = vadd.f32 0.0, %v3713
        %v3715 = vpop.f32.mrf.mxu0
        %v3716 = vadd.f32 0.0, %v3715
        %v3717 = vpop.f32.mrf.mxu0
        %v3718 = vadd.f32 0.0, %v3717
        %v3719 = vpop.f32.mrf.mxu0
        %v3720 = vadd.f32 0.0, %v3719
        %3721 = vmatprep.mubr.bf16.mxu0 0
        %3722 = vmatmul.mubr.bf16.gmra.mxu0 %v2985
        %v3723 = vpop.f32.mrf.mxu0
        %v3724 = vadd.f32 0.0, %v3723
        %v3725 = vpop.f32.mrf.mxu0
        %v3726 = vadd.f32 0.0, %v3725
        %v3727 = vpop.f32.mrf.mxu0
        %v3728 = vadd.f32 0.0, %v3727
        %v3729 = vpop.f32.mrf.mxu0
        %v3730 = vadd.f32 0.0, %v3729
        %3731 = vmatprep.mubr.bf16.mxu0 0
        %3732 = vmatmul.mubr.bf16.gmra.mxu0 %v2988
        %v3733 = vpop.f32.mrf.mxu0
        %v3734 = vadd.f32 0.0, %v3733
        %v3735 = vpop.f32.mrf.mxu0
        %v3736 = vadd.f32 0.0, %v3735
        %v3737 = vpop.f32.mrf.mxu0
        %v3738 = vadd.f32 0.0, %v3737
        %v3739 = vpop.f32.mrf.mxu0
        %v3740 = vadd.f32 0.0, %v3739
        %3741 = vmatprep.mubr.bf16.mxu0 0
        %3742 = vmatmul.mubr.bf16.gmra.mxu0 %v2991
        %v3743 = vpop.f32.mrf.mxu0
        %v3744 = vadd.f32 0.0, %v3743
        %v3745 = vpop.f32.mrf.mxu0
        %v3746 = vadd.f32 0.0, %v3745
        %v3747 = vpop.f32.mrf.mxu0
        %v3748 = vadd.f32 0.0, %v3747
        %v3749 = vpop.f32.mrf.mxu0
        %v3750 = vadd.f32 0.0, %v3749
        %3751 = vmatprep.mubr.bf16.mxu0 0
        %3752 = vmatmul.mubr.bf16.gmra.mxu0 %v2994
        %v3753 = vpop.f32.mrf.mxu0
        %v3754 = vadd.f32 0.0, %v3753
        %v3755 = vpop.f32.mrf.mxu0
        %v3756 = vadd.f32 0.0, %v3755
        %v3757 = vpop.f32.mrf.mxu0
        %v3758 = vadd.f32 0.0, %v3757
        %v3759 = vpop.f32.mrf.mxu0
        %v3760 = vadd.f32 0.0, %v3759
        %3761 = vmatprep.mubr.bf16.mxu0 0
        %3762 = vmatmul.mubr.bf16.gmra.mxu0 %v2997
        %v3763 = vpop.f32.mrf.mxu0
        %v3764 = vadd.f32 0.0, %v3763
        %v3765 = vpop.f32.mrf.mxu0
        %v3766 = vadd.f32 0.0, %v3765
        %v3767 = vpop.f32.mrf.mxu0
        %v3768 = vadd.f32 0.0, %v3767
        %v3769 = vpop.f32.mrf.mxu0
        %v3770 = vadd.f32 0.0, %v3769
        %3771 = vmatprep.mubr.bf16.mxu0 0
        %3772 = vmatmul.mubr.bf16.gmra.mxu0 %v3000
        %v3773 = vpop.f32.mrf.mxu0
        %v3774 = vadd.f32 0.0, %v3773
        %v3775 = vpop.f32.mrf.mxu0
        %v3776 = vadd.f32 0.0, %v3775
        %v3777 = vpop.f32.mrf.mxu0
        %v3778 = vadd.f32 0.0, %v3777
        %v3779 = vpop.f32.mrf.mxu0
        %v3780 = vadd.f32 0.0, %v3779
        %3781 = vmatprep.mubr.bf16.mxu0 0
        %3782 = vmatmul.mubr.bf16.gmra.mxu0 %v3003
        %v3783 = vpop.f32.mrf.mxu0
        %v3784 = vadd.f32 0.0, %v3783
        %v3785 = vpop.f32.mrf.mxu0
        %v3786 = vadd.f32 0.0, %v3785
        %v3787 = vpop.f32.mrf.mxu0
        %v3788 = vadd.f32 0.0, %v3787
        %v3789 = vpop.f32.mrf.mxu0
        %v3790 = vadd.f32 0.0, %v3789
        %3791 = vmatprep.mubr.bf16.mxu0 0
        %3792 = vmatmul.mubr.bf16.gmra.mxu0 %v3006
        %v3793 = vpop.f32.mrf.mxu0
        %v3794 = vadd.f32 0.0, %v3793
        %v3795 = vpop.f32.mrf.mxu0
        %v3796 = vadd.f32 0.0, %v3795
        %v3797 = vpop.f32.mrf.mxu0
        %v3798 = vadd.f32 0.0, %v3797
        %v3799 = vpop.f32.mrf.mxu0
        %v3800 = vadd.f32 0.0, %v3799
        %3801 = vmatprep.mubr.bf16.mxu0 0
        %3802 = vmatmul.mubr.bf16.gmra.mxu0 %v3009
        %v3803 = vpop.f32.mrf.mxu0
        %v3804 = vadd.f32 0.0, %v3803
        %v3805 = vpop.f32.mrf.mxu0
        %v3806 = vadd.f32 0.0, %v3805
        %v3807 = vpop.f32.mrf.mxu0
        %v3808 = vadd.f32 0.0, %v3807
        %v3809 = vpop.f32.mrf.mxu0
        %v3810 = vadd.f32 0.0, %v3809
        %3811 = vmatprep.mubr.bf16.mxu0 0
        %3812 = vmatmul.mubr.bf16.gmra.mxu0 %v3012
        %v3813 = vpop.f32.mrf.mxu0
        %v3814 = vadd.f32 0.0, %v3813
        %v3815 = vpop.f32.mrf.mxu0
        %v3816 = vadd.f32 0.0, %v3815
        %v3817 = vpop.f32.mrf.mxu0
        %v3818 = vadd.f32 0.0, %v3817
        %v3819 = vpop.f32.mrf.mxu0
        %v3820 = vadd.f32 0.0, %v3819
        %3821 = vmatprep.mubr.bf16.mxu0 0
        %3822 = vmatmul.mubr.bf16.gmra.mxu0 %v3015
        %v3823 = vpop.f32.mrf.mxu0
        %v3824 = vadd.f32 0.0, %v3823
        %v3825 = vpop.f32.mrf.mxu0
        %v3826 = vadd.f32 0.0, %v3825
        %v3827 = vpop.f32.mrf.mxu0
        %v3828 = vadd.f32 0.0, %v3827
        %v3829 = vpop.f32.mrf.mxu0
        %v3830 = vadd.f32 0.0, %v3829
        %3831 = vdwg.mxu0
        %v3832 = vpack.c.bf16 %v3678, %v3674
        %v3833 = vpack.c.bf16 %v3680, %v3676
        %v3834 = vpack.c.bf16 %v3688, %v3684
        %v3835 = vpack.c.bf16 %v3690, %v3686
        %v3836 = vpack.c.bf16 %v3698, %v3694
        %v3837 = vpack.c.bf16 %v3700, %v3696
        %v3838 = vpack.c.bf16 %v3708, %v3704
        %v3839 = vpack.c.bf16 %v3710, %v3706
        %v3840 = vpack.c.bf16 %v3718, %v3714
        %v3841 = vpack.c.bf16 %v3720, %v3716
        %v3842 = vpack.c.bf16 %v3728, %v3724
        %v3843 = vpack.c.bf16 %v3730, %v3726
        %v3844 = vpack.c.bf16 %v3738, %v3734
        %v3845 = vpack.c.bf16 %v3740, %v3736
        %v3846 = vpack.c.bf16 %v3748, %v3744
        %v3847 = vpack.c.bf16 %v3750, %v3746
        %v3848 = vpack.c.bf16 %v3758, %v3754
        %v3849 = vpack.c.bf16 %v3760, %v3756
        %v3850 = vpack.c.bf16 %v3768, %v3764
        %v3851 = vpack.c.bf16 %v3770, %v3766
        %v3852 = vpack.c.bf16 %v3778, %v3774
        %v3853 = vpack.c.bf16 %v3780, %v3776
        %v3854 = vpack.c.bf16 %v3788, %v3784
        %v3855 = vpack.c.bf16 %v3790, %v3786
        %v3856 = vpack.c.bf16 %v3798, %v3794
        %v3857 = vpack.c.bf16 %v3800, %v3796
        %v3858 = vpack.c.bf16 %v3808, %v3804
        %v3859 = vpack.c.bf16 %v3810, %v3806
        %v3860 = vpack.c.bf16 %v3818, %v3814
        %v3861 = vpack.c.bf16 %v3820, %v3816
        %v3862 = vpack.c.bf16 %v3828, %v3824
        %v3863 = vpack.c.bf16 %v3830, %v3826
        %v3865 = vsel %vm664, %v3210, 0
        %v3868 = vsel %vm664, %v3212, 0
        %v3871 = vsel %vm664, %v3214, 0
        %v3874 = vsel %vm664, %v3216, 0
        %v3877 = vsel %vm664, %v3218, 0
        %v3880 = vsel %vm664, %v3220, 0
        %v3883 = vsel %vm664, %v3222, 0
        %v3886 = vsel %vm664, %v3224, 0
        %v3889 = vsel %vm664, %v3226, 0
        %v3892 = vsel %vm664, %v3228, 0
        %v3895 = vsel %vm664, %v3230, 0
        %v3898 = vsel %vm664, %v3232, 0
        %v3901 = vsel %vm664, %v3234, 0
        %v3904 = vsel %vm664, %v3236, 0
        %v3907 = vsel %vm664, %v3238, 0
        %v3910 = vsel %vm664, %v3240, 0
        %3912 = vmatprep.subr.bf16.mxu0 0
        %3913 = vmatpush1.bf16.msra.mxu0 0
        %3914 = vmatprep.subr.bf16.mxu0 0
        %3915 = vmatpush1.bf16.msra.mxu0 0
        %3916 = vmatprep.subr.bf16.mxu0 0
        %3917 = vmatpush1.bf16.msra.mxu0 0
        %3918 = vmatprep.subr.bf16.mxu0 0
        %3919 = vmatpush1.bf16.msra.mxu0 0
        %3920 = vmatprep.subr.bf16.mxu0 %v3602
        %3921 = vmatpush1.bf16.msra.mxu0 %v3601
        %3922 = vmatprep.subr.bf16.mxu0 %v3600
        %3923 = vmatpush1.bf16.msra.mxu0 %v3599
        %3924 = vmatprep.subr.bf16.mxu0 %v3598
        %3925 = vmatpush1.bf16.msra.mxu0 %v3597
        %3926 = vmatprep.subr.bf16.mxu0 %v3596
        %3927 = vmatpush1.bf16.msra.mxu0 %v3595
        %3928 = vmatprep.subr.bf16.mxu0 0
        %3929 = vmatpush2.bf16.msra.mxu0 0
        %3930 = vmatprep.subr.bf16.mxu0 0
        %3931 = vmatpush2.bf16.msra.mxu0 0
        %3932 = vmatprep.subr.bf16.mxu0 0
        %3933 = vmatpush2.bf16.msra.mxu0 0
        %3934 = vmatprep.subr.bf16.mxu0 0
        %3935 = vmatpush2.bf16.msra.mxu0 0
        %3936 = vmatprep.subr.bf16.mxu0 0
        %3937 = vmatpush2.bf16.msra.mxu0 0
        %3938 = vmatprep.subr.bf16.mxu0 0
        %3939 = vmatpush2.bf16.msra.mxu0 0
        %3940 = vmatprep.subr.bf16.mxu0 0
        %3941 = vmatpush2.bf16.msra.mxu0 0
        %3942 = vmatprep.subr.bf16.mxu0 0
        %3943 = vmatpush2.bf16.msra.mxu0 0
        %3944 = vmatprep.mubr.bf16.mxu0 0
        %3945 = vmatmul.mubr.bf16.gmra.mxu0 %v3865
        %v3946 = vpop.f32.mrf.mxu0
        %v3947 = vadd.f32 0.0, %v3946
        %v3948 = vpop.f32.mrf.mxu0
        %v3949 = vadd.f32 0.0, %v3948
        %v3950 = vpop.f32.mrf.mxu0
        %v3951 = vadd.f32 0.0, %v3950
        %v3952 = vpop.f32.mrf.mxu0
        %v3953 = vadd.f32 0.0, %v3952
        %3954 = vmatprep.mubr.bf16.mxu0 0
        %3955 = vmatmul.mubr.bf16.gmra.mxu0 %v3868
        %v3956 = vpop.f32.mrf.mxu0
        %v3957 = vadd.f32 0.0, %v3956
        %v3958 = vpop.f32.mrf.mxu0
        %v3959 = vadd.f32 0.0, %v3958
        %v3960 = vpop.f32.mrf.mxu0
        %v3961 = vadd.f32 0.0, %v3960
        %v3962 = vpop.f32.mrf.mxu0
        %v3963 = vadd.f32 0.0, %v3962
        %3964 = vmatprep.mubr.bf16.mxu0 0
        %3965 = vmatmul.mubr.bf16.gmra.mxu0 %v3871
        %v3966 = vpop.f32.mrf.mxu0
        %v3967 = vadd.f32 0.0, %v3966
        %v3968 = vpop.f32.mrf.mxu0
        %v3969 = vadd.f32 0.0, %v3968
        %v3970 = vpop.f32.mrf.mxu0
        %v3971 = vadd.f32 0.0, %v3970
        %v3972 = vpop.f32.mrf.mxu0
        %v3973 = vadd.f32 0.0, %v3972
        %3974 = vmatprep.mubr.bf16.mxu0 0
        %3975 = vmatmul.mubr.bf16.gmra.mxu0 %v3874
        %v3976 = vpop.f32.mrf.mxu0
        %v3977 = vadd.f32 0.0, %v3976
        %v3978 = vpop.f32.mrf.mxu0
        %v3979 = vadd.f32 0.0, %v3978
        %v3980 = vpop.f32.mrf.mxu0
        %v3981 = vadd.f32 0.0, %v3980
        %v3982 = vpop.f32.mrf.mxu0
        %v3983 = vadd.f32 0.0, %v3982
        %3984 = vmatprep.mubr.bf16.mxu0 0
        %3985 = vmatmul.mubr.bf16.gmra.mxu0 %v3877
        %v3986 = vpop.f32.mrf.mxu0
        %v3987 = vadd.f32 0.0, %v3986
        %v3988 = vpop.f32.mrf.mxu0
        %v3989 = vadd.f32 0.0, %v3988
        %v3990 = vpop.f32.mrf.mxu0
        %v3991 = vadd.f32 0.0, %v3990
        %v3992 = vpop.f32.mrf.mxu0
        %v3993 = vadd.f32 0.0, %v3992
        %3994 = vmatprep.mubr.bf16.mxu0 0
        %3995 = vmatmul.mubr.bf16.gmra.mxu0 %v3880
        %v3996 = vpop.f32.mrf.mxu0
        %v3997 = vadd.f32 0.0, %v3996
        %v3998 = vpop.f32.mrf.mxu0
        %v3999 = vadd.f32 0.0, %v3998
        %v4000 = vpop.f32.mrf.mxu0
        %v4001 = vadd.f32 0.0, %v4000
        %v4002 = vpop.f32.mrf.mxu0
        %v4003 = vadd.f32 0.0, %v4002
        %4004 = vmatprep.mubr.bf16.mxu0 0
        %4005 = vmatmul.mubr.bf16.gmra.mxu0 %v3883
        %v4006 = vpop.f32.mrf.mxu0
        %v4007 = vadd.f32 0.0, %v4006
        %v4008 = vpop.f32.mrf.mxu0
        %v4009 = vadd.f32 0.0, %v4008
        %v4010 = vpop.f32.mrf.mxu0
        %v4011 = vadd.f32 0.0, %v4010
        %v4012 = vpop.f32.mrf.mxu0
        %v4013 = vadd.f32 0.0, %v4012
        %4014 = vmatprep.mubr.bf16.mxu0 0
        %4015 = vmatmul.mubr.bf16.gmra.mxu0 %v3886
        %v4016 = vpop.f32.mrf.mxu0
        %v4017 = vadd.f32 0.0, %v4016
        %v4018 = vpop.f32.mrf.mxu0
        %v4019 = vadd.f32 0.0, %v4018
        %v4020 = vpop.f32.mrf.mxu0
        %v4021 = vadd.f32 0.0, %v4020
        %v4022 = vpop.f32.mrf.mxu0
        %v4023 = vadd.f32 0.0, %v4022
        %4024 = vmatprep.mubr.bf16.mxu0 0
        %4025 = vmatmul.mubr.bf16.gmra.mxu0 %v3889
        %v4026 = vpop.f32.mrf.mxu0
        %v4027 = vadd.f32 0.0, %v4026
        %v4028 = vpop.f32.mrf.mxu0
        %v4029 = vadd.f32 0.0, %v4028
        %v4030 = vpop.f32.mrf.mxu0
        %v4031 = vadd.f32 0.0, %v4030
        %v4032 = vpop.f32.mrf.mxu0
        %v4033 = vadd.f32 0.0, %v4032
        %4034 = vmatprep.mubr.bf16.mxu0 0
        %4035 = vmatmul.mubr.bf16.gmra.mxu0 %v3892
        %v4036 = vpop.f32.mrf.mxu0
        %v4037 = vadd.f32 0.0, %v4036
        %v4038 = vpop.f32.mrf.mxu0
        %v4039 = vadd.f32 0.0, %v4038
        %v4040 = vpop.f32.mrf.mxu0
        %v4041 = vadd.f32 0.0, %v4040
        %v4042 = vpop.f32.mrf.mxu0
        %v4043 = vadd.f32 0.0, %v4042
        %4044 = vmatprep.mubr.bf16.mxu0 0
        %4045 = vmatmul.mubr.bf16.gmra.mxu0 %v3895
        %v4046 = vpop.f32.mrf.mxu0
        %v4047 = vadd.f32 0.0, %v4046
        %v4048 = vpop.f32.mrf.mxu0
        %v4049 = vadd.f32 0.0, %v4048
        %v4050 = vpop.f32.mrf.mxu0
        %v4051 = vadd.f32 0.0, %v4050
        %v4052 = vpop.f32.mrf.mxu0
        %v4053 = vadd.f32 0.0, %v4052
        %4054 = vmatprep.mubr.bf16.mxu0 0
        %4055 = vmatmul.mubr.bf16.gmra.mxu0 %v3898
        %v4056 = vpop.f32.mrf.mxu0
        %v4057 = vadd.f32 0.0, %v4056
        %v4058 = vpop.f32.mrf.mxu0
        %v4059 = vadd.f32 0.0, %v4058
        %v4060 = vpop.f32.mrf.mxu0
        %v4061 = vadd.f32 0.0, %v4060
        %v4062 = vpop.f32.mrf.mxu0
        %v4063 = vadd.f32 0.0, %v4062
        %4064 = vmatprep.mubr.bf16.mxu0 0
        %4065 = vmatmul.mubr.bf16.gmra.mxu0 %v3901
        %v4066 = vpop.f32.mrf.mxu0
        %v4067 = vadd.f32 0.0, %v4066
        %v4068 = vpop.f32.mrf.mxu0
        %v4069 = vadd.f32 0.0, %v4068
        %v4070 = vpop.f32.mrf.mxu0
        %v4071 = vadd.f32 0.0, %v4070
        %v4072 = vpop.f32.mrf.mxu0
        %v4073 = vadd.f32 0.0, %v4072
        %4074 = vmatprep.mubr.bf16.mxu0 0
        %4075 = vmatmul.mubr.bf16.gmra.mxu0 %v3904
        %v4076 = vpop.f32.mrf.mxu0
        %v4077 = vadd.f32 0.0, %v4076
        %v4078 = vpop.f32.mrf.mxu0
        %v4079 = vadd.f32 0.0, %v4078
        %v4080 = vpop.f32.mrf.mxu0
        %v4081 = vadd.f32 0.0, %v4080
        %v4082 = vpop.f32.mrf.mxu0
        %v4083 = vadd.f32 0.0, %v4082
        %4084 = vmatprep.mubr.bf16.mxu0 0
        %4085 = vmatmul.mubr.bf16.gmra.mxu0 %v3907
        %v4086 = vpop.f32.mrf.mxu0
        %v4087 = vadd.f32 0.0, %v4086
        %v4088 = vpop.f32.mrf.mxu0
        %v4089 = vadd.f32 0.0, %v4088
        %v4090 = vpop.f32.mrf.mxu0
        %v4091 = vadd.f32 0.0, %v4090
        %v4092 = vpop.f32.mrf.mxu0
        %v4093 = vadd.f32 0.0, %v4092
        %4094 = vmatprep.mubr.bf16.mxu0 0
        %4095 = vmatmul.mubr.bf16.gmra.mxu0 %v3910
        %v4096 = vpop.f32.mrf.mxu0
        %v4097 = vadd.f32 0.0, %v4096
        %v4098 = vpop.f32.mrf.mxu0
        %v4099 = vadd.f32 0.0, %v4098
        %v4100 = vpop.f32.mrf.mxu0
        %v4101 = vadd.f32 0.0, %v4100
        %v4102 = vpop.f32.mrf.mxu0
        %v4103 = vadd.f32 0.0, %v4102
        %4104 = vdwg.mxu0
        %v4105 = vmax.f32 %v3947, %v3949
        %4106 = vmax.xlane.f32.xlu0 %v4105
        %v4107 = vpop.xlane.xlu0 %4106
        %v4108 = vmax.f32 %v3951, %v3953
        %4109 = vmax.xlane.f32.xlu0 %v4108
        %v4110 = vpop.xlane.xlu0 %4109
        %v4111 = vmax.f32 %v3957, %v3959
        %4112 = vmax.xlane.f32.xlu0 %v4111
        %v4113 = vpop.xlane.xlu0 %4112
        %v4114 = vmax.f32 %v3961, %v3963
        %4115 = vmax.xlane.f32.xlu0 %v4114
        %v4116 = vpop.xlane.xlu0 %4115
        %v4117 = vmax.f32 %v3967, %v3969
        %4118 = vmax.xlane.f32.xlu0 %v4117
        %v4119 = vpop.xlane.xlu0 %4118
        %v4120 = vmax.f32 %v3971, %v3973
        %4121 = vmax.xlane.f32.xlu0 %v4120
        %v4122 = vpop.xlane.xlu0 %4121
        %v4123 = vmax.f32 %v3977, %v3979
        %4124 = vmax.xlane.f32.xlu0 %v4123
        %v4125 = vpop.xlane.xlu0 %4124
        %v4126 = vmax.f32 %v3981, %v3983
        %4127 = vmax.xlane.f32.xlu0 %v4126
        %v4128 = vpop.xlane.xlu0 %4127
        %v4129 = vmax.f32 %v3987, %v3989
        %4130 = vmax.xlane.f32.xlu0 %v4129
        %v4131 = vpop.xlane.xlu0 %4130
        %v4132 = vmax.f32 %v3991, %v3993
        %4133 = vmax.xlane.f32.xlu0 %v4132
        %v4134 = vpop.xlane.xlu0 %4133
        %v4135 = vmax.f32 %v3997, %v3999
        %4136 = vmax.xlane.f32.xlu0 %v4135
        %v4137 = vpop.xlane.xlu0 %4136
        %v4138 = vmax.f32 %v4001, %v4003
        %4139 = vmax.xlane.f32.xlu0 %v4138
        %v4140 = vpop.xlane.xlu0 %4139
        %v4141 = vmax.f32 %v4007, %v4009
        %4142 = vmax.xlane.f32.xlu0 %v4141
        %v4143 = vpop.xlane.xlu0 %4142
        %v4144 = vmax.f32 %v4011, %v4013
        %4145 = vmax.xlane.f32.xlu0 %v4144
        %v4146 = vpop.xlane.xlu0 %4145
        %v4147 = vmax.f32 %v4017, %v4019
        %4148 = vmax.xlane.f32.xlu0 %v4147
        %v4149 = vpop.xlane.xlu0 %4148
        %v4150 = vmax.f32 %v4021, %v4023
        %4151 = vmax.xlane.f32.xlu0 %v4150
        %v4152 = vpop.xlane.xlu0 %4151
        %v4153 = vmax.f32 %v4027, %v4029
        %4154 = vmax.xlane.f32.xlu0 %v4153
        %v4155 = vpop.xlane.xlu0 %4154
        %v4156 = vmax.f32 %v4031, %v4033
        %4157 = vmax.xlane.f32.xlu0 %v4156
        %v4158 = vpop.xlane.xlu0 %4157
        %v4159 = vmax.f32 %v4037, %v4039
        %4160 = vmax.xlane.f32.xlu0 %v4159
        %v4161 = vpop.xlane.xlu0 %4160
        %v4162 = vmax.f32 %v4041, %v4043
        %4163 = vmax.xlane.f32.xlu0 %v4162
        %v4164 = vpop.xlane.xlu0 %4163
        %v4165 = vmax.f32 %v4047, %v4049
        %4166 = vmax.xlane.f32.xlu0 %v4165
        %v4167 = vpop.xlane.xlu0 %4166
        %v4168 = vmax.f32 %v4051, %v4053
        %4169 = vmax.xlane.f32.xlu0 %v4168
        %v4170 = vpop.xlane.xlu0 %4169
        %v4171 = vmax.f32 %v4057, %v4059
        %4172 = vmax.xlane.f32.xlu0 %v4171
        %v4173 = vpop.xlane.xlu0 %4172
        %v4174 = vmax.f32 %v4061, %v4063
        %4175 = vmax.xlane.f32.xlu0 %v4174
        %v4176 = vpop.xlane.xlu0 %4175
        %v4177 = vmax.f32 %v4067, %v4069
        %4178 = vmax.xlane.f32.xlu0 %v4177
        %v4179 = vpop.xlane.xlu0 %4178
        %v4180 = vmax.f32 %v4071, %v4073
        %4181 = vmax.xlane.f32.xlu0 %v4180
        %v4182 = vpop.xlane.xlu0 %4181
        %v4183 = vmax.f32 %v4077, %v4079
        %4184 = vmax.xlane.f32.xlu0 %v4183
        %v4185 = vpop.xlane.xlu0 %4184
        %v4186 = vmax.f32 %v4081, %v4083
        %4187 = vmax.xlane.f32.xlu0 %v4186
        %v4188 = vpop.xlane.xlu0 %4187
        %v4189 = vmax.f32 %v4087, %v4089
        %4190 = vmax.xlane.f32.xlu0 %v4189
        %v4191 = vpop.xlane.xlu0 %4190
        %v4192 = vmax.f32 %v4091, %v4093
        %4193 = vmax.xlane.f32.xlu0 %v4192
        %v4194 = vpop.xlane.xlu0 %4193
        %v4195 = vmax.f32 %v4097, %v4099
        %4196 = vmax.xlane.f32.xlu0 %v4195
        %v4197 = vpop.xlane.xlu0 %4196
        %v4198 = vmax.f32 %v4101, %v4103
        %4199 = vmax.xlane.f32.xlu0 %v4198
        %v4200 = vpop.xlane.xlu0 %4199
        %v4201 = vsub.f32 %v3947, %v4107
        %v4202 = vsub.f32 %v3949, %v4107
        %v4203 = vsub.f32 %v3951, %v4110
        %v4204 = vsub.f32 %v3953, %v4110
        %v4205 = vsub.f32 %v3957, %v4113
        %v4206 = vsub.f32 %v3959, %v4113
        %v4207 = vsub.f32 %v3961, %v4116
        %v4208 = vsub.f32 %v3963, %v4116
        %v4209 = vsub.f32 %v3967, %v4119
        %v4210 = vsub.f32 %v3969, %v4119
        %v4211 = vsub.f32 %v3971, %v4122
        %v4212 = vsub.f32 %v3973, %v4122
        %v4213 = vsub.f32 %v3977, %v4125
        %v4214 = vsub.f32 %v3979, %v4125
        %v4215 = vsub.f32 %v3981, %v4128
        %v4216 = vsub.f32 %v3983, %v4128
        %v4217 = vsub.f32 %v3987, %v4131
        %v4218 = vsub.f32 %v3989, %v4131
        %v4219 = vsub.f32 %v3991, %v4134
        %v4220 = vsub.f32 %v3993, %v4134
        %v4221 = vsub.f32 %v3997, %v4137
        %v4222 = vsub.f32 %v3999, %v4137
        %v4223 = vsub.f32 %v4001, %v4140
        %v4224 = vsub.f32 %v4003, %v4140
        %v4225 = vsub.f32 %v4007, %v4143
        %v4226 = vsub.f32 %v4009, %v4143
        %v4227 = vsub.f32 %v4011, %v4146
        %v4228 = vsub.f32 %v4013, %v4146
        %v4229 = vsub.f32 %v4017, %v4149
        %v4230 = vsub.f32 %v4019, %v4149
        %v4231 = vsub.f32 %v4021, %v4152
        %v4232 = vsub.f32 %v4023, %v4152
        %v4233 = vsub.f32 %v4027, %v4155
        %v4234 = vsub.f32 %v4029, %v4155
        %v4235 = vsub.f32 %v4031, %v4158
        %v4236 = vsub.f32 %v4033, %v4158
        %v4237 = vsub.f32 %v4037, %v4161
        %v4238 = vsub.f32 %v4039, %v4161
        %v4239 = vsub.f32 %v4041, %v4164
        %v4240 = vsub.f32 %v4043, %v4164
        %v4241 = vsub.f32 %v4047, %v4167
        %v4242 = vsub.f32 %v4049, %v4167
        %v4243 = vsub.f32 %v4051, %v4170
        %v4244 = vsub.f32 %v4053, %v4170
        %v4245 = vsub.f32 %v4057, %v4173
        %v4246 = vsub.f32 %v4059, %v4173
        %v4247 = vsub.f32 %v4061, %v4176
        %v4248 = vsub.f32 %v4063, %v4176
        %v4249 = vsub.f32 %v4067, %v4179
        %v4250 = vsub.f32 %v4069, %v4179
        %v4251 = vsub.f32 %v4071, %v4182
        %v4252 = vsub.f32 %v4073, %v4182
        %v4253 = vsub.f32 %v4077, %v4185
        %v4254 = vsub.f32 %v4079, %v4185
        %v4255 = vsub.f32 %v4081, %v4188
        %v4256 = vsub.f32 %v4083, %v4188
        %v4257 = vsub.f32 %v4087, %v4191
        %v4258 = vsub.f32 %v4089, %v4191
        %v4259 = vsub.f32 %v4091, %v4194
        %v4260 = vsub.f32 %v4093, %v4194
        %v4261 = vsub.f32 %v4097, %v4197
        %v4262 = vsub.f32 %v4099, %v4197
        %v4263 = vsub.f32 %v4101, %v4200
        %v4264 = vsub.f32 %v4103, %v4200
        %v4265 = vmul.f32 %v4201, 1.442695
        %v4266 = vpow.pop %v4265
        %v4267 = vmul.f32 %v4202, 1.442695
        %v4268 = vpow.pop %v4267
        %v4269 = vmul.f32 %v4203, 1.442695
        %v4270 = vpow.pop %v4269
        %v4271 = vmul.f32 %v4204, 1.442695
        %v4272 = vpow.pop %v4271
        %v4273 = vmul.f32 %v4205, 1.442695
        %v4274 = vpow.pop %v4273
        %v4275 = vmul.f32 %v4206, 1.442695
        %v4276 = vpow.pop %v4275
        %v4277 = vmul.f32 %v4207, 1.442695
        %v4278 = vpow.pop %v4277
        %v4279 = vmul.f32 %v4208, 1.442695
        %v4280 = vpow.pop %v4279
        %v4281 = vmul.f32 %v4209, 1.442695
        %v4282 = vpow.pop %v4281
        %v4283 = vmul.f32 %v4210, 1.442695
        %v4284 = vpow.pop %v4283
        %v4285 = vmul.f32 %v4211, 1.442695
        %v4286 = vpow.pop %v4285
        %v4287 = vmul.f32 %v4212, 1.442695
        %v4288 = vpow.pop %v4287
        %v4289 = vmul.f32 %v4213, 1.442695
        %v4290 = vpow.pop %v4289
        %v4291 = vmul.f32 %v4214, 1.442695
        %v4292 = vpow.pop %v4291
        %v4293 = vmul.f32 %v4215, 1.442695
        %v4294 = vpow.pop %v4293
        %v4295 = vmul.f32 %v4216, 1.442695
        %v4296 = vpow.pop %v4295
        %v4297 = vmul.f32 %v4217, 1.442695
        %v4298 = vpow.pop %v4297
        %v4299 = vmul.f32 %v4218, 1.442695
        %v4300 = vpow.pop %v4299
        %v4301 = vmul.f32 %v4219, 1.442695
        %v4302 = vpow.pop %v4301
        %v4303 = vmul.f32 %v4220, 1.442695
        %v4304 = vpow.pop %v4303
        %v4305 = vmul.f32 %v4221, 1.442695
        %v4306 = vpow.pop %v4305
        %v4307 = vmul.f32 %v4222, 1.442695
        %v4308 = vpow.pop %v4307
        %v4309 = vmul.f32 %v4223, 1.442695
        %v4310 = vpow.pop %v4309
        %v4311 = vmul.f32 %v4224, 1.442695
        %v4312 = vpow.pop %v4311
        %v4313 = vmul.f32 %v4225, 1.442695
        %v4314 = vpow.pop %v4313
        %v4315 = vmul.f32 %v4226, 1.442695
        %v4316 = vpow.pop %v4315
        %v4317 = vmul.f32 %v4227, 1.442695
        %v4318 = vpow.pop %v4317
        %v4319 = vmul.f32 %v4228, 1.442695
        %v4320 = vpow.pop %v4319
        %v4321 = vmul.f32 %v4229, 1.442695
        %v4322 = vpow.pop %v4321
        %v4323 = vmul.f32 %v4230, 1.442695
        %v4324 = vpow.pop %v4323
        %v4325 = vmul.f32 %v4231, 1.442695
        %v4326 = vpow.pop %v4325
        %v4327 = vmul.f32 %v4232, 1.442695
        %v4328 = vpow.pop %v4327
        %v4329 = vmul.f32 %v4233, 1.442695
        %v4330 = vpow.pop %v4329
        %v4331 = vmul.f32 %v4234, 1.442695
        %v4332 = vpow.pop %v4331
        %v4333 = vmul.f32 %v4235, 1.442695
        %v4334 = vpow.pop %v4333
        %v4335 = vmul.f32 %v4236, 1.442695
        %v4336 = vpow.pop %v4335
        %v4337 = vmul.f32 %v4237, 1.442695
        %v4338 = vpow.pop %v4337
        %v4339 = vmul.f32 %v4238, 1.442695
        %v4340 = vpow.pop %v4339
        %v4341 = vmul.f32 %v4239, 1.442695
        %v4342 = vpow.pop %v4341
        %v4343 = vmul.f32 %v4240, 1.442695
        %v4344 = vpow.pop %v4343
        %v4345 = vmul.f32 %v4241, 1.442695
        %v4346 = vpow.pop %v4345
        %v4347 = vmul.f32 %v4242, 1.442695
        %v4348 = vpow.pop %v4347
        %v4349 = vmul.f32 %v4243, 1.442695
        %v4350 = vpow.pop %v4349
        %v4351 = vmul.f32 %v4244, 1.442695
        %v4352 = vpow.pop %v4351
        %v4353 = vmul.f32 %v4245, 1.442695
        %v4354 = vpow.pop %v4353
        %v4355 = vmul.f32 %v4246, 1.442695
        %v4356 = vpow.pop %v4355
        %v4357 = vmul.f32 %v4247, 1.442695
        %v4358 = vpow.pop %v4357
        %v4359 = vmul.f32 %v4248, 1.442695
        %v4360 = vpow.pop %v4359
        %v4361 = vmul.f32 %v4249, 1.442695
        %v4362 = vpow.pop %v4361
        %v4363 = vmul.f32 %v4250, 1.442695
        %v4364 = vpow.pop %v4363
        %v4365 = vmul.f32 %v4251, 1.442695
        %v4366 = vpow.pop %v4365
        %v4367 = vmul.f32 %v4252, 1.442695
        %v4368 = vpow.pop %v4367
        %v4369 = vmul.f32 %v4253, 1.442695
        %v4370 = vpow.pop %v4369
        %v4371 = vmul.f32 %v4254, 1.442695
        %v4372 = vpow.pop %v4371
        %v4373 = vmul.f32 %v4255, 1.442695
        %v4374 = vpow.pop %v4373
        %v4375 = vmul.f32 %v4256, 1.442695
        %v4376 = vpow.pop %v4375
        %v4377 = vmul.f32 %v4257, 1.442695
        %v4378 = vpow.pop %v4377
        %v4379 = vmul.f32 %v4258, 1.442695
        %v4380 = vpow.pop %v4379
        %v4381 = vmul.f32 %v4259, 1.442695
        %v4382 = vpow.pop %v4381
        %v4383 = vmul.f32 %v4260, 1.442695
        %v4384 = vpow.pop %v4383
        %v4385 = vmul.f32 %v4261, 1.442695
        %v4386 = vpow.pop %v4385
        %v4387 = vmul.f32 %v4262, 1.442695
        %v4388 = vpow.pop %v4387
        %v4389 = vmul.f32 %v4263, 1.442695
        %v4390 = vpow.pop %v4389
        %v4391 = vmul.f32 %v4264, 1.442695
        %v4392 = vpow.pop %v4391
        %v4393 = vadd.f32 %v4266, %v4268
        %4394 = vadd.xlane.f32.xlu0 %v4393
        %v4395 = vpop.xlane.xlu0 %4394
        %v4396 = vadd.f32 %v4270, %v4272
        %4397 = vadd.xlane.f32.xlu0 %v4396
        %v4398 = vpop.xlane.xlu0 %4397
        %v4399 = vadd.f32 %v4274, %v4276
        %4400 = vadd.xlane.f32.xlu0 %v4399
        %v4401 = vpop.xlane.xlu0 %4400
        %v4402 = vadd.f32 %v4278, %v4280
        %4403 = vadd.xlane.f32.xlu0 %v4402
        %v4404 = vpop.xlane.xlu0 %4403
        %v4405 = vadd.f32 %v4282, %v4284
        %4406 = vadd.xlane.f32.xlu0 %v4405
        %v4407 = vpop.xlane.xlu0 %4406
        %v4408 = vadd.f32 %v4286, %v4288
        %4409 = vadd.xlane.f32.xlu0 %v4408
        %v4410 = vpop.xlane.xlu0 %4409
        %v4411 = vadd.f32 %v4290, %v4292
        %4412 = vadd.xlane.f32.xlu0 %v4411
        %v4413 = vpop.xlane.xlu0 %4412
        %v4414 = vadd.f32 %v4294, %v4296
        %4415 = vadd.xlane.f32.xlu0 %v4414
        %v4416 = vpop.xlane.xlu0 %4415
        %v4417 = vadd.f32 %v4298, %v4300
        %4418 = vadd.xlane.f32.xlu0 %v4417
        %v4419 = vpop.xlane.xlu0 %4418
        %v4420 = vadd.f32 %v4302, %v4304
        %4421 = vadd.xlane.f32.xlu0 %v4420
        %v4422 = vpop.xlane.xlu0 %4421
        %v4423 = vadd.f32 %v4306, %v4308
        %4424 = vadd.xlane.f32.xlu0 %v4423
        %v4425 = vpop.xlane.xlu0 %4424
        %v4426 = vadd.f32 %v4310, %v4312
        %4427 = vadd.xlane.f32.xlu0 %v4426
        %v4428 = vpop.xlane.xlu0 %4427
        %v4429 = vadd.f32 %v4314, %v4316
        %4430 = vadd.xlane.f32.xlu0 %v4429
        %v4431 = vpop.xlane.xlu0 %4430
        %v4432 = vadd.f32 %v4318, %v4320
        %4433 = vadd.xlane.f32.xlu0 %v4432
        %v4434 = vpop.xlane.xlu0 %4433
        %v4435 = vadd.f32 %v4322, %v4324
        %4436 = vadd.xlane.f32.xlu0 %v4435
        %v4437 = vpop.xlane.xlu0 %4436
        %v4438 = vadd.f32 %v4326, %v4328
        %4439 = vadd.xlane.f32.xlu0 %v4438
        %v4440 = vpop.xlane.xlu0 %4439
        %v4441 = vadd.f32 %v4330, %v4332
        %4442 = vadd.xlane.f32.xlu0 %v4441
        %v4443 = vpop.xlane.xlu0 %4442
        %v4444 = vadd.f32 %v4334, %v4336
        %4445 = vadd.xlane.f32.xlu0 %v4444
        %v4446 = vpop.xlane.xlu0 %4445
        %v4447 = vadd.f32 %v4338, %v4340
        %4448 = vadd.xlane.f32.xlu0 %v4447
        %v4449 = vpop.xlane.xlu0 %4448
        %v4450 = vadd.f32 %v4342, %v4344
        %4451 = vadd.xlane.f32.xlu0 %v4450
        %v4452 = vpop.xlane.xlu0 %4451
        %v4453 = vadd.f32 %v4346, %v4348
        %4454 = vadd.xlane.f32.xlu0 %v4453
        %v4455 = vpop.xlane.xlu0 %4454
        %v4456 = vadd.f32 %v4350, %v4352
        %4457 = vadd.xlane.f32.xlu0 %v4456
        %v4458 = vpop.xlane.xlu0 %4457
        %v4459 = vadd.f32 %v4354, %v4356
        %4460 = vadd.xlane.f32.xlu0 %v4459
        %v4461 = vpop.xlane.xlu0 %4460
        %v4462 = vadd.f32 %v4358, %v4360
        %4463 = vadd.xlane.f32.xlu0 %v4462
        %v4464 = vpop.xlane.xlu0 %4463
        %v4465 = vadd.f32 %v4362, %v4364
        %4466 = vadd.xlane.f32.xlu0 %v4465
        %v4467 = vpop.xlane.xlu0 %4466
        %v4468 = vadd.f32 %v4366, %v4368
        %4469 = vadd.xlane.f32.xlu0 %v4468
        %v4470 = vpop.xlane.xlu0 %4469
        %v4471 = vadd.f32 %v4370, %v4372
        %4472 = vadd.xlane.f32.xlu0 %v4471
        %v4473 = vpop.xlane.xlu0 %4472
        %v4474 = vadd.f32 %v4374, %v4376
        %4475 = vadd.xlane.f32.xlu0 %v4474
        %v4476 = vpop.xlane.xlu0 %4475
        %v4477 = vadd.f32 %v4378, %v4380
        %4478 = vadd.xlane.f32.xlu0 %v4477
        %v4479 = vpop.xlane.xlu0 %4478
        %v4480 = vadd.f32 %v4382, %v4384
        %4481 = vadd.xlane.f32.xlu0 %v4480
        %v4482 = vpop.xlane.xlu0 %4481
        %v4483 = vadd.f32 %v4386, %v4388
        %4484 = vadd.xlane.f32.xlu0 %v4483
        %v4485 = vpop.xlane.xlu0 %4484
        %v4486 = vadd.f32 %v4390, %v4392
        %4487 = vadd.xlane.f32.xlu0 %v4486
        %v4488 = vpop.xlane.xlu0 %4487
        %v4489 = vpack.c.bf16 %v4270, %v4266
        %v4490 = vpack.c.bf16 %v4272, %v4268
        %v4491 = vpack.c.bf16 %v4278, %v4274
        %v4492 = vpack.c.bf16 %v4280, %v4276
        %v4493 = vpack.c.bf16 %v4286, %v4282
        %v4494 = vpack.c.bf16 %v4288, %v4284
        %v4495 = vpack.c.bf16 %v4294, %v4290
        %v4496 = vpack.c.bf16 %v4296, %v4292
        %v4497 = vpack.c.bf16 %v4302, %v4298
        %v4498 = vpack.c.bf16 %v4304, %v4300
        %v4499 = vpack.c.bf16 %v4310, %v4306
        %v4500 = vpack.c.bf16 %v4312, %v4308
        %v4501 = vpack.c.bf16 %v4318, %v4314
        %v4502 = vpack.c.bf16 %v4320, %v4316
        %v4503 = vpack.c.bf16 %v4326, %v4322
        %v4504 = vpack.c.bf16 %v4328, %v4324
        %v4505 = vpack.c.bf16 %v4334, %v4330
        %v4506 = vpack.c.bf16 %v4336, %v4332
        %v4507 = vpack.c.bf16 %v4342, %v4338
        %v4508 = vpack.c.bf16 %v4344, %v4340
        %v4509 = vpack.c.bf16 %v4350, %v4346
        %v4510 = vpack.c.bf16 %v4352, %v4348
        %v4511 = vpack.c.bf16 %v4358, %v4354
        %v4512 = vpack.c.bf16 %v4360, %v4356
        %v4513 = vpack.c.bf16 %v4366, %v4362
        %v4514 = vpack.c.bf16 %v4368, %v4364
        %v4515 = vpack.c.bf16 %v4374, %v4370
        %v4516 = vpack.c.bf16 %v4376, %v4372
        %v4517 = vpack.c.bf16 %v4382, %v4378
        %v4518 = vpack.c.bf16 %v4384, %v4380
        %v4519 = vpack.c.bf16 %v4390, %v4386
        %v4520 = vpack.c.bf16 %v4392, %v4388
        %4521 = vmatprep.subr.bf16.mxu0 0
        %4522 = vmatpush1.bf16.msra.mxu0 %v3846
        %4523 = vmatprep.subr.bf16.mxu0 0
        %4524 = vmatpush1.bf16.msra.mxu0 %v3844
        %4525 = vmatprep.subr.bf16.mxu0 0
        %4526 = vmatpush1.bf16.msra.mxu0 %v3842
        %4527 = vmatprep.subr.bf16.mxu0 0
        %4528 = vmatpush1.bf16.msra.mxu0 %v3840
        %4529 = vmatprep.subr.bf16.mxu0 0
        %4530 = vmatpush1.bf16.msra.mxu0 %v3838
        %4531 = vmatprep.subr.bf16.mxu0 0
        %4532 = vmatpush1.bf16.msra.mxu0 %v3836
        %4533 = vmatprep.subr.bf16.mxu0 0
        %4534 = vmatpush1.bf16.msra.mxu0 %v3834
        %4535 = vmatprep.subr.bf16.mxu0 0
        %4536 = vmatpush1.bf16.msra.mxu0 %v3832
        %4537 = vmatprep.subr.bf16.mxu0 0
        %4538 = vmatpush2.bf16.msra.mxu0 %v3862
        %4539 = vmatprep.subr.bf16.mxu0 0
        %4540 = vmatpush2.bf16.msra.mxu0 %v3860
        %4541 = vmatprep.subr.bf16.mxu0 0
        %4542 = vmatpush2.bf16.msra.mxu0 %v3858
        %4543 = vmatprep.subr.bf16.mxu0 0
        %4544 = vmatpush2.bf16.msra.mxu0 %v3856
        %4545 = vmatprep.subr.bf16.mxu0 0
        %4546 = vmatpush2.bf16.msra.mxu0 %v3854
        %4547 = vmatprep.subr.bf16.mxu0 0
        %4548 = vmatpush2.bf16.msra.mxu0 %v3852
        %4549 = vmatprep.subr.bf16.mxu0 0
        %4550 = vmatpush2.bf16.msra.mxu0 %v3850
        %4551 = vmatprep.subr.bf16.mxu0 0
        %4552 = vmatpush2.bf16.msra.mxu0 %v3848
        %4553 = vmatprep.mubr.bf16.mxu0 %v4490
        %4554 = vmatmul.mubr.bf16.gmra.mxu0 %v4489
        %v4555 = vpop.f32.mrf.mxu0
        %v4556 = vadd.f32 0.0, %v4555
        %v4557 = vpop.f32.mrf.mxu0
        %v4558 = vpop.f32.mrf.mxu0
        %v4559 = vadd.f32 0.0, %v4558
        %v4560 = vpop.f32.mrf.mxu0
        %4561 = vmatprep.mubr.bf16.mxu0 %v4492
        %4562 = vmatmul.mubr.bf16.gmra.mxu0 %v4491
        %v4563 = vpop.f32.mrf.mxu0
        %v4564 = vadd.f32 0.0, %v4563
        %v4565 = vpop.f32.mrf.mxu0
        %v4566 = vpop.f32.mrf.mxu0
        %v4567 = vadd.f32 0.0, %v4566
        %v4568 = vpop.f32.mrf.mxu0
        %4569 = vmatprep.mubr.bf16.mxu0 %v4494
        %4570 = vmatmul.mubr.bf16.gmra.mxu0 %v4493
        %v4571 = vpop.f32.mrf.mxu0
        %v4572 = vadd.f32 0.0, %v4571
        %v4573 = vpop.f32.mrf.mxu0
        %v4574 = vpop.f32.mrf.mxu0
        %v4575 = vadd.f32 0.0, %v4574
        %v4576 = vpop.f32.mrf.mxu0
        %4577 = vmatprep.mubr.bf16.mxu0 %v4496
        %4578 = vmatmul.mubr.bf16.gmra.mxu0 %v4495
        %v4579 = vpop.f32.mrf.mxu0
        %v4580 = vadd.f32 0.0, %v4579
        %v4581 = vpop.f32.mrf.mxu0
        %v4582 = vpop.f32.mrf.mxu0
        %v4583 = vadd.f32 0.0, %v4582
        %v4584 = vpop.f32.mrf.mxu0
        %4585 = vmatprep.mubr.bf16.mxu0 %v4498
        %4586 = vmatmul.mubr.bf16.gmra.mxu0 %v4497
        %v4587 = vpop.f32.mrf.mxu0
        %v4588 = vadd.f32 0.0, %v4587
        %v4589 = vpop.f32.mrf.mxu0
        %v4590 = vpop.f32.mrf.mxu0
        %v4591 = vadd.f32 0.0, %v4590
        %v4592 = vpop.f32.mrf.mxu0
        %4593 = vmatprep.mubr.bf16.mxu0 %v4500
        %4594 = vmatmul.mubr.bf16.gmra.mxu0 %v4499
        %v4595 = vpop.f32.mrf.mxu0
        %v4596 = vadd.f32 0.0, %v4595
        %v4597 = vpop.f32.mrf.mxu0
        %v4598 = vpop.f32.mrf.mxu0
        %v4599 = vadd.f32 0.0, %v4598
        %v4600 = vpop.f32.mrf.mxu0
        %4601 = vmatprep.mubr.bf16.mxu0 %v4502
        %4602 = vmatmul.mubr.bf16.gmra.mxu0 %v4501
        %v4603 = vpop.f32.mrf.mxu0
        %v4604 = vadd.f32 0.0, %v4603
        %v4605 = vpop.f32.mrf.mxu0
        %v4606 = vpop.f32.mrf.mxu0
        %v4607 = vadd.f32 0.0, %v4606
        %v4608 = vpop.f32.mrf.mxu0
        %4609 = vmatprep.mubr.bf16.mxu0 %v4504
        %4610 = vmatmul.mubr.bf16.gmra.mxu0 %v4503
        %v4611 = vpop.f32.mrf.mxu0
        %v4612 = vadd.f32 0.0, %v4611
        %v4613 = vpop.f32.mrf.mxu0
        %v4614 = vpop.f32.mrf.mxu0
        %v4615 = vadd.f32 0.0, %v4614
        %v4616 = vpop.f32.mrf.mxu0
        %4617 = vmatprep.mubr.bf16.mxu0 %v4506
        %4618 = vmatmul.mubr.bf16.gmra.mxu0 %v4505
        %v4619 = vpop.f32.mrf.mxu0
        %v4620 = vadd.f32 0.0, %v4619
        %v4621 = vpop.f32.mrf.mxu0
        %v4622 = vpop.f32.mrf.mxu0
        %v4623 = vadd.f32 0.0, %v4622
        %v4624 = vpop.f32.mrf.mxu0
        %4625 = vmatprep.mubr.bf16.mxu0 %v4508
        %4626 = vmatmul.mubr.bf16.gmra.mxu0 %v4507
        %v4627 = vpop.f32.mrf.mxu0
        %v4628 = vadd.f32 0.0, %v4627
        %v4629 = vpop.f32.mrf.mxu0
        %v4630 = vpop.f32.mrf.mxu0
        %v4631 = vadd.f32 0.0, %v4630
        %v4632 = vpop.f32.mrf.mxu0
        %4633 = vmatprep.mubr.bf16.mxu0 %v4510
        %4634 = vmatmul.mubr.bf16.gmra.mxu0 %v4509
        %v4635 = vpop.f32.mrf.mxu0
        %v4636 = vadd.f32 0.0, %v4635
        %v4637 = vpop.f32.mrf.mxu0
        %v4638 = vpop.f32.mrf.mxu0
        %v4639 = vadd.f32 0.0, %v4638
        %v4640 = vpop.f32.mrf.mxu0
        %4641 = vmatprep.mubr.bf16.mxu0 %v4512
        %4642 = vmatmul.mubr.bf16.gmra.mxu0 %v4511
        %v4643 = vpop.f32.mrf.mxu0
        %v4644 = vadd.f32 0.0, %v4643
        %v4645 = vpop.f32.mrf.mxu0
        %v4646 = vpop.f32.mrf.mxu0
        %v4647 = vadd.f32 0.0, %v4646
        %v4648 = vpop.f32.mrf.mxu0
        %4649 = vmatprep.mubr.bf16.mxu0 %v4514
        %4650 = vmatmul.mubr.bf16.gmra.mxu0 %v4513
        %v4651 = vpop.f32.mrf.mxu0
        %v4652 = vadd.f32 0.0, %v4651
        %v4653 = vpop.f32.mrf.mxu0
        %v4654 = vpop.f32.mrf.mxu0
        %v4655 = vadd.f32 0.0, %v4654
        %v4656 = vpop.f32.mrf.mxu0
        %4657 = vmatprep.mubr.bf16.mxu0 %v4516
        %4658 = vmatmul.mubr.bf16.gmra.mxu0 %v4515
        %v4659 = vpop.f32.mrf.mxu0
        %v4660 = vadd.f32 0.0, %v4659
        %v4661 = vpop.f32.mrf.mxu0
        %v4662 = vpop.f32.mrf.mxu0
        %v4663 = vadd.f32 0.0, %v4662
        %v4664 = vpop.f32.mrf.mxu0
        %4665 = vmatprep.mubr.bf16.mxu0 %v4518
        %4666 = vmatmul.mubr.bf16.gmra.mxu0 %v4517
        %v4667 = vpop.f32.mrf.mxu0
        %v4668 = vadd.f32 0.0, %v4667
        %v4669 = vpop.f32.mrf.mxu0
        %v4670 = vpop.f32.mrf.mxu0
        %v4671 = vadd.f32 0.0, %v4670
        %v4672 = vpop.f32.mrf.mxu0
        %4673 = vmatprep.mubr.bf16.mxu0 %v4520
        %4674 = vmatmul.mubr.bf16.gmra.mxu0 %v4519
        %v4675 = vpop.f32.mrf.mxu0
        %v4676 = vadd.f32 0.0, %v4675
        %v4677 = vpop.f32.mrf.mxu0
        %v4678 = vpop.f32.mrf.mxu0
        %v4679 = vadd.f32 0.0, %v4678
        %v4680 = vpop.f32.mrf.mxu0
        %4681 = vdwg.mxu0
        %v4682 = vrcp.pop %v4395
        %v4683 = vrcp.pop %v4398
        %v4684 = vrcp.pop %v4401
        %v4685 = vrcp.pop %v4404
        %v4686 = vrcp.pop %v4407
        %v4687 = vrcp.pop %v4410
        %v4688 = vrcp.pop %v4413
        %v4689 = vrcp.pop %v4416
        %v4690 = vrcp.pop %v4419
        %v4691 = vrcp.pop %v4422
        %v4692 = vrcp.pop %v4425
        %v4693 = vrcp.pop %v4428
        %v4694 = vrcp.pop %v4431
        %v4695 = vrcp.pop %v4434
        %v4696 = vrcp.pop %v4437
        %v4697 = vrcp.pop %v4440
        %v4698 = vrcp.pop %v4443
        %v4699 = vrcp.pop %v4446
        %v4700 = vrcp.pop %v4449
        %v4701 = vrcp.pop %v4452
        %v4702 = vrcp.pop %v4455
        %v4703 = vrcp.pop %v4458
        %v4704 = vrcp.pop %v4461
        %v4705 = vrcp.pop %v4464
        %v4706 = vrcp.pop %v4467
        %v4707 = vrcp.pop %v4470
        %v4708 = vrcp.pop %v4473
        %v4709 = vrcp.pop %v4476
        %v4710 = vrcp.pop %v4479
        %v4711 = vrcp.pop %v4482
        %v4712 = vrcp.pop %v4485
        %v4713 = vrcp.pop %v4488
        %v4714 = vmul.f32 %v4556, %v4682
        %v4715 = vmul.f32 %v4559, %v4683
        %v4716 = vmul.f32 %v4564, %v4684
        %v4717 = vmul.f32 %v4567, %v4685
        %v4718 = vmul.f32 %v4572, %v4686
        %v4719 = vmul.f32 %v4575, %v4687
        %v4720 = vmul.f32 %v4580, %v4688
        %v4721 = vmul.f32 %v4583, %v4689
        %v4722 = vmul.f32 %v4588, %v4690
        %v4723 = vmul.f32 %v4591, %v4691
        %v4724 = vmul.f32 %v4596, %v4692
        %v4725 = vmul.f32 %v4599, %v4693
        %v4726 = vmul.f32 %v4604, %v4694
        %v4727 = vmul.f32 %v4607, %v4695
        %v4728 = vmul.f32 %v4612, %v4696
        %v4729 = vmul.f32 %v4615, %v4697
        %v4730 = vmul.f32 %v4620, %v4698
        %v4731 = vmul.f32 %v4623, %v4699
        %v4732 = vmul.f32 %v4628, %v4700
        %v4733 = vmul.f32 %v4631, %v4701
        %v4734 = vmul.f32 %v4636, %v4702
        %v4735 = vmul.f32 %v4639, %v4703
        %v4736 = vmul.f32 %v4644, %v4704
        %v4737 = vmul.f32 %v4647, %v4705
        %v4738 = vmul.f32 %v4652, %v4706
        %v4739 = vmul.f32 %v4655, %v4707
        %v4740 = vmul.f32 %v4660, %v4708
        %v4741 = vmul.f32 %v4663, %v4709
        %v4742 = vmul.f32 %v4668, %v4710
        %v4743 = vmul.f32 %v4671, %v4711
        %v4744 = vmul.f32 %v4676, %v4712
        %v4745 = vmul.f32 %v4679, %v4713
        %v4746 = vpack.c.bf16 %v4715, %v4714
        %v4747 = vpack.c.bf16 %v4717, %v4716
        %v4748 = vpack.c.bf16 %v4719, %v4718
        %v4749 = vpack.c.bf16 %v4721, %v4720
        %v4750 = vpack.c.bf16 %v4723, %v4722
        %v4751 = vpack.c.bf16 %v4725, %v4724
        %v4752 = vpack.c.bf16 %v4727, %v4726
        %v4753 = vpack.c.bf16 %v4729, %v4728
        %v4754 = vpack.c.bf16 %v4731, %v4730
        %v4755 = vpack.c.bf16 %v4733, %v4732
        %v4756 = vpack.c.bf16 %v4735, %v4734
        %v4757 = vpack.c.bf16 %v4737, %v4736
        %v4758 = vpack.c.bf16 %v4739, %v4738
        %v4759 = vpack.c.bf16 %v4741, %v4740
        %v4760 = vpack.c.bf16 %v4743, %v4742
        %v4761 = vpack.c.bf16 %v4745, %v4744
        %v4778 = vunpack.c.l.b16 %v4746
        %v4779 = vunpack.c.h.b16 %v4746
        %v4780 = vunpack.c.l.b16 %v4747
        %v4781 = vunpack.c.h.b16 %v4747
        %v4782 = vunpack.c.l.b16 %v4748
        %v4783 = vunpack.c.h.b16 %v4748
        %v4784 = vunpack.c.l.b16 %v4749
        %v4785 = vunpack.c.h.b16 %v4749
        %v4786 = vunpack.c.l.b16 %v4750
        %v4787 = vunpack.c.h.b16 %v4750
        %v4788 = vunpack.c.l.b16 %v4751
        %v4789 = vunpack.c.h.b16 %v4751
        %v4790 = vunpack.c.l.b16 %v4752
        %v4791 = vunpack.c.h.b16 %v4752
        %v4792 = vunpack.c.l.b16 %v4753
        %v4793 = vunpack.c.h.b16 %v4753
        %v4794 = vunpack.c.l.b16 %v4754
        %v4795 = vunpack.c.h.b16 %v4754
        %v4796 = vunpack.c.l.b16 %v4755
        %v4797 = vunpack.c.h.b16 %v4755
        %v4798 = vunpack.c.l.b16 %v4756
        %v4799 = vunpack.c.h.b16 %v4756
        %v4800 = vunpack.c.l.b16 %v4757
        %v4801 = vunpack.c.h.b16 %v4757
        %v4802 = vunpack.c.l.b16 %v4758
        %v4803 = vunpack.c.h.b16 %v4758
        %v4804 = vunpack.c.l.b16 %v4759
        %v4805 = vunpack.c.h.b16 %v4759
        %v4806 = vunpack.c.l.b16 %v4760
        %v4807 = vunpack.c.h.b16 %v4760
        %v4808 = vunpack.c.l.b16 %v4761
        %v4809 = vunpack.c.h.b16 %v4761
        %v4810 = vpack.c.b16 %v4778, %v4778
        %v4811 = vpack.c.b16 %v4779, %v4779
        %v4812 = vpack.c.b16 %v4780, %v4780
        %v4813 = vpack.c.b16 %v4781, %v4781
        %v4814 = vpack.c.b16 %v4782, %v4782
        %v4815 = vpack.c.b16 %v4783, %v4783
        %v4816 = vpack.c.b16 %v4784, %v4784
        %v4817 = vpack.c.b16 %v4785, %v4785
        %v4818 = vpack.c.b16 %v4786, %v4786
        %v4819 = vpack.c.b16 %v4787, %v4787
        %v4820 = vpack.c.b16 %v4788, %v4788
        %v4821 = vpack.c.b16 %v4789, %v4789
        %v4822 = vpack.c.b16 %v4790, %v4790
        %v4823 = vpack.c.b16 %v4791, %v4791
        %v4824 = vpack.c.b16 %v4792, %v4792
        %v4825 = vpack.c.b16 %v4793, %v4793
        %v4826 = vpack.c.b16 %v4794, %v4794
        %v4827 = vpack.c.b16 %v4795, %v4795
        %v4828 = vpack.c.b16 %v4796, %v4796
        %v4829 = vpack.c.b16 %v4797, %v4797
        %v4830 = vpack.c.b16 %v4798, %v4798
        %v4831 = vpack.c.b16 %v4799, %v4799
        %v4832 = vpack.c.b16 %v4800, %v4800
        %v4833 = vpack.c.b16 %v4801, %v4801
        %v4834 = vpack.c.b16 %v4802, %v4802
        %v4835 = vpack.c.b16 %v4803, %v4803
        %v4836 = vpack.c.b16 %v4804, %v4804
        %v4837 = vpack.c.b16 %v4805, %v4805
        %v4838 = vpack.c.b16 %v4806, %v4806
        %v4839 = vpack.c.b16 %v4807, %v4807
        %v4840 = vpack.c.b16 %v4808, %v4808
        %v4841 = vpack.c.b16 %v4809, %v4809
        %vm4874 = vcmask 519168
        %4875 = vst.msk [vmem:[#allocation2] sm:$0xf] %vm4874, %v4810
        %4876 = vst.msk [vmem:[#allocation2 + $0x8] sm:$0xf] %vm4874, %v4811
        %4877 = vst.msk [vmem:[#allocation2 + $0x10] sm:$0xf] %vm4874, %v4812
        %4878 = vst.msk [vmem:[#allocation2 + $0x18] sm:$0xf] %vm4874, %v4813
        %4879 = vst.msk [vmem:[#allocation2 + $0x20] sm:$0xf] %vm4874, %v4814
        %4880 = vst.msk [vmem:[#allocation2 + $0x28] sm:$0xf] %vm4874, %v4815
        %4881 = vst.msk [vmem:[#allocation2 + $0x30] sm:$0xf] %vm4874, %v4816
        %4882 = vst.msk [vmem:[#allocation2 + $0x38] sm:$0xf] %vm4874, %v4817
        %4883 = vst.msk [vmem:[#allocation2 + $0x40] sm:$0xf] %vm4874, %v4818
        %4884 = vst.msk [vmem:[#allocation2 + $0x48] sm:$0xf] %vm4874, %v4819
        %4885 = vst.msk [vmem:[#allocation2 + $0x50] sm:$0xf] %vm4874, %v4820
        %4886 = vst.msk [vmem:[#allocation2 + $0x58] sm:$0xf] %vm4874, %v4821
        %4887 = vst.msk [vmem:[#allocation2 + $0x60] sm:$0xf] %vm4874, %v4822
        %4888 = vst.msk [vmem:[#allocation2 + $0x68] sm:$0xf] %vm4874, %v4823
        %4889 = vst.msk [vmem:[#allocation2 + $0x70] sm:$0xf] %vm4874, %v4824
        %4890 = vst.msk [vmem:[#allocation2 + $0x78] sm:$0xf] %vm4874, %v4825
        %4891 = vst.msk [vmem:[#allocation2 + $0x80] sm:$0xf] %vm4874, %v4826
        %4892 = vst.msk [vmem:[#allocation2 + $0x88] sm:$0xf] %vm4874, %v4827
        %4893 = vst.msk [vmem:[#allocation2 + $0x90] sm:$0xf] %vm4874, %v4828
        %4894 = vst.msk [vmem:[#allocation2 + $0x98] sm:$0xf] %vm4874, %v4829
        %4895 = vst.msk [vmem:[#allocation2 + $0xa0] sm:$0xf] %vm4874, %v4830
        %4896 = vst.msk [vmem:[#allocation2 + $0xa8] sm:$0xf] %vm4874, %v4831
        %4897 = vst.msk [vmem:[#allocation2 + $0xb0] sm:$0xf] %vm4874, %v4832
        %4898 = vst.msk [vmem:[#allocation2 + $0xb8] sm:$0xf] %vm4874, %v4833
        %4899 = vst.msk [vmem:[#allocation2 + $0xc0] sm:$0xf] %vm4874, %v4834
        %4900 = vst.msk [vmem:[#allocation2 + $0xc8] sm:$0xf] %vm4874, %v4835
        %4901 = vst.msk [vmem:[#allocation2 + $0xd0] sm:$0xf] %vm4874, %v4836
        %4902 = vst.msk [vmem:[#allocation2 + $0xd8] sm:$0xf] %vm4874, %v4837
        %4903 = vst.msk [vmem:[#allocation2 + $0xe0] sm:$0xf] %vm4874, %v4838
        %4904 = vst.msk [vmem:[#allocation2 + $0xe8] sm:$0xf] %vm4874, %v4839
        %4905 = vst.msk [vmem:[#allocation2 + $0xf0] sm:$0xf] %vm4874, %v4840
        %4906 = vst.msk [vmem:[#allocation2 + $0xf8] sm:$0xf] %vm4874, %v4841
        %4923 = vrot.lane.b32.xlu0 %v3210, 64
        %v4924 = vpop.permute.xlu0 %4923
        %4925 = vrot.lane.b32.xlu0 %v3212, 64
        %v4926 = vpop.permute.xlu0 %4925
        %4927 = vrot.lane.b32.xlu0 %v3214, 64
        %v4928 = vpop.permute.xlu0 %4927
        %4929 = vrot.lane.b32.xlu0 %v3216, 64
        %v4930 = vpop.permute.xlu0 %4929
        %4931 = vrot.lane.b32.xlu0 %v3218, 64
        %v4932 = vpop.permute.xlu0 %4931
        %4933 = vrot.lane.b32.xlu0 %v3220, 64
        %v4934 = vpop.permute.xlu0 %4933
        %4935 = vrot.lane.b32.xlu0 %v3222, 64
        %v4936 = vpop.permute.xlu0 %4935
        %4937 = vrot.lane.b32.xlu0 %v3224, 64
        %v4938 = vpop.permute.xlu0 %4937
        %4939 = vrot.lane.b32.xlu0 %v3226, 64
        %v4940 = vpop.permute.xlu0 %4939
        %4941 = vrot.lane.b32.xlu0 %v3228, 64
        %v4942 = vpop.permute.xlu0 %4941
        %4943 = vrot.lane.b32.xlu0 %v3230, 64
        %v4944 = vpop.permute.xlu0 %4943
        %4945 = vrot.lane.b32.xlu0 %v3232, 64
        %v4946 = vpop.permute.xlu0 %4945
        %4947 = vrot.lane.b32.xlu0 %v3234, 64
        %v4948 = vpop.permute.xlu0 %4947
        %4949 = vrot.lane.b32.xlu0 %v3236, 64
        %v4950 = vpop.permute.xlu0 %4949
        %4951 = vrot.lane.b32.xlu0 %v3238, 64
        %v4952 = vpop.permute.xlu0 %4951
        %4953 = vrot.lane.b32.xlu0 %v3240, 64
        %v4954 = vpop.permute.xlu0 %4953
        %v4956 = vsel %vm664, %v4924, 0
        %v4959 = vsel %vm664, %v4926, 0
        %v4962 = vsel %vm664, %v4928, 0
        %v4965 = vsel %vm664, %v4930, 0
        %v4968 = vsel %vm664, %v4932, 0
        %v4971 = vsel %vm664, %v4934, 0
        %v4974 = vsel %vm664, %v4936, 0
        %v4977 = vsel %vm664, %v4938, 0
        %v4980 = vsel %vm664, %v4940, 0
        %v4983 = vsel %vm664, %v4942, 0
        %v4986 = vsel %vm664, %v4944, 0
        %v4989 = vsel %vm664, %v4946, 0
        %v4992 = vsel %vm664, %v4948, 0
        %v4995 = vsel %vm664, %v4950, 0
        %v4998 = vsel %vm664, %v4952, 0
        %v5001 = vsel %vm664, %v4954, 0
        %5003 = vmatprep.subr.bf16.mxu0 0
        %5004 = vmatpush1.bf16.msra.mxu0 0
        %5005 = vmatprep.subr.bf16.mxu0 0
        %5006 = vmatpush1.bf16.msra.mxu0 0
        %5007 = vmatprep.subr.bf16.mxu0 0
        %5008 = vmatpush1.bf16.msra.mxu0 0
        %5009 = vmatprep.subr.bf16.mxu0 0
        %5010 = vmatpush1.bf16.msra.mxu0 0
        %5011 = vmatprep.subr.bf16.mxu0 %v3610
        %5012 = vmatpush1.bf16.msra.mxu0 %v3609
        %5013 = vmatprep.subr.bf16.mxu0 %v3608
        %5014 = vmatpush1.bf16.msra.mxu0 %v3607
        %5015 = vmatprep.subr.bf16.mxu0 %v3606
        %5016 = vmatpush1.bf16.msra.mxu0 %v3605
        %5017 = vmatprep.subr.bf16.mxu0 %v3604
        %5018 = vmatpush1.bf16.msra.mxu0 %v3603
        %5019 = vmatprep.subr.bf16.mxu0 0
        %5020 = vmatpush2.bf16.msra.mxu0 0
        %5021 = vmatprep.subr.bf16.mxu0 0
        %5022 = vmatpush2.bf16.msra.mxu0 0
        %5023 = vmatprep.subr.bf16.mxu0 0
        %5024 = vmatpush2.bf16.msra.mxu0 0
        %5025 = vmatprep.subr.bf16.mxu0 0
        %5026 = vmatpush2.bf16.msra.mxu0 0
        %5027 = vmatprep.subr.bf16.mxu0 0
        %5028 = vmatpush2.bf16.msra.mxu0 0
        %5029 = vmatprep.subr.bf16.mxu0 0
        %5030 = vmatpush2.bf16.msra.mxu0 0
        %5031 = vmatprep.subr.bf16.mxu0 0
        %5032 = vmatpush2.bf16.msra.mxu0 0
        %5033 = vmatprep.subr.bf16.mxu0 0
        %5034 = vmatpush2.bf16.msra.mxu0 0
        %5035 = vmatprep.mubr.bf16.mxu0 0
        %5036 = vmatmul.mubr.bf16.gmra.mxu0 %v4956
        %v5037 = vpop.f32.mrf.mxu0
        %v5038 = vadd.f32 0.0, %v5037
        %v5039 = vpop.f32.mrf.mxu0
        %v5040 = vadd.f32 0.0, %v5039
        %v5041 = vpop.f32.mrf.mxu0
        %v5042 = vadd.f32 0.0, %v5041
        %v5043 = vpop.f32.mrf.mxu0
        %v5044 = vadd.f32 0.0, %v5043
        %5045 = vmatprep.mubr.bf16.mxu0 0
        %5046 = vmatmul.mubr.bf16.gmra.mxu0 %v4959
        %v5047 = vpop.f32.mrf.mxu0
        %v5048 = vadd.f32 0.0, %v5047
        %v5049 = vpop.f32.mrf.mxu0
        %v5050 = vadd.f32 0.0, %v5049
        %v5051 = vpop.f32.mrf.mxu0
        %v5052 = vadd.f32 0.0, %v5051
        %v5053 = vpop.f32.mrf.mxu0
        %v5054 = vadd.f32 0.0, %v5053
        %5055 = vmatprep.mubr.bf16.mxu0 0
        %5056 = vmatmul.mubr.bf16.gmra.mxu0 %v4962
        %v5057 = vpop.f32.mrf.mxu0
        %v5058 = vadd.f32 0.0, %v5057
        %v5059 = vpop.f32.mrf.mxu0
        %v5060 = vadd.f32 0.0, %v5059
        %v5061 = vpop.f32.mrf.mxu0
        %v5062 = vadd.f32 0.0, %v5061
        %v5063 = vpop.f32.mrf.mxu0
        %v5064 = vadd.f32 0.0, %v5063
        %5065 = vmatprep.mubr.bf16.mxu0 0
        %5066 = vmatmul.mubr.bf16.gmra.mxu0 %v4965
        %v5067 = vpop.f32.mrf.mxu0
        %v5068 = vadd.f32 0.0, %v5067
        %v5069 = vpop.f32.mrf.mxu0
        %v5070 = vadd.f32 0.0, %v5069
        %v5071 = vpop.f32.mrf.mxu0
        %v5072 = vadd.f32 0.0, %v5071
        %v5073 = vpop.f32.mrf.mxu0
        %v5074 = vadd.f32 0.0, %v5073
        %5075 = vmatprep.mubr.bf16.mxu0 0
        %5076 = vmatmul.mubr.bf16.gmra.mxu0 %v4968
        %v5077 = vpop.f32.mrf.mxu0
        %v5078 = vadd.f32 0.0, %v5077
        %v5079 = vpop.f32.mrf.mxu0
        %v5080 = vadd.f32 0.0, %v5079
        %v5081 = vpop.f32.mrf.mxu0
        %v5082 = vadd.f32 0.0, %v5081
        %v5083 = vpop.f32.mrf.mxu0
        %v5084 = vadd.f32 0.0, %v5083
        %5085 = vmatprep.mubr.bf16.mxu0 0
        %5086 = vmatmul.mubr.bf16.gmra.mxu0 %v4971
        %v5087 = vpop.f32.mrf.mxu0
        %v5088 = vadd.f32 0.0, %v5087
        %v5089 = vpop.f32.mrf.mxu0
        %v5090 = vadd.f32 0.0, %v5089
        %v5091 = vpop.f32.mrf.mxu0
        %v5092 = vadd.f32 0.0, %v5091
        %v5093 = vpop.f32.mrf.mxu0
        %v5094 = vadd.f32 0.0, %v5093
        %5095 = vmatprep.mubr.bf16.mxu0 0
        %5096 = vmatmul.mubr.bf16.gmra.mxu0 %v4974
        %v5097 = vpop.f32.mrf.mxu0
        %v5098 = vadd.f32 0.0, %v5097
        %v5099 = vpop.f32.mrf.mxu0
        %v5100 = vadd.f32 0.0, %v5099
        %v5101 = vpop.f32.mrf.mxu0
        %v5102 = vadd.f32 0.0, %v5101
        %v5103 = vpop.f32.mrf.mxu0
        %v5104 = vadd.f32 0.0, %v5103
        %5105 = vmatprep.mubr.bf16.mxu0 0
        %5106 = vmatmul.mubr.bf16.gmra.mxu0 %v4977
        %v5107 = vpop.f32.mrf.mxu0
        %v5108 = vadd.f32 0.0, %v5107
        %v5109 = vpop.f32.mrf.mxu0
        %v5110 = vadd.f32 0.0, %v5109
        %v5111 = vpop.f32.mrf.mxu0
        %v5112 = vadd.f32 0.0, %v5111
        %v5113 = vpop.f32.mrf.mxu0
        %v5114 = vadd.f32 0.0, %v5113
        %5115 = vmatprep.mubr.bf16.mxu0 0
        %5116 = vmatmul.mubr.bf16.gmra.mxu0 %v4980
        %v5117 = vpop.f32.mrf.mxu0
        %v5118 = vadd.f32 0.0, %v5117
        %v5119 = vpop.f32.mrf.mxu0
        %v5120 = vadd.f32 0.0, %v5119
        %v5121 = vpop.f32.mrf.mxu0
        %v5122 = vadd.f32 0.0, %v5121
        %v5123 = vpop.f32.mrf.mxu0
        %v5124 = vadd.f32 0.0, %v5123
        %5125 = vmatprep.mubr.bf16.mxu0 0
        %5126 = vmatmul.mubr.bf16.gmra.mxu0 %v4983
        %v5127 = vpop.f32.mrf.mxu0
        %v5128 = vadd.f32 0.0, %v5127
        %v5129 = vpop.f32.mrf.mxu0
        %v5130 = vadd.f32 0.0, %v5129
        %v5131 = vpop.f32.mrf.mxu0
        %v5132 = vadd.f32 0.0, %v5131
        %v5133 = vpop.f32.mrf.mxu0
        %v5134 = vadd.f32 0.0, %v5133
        %5135 = vmatprep.mubr.bf16.mxu0 0
        %5136 = vmatmul.mubr.bf16.gmra.mxu0 %v4986
        %v5137 = vpop.f32.mrf.mxu0
        %v5138 = vadd.f32 0.0, %v5137
        %v5139 = vpop.f32.mrf.mxu0
        %v5140 = vadd.f32 0.0, %v5139
        %v5141 = vpop.f32.mrf.mxu0
        %v5142 = vadd.f32 0.0, %v5141
        %v5143 = vpop.f32.mrf.mxu0
        %v5144 = vadd.f32 0.0, %v5143
        %5145 = vmatprep.mubr.bf16.mxu0 0
        %5146 = vmatmul.mubr.bf16.gmra.mxu0 %v4989
        %v5147 = vpop.f32.mrf.mxu0
        %v5148 = vadd.f32 0.0, %v5147
        %v5149 = vpop.f32.mrf.mxu0
        %v5150 = vadd.f32 0.0, %v5149
        %v5151 = vpop.f32.mrf.mxu0
        %v5152 = vadd.f32 0.0, %v5151
        %v5153 = vpop.f32.mrf.mxu0
        %v5154 = vadd.f32 0.0, %v5153
        %5155 = vmatprep.mubr.bf16.mxu0 0
        %5156 = vmatmul.mubr.bf16.gmra.mxu0 %v4992
        %v5157 = vpop.f32.mrf.mxu0
        %v5158 = vadd.f32 0.0, %v5157
        %v5159 = vpop.f32.mrf.mxu0
        %v5160 = vadd.f32 0.0, %v5159
        %v5161 = vpop.f32.mrf.mxu0
        %v5162 = vadd.f32 0.0, %v5161
        %v5163 = vpop.f32.mrf.mxu0
        %v5164 = vadd.f32 0.0, %v5163
        %5165 = vmatprep.mubr.bf16.mxu0 0
        %5166 = vmatmul.mubr.bf16.gmra.mxu0 %v4995
        %v5167 = vpop.f32.mrf.mxu0
        %v5168 = vadd.f32 0.0, %v5167
        %v5169 = vpop.f32.mrf.mxu0
        %v5170 = vadd.f32 0.0, %v5169
        %v5171 = vpop.f32.mrf.mxu0
        %v5172 = vadd.f32 0.0, %v5171
        %v5173 = vpop.f32.mrf.mxu0
        %v5174 = vadd.f32 0.0, %v5173
        %5175 = vmatprep.mubr.bf16.mxu0 0
        %5176 = vmatmul.mubr.bf16.gmra.mxu0 %v4998
        %v5177 = vpop.f32.mrf.mxu0
        %v5178 = vadd.f32 0.0, %v5177
        %v5179 = vpop.f32.mrf.mxu0
        %v5180 = vadd.f32 0.0, %v5179
        %v5181 = vpop.f32.mrf.mxu0
        %v5182 = vadd.f32 0.0, %v5181
        %v5183 = vpop.f32.mrf.mxu0
        %v5184 = vadd.f32 0.0, %v5183
        %5185 = vmatprep.mubr.bf16.mxu0 0
        %5186 = vmatmul.mubr.bf16.gmra.mxu0 %v5001
        %v5187 = vpop.f32.mrf.mxu0
        %v5188 = vadd.f32 0.0, %v5187
        %v5189 = vpop.f32.mrf.mxu0
        %v5190 = vadd.f32 0.0, %v5189
        %v5191 = vpop.f32.mrf.mxu0
        %v5192 = vadd.f32 0.0, %v5191
        %v5193 = vpop.f32.mrf.mxu0
        %v5194 = vadd.f32 0.0, %v5193
        %5195 = vdwg.mxu0
        %v5196 = vmax.f32 %v5038, %v5040
        %5197 = vmax.xlane.f32.xlu0 %v5196
        %v5198 = vpop.xlane.xlu0 %5197
        %v5199 = vmax.f32 %v5042, %v5044
        %5200 = vmax.xlane.f32.xlu0 %v5199
        %v5201 = vpop.xlane.xlu0 %5200
        %v5202 = vmax.f32 %v5048, %v5050
        %5203 = vmax.xlane.f32.xlu0 %v5202
        %v5204 = vpop.xlane.xlu0 %5203
        %v5205 = vmax.f32 %v5052, %v5054
        %5206 = vmax.xlane.f32.xlu0 %v5205
        %v5207 = vpop.xlane.xlu0 %5206
        %v5208 = vmax.f32 %v5058, %v5060
        %5209 = vmax.xlane.f32.xlu0 %v5208
        %v5210 = vpop.xlane.xlu0 %5209
        %v5211 = vmax.f32 %v5062, %v5064
        %5212 = vmax.xlane.f32.xlu0 %v5211
        %v5213 = vpop.xlane.xlu0 %5212
        %v5214 = vmax.f32 %v5068, %v5070
        %5215 = vmax.xlane.f32.xlu0 %v5214
        %v5216 = vpop.xlane.xlu0 %5215
        %v5217 = vmax.f32 %v5072, %v5074
        %5218 = vmax.xlane.f32.xlu0 %v5217
        %v5219 = vpop.xlane.xlu0 %5218
        %v5220 = vmax.f32 %v5078, %v5080
        %5221 = vmax.xlane.f32.xlu0 %v5220
        %v5222 = vpop.xlane.xlu0 %5221
        %v5223 = vmax.f32 %v5082, %v5084
        %5224 = vmax.xlane.f32.xlu0 %v5223
        %v5225 = vpop.xlane.xlu0 %5224
        %v5226 = vmax.f32 %v5088, %v5090
        %5227 = vmax.xlane.f32.xlu0 %v5226
        %v5228 = vpop.xlane.xlu0 %5227
        %v5229 = vmax.f32 %v5092, %v5094
        %5230 = vmax.xlane.f32.xlu0 %v5229
        %v5231 = vpop.xlane.xlu0 %5230
        %v5232 = vmax.f32 %v5098, %v5100
        %5233 = vmax.xlane.f32.xlu0 %v5232
        %v5234 = vpop.xlane.xlu0 %5233
        %v5235 = vmax.f32 %v5102, %v5104
        %5236 = vmax.xlane.f32.xlu0 %v5235
        %v5237 = vpop.xlane.xlu0 %5236
        %v5238 = vmax.f32 %v5108, %v5110
        %5239 = vmax.xlane.f32.xlu0 %v5238
        %v5240 = vpop.xlane.xlu0 %5239
        %v5241 = vmax.f32 %v5112, %v5114
        %5242 = vmax.xlane.f32.xlu0 %v5241
        %v5243 = vpop.xlane.xlu0 %5242
        %v5244 = vmax.f32 %v5118, %v5120
        %5245 = vmax.xlane.f32.xlu0 %v5244
        %v5246 = vpop.xlane.xlu0 %5245
        %v5247 = vmax.f32 %v5122, %v5124
        %5248 = vmax.xlane.f32.xlu0 %v5247
        %v5249 = vpop.xlane.xlu0 %5248
        %v5250 = vmax.f32 %v5128, %v5130
        %5251 = vmax.xlane.f32.xlu0 %v5250
        %v5252 = vpop.xlane.xlu0 %5251
        %v5253 = vmax.f32 %v5132, %v5134
        %5254 = vmax.xlane.f32.xlu0 %v5253
        %v5255 = vpop.xlane.xlu0 %5254
        %v5256 = vmax.f32 %v5138, %v5140
        %5257 = vmax.xlane.f32.xlu0 %v5256
        %v5258 = vpop.xlane.xlu0 %5257
        %v5259 = vmax.f32 %v5142, %v5144
        %5260 = vmax.xlane.f32.xlu0 %v5259
        %v5261 = vpop.xlane.xlu0 %5260
        %v5262 = vmax.f32 %v5148, %v5150
        %5263 = vmax.xlane.f32.xlu0 %v5262
        %v5264 = vpop.xlane.xlu0 %5263
        %v5265 = vmax.f32 %v5152, %v5154
        %5266 = vmax.xlane.f32.xlu0 %v5265
        %v5267 = vpop.xlane.xlu0 %5266
        %v5268 = vmax.f32 %v5158, %v5160
        %5269 = vmax.xlane.f32.xlu0 %v5268
        %v5270 = vpop.xlane.xlu0 %5269
        %v5271 = vmax.f32 %v5162, %v5164
        %5272 = vmax.xlane.f32.xlu0 %v5271
        %v5273 = vpop.xlane.xlu0 %5272
        %v5274 = vmax.f32 %v5168, %v5170
        %5275 = vmax.xlane.f32.xlu0 %v5274
        %v5276 = vpop.xlane.xlu0 %5275
        %v5277 = vmax.f32 %v5172, %v5174
        %5278 = vmax.xlane.f32.xlu0 %v5277
        %v5279 = vpop.xlane.xlu0 %5278
        %v5280 = vmax.f32 %v5178, %v5180
        %5281 = vmax.xlane.f32.xlu0 %v5280
        %v5282 = vpop.xlane.xlu0 %5281
        %v5283 = vmax.f32 %v5182, %v5184
        %5284 = vmax.xlane.f32.xlu0 %v5283
        %v5285 = vpop.xlane.xlu0 %5284
        %v5286 = vmax.f32 %v5188, %v5190
        %5287 = vmax.xlane.f32.xlu0 %v5286
        %v5288 = vpop.xlane.xlu0 %5287
        %v5289 = vmax.f32 %v5192, %v5194
        %5290 = vmax.xlane.f32.xlu0 %v5289
        %v5291 = vpop.xlane.xlu0 %5290
        %v5292 = vsub.f32 %v5038, %v5198
        %v5293 = vsub.f32 %v5040, %v5198
        %v5294 = vsub.f32 %v5042, %v5201
        %v5295 = vsub.f32 %v5044, %v5201
        %v5296 = vsub.f32 %v5048, %v5204
        %v5297 = vsub.f32 %v5050, %v5204
        %v5298 = vsub.f32 %v5052, %v5207
        %v5299 = vsub.f32 %v5054, %v5207
        %v5300 = vsub.f32 %v5058, %v5210
        %v5301 = vsub.f32 %v5060, %v5210
        %v5302 = vsub.f32 %v5062, %v5213
        %v5303 = vsub.f32 %v5064, %v5213
        %v5304 = vsub.f32 %v5068, %v5216
        %v5305 = vsub.f32 %v5070, %v5216
        %v5306 = vsub.f32 %v5072, %v5219
        %v5307 = vsub.f32 %v5074, %v5219
        %v5308 = vsub.f32 %v5078, %v5222
        %v5309 = vsub.f32 %v5080, %v5222
        %v5310 = vsub.f32 %v5082, %v5225
        %v5311 = vsub.f32 %v5084, %v5225
        %v5312 = vsub.f32 %v5088, %v5228
        %v5313 = vsub.f32 %v5090, %v5228
        %v5314 = vsub.f32 %v5092, %v5231
        %v5315 = vsub.f32 %v5094, %v5231
        %v5316 = vsub.f32 %v5098, %v5234
        %v5317 = vsub.f32 %v5100, %v5234
        %v5318 = vsub.f32 %v5102, %v5237
        %v5319 = vsub.f32 %v5104, %v5237
        %v5320 = vsub.f32 %v5108, %v5240
        %v5321 = vsub.f32 %v5110, %v5240
        %v5322 = vsub.f32 %v5112, %v5243
        %v5323 = vsub.f32 %v5114, %v5243
        %v5324 = vsub.f32 %v5118, %v5246
        %v5325 = vsub.f32 %v5120, %v5246
        %v5326 = vsub.f32 %v5122, %v5249
        %v5327 = vsub.f32 %v5124, %v5249
        %v5328 = vsub.f32 %v5128, %v5252
        %v5329 = vsub.f32 %v5130, %v5252
        %v5330 = vsub.f32 %v5132, %v5255
        %v5331 = vsub.f32 %v5134, %v5255
        %v5332 = vsub.f32 %v5138, %v5258
        %v5333 = vsub.f32 %v5140, %v5258
        %v5334 = vsub.f32 %v5142, %v5261
        %v5335 = vsub.f32 %v5144, %v5261
        %v5336 = vsub.f32 %v5148, %v5264
        %v5337 = vsub.f32 %v5150, %v5264
        %v5338 = vsub.f32 %v5152, %v5267
        %v5339 = vsub.f32 %v5154, %v5267
        %v5340 = vsub.f32 %v5158, %v5270
        %v5341 = vsub.f32 %v5160, %v5270
        %v5342 = vsub.f32 %v5162, %v5273
        %v5343 = vsub.f32 %v5164, %v5273
        %v5344 = vsub.f32 %v5168, %v5276
        %v5345 = vsub.f32 %v5170, %v5276
        %v5346 = vsub.f32 %v5172, %v5279
        %v5347 = vsub.f32 %v5174, %v5279
        %v5348 = vsub.f32 %v5178, %v5282
        %v5349 = vsub.f32 %v5180, %v5282
        %v5350 = vsub.f32 %v5182, %v5285
        %v5351 = vsub.f32 %v5184, %v5285
        %v5352 = vsub.f32 %v5188, %v5288
        %v5353 = vsub.f32 %v5190, %v5288
        %v5354 = vsub.f32 %v5192, %v5291
        %v5355 = vsub.f32 %v5194, %v5291
        %v5356 = vmul.f32 %v5292, 1.442695
        %v5357 = vpow.pop %v5356
        %v5358 = vmul.f32 %v5293, 1.442695
        %v5359 = vpow.pop %v5358
        %v5360 = vmul.f32 %v5294, 1.442695
        %v5361 = vpow.pop %v5360
        %v5362 = vmul.f32 %v5295, 1.442695
        %v5363 = vpow.pop %v5362
        %v5364 = vmul.f32 %v5296, 1.442695
        %v5365 = vpow.pop %v5364
        %v5366 = vmul.f32 %v5297, 1.442695
        %v5367 = vpow.pop %v5366
        %v5368 = vmul.f32 %v5298, 1.442695
        %v5369 = vpow.pop %v5368
        %v5370 = vmul.f32 %v5299, 1.442695
        %v5371 = vpow.pop %v5370
        %v5372 = vmul.f32 %v5300, 1.442695
        %v5373 = vpow.pop %v5372
        %v5374 = vmul.f32 %v5301, 1.442695
        %v5375 = vpow.pop %v5374
        %v5376 = vmul.f32 %v5302, 1.442695
        %v5377 = vpow.pop %v5376
        %v5378 = vmul.f32 %v5303, 1.442695
        %v5379 = vpow.pop %v5378
        %v5380 = vmul.f32 %v5304, 1.442695
        %v5381 = vpow.pop %v5380
        %v5382 = vmul.f32 %v5305, 1.442695
        %v5383 = vpow.pop %v5382
        %v5384 = vmul.f32 %v5306, 1.442695
        %v5385 = vpow.pop %v5384
        %v5386 = vmul.f32 %v5307, 1.442695
        %v5387 = vpow.pop %v5386
        %v5388 = vmul.f32 %v5308, 1.442695
        %v5389 = vpow.pop %v5388
        %v5390 = vmul.f32 %v5309, 1.442695
        %v5391 = vpow.pop %v5390
        %v5392 = vmul.f32 %v5310, 1.442695
        %v5393 = vpow.pop %v5392
        %v5394 = vmul.f32 %v5311, 1.442695
        %v5395 = vpow.pop %v5394
        %v5396 = vmul.f32 %v5312, 1.442695
        %v5397 = vpow.pop %v5396
        %v5398 = vmul.f32 %v5313, 1.442695
        %v5399 = vpow.pop %v5398
        %v5400 = vmul.f32 %v5314, 1.442695
        %v5401 = vpow.pop %v5400
        %v5402 = vmul.f32 %v5315, 1.442695
        %v5403 = vpow.pop %v5402
        %v5404 = vmul.f32 %v5316, 1.442695
        %v5405 = vpow.pop %v5404
        %v5406 = vmul.f32 %v5317, 1.442695
        %v5407 = vpow.pop %v5406
        %v5408 = vmul.f32 %v5318, 1.442695
        %v5409 = vpow.pop %v5408
        %v5410 = vmul.f32 %v5319, 1.442695
        %v5411 = vpow.pop %v5410
        %v5412 = vmul.f32 %v5320, 1.442695
        %v5413 = vpow.pop %v5412
        %v5414 = vmul.f32 %v5321, 1.442695
        %v5415 = vpow.pop %v5414
        %v5416 = vmul.f32 %v5322, 1.442695
        %v5417 = vpow.pop %v5416
        %v5418 = vmul.f32 %v5323, 1.442695
        %v5419 = vpow.pop %v5418
        %v5420 = vmul.f32 %v5324, 1.442695
        %v5421 = vpow.pop %v5420
        %v5422 = vmul.f32 %v5325, 1.442695
        %v5423 = vpow.pop %v5422
        %v5424 = vmul.f32 %v5326, 1.442695
        %v5425 = vpow.pop %v5424
        %v5426 = vmul.f32 %v5327, 1.442695
        %v5427 = vpow.pop %v5426
        %v5428 = vmul.f32 %v5328, 1.442695
        %v5429 = vpow.pop %v5428
        %v5430 = vmul.f32 %v5329, 1.442695
        %v5431 = vpow.pop %v5430
        %v5432 = vmul.f32 %v5330, 1.442695
        %v5433 = vpow.pop %v5432
        %v5434 = vmul.f32 %v5331, 1.442695
        %v5435 = vpow.pop %v5434
        %v5436 = vmul.f32 %v5332, 1.442695
        %v5437 = vpow.pop %v5436
        %v5438 = vmul.f32 %v5333, 1.442695
        %v5439 = vpow.pop %v5438
        %v5440 = vmul.f32 %v5334, 1.442695
        %v5441 = vpow.pop %v5440
        %v5442 = vmul.f32 %v5335, 1.442695
        %v5443 = vpow.pop %v5442
        %v5444 = vmul.f32 %v5336, 1.442695
        %v5445 = vpow.pop %v5444
        %v5446 = vmul.f32 %v5337, 1.442695
        %v5447 = vpow.pop %v5446
        %v5448 = vmul.f32 %v5338, 1.442695
        %v5449 = vpow.pop %v5448
        %v5450 = vmul.f32 %v5339, 1.442695
        %v5451 = vpow.pop %v5450
        %v5452 = vmul.f32 %v5340, 1.442695
        %v5453 = vpow.pop %v5452
        %v5454 = vmul.f32 %v5341, 1.442695
        %v5455 = vpow.pop %v5454
        %v5456 = vmul.f32 %v5342, 1.442695
        %v5457 = vpow.pop %v5456
        %v5458 = vmul.f32 %v5343, 1.442695
        %v5459 = vpow.pop %v5458
        %v5460 = vmul.f32 %v5344, 1.442695
        %v5461 = vpow.pop %v5460
        %v5462 = vmul.f32 %v5345, 1.442695
        %v5463 = vpow.pop %v5462
        %v5464 = vmul.f32 %v5346, 1.442695
        %v5465 = vpow.pop %v5464
        %v5466 = vmul.f32 %v5347, 1.442695
        %v5467 = vpow.pop %v5466
        %v5468 = vmul.f32 %v5348, 1.442695
        %v5469 = vpow.pop %v5468
        %v5470 = vmul.f32 %v5349, 1.442695
        %v5471 = vpow.pop %v5470
        %v5472 = vmul.f32 %v5350, 1.442695
        %v5473 = vpow.pop %v5472
        %v5474 = vmul.f32 %v5351, 1.442695
        %v5475 = vpow.pop %v5474
        %v5476 = vmul.f32 %v5352, 1.442695
        %v5477 = vpow.pop %v5476
        %v5478 = vmul.f32 %v5353, 1.442695
        %v5479 = vpow.pop %v5478
        %v5480 = vmul.f32 %v5354, 1.442695
        %v5481 = vpow.pop %v5480
        %v5482 = vmul.f32 %v5355, 1.442695
        %v5483 = vpow.pop %v5482
        %v5484 = vadd.f32 %v5357, %v5359
        %5485 = vadd.xlane.f32.xlu0 %v5484
        %v5486 = vpop.xlane.xlu0 %5485
        %v5487 = vadd.f32 %v5361, %v5363
        %5488 = vadd.xlane.f32.xlu0 %v5487
        %v5489 = vpop.xlane.xlu0 %5488
        %v5490 = vadd.f32 %v5365, %v5367
        %5491 = vadd.xlane.f32.xlu0 %v5490
        %v5492 = vpop.xlane.xlu0 %5491
        %v5493 = vadd.f32 %v5369, %v5371
        %5494 = vadd.xlane.f32.xlu0 %v5493
        %v5495 = vpop.xlane.xlu0 %5494
        %v5496 = vadd.f32 %v5373, %v5375
        %5497 = vadd.xlane.f32.xlu0 %v5496
        %v5498 = vpop.xlane.xlu0 %5497
        %v5499 = vadd.f32 %v5377, %v5379
        %5500 = vadd.xlane.f32.xlu0 %v5499
        %v5501 = vpop.xlane.xlu0 %5500
        %v5502 = vadd.f32 %v5381, %v5383
        %5503 = vadd.xlane.f32.xlu0 %v5502
        %v5504 = vpop.xlane.xlu0 %5503
        %v5505 = vadd.f32 %v5385, %v5387
        %5506 = vadd.xlane.f32.xlu0 %v5505
        %v5507 = vpop.xlane.xlu0 %5506
        %v5508 = vadd.f32 %v5389, %v5391
        %5509 = vadd.xlane.f32.xlu0 %v5508
        %v5510 = vpop.xlane.xlu0 %5509
        %v5511 = vadd.f32 %v5393, %v5395
        %5512 = vadd.xlane.f32.xlu0 %v5511
        %v5513 = vpop.xlane.xlu0 %5512
        %v5514 = vadd.f32 %v5397, %v5399
        %5515 = vadd.xlane.f32.xlu0 %v5514
        %v5516 = vpop.xlane.xlu0 %5515
        %v5517 = vadd.f32 %v5401, %v5403
        %5518 = vadd.xlane.f32.xlu0 %v5517
        %v5519 = vpop.xlane.xlu0 %5518
        %v5520 = vadd.f32 %v5405, %v5407
        %5521 = vadd.xlane.f32.xlu0 %v5520
        %v5522 = vpop.xlane.xlu0 %5521
        %v5523 = vadd.f32 %v5409, %v5411
        %5524 = vadd.xlane.f32.xlu0 %v5523
        %v5525 = vpop.xlane.xlu0 %5524
        %v5526 = vadd.f32 %v5413, %v5415
        %5527 = vadd.xlane.f32.xlu0 %v5526
        %v5528 = vpop.xlane.xlu0 %5527
        %v5529 = vadd.f32 %v5417, %v5419
        %5530 = vadd.xlane.f32.xlu0 %v5529
        %v5531 = vpop.xlane.xlu0 %5530
        %v5532 = vadd.f32 %v5421, %v5423
        %5533 = vadd.xlane.f32.xlu0 %v5532
        %v5534 = vpop.xlane.xlu0 %5533
        %v5535 = vadd.f32 %v5425, %v5427
        %5536 = vadd.xlane.f32.xlu0 %v5535
        %v5537 = vpop.xlane.xlu0 %5536
        %v5538 = vadd.f32 %v5429, %v5431
        %5539 = vadd.xlane.f32.xlu0 %v5538
        %v5540 = vpop.xlane.xlu0 %5539
        %v5541 = vadd.f32 %v5433, %v5435
        %5542 = vadd.xlane.f32.xlu0 %v5541
        %v5543 = vpop.xlane.xlu0 %5542
        %v5544 = vadd.f32 %v5437, %v5439
        %5545 = vadd.xlane.f32.xlu0 %v5544
        %v5546 = vpop.xlane.xlu0 %5545
        %v5547 = vadd.f32 %v5441, %v5443
        %5548 = vadd.xlane.f32.xlu0 %v5547
        %v5549 = vpop.xlane.xlu0 %5548
        %v5550 = vadd.f32 %v5445, %v5447
        %5551 = vadd.xlane.f32.xlu0 %v5550
        %v5552 = vpop.xlane.xlu0 %5551
        %v5553 = vadd.f32 %v5449, %v5451
        %5554 = vadd.xlane.f32.xlu0 %v5553
        %v5555 = vpop.xlane.xlu0 %5554
        %v5556 = vadd.f32 %v5453, %v5455
        %5557 = vadd.xlane.f32.xlu0 %v5556
        %v5558 = vpop.xlane.xlu0 %5557
        %v5559 = vadd.f32 %v5457, %v5459
        %5560 = vadd.xlane.f32.xlu0 %v5559
        %v5561 = vpop.xlane.xlu0 %5560
        %v5562 = vadd.f32 %v5461, %v5463
        %5563 = vadd.xlane.f32.xlu0 %v5562
        %v5564 = vpop.xlane.xlu0 %5563
        %v5565 = vadd.f32 %v5465, %v5467
        %5566 = vadd.xlane.f32.xlu0 %v5565
        %v5567 = vpop.xlane.xlu0 %5566
        %v5568 = vadd.f32 %v5469, %v5471
        %5569 = vadd.xlane.f32.xlu0 %v5568
        %v5570 = vpop.xlane.xlu0 %5569
        %v5571 = vadd.f32 %v5473, %v5475
        %5572 = vadd.xlane.f32.xlu0 %v5571
        %v5573 = vpop.xlane.xlu0 %5572
        %v5574 = vadd.f32 %v5477, %v5479
        %5575 = vadd.xlane.f32.xlu0 %v5574
        %v5576 = vpop.xlane.xlu0 %5575
        %v5577 = vadd.f32 %v5481, %v5483
        %5578 = vadd.xlane.f32.xlu0 %v5577
        %v5579 = vpop.xlane.xlu0 %5578
        %v5580 = vpack.c.bf16 %v5361, %v5357
        %v5581 = vpack.c.bf16 %v5363, %v5359
        %v5582 = vpack.c.bf16 %v5369, %v5365
        %v5583 = vpack.c.bf16 %v5371, %v5367
        %v5584 = vpack.c.bf16 %v5377, %v5373
        %v5585 = vpack.c.bf16 %v5379, %v5375
        %v5586 = vpack.c.bf16 %v5385, %v5381
        %v5587 = vpack.c.bf16 %v5387, %v5383
        %v5588 = vpack.c.bf16 %v5393, %v5389
        %v5589 = vpack.c.bf16 %v5395, %v5391
        %v5590 = vpack.c.bf16 %v5401, %v5397
        %v5591 = vpack.c.bf16 %v5403, %v5399
        %v5592 = vpack.c.bf16 %v5409, %v5405
        %v5593 = vpack.c.bf16 %v5411, %v5407
        %v5594 = vpack.c.bf16 %v5417, %v5413
        %v5595 = vpack.c.bf16 %v5419, %v5415
        %v5596 = vpack.c.bf16 %v5425, %v5421
        %v5597 = vpack.c.bf16 %v5427, %v5423
        %v5598 = vpack.c.bf16 %v5433, %v5429
        %v5599 = vpack.c.bf16 %v5435, %v5431
        %v5600 = vpack.c.bf16 %v5441, %v5437
        %v5601 = vpack.c.bf16 %v5443, %v5439
        %v5602 = vpack.c.bf16 %v5449, %v5445
        %v5603 = vpack.c.bf16 %v5451, %v5447
        %v5604 = vpack.c.bf16 %v5457, %v5453
        %v5605 = vpack.c.bf16 %v5459, %v5455
        %v5606 = vpack.c.bf16 %v5465, %v5461
        %v5607 = vpack.c.bf16 %v5467, %v5463
        %v5608 = vpack.c.bf16 %v5473, %v5469
        %v5609 = vpack.c.bf16 %v5475, %v5471
        %v5610 = vpack.c.bf16 %v5481, %v5477
        %v5611 = vpack.c.bf16 %v5483, %v5479
        %5628 = vrot.lane.b32.xlu0 %v3832, 64
        %v5629 = vpop.permute.xlu0 %5628
        %5630 = vrot.lane.b32.xlu0 %v3834, 64
        %v5631 = vpop.permute.xlu0 %5630
        %5632 = vrot.lane.b32.xlu0 %v3836, 64
        %v5633 = vpop.permute.xlu0 %5632
        %5634 = vrot.lane.b32.xlu0 %v3838, 64
        %v5635 = vpop.permute.xlu0 %5634
        %5636 = vrot.lane.b32.xlu0 %v3840, 64
        %v5637 = vpop.permute.xlu0 %5636
        %5638 = vrot.lane.b32.xlu0 %v3842, 64
        %v5639 = vpop.permute.xlu0 %5638
        %5640 = vrot.lane.b32.xlu0 %v3844, 64
        %v5641 = vpop.permute.xlu0 %5640
        %5642 = vrot.lane.b32.xlu0 %v3846, 64
        %v5643 = vpop.permute.xlu0 %5642
        %5644 = vrot.lane.b32.xlu0 %v3848, 64
        %v5645 = vpop.permute.xlu0 %5644
        %5646 = vrot.lane.b32.xlu0 %v3850, 64
        %v5647 = vpop.permute.xlu0 %5646
        %5648 = vrot.lane.b32.xlu0 %v3852, 64
        %v5649 = vpop.permute.xlu0 %5648
        %5650 = vrot.lane.b32.xlu0 %v3854, 64
        %v5651 = vpop.permute.xlu0 %5650
        %5652 = vrot.lane.b32.xlu0 %v3856, 64
        %v5653 = vpop.permute.xlu0 %5652
        %5654 = vrot.lane.b32.xlu0 %v3858, 64
        %v5655 = vpop.permute.xlu0 %5654
        %5656 = vrot.lane.b32.xlu0 %v3860, 64
        %v5657 = vpop.permute.xlu0 %5656
        %5658 = vrot.lane.b32.xlu0 %v3862, 64
        %v5659 = vpop.permute.xlu0 %5658
        %5676 = vmatprep.subr.bf16.mxu0 0
        %5677 = vmatpush1.bf16.msra.mxu0 %v5643
        %5678 = vmatprep.subr.bf16.mxu0 0
        %5679 = vmatpush1.bf16.msra.mxu0 %v5641
        %5680 = vmatprep.subr.bf16.mxu0 0
        %5681 = vmatpush1.bf16.msra.mxu0 %v5639
        %5682 = vmatprep.subr.bf16.mxu0 0
        %5683 = vmatpush1.bf16.msra.mxu0 %v5637
        %5684 = vmatprep.subr.bf16.mxu0 0
        %5685 = vmatpush1.bf16.msra.mxu0 %v5635
        %5686 = vmatprep.subr.bf16.mxu0 0
        %5687 = vmatpush1.bf16.msra.mxu0 %v5633
        %5688 = vmatprep.subr.bf16.mxu0 0
        %5689 = vmatpush1.bf16.msra.mxu0 %v5631
        %5690 = vmatprep.subr.bf16.mxu0 0
        %5691 = vmatpush1.bf16.msra.mxu0 %v5629
        %5692 = vmatprep.subr.bf16.mxu0 0
        %5693 = vmatpush2.bf16.msra.mxu0 %v5659
        %5694 = vmatprep.subr.bf16.mxu0 0
        %5695 = vmatpush2.bf16.msra.mxu0 %v5657
        %5696 = vmatprep.subr.bf16.mxu0 0
        %5697 = vmatpush2.bf16.msra.mxu0 %v5655
        %5698 = vmatprep.subr.bf16.mxu0 0
        %5699 = vmatpush2.bf16.msra.mxu0 %v5653
        %5700 = vmatprep.subr.bf16.mxu0 0
        %5701 = vmatpush2.bf16.msra.mxu0 %v5651
        %5702 = vmatprep.subr.bf16.mxu0 0
        %5703 = vmatpush2.bf16.msra.mxu0 %v5649
        %5704 = vmatprep.subr.bf16.mxu0 0
        %5705 = vmatpush2.bf16.msra.mxu0 %v5647
        %5706 = vmatprep.subr.bf16.mxu0 0
        %5707 = vmatpush2.bf16.msra.mxu0 %v5645
        %5708 = vmatprep.mubr.bf16.mxu0 %v5581
        %5709 = vmatmul.mubr.bf16.gmra.mxu0 %v5580
        %v5710 = vpop.f32.mrf.mxu0
        %v5711 = vadd.f32 0.0, %v5710
        %v5712 = vpop.f32.mrf.mxu0
        %v5713 = vpop.f32.mrf.mxu0
        %v5714 = vadd.f32 0.0, %v5713
        %v5715 = vpop.f32.mrf.mxu0
        %5716 = vmatprep.mubr.bf16.mxu0 %v5583
        %5717 = vmatmul.mubr.bf16.gmra.mxu0 %v5582
        %v5718 = vpop.f32.mrf.mxu0
        %v5719 = vadd.f32 0.0, %v5718
        %v5720 = vpop.f32.mrf.mxu0
        %v5721 = vpop.f32.mrf.mxu0
        %v5722 = vadd.f32 0.0, %v5721
        %v5723 = vpop.f32.mrf.mxu0
        %5724 = vmatprep.mubr.bf16.mxu0 %v5585
        %5725 = vmatmul.mubr.bf16.gmra.mxu0 %v5584
        %v5726 = vpop.f32.mrf.mxu0
        %v5727 = vadd.f32 0.0, %v5726
        %v5728 = vpop.f32.mrf.mxu0
        %v5729 = vpop.f32.mrf.mxu0
        %v5730 = vadd.f32 0.0, %v5729
        %v5731 = vpop.f32.mrf.mxu0
        %5732 = vmatprep.mubr.bf16.mxu0 %v5587
        %5733 = vmatmul.mubr.bf16.gmra.mxu0 %v5586
        %v5734 = vpop.f32.mrf.mxu0
        %v5735 = vadd.f32 0.0, %v5734
        %v5736 = vpop.f32.mrf.mxu0
        %v5737 = vpop.f32.mrf.mxu0
        %v5738 = vadd.f32 0.0, %v5737
        %v5739 = vpop.f32.mrf.mxu0
        %5740 = vmatprep.mubr.bf16.mxu0 %v5589
        %5741 = vmatmul.mubr.bf16.gmra.mxu0 %v5588
        %v5742 = vpop.f32.mrf.mxu0
        %v5743 = vadd.f32 0.0, %v5742
        %v5744 = vpop.f32.mrf.mxu0
        %v5745 = vpop.f32.mrf.mxu0
        %v5746 = vadd.f32 0.0, %v5745
        %v5747 = vpop.f32.mrf.mxu0
        %5748 = vmatprep.mubr.bf16.mxu0 %v5591
        %5749 = vmatmul.mubr.bf16.gmra.mxu0 %v5590
        %v5750 = vpop.f32.mrf.mxu0
        %v5751 = vadd.f32 0.0, %v5750
        %v5752 = vpop.f32.mrf.mxu0
        %v5753 = vpop.f32.mrf.mxu0
        %v5754 = vadd.f32 0.0, %v5753
        %v5755 = vpop.f32.mrf.mxu0
        %5756 = vmatprep.mubr.bf16.mxu0 %v5593
        %5757 = vmatmul.mubr.bf16.gmra.mxu0 %v5592
        %v5758 = vpop.f32.mrf.mxu0
        %v5759 = vadd.f32 0.0, %v5758
        %v5760 = vpop.f32.mrf.mxu0
        %v5761 = vpop.f32.mrf.mxu0
        %v5762 = vadd.f32 0.0, %v5761
        %v5763 = vpop.f32.mrf.mxu0
        %5764 = vmatprep.mubr.bf16.mxu0 %v5595
        %5765 = vmatmul.mubr.bf16.gmra.mxu0 %v5594
        %v5766 = vpop.f32.mrf.mxu0
        %v5767 = vadd.f32 0.0, %v5766
        %v5768 = vpop.f32.mrf.mxu0
        %v5769 = vpop.f32.mrf.mxu0
        %v5770 = vadd.f32 0.0, %v5769
        %v5771 = vpop.f32.mrf.mxu0
        %5772 = vmatprep.mubr.bf16.mxu0 %v5597
        %5773 = vmatmul.mubr.bf16.gmra.mxu0 %v5596
        %v5774 = vpop.f32.mrf.mxu0
        %v5775 = vadd.f32 0.0, %v5774
        %v5776 = vpop.f32.mrf.mxu0
        %v5777 = vpop.f32.mrf.mxu0
        %v5778 = vadd.f32 0.0, %v5777
        %v5779 = vpop.f32.mrf.mxu0
        %5780 = vmatprep.mubr.bf16.mxu0 %v5599
        %5781 = vmatmul.mubr.bf16.gmra.mxu0 %v5598
        %v5782 = vpop.f32.mrf.mxu0
        %v5783 = vadd.f32 0.0, %v5782
        %v5784 = vpop.f32.mrf.mxu0
        %v5785 = vpop.f32.mrf.mxu0
        %v5786 = vadd.f32 0.0, %v5785
        %v5787 = vpop.f32.mrf.mxu0
        %5788 = vmatprep.mubr.bf16.mxu0 %v5601
        %5789 = vmatmul.mubr.bf16.gmra.mxu0 %v5600
        %v5790 = vpop.f32.mrf.mxu0
        %v5791 = vadd.f32 0.0, %v5790
        %v5792 = vpop.f32.mrf.mxu0
        %v5793 = vpop.f32.mrf.mxu0
        %v5794 = vadd.f32 0.0, %v5793
        %v5795 = vpop.f32.mrf.mxu0
        %5796 = vmatprep.mubr.bf16.mxu0 %v5603
        %5797 = vmatmul.mubr.bf16.gmra.mxu0 %v5602
        %v5798 = vpop.f32.mrf.mxu0
        %v5799 = vadd.f32 0.0, %v5798
        %v5800 = vpop.f32.mrf.mxu0
        %v5801 = vpop.f32.mrf.mxu0
        %v5802 = vadd.f32 0.0, %v5801
        %v5803 = vpop.f32.mrf.mxu0
        %5804 = vmatprep.mubr.bf16.mxu0 %v5605
        %5805 = vmatmul.mubr.bf16.gmra.mxu0 %v5604
        %v5806 = vpop.f32.mrf.mxu0
        %v5807 = vadd.f32 0.0, %v5806
        %v5808 = vpop.f32.mrf.mxu0
        %v5809 = vpop.f32.mrf.mxu0
        %v5810 = vadd.f32 0.0, %v5809
        %v5811 = vpop.f32.mrf.mxu0
        %5812 = vmatprep.mubr.bf16.mxu0 %v5607
        %5813 = vmatmul.mubr.bf16.gmra.mxu0 %v5606
        %v5814 = vpop.f32.mrf.mxu0
        %v5815 = vadd.f32 0.0, %v5814
        %v5816 = vpop.f32.mrf.mxu0
        %v5817 = vpop.f32.mrf.mxu0
        %v5818 = vadd.f32 0.0, %v5817
        %v5819 = vpop.f32.mrf.mxu0
        %5820 = vmatprep.mubr.bf16.mxu0 %v5609
        %5821 = vmatmul.mubr.bf16.gmra.mxu0 %v5608
        %v5822 = vpop.f32.mrf.mxu0
        %v5823 = vadd.f32 0.0, %v5822
        %v5824 = vpop.f32.mrf.mxu0
        %v5825 = vpop.f32.mrf.mxu0
        %v5826 = vadd.f32 0.0, %v5825
        %v5827 = vpop.f32.mrf.mxu0
        %5828 = vmatprep.mubr.bf16.mxu0 %v5611
        %5829 = vmatmul.mubr.bf16.gmra.mxu0 %v5610
        %v5830 = vpop.f32.mrf.mxu0
        %v5831 = vadd.f32 0.0, %v5830
        %v5832 = vpop.f32.mrf.mxu0
        %v5833 = vpop.f32.mrf.mxu0
        %v5834 = vadd.f32 0.0, %v5833
        %v5835 = vpop.f32.mrf.mxu0
        %5836 = vdwg.mxu0
        %v5837 = vrcp.pop %v5486
        %v5838 = vrcp.pop %v5489
        %v5839 = vrcp.pop %v5492
        %v5840 = vrcp.pop %v5495
        %v5841 = vrcp.pop %v5498
        %v5842 = vrcp.pop %v5501
        %v5843 = vrcp.pop %v5504
        %v5844 = vrcp.pop %v5507
        %v5845 = vrcp.pop %v5510
        %v5846 = vrcp.pop %v5513
        %v5847 = vrcp.pop %v5516
        %v5848 = vrcp.pop %v5519
        %v5849 = vrcp.pop %v5522
        %v5850 = vrcp.pop %v5525
        %v5851 = vrcp.pop %v5528
        %v5852 = vrcp.pop %v5531
        %v5853 = vrcp.pop %v5534
        %v5854 = vrcp.pop %v5537
        %v5855 = vrcp.pop %v5540
        %v5856 = vrcp.pop %v5543
        %v5857 = vrcp.pop %v5546
        %v5858 = vrcp.pop %v5549
        %v5859 = vrcp.pop %v5552
        %v5860 = vrcp.pop %v5555
        %v5861 = vrcp.pop %v5558
        %v5862 = vrcp.pop %v5561
        %v5863 = vrcp.pop %v5564
        %v5864 = vrcp.pop %v5567
        %v5865 = vrcp.pop %v5570
        %v5866 = vrcp.pop %v5573
        %v5867 = vrcp.pop %v5576
        %v5868 = vrcp.pop %v5579
        %v5869 = vmul.f32 %v5711, %v5837
        %v5870 = vmul.f32 %v5714, %v5838
        %v5871 = vmul.f32 %v5719, %v5839
        %v5872 = vmul.f32 %v5722, %v5840
        %v5873 = vmul.f32 %v5727, %v5841
        %v5874 = vmul.f32 %v5730, %v5842
        %v5875 = vmul.f32 %v5735, %v5843
        %v5876 = vmul.f32 %v5738, %v5844
        %v5877 = vmul.f32 %v5743, %v5845
        %v5878 = vmul.f32 %v5746, %v5846
        %v5879 = vmul.f32 %v5751, %v5847
        %v5880 = vmul.f32 %v5754, %v5848
        %v5881 = vmul.f32 %v5759, %v5849
        %v5882 = vmul.f32 %v5762, %v5850
        %v5883 = vmul.f32 %v5767, %v5851
        %v5884 = vmul.f32 %v5770, %v5852
        %v5885 = vmul.f32 %v5775, %v5853
        %v5886 = vmul.f32 %v5778, %v5854
        %v5887 = vmul.f32 %v5783, %v5855
        %v5888 = vmul.f32 %v5786, %v5856
        %v5889 = vmul.f32 %v5791, %v5857
        %v5890 = vmul.f32 %v5794, %v5858
        %v5891 = vmul.f32 %v5799, %v5859
        %v5892 = vmul.f32 %v5802, %v5860
        %v5893 = vmul.f32 %v5807, %v5861
        %v5894 = vmul.f32 %v5810, %v5862
        %v5895 = vmul.f32 %v5815, %v5863
        %v5896 = vmul.f32 %v5818, %v5864
        %v5897 = vmul.f32 %v5823, %v5865
        %v5898 = vmul.f32 %v5826, %v5866
        %v5899 = vmul.f32 %v5831, %v5867
        %v5900 = vmul.f32 %v5834, %v5868
        %v5901 = vpack.c.bf16 %v5870, %v5869
        %v5902 = vpack.c.bf16 %v5872, %v5871
        %v5903 = vpack.c.bf16 %v5874, %v5873
        %v5904 = vpack.c.bf16 %v5876, %v5875
        %v5905 = vpack.c.bf16 %v5878, %v5877
        %v5906 = vpack.c.bf16 %v5880, %v5879
        %v5907 = vpack.c.bf16 %v5882, %v5881
        %v5908 = vpack.c.bf16 %v5884, %v5883
        %v5909 = vpack.c.bf16 %v5886, %v5885
        %v5910 = vpack.c.bf16 %v5888, %v5887
        %v5911 = vpack.c.bf16 %v5890, %v5889
        %v5912 = vpack.c.bf16 %v5892, %v5891
        %v5913 = vpack.c.bf16 %v5894, %v5893
        %v5914 = vpack.c.bf16 %v5896, %v5895
        %v5915 = vpack.c.bf16 %v5898, %v5897
        %v5916 = vpack.c.bf16 %v5900, %v5899
        %v5933 = vunpack.c.l.b16 %v5901
        %v5934 = vunpack.c.h.b16 %v5901
        %v5935 = vunpack.c.l.b16 %v5902
        %v5936 = vunpack.c.h.b16 %v5902
        %v5937 = vunpack.c.l.b16 %v5903
        %v5938 = vunpack.c.h.b16 %v5903
        %v5939 = vunpack.c.l.b16 %v5904
        %v5940 = vunpack.c.h.b16 %v5904
        %v5941 = vunpack.c.l.b16 %v5905
        %v5942 = vunpack.c.h.b16 %v5905
        %v5943 = vunpack.c.l.b16 %v5906
        %v5944 = vunpack.c.h.b16 %v5906
        %v5945 = vunpack.c.l.b16 %v5907
        %v5946 = vunpack.c.h.b16 %v5907
        %v5947 = vunpack.c.l.b16 %v5908
        %v5948 = vunpack.c.h.b16 %v5908
        %v5949 = vunpack.c.l.b16 %v5909
        %v5950 = vunpack.c.h.b16 %v5909
        %v5951 = vunpack.c.l.b16 %v5910
        %v5952 = vunpack.c.h.b16 %v5910
        %v5953 = vunpack.c.l.b16 %v5911
        %v5954 = vunpack.c.h.b16 %v5911
        %v5955 = vunpack.c.l.b16 %v5912
        %v5956 = vunpack.c.h.b16 %v5912
        %v5957 = vunpack.c.l.b16 %v5913
        %v5958 = vunpack.c.h.b16 %v5913
        %v5959 = vunpack.c.l.b16 %v5914
        %v5960 = vunpack.c.h.b16 %v5914
        %v5961 = vunpack.c.l.b16 %v5915
        %v5962 = vunpack.c.h.b16 %v5915
        %v5963 = vunpack.c.l.b16 %v5916
        %v5964 = vunpack.c.h.b16 %v5916
        %v5965 = vpack.c.b16 %v5933, %v5933
        %v5966 = vpack.c.b16 %v5934, %v5934
        %v5967 = vpack.c.b16 %v5935, %v5935
        %v5968 = vpack.c.b16 %v5936, %v5936
        %v5969 = vpack.c.b16 %v5937, %v5937
        %v5970 = vpack.c.b16 %v5938, %v5938
        %v5971 = vpack.c.b16 %v5939, %v5939
        %v5972 = vpack.c.b16 %v5940, %v5940
        %v5973 = vpack.c.b16 %v5941, %v5941
        %v5974 = vpack.c.b16 %v5942, %v5942
        %v5975 = vpack.c.b16 %v5943, %v5943
        %v5976 = vpack.c.b16 %v5944, %v5944
        %v5977 = vpack.c.b16 %v5945, %v5945
        %v5978 = vpack.c.b16 %v5946, %v5946
        %v5979 = vpack.c.b16 %v5947, %v5947
        %v5980 = vpack.c.b16 %v5948, %v5948
        %v5981 = vpack.c.b16 %v5949, %v5949
        %v5982 = vpack.c.b16 %v5950, %v5950
        %v5983 = vpack.c.b16 %v5951, %v5951
        %v5984 = vpack.c.b16 %v5952, %v5952
        %v5985 = vpack.c.b16 %v5953, %v5953
        %v5986 = vpack.c.b16 %v5954, %v5954
        %v5987 = vpack.c.b16 %v5955, %v5955
        %v5988 = vpack.c.b16 %v5956, %v5956
        %v5989 = vpack.c.b16 %v5957, %v5957
        %v5990 = vpack.c.b16 %v5958, %v5958
        %v5991 = vpack.c.b16 %v5959, %v5959
        %v5992 = vpack.c.b16 %v5960, %v5960
        %v5993 = vpack.c.b16 %v5961, %v5961
        %v5994 = vpack.c.b16 %v5962, %v5962
        %v5995 = vpack.c.b16 %v5963, %v5963
        %v5996 = vpack.c.b16 %v5964, %v5964
        %5997 = vrot.lane.b32.xlu0 %v5965, 64
        %v5998 = vpop.permute.xlu0 %5997
        %5999 = vrot.lane.b32.xlu0 %v5966, 64
        %v6000 = vpop.permute.xlu0 %5999
        %6001 = vrot.lane.b32.xlu0 %v5967, 64
        %v6002 = vpop.permute.xlu0 %6001
        %6003 = vrot.lane.b32.xlu0 %v5968, 64
        %v6004 = vpop.permute.xlu0 %6003
        %6005 = vrot.lane.b32.xlu0 %v5969, 64
        %v6006 = vpop.permute.xlu0 %6005
        %6007 = vrot.lane.b32.xlu0 %v5970, 64
        %v6008 = vpop.permute.xlu0 %6007
        %6009 = vrot.lane.b32.xlu0 %v5971, 64
        %v6010 = vpop.permute.xlu0 %6009
        %6011 = vrot.lane.b32.xlu0 %v5972, 64
        %v6012 = vpop.permute.xlu0 %6011
        %6013 = vrot.lane.b32.xlu0 %v5973, 64
        %v6014 = vpop.permute.xlu0 %6013
        %6015 = vrot.lane.b32.xlu0 %v5974, 64
        %v6016 = vpop.permute.xlu0 %6015
        %6017 = vrot.lane.b32.xlu0 %v5975, 64
        %v6018 = vpop.permute.xlu0 %6017
        %6019 = vrot.lane.b32.xlu0 %v5976, 64
        %v6020 = vpop.permute.xlu0 %6019
        %6021 = vrot.lane.b32.xlu0 %v5977, 64
        %v6022 = vpop.permute.xlu0 %6021
        %6023 = vrot.lane.b32.xlu0 %v5978, 64
        %v6024 = vpop.permute.xlu0 %6023
        %6025 = vrot.lane.b32.xlu0 %v5979, 64
        %v6026 = vpop.permute.xlu0 %6025
        %6027 = vrot.lane.b32.xlu0 %v5980, 64
        %v6028 = vpop.permute.xlu0 %6027
        %6029 = vrot.lane.b32.xlu0 %v5981, 64
        %v6030 = vpop.permute.xlu0 %6029
        %6031 = vrot.lane.b32.xlu0 %v5982, 64
        %v6032 = vpop.permute.xlu0 %6031
        %6033 = vrot.lane.b32.xlu0 %v5983, 64
        %v6034 = vpop.permute.xlu0 %6033
        %6035 = vrot.lane.b32.xlu0 %v5984, 64
        %v6036 = vpop.permute.xlu0 %6035
        %6037 = vrot.lane.b32.xlu0 %v5985, 64
        %v6038 = vpop.permute.xlu0 %6037
        %6039 = vrot.lane.b32.xlu0 %v5986, 64
        %v6040 = vpop.permute.xlu0 %6039
        %6041 = vrot.lane.b32.xlu0 %v5987, 64
        %v6042 = vpop.permute.xlu0 %6041
        %6043 = vrot.lane.b32.xlu0 %v5988, 64
        %v6044 = vpop.permute.xlu0 %6043
        %6045 = vrot.lane.b32.xlu0 %v5989, 64
        %v6046 = vpop.permute.xlu0 %6045
        %6047 = vrot.lane.b32.xlu0 %v5990, 64
        %v6048 = vpop.permute.xlu0 %6047
        %6049 = vrot.lane.b32.xlu0 %v5991, 64
        %v6050 = vpop.permute.xlu0 %6049
        %6051 = vrot.lane.b32.xlu0 %v5992, 64
        %v6052 = vpop.permute.xlu0 %6051
        %6053 = vrot.lane.b32.xlu0 %v5993, 64
        %v6054 = vpop.permute.xlu0 %6053
        %6055 = vrot.lane.b32.xlu0 %v5994, 64
        %v6056 = vpop.permute.xlu0 %6055
        %6057 = vrot.lane.b32.xlu0 %v5995, 64
        %v6058 = vpop.permute.xlu0 %6057
        %6059 = vrot.lane.b32.xlu0 %v5996, 64
        %v6060 = vpop.permute.xlu0 %6059
        %vm6093 = vcmask 1043968
        %6094 = vst.msk [vmem:[#allocation2] sm:$0xf] %vm6093, %v5998
        %6095 = vst.msk [vmem:[#allocation2 + $0x8] sm:$0xf] %vm6093, %v6000
        %6096 = vst.msk [vmem:[#allocation2 + $0x10] sm:$0xf] %vm6093, %v6002
        %6097 = vst.msk [vmem:[#allocation2 + $0x18] sm:$0xf] %vm6093, %v6004
        %6098 = vst.msk [vmem:[#allocation2 + $0x20] sm:$0xf] %vm6093, %v6006
        %6099 = vst.msk [vmem:[#allocation2 + $0x28] sm:$0xf] %vm6093, %v6008
        %6100 = vst.msk [vmem:[#allocation2 + $0x30] sm:$0xf] %vm6093, %v6010
        %6101 = vst.msk [vmem:[#allocation2 + $0x38] sm:$0xf] %vm6093, %v6012
        %6102 = vst.msk [vmem:[#allocation2 + $0x40] sm:$0xf] %vm6093, %v6014
        %6103 = vst.msk [vmem:[#allocation2 + $0x48] sm:$0xf] %vm6093, %v6016
        %6104 = vst.msk [vmem:[#allocation2 + $0x50] sm:$0xf] %vm6093, %v6018
        %6105 = vst.msk [vmem:[#allocation2 + $0x58] sm:$0xf] %vm6093, %v6020
        %6106 = vst.msk [vmem:[#allocation2 + $0x60] sm:$0xf] %vm6093, %v6022
        %6107 = vst.msk [vmem:[#allocation2 + $0x68] sm:$0xf] %vm6093, %v6024
        %6108 = vst.msk [vmem:[#allocation2 + $0x70] sm:$0xf] %vm6093, %v6026
        %6109 = vst.msk [vmem:[#allocation2 + $0x78] sm:$0xf] %vm6093, %v6028
        %6110 = vst.msk [vmem:[#allocation2 + $0x80] sm:$0xf] %vm6093, %v6030
        %6111 = vst.msk [vmem:[#allocation2 + $0x88] sm:$0xf] %vm6093, %v6032
        %6112 = vst.msk [vmem:[#allocation2 + $0x90] sm:$0xf] %vm6093, %v6034
        %6113 = vst.msk [vmem:[#allocation2 + $0x98] sm:$0xf] %vm6093, %v6036
        %6114 = vst.msk [vmem:[#allocation2 + $0xa0] sm:$0xf] %vm6093, %v6038
        %6115 = vst.msk [vmem:[#allocation2 + $0xa8] sm:$0xf] %vm6093, %v6040
        %6116 = vst.msk [vmem:[#allocation2 + $0xb0] sm:$0xf] %vm6093, %v6042
        %6117 = vst.msk [vmem:[#allocation2 + $0xb8] sm:$0xf] %vm6093, %v6044
        %6118 = vst.msk [vmem:[#allocation2 + $0xc0] sm:$0xf] %vm6093, %v6046
        %6119 = vst.msk [vmem:[#allocation2 + $0xc8] sm:$0xf] %vm6093, %v6048
        %6120 = vst.msk [vmem:[#allocation2 + $0xd0] sm:$0xf] %vm6093, %v6050
        %6121 = vst.msk [vmem:[#allocation2 + $0xd8] sm:$0xf] %vm6093, %v6052
        %6122 = vst.msk [vmem:[#allocation2 + $0xe0] sm:$0xf] %vm6093, %v6054
        %6123 = vst.msk [vmem:[#allocation2 + $0xe8] sm:$0xf] %vm6093, %v6056
        %6124 = vst.msk [vmem:[#allocation2 + $0xf0] sm:$0xf] %vm6093, %v6058
        %6125 = vst.msk [vmem:[#allocation2 + $0xf8] sm:$0xf] %vm6093, %v6060
        %v6127 = vsel %vm664, %v3211, 0
        %v6130 = vsel %vm664, %v3213, 0
        %v6133 = vsel %vm664, %v3215, 0
        %v6136 = vsel %vm664, %v3217, 0
        %v6139 = vsel %vm664, %v3219, 0
        %v6142 = vsel %vm664, %v3221, 0
        %v6145 = vsel %vm664, %v3223, 0
        %v6148 = vsel %vm664, %v3225, 0
        %v6151 = vsel %vm664, %v3227, 0
        %v6154 = vsel %vm664, %v3229, 0
        %v6157 = vsel %vm664, %v3231, 0
        %v6160 = vsel %vm664, %v3233, 0
        %v6163 = vsel %vm664, %v3235, 0
        %v6166 = vsel %vm664, %v3237, 0
        %v6169 = vsel %vm664, %v3239, 0
        %v6172 = vsel %vm664, %v3241, 0
        %6174 = vmatprep.subr.bf16.mxu0 0
        %6175 = vmatpush1.bf16.msra.mxu0 0
        %6176 = vmatprep.subr.bf16.mxu0 0
        %6177 = vmatpush1.bf16.msra.mxu0 0
        %6178 = vmatprep.subr.bf16.mxu0 0
        %6179 = vmatpush1.bf16.msra.mxu0 0
        %6180 = vmatprep.subr.bf16.mxu0 0
        %6181 = vmatpush1.bf16.msra.mxu0 0
        %6182 = vmatprep.subr.bf16.mxu0 %v3618
        %6183 = vmatpush1.bf16.msra.mxu0 %v3617
        %6184 = vmatprep.subr.bf16.mxu0 %v3616
        %6185 = vmatpush1.bf16.msra.mxu0 %v3615
        %6186 = vmatprep.subr.bf16.mxu0 %v3614
        %6187 = vmatpush1.bf16.msra.mxu0 %v3613
        %6188 = vmatprep.subr.bf16.mxu0 %v3612
        %6189 = vmatpush1.bf16.msra.mxu0 %v3611
        %6190 = vmatprep.subr.bf16.mxu0 0
        %6191 = vmatpush2.bf16.msra.mxu0 0
        %6192 = vmatprep.subr.bf16.mxu0 0
        %6193 = vmatpush2.bf16.msra.mxu0 0
        %6194 = vmatprep.subr.bf16.mxu0 0
        %6195 = vmatpush2.bf16.msra.mxu0 0
        %6196 = vmatprep.subr.bf16.mxu0 0
        %6197 = vmatpush2.bf16.msra.mxu0 0
        %6198 = vmatprep.subr.bf16.mxu0 0
        %6199 = vmatpush2.bf16.msra.mxu0 0
        %6200 = vmatprep.subr.bf16.mxu0 0
        %6201 = vmatpush2.bf16.msra.mxu0 0
        %6202 = vmatprep.subr.bf16.mxu0 0
        %6203 = vmatpush2.bf16.msra.mxu0 0
        %6204 = vmatprep.subr.bf16.mxu0 0
        %6205 = vmatpush2.bf16.msra.mxu0 0
        %6206 = vmatprep.mubr.bf16.mxu0 0
        %6207 = vmatmul.mubr.bf16.gmra.mxu0 %v6127
        %v6208 = vpop.f32.mrf.mxu0
        %v6209 = vadd.f32 0.0, %v6208
        %v6210 = vpop.f32.mrf.mxu0
        %v6211 = vadd.f32 0.0, %v6210
        %v6212 = vpop.f32.mrf.mxu0
        %v6213 = vadd.f32 0.0, %v6212
        %v6214 = vpop.f32.mrf.mxu0
        %v6215 = vadd.f32 0.0, %v6214
        %6216 = vmatprep.mubr.bf16.mxu0 0
        %6217 = vmatmul.mubr.bf16.gmra.mxu0 %v6130
        %v6218 = vpop.f32.mrf.mxu0
        %v6219 = vadd.f32 0.0, %v6218
        %v6220 = vpop.f32.mrf.mxu0
        %v6221 = vadd.f32 0.0, %v6220
        %v6222 = vpop.f32.mrf.mxu0
        %v6223 = vadd.f32 0.0, %v6222
        %v6224 = vpop.f32.mrf.mxu0
        %v6225 = vadd.f32 0.0, %v6224
        %6226 = vmatprep.mubr.bf16.mxu0 0
        %6227 = vmatmul.mubr.bf16.gmra.mxu0 %v6133
        %v6228 = vpop.f32.mrf.mxu0
        %v6229 = vadd.f32 0.0, %v6228
        %v6230 = vpop.f32.mrf.mxu0
        %v6231 = vadd.f32 0.0, %v6230
        %v6232 = vpop.f32.mrf.mxu0
        %v6233 = vadd.f32 0.0, %v6232
        %v6234 = vpop.f32.mrf.mxu0
        %v6235 = vadd.f32 0.0, %v6234
        %6236 = vmatprep.mubr.bf16.mxu0 0
        %6237 = vmatmul.mubr.bf16.gmra.mxu0 %v6136
        %v6238 = vpop.f32.mrf.mxu0
        %v6239 = vadd.f32 0.0, %v6238
        %v6240 = vpop.f32.mrf.mxu0
        %v6241 = vadd.f32 0.0, %v6240
        %v6242 = vpop.f32.mrf.mxu0
        %v6243 = vadd.f32 0.0, %v6242
        %v6244 = vpop.f32.mrf.mxu0
        %v6245 = vadd.f32 0.0, %v6244
        %6246 = vmatprep.mubr.bf16.mxu0 0
        %6247 = vmatmul.mubr.bf16.gmra.mxu0 %v6139
        %v6248 = vpop.f32.mrf.mxu0
        %v6249 = vadd.f32 0.0, %v6248
        %v6250 = vpop.f32.mrf.mxu0
        %v6251 = vadd.f32 0.0, %v6250
        %v6252 = vpop.f32.mrf.mxu0
        %v6253 = vadd.f32 0.0, %v6252
        %v6254 = vpop.f32.mrf.mxu0
        %v6255 = vadd.f32 0.0, %v6254
        %6256 = vmatprep.mubr.bf16.mxu0 0
        %6257 = vmatmul.mubr.bf16.gmra.mxu0 %v6142
        %v6258 = vpop.f32.mrf.mxu0
        %v6259 = vadd.f32 0.0, %v6258
        %v6260 = vpop.f32.mrf.mxu0
        %v6261 = vadd.f32 0.0, %v6260
        %v6262 = vpop.f32.mrf.mxu0
        %v6263 = vadd.f32 0.0, %v6262
        %v6264 = vpop.f32.mrf.mxu0
        %v6265 = vadd.f32 0.0, %v6264
        %6266 = vmatprep.mubr.bf16.mxu0 0
        %6267 = vmatmul.mubr.bf16.gmra.mxu0 %v6145
        %v6268 = vpop.f32.mrf.mxu0
        %v6269 = vadd.f32 0.0, %v6268
        %v6270 = vpop.f32.mrf.mxu0
        %v6271 = vadd.f32 0.0, %v6270
        %v6272 = vpop.f32.mrf.mxu0
        %v6273 = vadd.f32 0.0, %v6272
        %v6274 = vpop.f32.mrf.mxu0
        %v6275 = vadd.f32 0.0, %v6274
        %6276 = vmatprep.mubr.bf16.mxu0 0
        %6277 = vmatmul.mubr.bf16.gmra.mxu0 %v6148
        %v6278 = vpop.f32.mrf.mxu0
        %v6279 = vadd.f32 0.0, %v6278
        %v6280 = vpop.f32.mrf.mxu0
        %v6281 = vadd.f32 0.0, %v6280
        %v6282 = vpop.f32.mrf.mxu0
        %v6283 = vadd.f32 0.0, %v6282
        %v6284 = vpop.f32.mrf.mxu0
        %v6285 = vadd.f32 0.0, %v6284
        %6286 = vmatprep.mubr.bf16.mxu0 0
        %6287 = vmatmul.mubr.bf16.gmra.mxu0 %v6151
        %v6288 = vpop.f32.mrf.mxu0
        %v6289 = vadd.f32 0.0, %v6288
        %v6290 = vpop.f32.mrf.mxu0
        %v6291 = vadd.f32 0.0, %v6290
        %v6292 = vpop.f32.mrf.mxu0
        %v6293 = vadd.f32 0.0, %v6292
        %v6294 = vpop.f32.mrf.mxu0
        %v6295 = vadd.f32 0.0, %v6294
        %6296 = vmatprep.mubr.bf16.mxu0 0
        %6297 = vmatmul.mubr.bf16.gmra.mxu0 %v6154
        %v6298 = vpop.f32.mrf.mxu0
        %v6299 = vadd.f32 0.0, %v6298
        %v6300 = vpop.f32.mrf.mxu0
        %v6301 = vadd.f32 0.0, %v6300
        %v6302 = vpop.f32.mrf.mxu0
        %v6303 = vadd.f32 0.0, %v6302
        %v6304 = vpop.f32.mrf.mxu0
        %v6305 = vadd.f32 0.0, %v6304
        %6306 = vmatprep.mubr.bf16.mxu0 0
        %6307 = vmatmul.mubr.bf16.gmra.mxu0 %v6157
        %v6308 = vpop.f32.mrf.mxu0
        %v6309 = vadd.f32 0.0, %v6308
        %v6310 = vpop.f32.mrf.mxu0
        %v6311 = vadd.f32 0.0, %v6310
        %v6312 = vpop.f32.mrf.mxu0
        %v6313 = vadd.f32 0.0, %v6312
        %v6314 = vpop.f32.mrf.mxu0
        %v6315 = vadd.f32 0.0, %v6314
        %6316 = vmatprep.mubr.bf16.mxu0 0
        %6317 = vmatmul.mubr.bf16.gmra.mxu0 %v6160
        %v6318 = vpop.f32.mrf.mxu0
        %v6319 = vadd.f32 0.0, %v6318
        %v6320 = vpop.f32.mrf.mxu0
        %v6321 = vadd.f32 0.0, %v6320
        %v6322 = vpop.f32.mrf.mxu0
        %v6323 = vadd.f32 0.0, %v6322
        %v6324 = vpop.f32.mrf.mxu0
        %v6325 = vadd.f32 0.0, %v6324
        %6326 = vmatprep.mubr.bf16.mxu0 0
        %6327 = vmatmul.mubr.bf16.gmra.mxu0 %v6163
        %v6328 = vpop.f32.mrf.mxu0
        %v6329 = vadd.f32 0.0, %v6328
        %v6330 = vpop.f32.mrf.mxu0
        %v6331 = vadd.f32 0.0, %v6330
        %v6332 = vpop.f32.mrf.mxu0
        %v6333 = vadd.f32 0.0, %v6332
        %v6334 = vpop.f32.mrf.mxu0
        %v6335 = vadd.f32 0.0, %v6334
        %6336 = vmatprep.mubr.bf16.mxu0 0
        %6337 = vmatmul.mubr.bf16.gmra.mxu0 %v6166
        %v6338 = vpop.f32.mrf.mxu0
        %v6339 = vadd.f32 0.0, %v6338
        %v6340 = vpop.f32.mrf.mxu0
        %v6341 = vadd.f32 0.0, %v6340
        %v6342 = vpop.f32.mrf.mxu0
        %v6343 = vadd.f32 0.0, %v6342
        %v6344 = vpop.f32.mrf.mxu0
        %v6345 = vadd.f32 0.0, %v6344
        %6346 = vmatprep.mubr.bf16.mxu0 0
        %6347 = vmatmul.mubr.bf16.gmra.mxu0 %v6169
        %v6348 = vpop.f32.mrf.mxu0
        %v6349 = vadd.f32 0.0, %v6348
        %v6350 = vpop.f32.mrf.mxu0
        %v6351 = vadd.f32 0.0, %v6350
        %v6352 = vpop.f32.mrf.mxu0
        %v6353 = vadd.f32 0.0, %v6352
        %v6354 = vpop.f32.mrf.mxu0
        %v6355 = vadd.f32 0.0, %v6354
        %6356 = vmatprep.mubr.bf16.mxu0 0
        %6357 = vmatmul.mubr.bf16.gmra.mxu0 %v6172
        %v6358 = vpop.f32.mrf.mxu0
        %v6359 = vadd.f32 0.0, %v6358
        %v6360 = vpop.f32.mrf.mxu0
        %v6361 = vadd.f32 0.0, %v6360
        %v6362 = vpop.f32.mrf.mxu0
        %v6363 = vadd.f32 0.0, %v6362
        %v6364 = vpop.f32.mrf.mxu0
        %v6365 = vadd.f32 0.0, %v6364
        %6366 = vdwg.mxu0
        %v6367 = vmax.f32 %v6209, %v6211
        %6368 = vmax.xlane.f32.xlu0 %v6367
        %v6369 = vpop.xlane.xlu0 %6368
        %v6370 = vmax.f32 %v6213, %v6215
        %6371 = vmax.xlane.f32.xlu0 %v6370
        %v6372 = vpop.xlane.xlu0 %6371
        %v6373 = vmax.f32 %v6219, %v6221
        %6374 = vmax.xlane.f32.xlu0 %v6373
        %v6375 = vpop.xlane.xlu0 %6374
        %v6376 = vmax.f32 %v6223, %v6225
        %6377 = vmax.xlane.f32.xlu0 %v6376
        %v6378 = vpop.xlane.xlu0 %6377
        %v6379 = vmax.f32 %v6229, %v6231
        %6380 = vmax.xlane.f32.xlu0 %v6379
        %v6381 = vpop.xlane.xlu0 %6380
        %v6382 = vmax.f32 %v6233, %v6235
        %6383 = vmax.xlane.f32.xlu0 %v6382
        %v6384 = vpop.xlane.xlu0 %6383
        %v6385 = vmax.f32 %v6239, %v6241
        %6386 = vmax.xlane.f32.xlu0 %v6385
        %v6387 = vpop.xlane.xlu0 %6386
        %v6388 = vmax.f32 %v6243, %v6245
        %6389 = vmax.xlane.f32.xlu0 %v6388
        %v6390 = vpop.xlane.xlu0 %6389
        %v6391 = vmax.f32 %v6249, %v6251
        %6392 = vmax.xlane.f32.xlu0 %v6391
        %v6393 = vpop.xlane.xlu0 %6392
        %v6394 = vmax.f32 %v6253, %v6255
        %6395 = vmax.xlane.f32.xlu0 %v6394
        %v6396 = vpop.xlane.xlu0 %6395
        %v6397 = vmax.f32 %v6259, %v6261
        %6398 = vmax.xlane.f32.xlu0 %v6397
        %v6399 = vpop.xlane.xlu0 %6398
        %v6400 = vmax.f32 %v6263, %v6265
        %6401 = vmax.xlane.f32.xlu0 %v6400
        %v6402 = vpop.xlane.xlu0 %6401
        %v6403 = vmax.f32 %v6269, %v6271
        %6404 = vmax.xlane.f32.xlu0 %v6403
        %v6405 = vpop.xlane.xlu0 %6404
        %v6406 = vmax.f32 %v6273, %v6275
        %6407 = vmax.xlane.f32.xlu0 %v6406
        %v6408 = vpop.xlane.xlu0 %6407
        %v6409 = vmax.f32 %v6279, %v6281
        %6410 = vmax.xlane.f32.xlu0 %v6409
        %v6411 = vpop.xlane.xlu0 %6410
        %v6412 = vmax.f32 %v6283, %v6285
        %6413 = vmax.xlane.f32.xlu0 %v6412
        %v6414 = vpop.xlane.xlu0 %6413
        %v6415 = vmax.f32 %v6289, %v6291
        %6416 = vmax.xlane.f32.xlu0 %v6415
        %v6417 = vpop.xlane.xlu0 %6416
        %v6418 = vmax.f32 %v6293, %v6295
        %6419 = vmax.xlane.f32.xlu0 %v6418
        %v6420 = vpop.xlane.xlu0 %6419
        %v6421 = vmax.f32 %v6299, %v6301
        %6422 = vmax.xlane.f32.xlu0 %v6421
        %v6423 = vpop.xlane.xlu0 %6422
        %v6424 = vmax.f32 %v6303, %v6305
        %6425 = vmax.xlane.f32.xlu0 %v6424
        %v6426 = vpop.xlane.xlu0 %6425
        %v6427 = vmax.f32 %v6309, %v6311
        %6428 = vmax.xlane.f32.xlu0 %v6427
        %v6429 = vpop.xlane.xlu0 %6428
        %v6430 = vmax.f32 %v6313, %v6315
        %6431 = vmax.xlane.f32.xlu0 %v6430
        %v6432 = vpop.xlane.xlu0 %6431
        %v6433 = vmax.f32 %v6319, %v6321
        %6434 = vmax.xlane.f32.xlu0 %v6433
        %v6435 = vpop.xlane.xlu0 %6434
        %v6436 = vmax.f32 %v6323, %v6325
        %6437 = vmax.xlane.f32.xlu0 %v6436
        %v6438 = vpop.xlane.xlu0 %6437
        %v6439 = vmax.f32 %v6329, %v6331
        %6440 = vmax.xlane.f32.xlu0 %v6439
        %v6441 = vpop.xlane.xlu0 %6440
        %v6442 = vmax.f32 %v6333, %v6335
        %6443 = vmax.xlane.f32.xlu0 %v6442
        %v6444 = vpop.xlane.xlu0 %6443
        %v6445 = vmax.f32 %v6339, %v6341
        %6446 = vmax.xlane.f32.xlu0 %v6445
        %v6447 = vpop.xlane.xlu0 %6446
        %v6448 = vmax.f32 %v6343, %v6345
        %6449 = vmax.xlane.f32.xlu0 %v6448
        %v6450 = vpop.xlane.xlu0 %6449
        %v6451 = vmax.f32 %v6349, %v6351
        %6452 = vmax.xlane.f32.xlu0 %v6451
        %v6453 = vpop.xlane.xlu0 %6452
        %v6454 = vmax.f32 %v6353, %v6355
        %6455 = vmax.xlane.f32.xlu0 %v6454
        %v6456 = vpop.xlane.xlu0 %6455
        %v6457 = vmax.f32 %v6359, %v6361
        %6458 = vmax.xlane.f32.xlu0 %v6457
        %v6459 = vpop.xlane.xlu0 %6458
        %v6460 = vmax.f32 %v6363, %v6365
        %6461 = vmax.xlane.f32.xlu0 %v6460
        %v6462 = vpop.xlane.xlu0 %6461
        %v6463 = vsub.f32 %v6209, %v6369
        %v6464 = vsub.f32 %v6211, %v6369
        %v6465 = vsub.f32 %v6213, %v6372
        %v6466 = vsub.f32 %v6215, %v6372
        %v6467 = vsub.f32 %v6219, %v6375
        %v6468 = vsub.f32 %v6221, %v6375
        %v6469 = vsub.f32 %v6223, %v6378
        %v6470 = vsub.f32 %v6225, %v6378
        %v6471 = vsub.f32 %v6229, %v6381
        %v6472 = vsub.f32 %v6231, %v6381
        %v6473 = vsub.f32 %v6233, %v6384
        %v6474 = vsub.f32 %v6235, %v6384
        %v6475 = vsub.f32 %v6239, %v6387
        %v6476 = vsub.f32 %v6241, %v6387
        %v6477 = vsub.f32 %v6243, %v6390
        %v6478 = vsub.f32 %v6245, %v6390
        %v6479 = vsub.f32 %v6249, %v6393
        %v6480 = vsub.f32 %v6251, %v6393
        %v6481 = vsub.f32 %v6253, %v6396
        %v6482 = vsub.f32 %v6255, %v6396
        %v6483 = vsub.f32 %v6259, %v6399
        %v6484 = vsub.f32 %v6261, %v6399
        %v6485 = vsub.f32 %v6263, %v6402
        %v6486 = vsub.f32 %v6265, %v6402
        %v6487 = vsub.f32 %v6269, %v6405
        %v6488 = vsub.f32 %v6271, %v6405
        %v6489 = vsub.f32 %v6273, %v6408
        %v6490 = vsub.f32 %v6275, %v6408
        %v6491 = vsub.f32 %v6279, %v6411
        %v6492 = vsub.f32 %v6281, %v6411
        %v6493 = vsub.f32 %v6283, %v6414
        %v6494 = vsub.f32 %v6285, %v6414
        %v6495 = vsub.f32 %v6289, %v6417
        %v6496 = vsub.f32 %v6291, %v6417
        %v6497 = vsub.f32 %v6293, %v6420
        %v6498 = vsub.f32 %v6295, %v6420
        %v6499 = vsub.f32 %v6299, %v6423
        %v6500 = vsub.f32 %v6301, %v6423
        %v6501 = vsub.f32 %v6303, %v6426
        %v6502 = vsub.f32 %v6305, %v6426
        %v6503 = vsub.f32 %v6309, %v6429
        %v6504 = vsub.f32 %v6311, %v6429
        %v6505 = vsub.f32 %v6313, %v6432
        %v6506 = vsub.f32 %v6315, %v6432
        %v6507 = vsub.f32 %v6319, %v6435
        %v6508 = vsub.f32 %v6321, %v6435
        %v6509 = vsub.f32 %v6323, %v6438
        %v6510 = vsub.f32 %v6325, %v6438
        %v6511 = vsub.f32 %v6329, %v6441
        %v6512 = vsub.f32 %v6331, %v6441
        %v6513 = vsub.f32 %v6333, %v6444
        %v6514 = vsub.f32 %v6335, %v6444
        %v6515 = vsub.f32 %v6339, %v6447
        %v6516 = vsub.f32 %v6341, %v6447
        %v6517 = vsub.f32 %v6343, %v6450
        %v6518 = vsub.f32 %v6345, %v6450
        %v6519 = vsub.f32 %v6349, %v6453
        %v6520 = vsub.f32 %v6351, %v6453
        %v6521 = vsub.f32 %v6353, %v6456
        %v6522 = vsub.f32 %v6355, %v6456
        %v6523 = vsub.f32 %v6359, %v6459
        %v6524 = vsub.f32 %v6361, %v6459
        %v6525 = vsub.f32 %v6363, %v6462
        %v6526 = vsub.f32 %v6365, %v6462
        %v6527 = vmul.f32 %v6463, 1.442695
        %v6528 = vpow.pop %v6527
        %v6529 = vmul.f32 %v6464, 1.442695
        %v6530 = vpow.pop %v6529
        %v6531 = vmul.f32 %v6465, 1.442695
        %v6532 = vpow.pop %v6531
        %v6533 = vmul.f32 %v6466, 1.442695
        %v6534 = vpow.pop %v6533
        %v6535 = vmul.f32 %v6467, 1.442695
        %v6536 = vpow.pop %v6535
        %v6537 = vmul.f32 %v6468, 1.442695
        %v6538 = vpow.pop %v6537
        %v6539 = vmul.f32 %v6469, 1.442695
        %v6540 = vpow.pop %v6539
        %v6541 = vmul.f32 %v6470, 1.442695
        %v6542 = vpow.pop %v6541
        %v6543 = vmul.f32 %v6471, 1.442695
        %v6544 = vpow.pop %v6543
        %v6545 = vmul.f32 %v6472, 1.442695
        %v6546 = vpow.pop %v6545
        %v6547 = vmul.f32 %v6473, 1.442695
        %v6548 = vpow.pop %v6547
        %v6549 = vmul.f32 %v6474, 1.442695
        %v6550 = vpow.pop %v6549
        %v6551 = vmul.f32 %v6475, 1.442695
        %v6552 = vpow.pop %v6551
        %v6553 = vmul.f32 %v6476, 1.442695
        %v6554 = vpow.pop %v6553
        %v6555 = vmul.f32 %v6477, 1.442695
        %v6556 = vpow.pop %v6555
        %v6557 = vmul.f32 %v6478, 1.442695
        %v6558 = vpow.pop %v6557
        %v6559 = vmul.f32 %v6479, 1.442695
        %v6560 = vpow.pop %v6559
        %v6561 = vmul.f32 %v6480, 1.442695
        %v6562 = vpow.pop %v6561
        %v6563 = vmul.f32 %v6481, 1.442695
        %v6564 = vpow.pop %v6563
        %v6565 = vmul.f32 %v6482, 1.442695
        %v6566 = vpow.pop %v6565
        %v6567 = vmul.f32 %v6483, 1.442695
        %v6568 = vpow.pop %v6567
        %v6569 = vmul.f32 %v6484, 1.442695
        %v6570 = vpow.pop %v6569
        %v6571 = vmul.f32 %v6485, 1.442695
        %v6572 = vpow.pop %v6571
        %v6573 = vmul.f32 %v6486, 1.442695
        %v6574 = vpow.pop %v6573
        %v6575 = vmul.f32 %v6487, 1.442695
        %v6576 = vpow.pop %v6575
        %v6577 = vmul.f32 %v6488, 1.442695
        %v6578 = vpow.pop %v6577
        %v6579 = vmul.f32 %v6489, 1.442695
        %v6580 = vpow.pop %v6579
        %v6581 = vmul.f32 %v6490, 1.442695
        %v6582 = vpow.pop %v6581
        %v6583 = vmul.f32 %v6491, 1.442695
        %v6584 = vpow.pop %v6583
        %v6585 = vmul.f32 %v6492, 1.442695
        %v6586 = vpow.pop %v6585
        %v6587 = vmul.f32 %v6493, 1.442695
        %v6588 = vpow.pop %v6587
        %v6589 = vmul.f32 %v6494, 1.442695
        %v6590 = vpow.pop %v6589
        %v6591 = vmul.f32 %v6495, 1.442695
        %v6592 = vpow.pop %v6591
        %v6593 = vmul.f32 %v6496, 1.442695
        %v6594 = vpow.pop %v6593
        %v6595 = vmul.f32 %v6497, 1.442695
        %v6596 = vpow.pop %v6595
        %v6597 = vmul.f32 %v6498, 1.442695
        %v6598 = vpow.pop %v6597
        %v6599 = vmul.f32 %v6499, 1.442695
        %v6600 = vpow.pop %v6599
        %v6601 = vmul.f32 %v6500, 1.442695
        %v6602 = vpow.pop %v6601
        %v6603 = vmul.f32 %v6501, 1.442695
        %v6604 = vpow.pop %v6603
        %v6605 = vmul.f32 %v6502, 1.442695
        %v6606 = vpow.pop %v6605
        %v6607 = vmul.f32 %v6503, 1.442695
        %v6608 = vpow.pop %v6607
        %v6609 = vmul.f32 %v6504, 1.442695
        %v6610 = vpow.pop %v6609
        %v6611 = vmul.f32 %v6505, 1.442695
        %v6612 = vpow.pop %v6611
        %v6613 = vmul.f32 %v6506, 1.442695
        %v6614 = vpow.pop %v6613
        %v6615 = vmul.f32 %v6507, 1.442695
        %v6616 = vpow.pop %v6615
        %v6617 = vmul.f32 %v6508, 1.442695
        %v6618 = vpow.pop %v6617
        %v6619 = vmul.f32 %v6509, 1.442695
        %v6620 = vpow.pop %v6619
        %v6621 = vmul.f32 %v6510, 1.442695
        %v6622 = vpow.pop %v6621
        %v6623 = vmul.f32 %v6511, 1.442695
        %v6624 = vpow.pop %v6623
        %v6625 = vmul.f32 %v6512, 1.442695
        %v6626 = vpow.pop %v6625
        %v6627 = vmul.f32 %v6513, 1.442695
        %v6628 = vpow.pop %v6627
        %v6629 = vmul.f32 %v6514, 1.442695
        %v6630 = vpow.pop %v6629
        %v6631 = vmul.f32 %v6515, 1.442695
        %v6632 = vpow.pop %v6631
        %v6633 = vmul.f32 %v6516, 1.442695
        %v6634 = vpow.pop %v6633
        %v6635 = vmul.f32 %v6517, 1.442695
        %v6636 = vpow.pop %v6635
        %v6637 = vmul.f32 %v6518, 1.442695
        %v6638 = vpow.pop %v6637
        %v6639 = vmul.f32 %v6519, 1.442695
        %v6640 = vpow.pop %v6639
        %v6641 = vmul.f32 %v6520, 1.442695
        %v6642 = vpow.pop %v6641
        %v6643 = vmul.f32 %v6521, 1.442695
        %v6644 = vpow.pop %v6643
        %v6645 = vmul.f32 %v6522, 1.442695
        %v6646 = vpow.pop %v6645
        %v6647 = vmul.f32 %v6523, 1.442695
        %v6648 = vpow.pop %v6647
        %v6649 = vmul.f32 %v6524, 1.442695
        %v6650 = vpow.pop %v6649
        %v6651 = vmul.f32 %v6525, 1.442695
        %v6652 = vpow.pop %v6651
        %v6653 = vmul.f32 %v6526, 1.442695
        %v6654 = vpow.pop %v6653
        %v6655 = vadd.f32 %v6528, %v6530
        %6656 = vadd.xlane.f32.xlu0 %v6655
        %v6657 = vpop.xlane.xlu0 %6656
        %v6658 = vadd.f32 %v6532, %v6534
        %6659 = vadd.xlane.f32.xlu0 %v6658
        %v6660 = vpop.xlane.xlu0 %6659
        %v6661 = vadd.f32 %v6536, %v6538
        %6662 = vadd.xlane.f32.xlu0 %v6661
        %v6663 = vpop.xlane.xlu0 %6662
        %v6664 = vadd.f32 %v6540, %v6542
        %6665 = vadd.xlane.f32.xlu0 %v6664
        %v6666 = vpop.xlane.xlu0 %6665
        %v6667 = vadd.f32 %v6544, %v6546
        %6668 = vadd.xlane.f32.xlu0 %v6667
        %v6669 = vpop.xlane.xlu0 %6668
        %v6670 = vadd.f32 %v6548, %v6550
        %6671 = vadd.xlane.f32.xlu0 %v6670
        %v6672 = vpop.xlane.xlu0 %6671
        %v6673 = vadd.f32 %v6552, %v6554
        %6674 = vadd.xlane.f32.xlu0 %v6673
        %v6675 = vpop.xlane.xlu0 %6674
        %v6676 = vadd.f32 %v6556, %v6558
        %6677 = vadd.xlane.f32.xlu0 %v6676
        %v6678 = vpop.xlane.xlu0 %6677
        %v6679 = vadd.f32 %v6560, %v6562
        %6680 = vadd.xlane.f32.xlu0 %v6679
        %v6681 = vpop.xlane.xlu0 %6680
        %v6682 = vadd.f32 %v6564, %v6566
        %6683 = vadd.xlane.f32.xlu0 %v6682
        %v6684 = vpop.xlane.xlu0 %6683
        %v6685 = vadd.f32 %v6568, %v6570
        %6686 = vadd.xlane.f32.xlu0 %v6685
        %v6687 = vpop.xlane.xlu0 %6686
        %v6688 = vadd.f32 %v6572, %v6574
        %6689 = vadd.xlane.f32.xlu0 %v6688
        %v6690 = vpop.xlane.xlu0 %6689
        %v6691 = vadd.f32 %v6576, %v6578
        %6692 = vadd.xlane.f32.xlu0 %v6691
        %v6693 = vpop.xlane.xlu0 %6692
        %v6694 = vadd.f32 %v6580, %v6582
        %6695 = vadd.xlane.f32.xlu0 %v6694
        %v6696 = vpop.xlane.xlu0 %6695
        %v6697 = vadd.f32 %v6584, %v6586
        %6698 = vadd.xlane.f32.xlu0 %v6697
        %v6699 = vpop.xlane.xlu0 %6698
        %v6700 = vadd.f32 %v6588, %v6590
        %6701 = vadd.xlane.f32.xlu0 %v6700
        %v6702 = vpop.xlane.xlu0 %6701
        %v6703 = vadd.f32 %v6592, %v6594
        %6704 = vadd.xlane.f32.xlu0 %v6703
        %v6705 = vpop.xlane.xlu0 %6704
        %v6706 = vadd.f32 %v6596, %v6598
        %6707 = vadd.xlane.f32.xlu0 %v6706
        %v6708 = vpop.xlane.xlu0 %6707
        %v6709 = vadd.f32 %v6600, %v6602
        %6710 = vadd.xlane.f32.xlu0 %v6709
        %v6711 = vpop.xlane.xlu0 %6710
        %v6712 = vadd.f32 %v6604, %v6606
        %6713 = vadd.xlane.f32.xlu0 %v6712
        %v6714 = vpop.xlane.xlu0 %6713
        %v6715 = vadd.f32 %v6608, %v6610
        %6716 = vadd.xlane.f32.xlu0 %v6715
        %v6717 = vpop.xlane.xlu0 %6716
        %v6718 = vadd.f32 %v6612, %v6614
        %6719 = vadd.xlane.f32.xlu0 %v6718
        %v6720 = vpop.xlane.xlu0 %6719
        %v6721 = vadd.f32 %v6616, %v6618
        %6722 = vadd.xlane.f32.xlu0 %v6721
        %v6723 = vpop.xlane.xlu0 %6722
        %v6724 = vadd.f32 %v6620, %v6622
        %6725 = vadd.xlane.f32.xlu0 %v6724
        %v6726 = vpop.xlane.xlu0 %6725
        %v6727 = vadd.f32 %v6624, %v6626
        %6728 = vadd.xlane.f32.xlu0 %v6727
        %v6729 = vpop.xlane.xlu0 %6728
        %v6730 = vadd.f32 %v6628, %v6630
        %6731 = vadd.xlane.f32.xlu0 %v6730
        %v6732 = vpop.xlane.xlu0 %6731
        %v6733 = vadd.f32 %v6632, %v6634
        %6734 = vadd.xlane.f32.xlu0 %v6733
        %v6735 = vpop.xlane.xlu0 %6734
        %v6736 = vadd.f32 %v6636, %v6638
        %6737 = vadd.xlane.f32.xlu0 %v6736
        %v6738 = vpop.xlane.xlu0 %6737
        %v6739 = vadd.f32 %v6640, %v6642
        %6740 = vadd.xlane.f32.xlu0 %v6739
        %v6741 = vpop.xlane.xlu0 %6740
        %v6742 = vadd.f32 %v6644, %v6646
        %6743 = vadd.xlane.f32.xlu0 %v6742
        %v6744 = vpop.xlane.xlu0 %6743
        %v6745 = vadd.f32 %v6648, %v6650
        %6746 = vadd.xlane.f32.xlu0 %v6745
        %v6747 = vpop.xlane.xlu0 %6746
        %v6748 = vadd.f32 %v6652, %v6654
        %6749 = vadd.xlane.f32.xlu0 %v6748
        %v6750 = vpop.xlane.xlu0 %6749
        %v6751 = vpack.c.bf16 %v6532, %v6528
        %v6752 = vpack.c.bf16 %v6534, %v6530
        %v6753 = vpack.c.bf16 %v6540, %v6536
        %v6754 = vpack.c.bf16 %v6542, %v6538
        %v6755 = vpack.c.bf16 %v6548, %v6544
        %v6756 = vpack.c.bf16 %v6550, %v6546
        %v6757 = vpack.c.bf16 %v6556, %v6552
        %v6758 = vpack.c.bf16 %v6558, %v6554
        %v6759 = vpack.c.bf16 %v6564, %v6560
        %v6760 = vpack.c.bf16 %v6566, %v6562
        %v6761 = vpack.c.bf16 %v6572, %v6568
        %v6762 = vpack.c.bf16 %v6574, %v6570
        %v6763 = vpack.c.bf16 %v6580, %v6576
        %v6764 = vpack.c.bf16 %v6582, %v6578
        %v6765 = vpack.c.bf16 %v6588, %v6584
        %v6766 = vpack.c.bf16 %v6590, %v6586
        %v6767 = vpack.c.bf16 %v6596, %v6592
        %v6768 = vpack.c.bf16 %v6598, %v6594
        %v6769 = vpack.c.bf16 %v6604, %v6600
        %v6770 = vpack.c.bf16 %v6606, %v6602
        %v6771 = vpack.c.bf16 %v6612, %v6608
        %v6772 = vpack.c.bf16 %v6614, %v6610
        %v6773 = vpack.c.bf16 %v6620, %v6616
        %v6774 = vpack.c.bf16 %v6622, %v6618
        %v6775 = vpack.c.bf16 %v6628, %v6624
        %v6776 = vpack.c.bf16 %v6630, %v6626
        %v6777 = vpack.c.bf16 %v6636, %v6632
        %v6778 = vpack.c.bf16 %v6638, %v6634
        %v6779 = vpack.c.bf16 %v6644, %v6640
        %v6780 = vpack.c.bf16 %v6646, %v6642
        %v6781 = vpack.c.bf16 %v6652, %v6648
        %v6782 = vpack.c.bf16 %v6654, %v6650
        %6783 = vmatprep.subr.bf16.mxu0 0
        %6784 = vmatpush1.bf16.msra.mxu0 %v3847
        %6785 = vmatprep.subr.bf16.mxu0 0
        %6786 = vmatpush1.bf16.msra.mxu0 %v3845
        %6787 = vmatprep.subr.bf16.mxu0 0
        %6788 = vmatpush1.bf16.msra.mxu0 %v3843
        %6789 = vmatprep.subr.bf16.mxu0 0
        %6790 = vmatpush1.bf16.msra.mxu0 %v3841
        %6791 = vmatprep.subr.bf16.mxu0 0
        %6792 = vmatpush1.bf16.msra.mxu0 %v3839
        %6793 = vmatprep.subr.bf16.mxu0 0
        %6794 = vmatpush1.bf16.msra.mxu0 %v3837
        %6795 = vmatprep.subr.bf16.mxu0 0
        %6796 = vmatpush1.bf16.msra.mxu0 %v3835
        %6797 = vmatprep.subr.bf16.mxu0 0
        %6798 = vmatpush1.bf16.msra.mxu0 %v3833
        %6799 = vmatprep.subr.bf16.mxu0 0
        %6800 = vmatpush2.bf16.msra.mxu0 %v3863
        %6801 = vmatprep.subr.bf16.mxu0 0
        %6802 = vmatpush2.bf16.msra.mxu0 %v3861
        %6803 = vmatprep.subr.bf16.mxu0 0
        %6804 = vmatpush2.bf16.msra.mxu0 %v3859
        %6805 = vmatprep.subr.bf16.mxu0 0
        %6806 = vmatpush2.bf16.msra.mxu0 %v3857
        %6807 = vmatprep.subr.bf16.mxu0 0
        %6808 = vmatpush2.bf16.msra.mxu0 %v3855
        %6809 = vmatprep.subr.bf16.mxu0 0
        %6810 = vmatpush2.bf16.msra.mxu0 %v3853
        %6811 = vmatprep.subr.bf16.mxu0 0
        %6812 = vmatpush2.bf16.msra.mxu0 %v3851
        %6813 = vmatprep.subr.bf16.mxu0 0
        %6814 = vmatpush2.bf16.msra.mxu0 %v3849
        %6815 = vmatprep.mubr.bf16.mxu0 %v6752
        %6816 = vmatmul.mubr.bf16.gmra.mxu0 %v6751
        %v6817 = vpop.f32.mrf.mxu0
        %v6818 = vadd.f32 0.0, %v6817
        %v6819 = vpop.f32.mrf.mxu0
        %v6820 = vpop.f32.mrf.mxu0
        %v6821 = vadd.f32 0.0, %v6820
        %v6822 = vpop.f32.mrf.mxu0
        %6823 = vmatprep.mubr.bf16.mxu0 %v6754
        %6824 = vmatmul.mubr.bf16.gmra.mxu0 %v6753
        %v6825 = vpop.f32.mrf.mxu0
        %v6826 = vadd.f32 0.0, %v6825
        %v6827 = vpop.f32.mrf.mxu0
        %v6828 = vpop.f32.mrf.mxu0
        %v6829 = vadd.f32 0.0, %v6828
        %v6830 = vpop.f32.mrf.mxu0
        %6831 = vmatprep.mubr.bf16.mxu0 %v6756
        %6832 = vmatmul.mubr.bf16.gmra.mxu0 %v6755
        %v6833 = vpop.f32.mrf.mxu0
        %v6834 = vadd.f32 0.0, %v6833
        %v6835 = vpop.f32.mrf.mxu0
        %v6836 = vpop.f32.mrf.mxu0
        %v6837 = vadd.f32 0.0, %v6836
        %v6838 = vpop.f32.mrf.mxu0
        %6839 = vmatprep.mubr.bf16.mxu0 %v6758
        %6840 = vmatmul.mubr.bf16.gmra.mxu0 %v6757
        %v6841 = vpop.f32.mrf.mxu0
        %v6842 = vadd.f32 0.0, %v6841
        %v6843 = vpop.f32.mrf.mxu0
        %v6844 = vpop.f32.mrf.mxu0
        %v6845 = vadd.f32 0.0, %v6844
        %v6846 = vpop.f32.mrf.mxu0
        %6847 = vmatprep.mubr.bf16.mxu0 %v6760
        %6848 = vmatmul.mubr.bf16.gmra.mxu0 %v6759
        %v6849 = vpop.f32.mrf.mxu0
        %v6850 = vadd.f32 0.0, %v6849
        %v6851 = vpop.f32.mrf.mxu0
        %v6852 = vpop.f32.mrf.mxu0
        %v6853 = vadd.f32 0.0, %v6852
        %v6854 = vpop.f32.mrf.mxu0
        %6855 = vmatprep.mubr.bf16.mxu0 %v6762
        %6856 = vmatmul.mubr.bf16.gmra.mxu0 %v6761
        %v6857 = vpop.f32.mrf.mxu0
        %v6858 = vadd.f32 0.0, %v6857
        %v6859 = vpop.f32.mrf.mxu0
        %v6860 = vpop.f32.mrf.mxu0
        %v6861 = vadd.f32 0.0, %v6860
        %v6862 = vpop.f32.mrf.mxu0
        %6863 = vmatprep.mubr.bf16.mxu0 %v6764
        %6864 = vmatmul.mubr.bf16.gmra.mxu0 %v6763
        %v6865 = vpop.f32.mrf.mxu0
        %v6866 = vadd.f32 0.0, %v6865
        %v6867 = vpop.f32.mrf.mxu0
        %v6868 = vpop.f32.mrf.mxu0
        %v6869 = vadd.f32 0.0, %v6868
        %v6870 = vpop.f32.mrf.mxu0
        %6871 = vmatprep.mubr.bf16.mxu0 %v6766
        %6872 = vmatmul.mubr.bf16.gmra.mxu0 %v6765
        %v6873 = vpop.f32.mrf.mxu0
        %v6874 = vadd.f32 0.0, %v6873
        %v6875 = vpop.f32.mrf.mxu0
        %v6876 = vpop.f32.mrf.mxu0
        %v6877 = vadd.f32 0.0, %v6876
        %v6878 = vpop.f32.mrf.mxu0
        %6879 = vmatprep.mubr.bf16.mxu0 %v6768
        %6880 = vmatmul.mubr.bf16.gmra.mxu0 %v6767
        %v6881 = vpop.f32.mrf.mxu0
        %v6882 = vadd.f32 0.0, %v6881
        %v6883 = vpop.f32.mrf.mxu0
        %v6884 = vpop.f32.mrf.mxu0
        %v6885 = vadd.f32 0.0, %v6884
        %v6886 = vpop.f32.mrf.mxu0
        %6887 = vmatprep.mubr.bf16.mxu0 %v6770
        %6888 = vmatmul.mubr.bf16.gmra.mxu0 %v6769
        %v6889 = vpop.f32.mrf.mxu0
        %v6890 = vadd.f32 0.0, %v6889
        %v6891 = vpop.f32.mrf.mxu0
        %v6892 = vpop.f32.mrf.mxu0
        %v6893 = vadd.f32 0.0, %v6892
        %v6894 = vpop.f32.mrf.mxu0
        %6895 = vmatprep.mubr.bf16.mxu0 %v6772
        %6896 = vmatmul.mubr.bf16.gmra.mxu0 %v6771
        %v6897 = vpop.f32.mrf.mxu0
        %v6898 = vadd.f32 0.0, %v6897
        %v6899 = vpop.f32.mrf.mxu0
        %v6900 = vpop.f32.mrf.mxu0
        %v6901 = vadd.f32 0.0, %v6900
        %v6902 = vpop.f32.mrf.mxu0
        %6903 = vmatprep.mubr.bf16.mxu0 %v6774
        %6904 = vmatmul.mubr.bf16.gmra.mxu0 %v6773
        %v6905 = vpop.f32.mrf.mxu0
        %v6906 = vadd.f32 0.0, %v6905
        %v6907 = vpop.f32.mrf.mxu0
        %v6908 = vpop.f32.mrf.mxu0
        %v6909 = vadd.f32 0.0, %v6908
        %v6910 = vpop.f32.mrf.mxu0
        %6911 = vmatprep.mubr.bf16.mxu0 %v6776
        %6912 = vmatmul.mubr.bf16.gmra.mxu0 %v6775
        %v6913 = vpop.f32.mrf.mxu0
        %v6914 = vadd.f32 0.0, %v6913
        %v6915 = vpop.f32.mrf.mxu0
        %v6916 = vpop.f32.mrf.mxu0
        %v6917 = vadd.f32 0.0, %v6916
        %v6918 = vpop.f32.mrf.mxu0
        %6919 = vmatprep.mubr.bf16.mxu0 %v6778
        %6920 = vmatmul.mubr.bf16.gmra.mxu0 %v6777
        %v6921 = vpop.f32.mrf.mxu0
        %v6922 = vadd.f32 0.0, %v6921
        %v6923 = vpop.f32.mrf.mxu0
        %v6924 = vpop.f32.mrf.mxu0
        %v6925 = vadd.f32 0.0, %v6924
        %v6926 = vpop.f32.mrf.mxu0
        %6927 = vmatprep.mubr.bf16.mxu0 %v6780
        %6928 = vmatmul.mubr.bf16.gmra.mxu0 %v6779
        %v6929 = vpop.f32.mrf.mxu0
        %v6930 = vadd.f32 0.0, %v6929
        %v6931 = vpop.f32.mrf.mxu0
        %v6932 = vpop.f32.mrf.mxu0
        %v6933 = vadd.f32 0.0, %v6932
        %v6934 = vpop.f32.mrf.mxu0
        %6935 = vmatprep.mubr.bf16.mxu0 %v6782
        %6936 = vmatmul.mubr.bf16.gmra.mxu0 %v6781
        %v6937 = vpop.f32.mrf.mxu0
        %v6938 = vadd.f32 0.0, %v6937
        %v6939 = vpop.f32.mrf.mxu0
        %v6940 = vpop.f32.mrf.mxu0
        %v6941 = vadd.f32 0.0, %v6940
        %v6942 = vpop.f32.mrf.mxu0
        %6943 = vdwg.mxu0
        %v6944 = vrcp.pop %v6657
        %v6945 = vrcp.pop %v6660
        %v6946 = vrcp.pop %v6663
        %v6947 = vrcp.pop %v6666
        %v6948 = vrcp.pop %v6669
        %v6949 = vrcp.pop %v6672
        %v6950 = vrcp.pop %v6675
        %v6951 = vrcp.pop %v6678
        %v6952 = vrcp.pop %v6681
        %v6953 = vrcp.pop %v6684
        %v6954 = vrcp.pop %v6687
        %v6955 = vrcp.pop %v6690
        %v6956 = vrcp.pop %v6693
        %v6957 = vrcp.pop %v6696
        %v6958 = vrcp.pop %v6699
        %v6959 = vrcp.pop %v6702
        %v6960 = vrcp.pop %v6705
        %v6961 = vrcp.pop %v6708
        %v6962 = vrcp.pop %v6711
        %v6963 = vrcp.pop %v6714
        %v6964 = vrcp.pop %v6717
        %v6965 = vrcp.pop %v6720
        %v6966 = vrcp.pop %v6723
        %v6967 = vrcp.pop %v6726
        %v6968 = vrcp.pop %v6729
        %v6969 = vrcp.pop %v6732
        %v6970 = vrcp.pop %v6735
        %v6971 = vrcp.pop %v6738
        %v6972 = vrcp.pop %v6741
        %v6973 = vrcp.pop %v6744
        %v6974 = vrcp.pop %v6747
        %v6975 = vrcp.pop %v6750
        %v6976 = vmul.f32 %v6818, %v6944
        %v6977 = vmul.f32 %v6821, %v6945
        %v6978 = vmul.f32 %v6826, %v6946
        %v6979 = vmul.f32 %v6829, %v6947
        %v6980 = vmul.f32 %v6834, %v6948
        %v6981 = vmul.f32 %v6837, %v6949
        %v6982 = vmul.f32 %v6842, %v6950
        %v6983 = vmul.f32 %v6845, %v6951
        %v6984 = vmul.f32 %v6850, %v6952
        %v6985 = vmul.f32 %v6853, %v6953
        %v6986 = vmul.f32 %v6858, %v6954
        %v6987 = vmul.f32 %v6861, %v6955
        %v6988 = vmul.f32 %v6866, %v6956
        %v6989 = vmul.f32 %v6869, %v6957
        %v6990 = vmul.f32 %v6874, %v6958
        %v6991 = vmul.f32 %v6877, %v6959
        %v6992 = vmul.f32 %v6882, %v6960
        %v6993 = vmul.f32 %v6885, %v6961
        %v6994 = vmul.f32 %v6890, %v6962
        %v6995 = vmul.f32 %v6893, %v6963
        %v6996 = vmul.f32 %v6898, %v6964
        %v6997 = vmul.f32 %v6901, %v6965
        %v6998 = vmul.f32 %v6906, %v6966
        %v6999 = vmul.f32 %v6909, %v6967
        %v7000 = vmul.f32 %v6914, %v6968
        %v7001 = vmul.f32 %v6917, %v6969
        %v7002 = vmul.f32 %v6922, %v6970
        %v7003 = vmul.f32 %v6925, %v6971
        %v7004 = vmul.f32 %v6930, %v6972
        %v7005 = vmul.f32 %v6933, %v6973
        %v7006 = vmul.f32 %v6938, %v6974
        %v7007 = vmul.f32 %v6941, %v6975
        %v7008 = vpack.c.bf16 %v6977, %v6976
        %v7009 = vpack.c.bf16 %v6979, %v6978
        %v7010 = vpack.c.bf16 %v6981, %v6980
        %v7011 = vpack.c.bf16 %v6983, %v6982
        %v7012 = vpack.c.bf16 %v6985, %v6984
        %v7013 = vpack.c.bf16 %v6987, %v6986
        %v7014 = vpack.c.bf16 %v6989, %v6988
        %v7015 = vpack.c.bf16 %v6991, %v6990
        %v7016 = vpack.c.bf16 %v6993, %v6992
        %v7017 = vpack.c.bf16 %v6995, %v6994
        %v7018 = vpack.c.bf16 %v6997, %v6996
        %v7019 = vpack.c.bf16 %v6999, %v6998
        %v7020 = vpack.c.bf16 %v7001, %v7000
        %v7021 = vpack.c.bf16 %v7003, %v7002
        %v7022 = vpack.c.bf16 %v7005, %v7004
        %v7023 = vpack.c.bf16 %v7007, %v7006
        %v7040 = vunpack.c.l.b16 %v7008
        %v7041 = vunpack.c.h.b16 %v7008
        %v7042 = vunpack.c.l.b16 %v7009
        %v7043 = vunpack.c.h.b16 %v7009
        %v7044 = vunpack.c.l.b16 %v7010
        %v7045 = vunpack.c.h.b16 %v7010
        %v7046 = vunpack.c.l.b16 %v7011
        %v7047 = vunpack.c.h.b16 %v7011
        %v7048 = vunpack.c.l.b16 %v7012
        %v7049 = vunpack.c.h.b16 %v7012
        %v7050 = vunpack.c.l.b16 %v7013
        %v7051 = vunpack.c.h.b16 %v7013
        %v7052 = vunpack.c.l.b16 %v7014
        %v7053 = vunpack.c.h.b16 %v7014
        %v7054 = vunpack.c.l.b16 %v7015
        %v7055 = vunpack.c.h.b16 %v7015
        %v7056 = vunpack.c.l.b16 %v7016
        %v7057 = vunpack.c.h.b16 %v7016
        %v7058 = vunpack.c.l.b16 %v7017
        %v7059 = vunpack.c.h.b16 %v7017
        %v7060 = vunpack.c.l.b16 %v7018
        %v7061 = vunpack.c.h.b16 %v7018
        %v7062 = vunpack.c.l.b16 %v7019
        %v7063 = vunpack.c.h.b16 %v7019
        %v7064 = vunpack.c.l.b16 %v7020
        %v7065 = vunpack.c.h.b16 %v7020
        %v7066 = vunpack.c.l.b16 %v7021
        %v7067 = vunpack.c.h.b16 %v7021
        %v7068 = vunpack.c.l.b16 %v7022
        %v7069 = vunpack.c.h.b16 %v7022
        %v7070 = vunpack.c.l.b16 %v7023
        %v7071 = vunpack.c.h.b16 %v7023
        %v7072 = vpack.c.b16 %v7040, %v7040
        %v7073 = vpack.c.b16 %v7041, %v7041
        %v7074 = vpack.c.b16 %v7042, %v7042
        %v7075 = vpack.c.b16 %v7043, %v7043
        %v7076 = vpack.c.b16 %v7044, %v7044
        %v7077 = vpack.c.b16 %v7045, %v7045
        %v7078 = vpack.c.b16 %v7046, %v7046
        %v7079 = vpack.c.b16 %v7047, %v7047
        %v7080 = vpack.c.b16 %v7048, %v7048
        %v7081 = vpack.c.b16 %v7049, %v7049
        %v7082 = vpack.c.b16 %v7050, %v7050
        %v7083 = vpack.c.b16 %v7051, %v7051
        %v7084 = vpack.c.b16 %v7052, %v7052
        %v7085 = vpack.c.b16 %v7053, %v7053
        %v7086 = vpack.c.b16 %v7054, %v7054
        %v7087 = vpack.c.b16 %v7055, %v7055
        %v7088 = vpack.c.b16 %v7056, %v7056
        %v7089 = vpack.c.b16 %v7057, %v7057
        %v7090 = vpack.c.b16 %v7058, %v7058
        %v7091 = vpack.c.b16 %v7059, %v7059
        %v7092 = vpack.c.b16 %v7060, %v7060
        %v7093 = vpack.c.b16 %v7061, %v7061
        %v7094 = vpack.c.b16 %v7062, %v7062
        %v7095 = vpack.c.b16 %v7063, %v7063
        %v7096 = vpack.c.b16 %v7064, %v7064
        %v7097 = vpack.c.b16 %v7065, %v7065
        %v7098 = vpack.c.b16 %v7066, %v7066
        %v7099 = vpack.c.b16 %v7067, %v7067
        %v7100 = vpack.c.b16 %v7068, %v7068
        %v7101 = vpack.c.b16 %v7069, %v7069
        %v7102 = vpack.c.b16 %v7070, %v7070
        %v7103 = vpack.c.b16 %v7071, %v7071
        %7136 = vst.msk [vmem:[#allocation2 + $0x4] sm:$0xf] %vm4874, %v7072
        %7137 = vst.msk [vmem:[#allocation2 + $0xc] sm:$0xf] %vm4874, %v7073
        %7138 = vst.msk [vmem:[#allocation2 + $0x14] sm:$0xf] %vm4874, %v7074
        %7139 = vst.msk [vmem:[#allocation2 + $0x1c] sm:$0xf] %vm4874, %v7075
        %7140 = vst.msk [vmem:[#allocation2 + $0x24] sm:$0xf] %vm4874, %v7076
        %7141 = vst.msk [vmem:[#allocation2 + $0x2c] sm:$0xf] %vm4874, %v7077
        %7142 = vst.msk [vmem:[#allocation2 + $0x34] sm:$0xf] %vm4874, %v7078
        %7143 = vst.msk [vmem:[#allocation2 + $0x3c] sm:$0xf] %vm4874, %v7079
        %7144 = vst.msk [vmem:[#allocation2 + $0x44] sm:$0xf] %vm4874, %v7080
        %7145 = vst.msk [vmem:[#allocation2 + $0x4c] sm:$0xf] %vm4874, %v7081
        %7146 = vst.msk [vmem:[#allocation2 + $0x54] sm:$0xf] %vm4874, %v7082
        %7147 = vst.msk [vmem:[#allocation2 + $0x5c] sm:$0xf] %vm4874, %v7083
        %7148 = vst.msk [vmem:[#allocation2 + $0x64] sm:$0xf] %vm4874, %v7084
        %7149 = vst.msk [vmem:[#allocation2 + $0x6c] sm:$0xf] %vm4874, %v7085
        %7150 = vst.msk [vmem:[#allocation2 + $0x74] sm:$0xf] %vm4874, %v7086
        %7151 = vst.msk [vmem:[#allocation2 + $0x7c] sm:$0xf] %vm4874, %v7087
        %7152 = vst.msk [vmem:[#allocation2 + $0x84] sm:$0xf] %vm4874, %v7088
        %7153 = vst.msk [vmem:[#allocation2 + $0x8c] sm:$0xf] %vm4874, %v7089
        %7154 = vst.msk [vmem:[#allocation2 + $0x94] sm:$0xf] %vm4874, %v7090
        %7155 = vst.msk [vmem:[#allocation2 + $0x9c] sm:$0xf] %vm4874, %v7091
        %7156 = vst.msk [vmem:[#allocation2 + $0xa4] sm:$0xf] %vm4874, %v7092
        %7157 = vst.msk [vmem:[#allocation2 + $0xac] sm:$0xf] %vm4874, %v7093
        %7158 = vst.msk [vmem:[#allocation2 + $0xb4] sm:$0xf] %vm4874, %v7094
        %7159 = vst.msk [vmem:[#allocation2 + $0xbc] sm:$0xf] %vm4874, %v7095
        %7160 = vst.msk [vmem:[#allocation2 + $0xc4] sm:$0xf] %vm4874, %v7096
        %7161 = vst.msk [vmem:[#allocation2 + $0xcc] sm:$0xf] %vm4874, %v7097
        %7162 = vst.msk [vmem:[#allocation2 + $0xd4] sm:$0xf] %vm4874, %v7098
        %7163 = vst.msk [vmem:[#allocation2 + $0xdc] sm:$0xf] %vm4874, %v7099
        %7164 = vst.msk [vmem:[#allocation2 + $0xe4] sm:$0xf] %vm4874, %v7100
        %7165 = vst.msk [vmem:[#allocation2 + $0xec] sm:$0xf] %vm4874, %v7101
        %7166 = vst.msk [vmem:[#allocation2 + $0xf4] sm:$0xf] %vm4874, %v7102
        %7167 = vst.msk [vmem:[#allocation2 + $0xfc] sm:$0xf] %vm4874, %v7103
        %7184 = vrot.lane.b32.xlu0 %v3211, 64
        %v7185 = vpop.permute.xlu0 %7184
        %7186 = vrot.lane.b32.xlu0 %v3213, 64
        %v7187 = vpop.permute.xlu0 %7186
        %7188 = vrot.lane.b32.xlu0 %v3215, 64
        %v7189 = vpop.permute.xlu0 %7188
        %7190 = vrot.lane.b32.xlu0 %v3217, 64
        %v7191 = vpop.permute.xlu0 %7190
        %7192 = vrot.lane.b32.xlu0 %v3219, 64
        %v7193 = vpop.permute.xlu0 %7192
        %7194 = vrot.lane.b32.xlu0 %v3221, 64
        %v7195 = vpop.permute.xlu0 %7194
        %7196 = vrot.lane.b32.xlu0 %v3223, 64
        %v7197 = vpop.permute.xlu0 %7196
        %7198 = vrot.lane.b32.xlu0 %v3225, 64
        %v7199 = vpop.permute.xlu0 %7198
        %7200 = vrot.lane.b32.xlu0 %v3227, 64
        %v7201 = vpop.permute.xlu0 %7200
        %7202 = vrot.lane.b32.xlu0 %v3229, 64
        %v7203 = vpop.permute.xlu0 %7202
        %7204 = vrot.lane.b32.xlu0 %v3231, 64
        %v7205 = vpop.permute.xlu0 %7204
        %7206 = vrot.lane.b32.xlu0 %v3233, 64
        %v7207 = vpop.permute.xlu0 %7206
        %7208 = vrot.lane.b32.xlu0 %v3235, 64
        %v7209 = vpop.permute.xlu0 %7208
        %7210 = vrot.lane.b32.xlu0 %v3237, 64
        %v7211 = vpop.permute.xlu0 %7210
        %7212 = vrot.lane.b32.xlu0 %v3239, 64
        %v7213 = vpop.permute.xlu0 %7212
        %7214 = vrot.lane.b32.xlu0 %v3241, 64
        %v7215 = vpop.permute.xlu0 %7214
        %v7217 = vsel %vm664, %v7185, 0
        %v7220 = vsel %vm664, %v7187, 0
        %v7223 = vsel %vm664, %v7189, 0
        %v7226 = vsel %vm664, %v7191, 0
        %v7229 = vsel %vm664, %v7193, 0
        %v7232 = vsel %vm664, %v7195, 0
        %v7235 = vsel %vm664, %v7197, 0
        %v7238 = vsel %vm664, %v7199, 0
        %v7241 = vsel %vm664, %v7201, 0
        %v7244 = vsel %vm664, %v7203, 0
        %v7247 = vsel %vm664, %v7205, 0
        %v7250 = vsel %vm664, %v7207, 0
        %v7253 = vsel %vm664, %v7209, 0
        %v7256 = vsel %vm664, %v7211, 0
        %v7259 = vsel %vm664, %v7213, 0
        %v7262 = vsel %vm664, %v7215, 0
        %7264 = vmatprep.subr.bf16.mxu0 0
        %7265 = vmatpush1.bf16.msra.mxu0 0
        %7266 = vmatprep.subr.bf16.mxu0 0
        %7267 = vmatpush1.bf16.msra.mxu0 0
        %7268 = vmatprep.subr.bf16.mxu0 0
        %7269 = vmatpush1.bf16.msra.mxu0 0
        %7270 = vmatprep.subr.bf16.mxu0 0
        %7271 = vmatpush1.bf16.msra.mxu0 0
        %7272 = vmatprep.subr.bf16.mxu0 %v3626
        %7273 = vmatpush1.bf16.msra.mxu0 %v3625
        %7274 = vmatprep.subr.bf16.mxu0 %v3624
        %7275 = vmatpush1.bf16.msra.mxu0 %v3623
        %7276 = vmatprep.subr.bf16.mxu0 %v3622
        %7277 = vmatpush1.bf16.msra.mxu0 %v3621
        %7278 = vmatprep.subr.bf16.mxu0 %v3620
        %7279 = vmatpush1.bf16.msra.mxu0 %v3619
        %7280 = vmatprep.subr.bf16.mxu0 0
        %7281 = vmatpush2.bf16.msra.mxu0 0
        %7282 = vmatprep.subr.bf16.mxu0 0
        %7283 = vmatpush2.bf16.msra.mxu0 0
        %7284 = vmatprep.subr.bf16.mxu0 0
        %7285 = vmatpush2.bf16.msra.mxu0 0
        %7286 = vmatprep.subr.bf16.mxu0 0
        %7287 = vmatpush2.bf16.msra.mxu0 0
        %7288 = vmatprep.subr.bf16.mxu0 0
        %7289 = vmatpush2.bf16.msra.mxu0 0
        %7290 = vmatprep.subr.bf16.mxu0 0
        %7291 = vmatpush2.bf16.msra.mxu0 0
        %7292 = vmatprep.subr.bf16.mxu0 0
        %7293 = vmatpush2.bf16.msra.mxu0 0
        %7294 = vmatprep.subr.bf16.mxu0 0
        %7295 = vmatpush2.bf16.msra.mxu0 0
        %7296 = vmatprep.mubr.bf16.mxu0 0
        %7297 = vmatmul.mubr.bf16.gmra.mxu0 %v7217
        %v7298 = vpop.f32.mrf.mxu0
        %v7299 = vadd.f32 0.0, %v7298
        %v7300 = vpop.f32.mrf.mxu0
        %v7301 = vadd.f32 0.0, %v7300
        %v7302 = vpop.f32.mrf.mxu0
        %v7303 = vadd.f32 0.0, %v7302
        %v7304 = vpop.f32.mrf.mxu0
        %v7305 = vadd.f32 0.0, %v7304
        %7306 = vmatprep.mubr.bf16.mxu0 0
        %7307 = vmatmul.mubr.bf16.gmra.mxu0 %v7220
        %v7308 = vpop.f32.mrf.mxu0
        %v7309 = vadd.f32 0.0, %v7308
        %v7310 = vpop.f32.mrf.mxu0
        %v7311 = vadd.f32 0.0, %v7310
        %v7312 = vpop.f32.mrf.mxu0
        %v7313 = vadd.f32 0.0, %v7312
        %v7314 = vpop.f32.mrf.mxu0
        %v7315 = vadd.f32 0.0, %v7314
        %7316 = vmatprep.mubr.bf16.mxu0 0
        %7317 = vmatmul.mubr.bf16.gmra.mxu0 %v7223
        %v7318 = vpop.f32.mrf.mxu0
        %v7319 = vadd.f32 0.0, %v7318
        %v7320 = vpop.f32.mrf.mxu0
        %v7321 = vadd.f32 0.0, %v7320
        %v7322 = vpop.f32.mrf.mxu0
        %v7323 = vadd.f32 0.0, %v7322
        %v7324 = vpop.f32.mrf.mxu0
        %v7325 = vadd.f32 0.0, %v7324
        %7326 = vmatprep.mubr.bf16.mxu0 0
        %7327 = vmatmul.mubr.bf16.gmra.mxu0 %v7226
        %v7328 = vpop.f32.mrf.mxu0
        %v7329 = vadd.f32 0.0, %v7328
        %v7330 = vpop.f32.mrf.mxu0
        %v7331 = vadd.f32 0.0, %v7330
        %v7332 = vpop.f32.mrf.mxu0
        %v7333 = vadd.f32 0.0, %v7332
        %v7334 = vpop.f32.mrf.mxu0
        %v7335 = vadd.f32 0.0, %v7334
        %7336 = vmatprep.mubr.bf16.mxu0 0
        %7337 = vmatmul.mubr.bf16.gmra.mxu0 %v7229
        %v7338 = vpop.f32.mrf.mxu0
        %v7339 = vadd.f32 0.0, %v7338
        %v7340 = vpop.f32.mrf.mxu0
        %v7341 = vadd.f32 0.0, %v7340
        %v7342 = vpop.f32.mrf.mxu0
        %v7343 = vadd.f32 0.0, %v7342
        %v7344 = vpop.f32.mrf.mxu0
        %v7345 = vadd.f32 0.0, %v7344
        %7346 = vmatprep.mubr.bf16.mxu0 0
        %7347 = vmatmul.mubr.bf16.gmra.mxu0 %v7232
        %v7348 = vpop.f32.mrf.mxu0
        %v7349 = vadd.f32 0.0, %v7348
        %v7350 = vpop.f32.mrf.mxu0
        %v7351 = vadd.f32 0.0, %v7350
        %v7352 = vpop.f32.mrf.mxu0
        %v7353 = vadd.f32 0.0, %v7352
        %v7354 = vpop.f32.mrf.mxu0
        %v7355 = vadd.f32 0.0, %v7354
        %7356 = vmatprep.mubr.bf16.mxu0 0
        %7357 = vmatmul.mubr.bf16.gmra.mxu0 %v7235
        %v7358 = vpop.f32.mrf.mxu0
        %v7359 = vadd.f32 0.0, %v7358
        %v7360 = vpop.f32.mrf.mxu0
        %v7361 = vadd.f32 0.0, %v7360
        %v7362 = vpop.f32.mrf.mxu0
        %v7363 = vadd.f32 0.0, %v7362
        %v7364 = vpop.f32.mrf.mxu0
        %v7365 = vadd.f32 0.0, %v7364
        %7366 = vmatprep.mubr.bf16.mxu0 0
        %7367 = vmatmul.mubr.bf16.gmra.mxu0 %v7238
        %v7368 = vpop.f32.mrf.mxu0
        %v7369 = vadd.f32 0.0, %v7368
        %v7370 = vpop.f32.mrf.mxu0
        %v7371 = vadd.f32 0.0, %v7370
        %v7372 = vpop.f32.mrf.mxu0
        %v7373 = vadd.f32 0.0, %v7372
        %v7374 = vpop.f32.mrf.mxu0
        %v7375 = vadd.f32 0.0, %v7374
        %7376 = vmatprep.mubr.bf16.mxu0 0
        %7377 = vmatmul.mubr.bf16.gmra.mxu0 %v7241
        %v7378 = vpop.f32.mrf.mxu0
        %v7379 = vadd.f32 0.0, %v7378
        %v7380 = vpop.f32.mrf.mxu0
        %v7381 = vadd.f32 0.0, %v7380
        %v7382 = vpop.f32.mrf.mxu0
        %v7383 = vadd.f32 0.0, %v7382
        %v7384 = vpop.f32.mrf.mxu0
        %v7385 = vadd.f32 0.0, %v7384
        %7386 = vmatprep.mubr.bf16.mxu0 0
        %7387 = vmatmul.mubr.bf16.gmra.mxu0 %v7244
        %v7388 = vpop.f32.mrf.mxu0
        %v7389 = vadd.f32 0.0, %v7388
        %v7390 = vpop.f32.mrf.mxu0
        %v7391 = vadd.f32 0.0, %v7390
        %v7392 = vpop.f32.mrf.mxu0
        %v7393 = vadd.f32 0.0, %v7392
        %v7394 = vpop.f32.mrf.mxu0
        %v7395 = vadd.f32 0.0, %v7394
        %7396 = vmatprep.mubr.bf16.mxu0 0
        %7397 = vmatmul.mubr.bf16.gmra.mxu0 %v7247
        %v7398 = vpop.f32.mrf.mxu0
        %v7399 = vadd.f32 0.0, %v7398
        %v7400 = vpop.f32.mrf.mxu0
        %v7401 = vadd.f32 0.0, %v7400
        %v7402 = vpop.f32.mrf.mxu0
        %v7403 = vadd.f32 0.0, %v7402
        %v7404 = vpop.f32.mrf.mxu0
        %v7405 = vadd.f32 0.0, %v7404
        %7406 = vmatprep.mubr.bf16.mxu0 0
        %7407 = vmatmul.mubr.bf16.gmra.mxu0 %v7250
        %v7408 = vpop.f32.mrf.mxu0
        %v7409 = vadd.f32 0.0, %v7408
        %v7410 = vpop.f32.mrf.mxu0
        %v7411 = vadd.f32 0.0, %v7410
        %v7412 = vpop.f32.mrf.mxu0
        %v7413 = vadd.f32 0.0, %v7412
        %v7414 = vpop.f32.mrf.mxu0
        %v7415 = vadd.f32 0.0, %v7414
        %7416 = vmatprep.mubr.bf16.mxu0 0
        %7417 = vmatmul.mubr.bf16.gmra.mxu0 %v7253
        %v7418 = vpop.f32.mrf.mxu0
        %v7419 = vadd.f32 0.0, %v7418
        %v7420 = vpop.f32.mrf.mxu0
        %v7421 = vadd.f32 0.0, %v7420
        %v7422 = vpop.f32.mrf.mxu0
        %v7423 = vadd.f32 0.0, %v7422
        %v7424 = vpop.f32.mrf.mxu0
        %v7425 = vadd.f32 0.0, %v7424
        %7426 = vmatprep.mubr.bf16.mxu0 0
        %7427 = vmatmul.mubr.bf16.gmra.mxu0 %v7256
        %v7428 = vpop.f32.mrf.mxu0
        %v7429 = vadd.f32 0.0, %v7428
        %v7430 = vpop.f32.mrf.mxu0
        %v7431 = vadd.f32 0.0, %v7430
        %v7432 = vpop.f32.mrf.mxu0
        %v7433 = vadd.f32 0.0, %v7432
        %v7434 = vpop.f32.mrf.mxu0
        %v7435 = vadd.f32 0.0, %v7434
        %7436 = vmatprep.mubr.bf16.mxu0 0
        %7437 = vmatmul.mubr.bf16.gmra.mxu0 %v7259
        %v7438 = vpop.f32.mrf.mxu0
        %v7439 = vadd.f32 0.0, %v7438
        %v7440 = vpop.f32.mrf.mxu0
        %v7441 = vadd.f32 0.0, %v7440
        %v7442 = vpop.f32.mrf.mxu0
        %v7443 = vadd.f32 0.0, %v7442
        %v7444 = vpop.f32.mrf.mxu0
        %v7445 = vadd.f32 0.0, %v7444
        %7446 = vmatprep.mubr.bf16.mxu0 0
        %7447 = vmatmul.mubr.bf16.gmra.mxu0 %v7262
        %v7448 = vpop.f32.mrf.mxu0
        %v7449 = vadd.f32 0.0, %v7448
        %v7450 = vpop.f32.mrf.mxu0
        %v7451 = vadd.f32 0.0, %v7450
        %v7452 = vpop.f32.mrf.mxu0
        %v7453 = vadd.f32 0.0, %v7452
        %v7454 = vpop.f32.mrf.mxu0
        %v7455 = vadd.f32 0.0, %v7454
        %7456 = vdwg.mxu0
        %v7457 = vmax.f32 %v7299, %v7301
        %7458 = vmax.xlane.f32.xlu0 %v7457
        %v7459 = vpop.xlane.xlu0 %7458
        %v7460 = vmax.f32 %v7303, %v7305
        %7461 = vmax.xlane.f32.xlu0 %v7460
        %v7462 = vpop.xlane.xlu0 %7461
        %v7463 = vmax.f32 %v7309, %v7311
        %7464 = vmax.xlane.f32.xlu0 %v7463
        %v7465 = vpop.xlane.xlu0 %7464
        %v7466 = vmax.f32 %v7313, %v7315
        %7467 = vmax.xlane.f32.xlu0 %v7466
        %v7468 = vpop.xlane.xlu0 %7467
        %v7469 = vmax.f32 %v7319, %v7321
        %7470 = vmax.xlane.f32.xlu0 %v7469
        %v7471 = vpop.xlane.xlu0 %7470
        %v7472 = vmax.f32 %v7323, %v7325
        %7473 = vmax.xlane.f32.xlu0 %v7472
        %v7474 = vpop.xlane.xlu0 %7473
        %v7475 = vmax.f32 %v7329, %v7331
        %7476 = vmax.xlane.f32.xlu0 %v7475
        %v7477 = vpop.xlane.xlu0 %7476
        %v7478 = vmax.f32 %v7333, %v7335
        %7479 = vmax.xlane.f32.xlu0 %v7478
        %v7480 = vpop.xlane.xlu0 %7479
        %v7481 = vmax.f32 %v7339, %v7341
        %7482 = vmax.xlane.f32.xlu0 %v7481
        %v7483 = vpop.xlane.xlu0 %7482
        %v7484 = vmax.f32 %v7343, %v7345
        %7485 = vmax.xlane.f32.xlu0 %v7484
        %v7486 = vpop.xlane.xlu0 %7485
        %v7487 = vmax.f32 %v7349, %v7351
        %7488 = vmax.xlane.f32.xlu0 %v7487
        %v7489 = vpop.xlane.xlu0 %7488
        %v7490 = vmax.f32 %v7353, %v7355
        %7491 = vmax.xlane.f32.xlu0 %v7490
        %v7492 = vpop.xlane.xlu0 %7491
        %v7493 = vmax.f32 %v7359, %v7361
        %7494 = vmax.xlane.f32.xlu0 %v7493
        %v7495 = vpop.xlane.xlu0 %7494
        %v7496 = vmax.f32 %v7363, %v7365
        %7497 = vmax.xlane.f32.xlu0 %v7496
        %v7498 = vpop.xlane.xlu0 %7497
        %v7499 = vmax.f32 %v7369, %v7371
        %7500 = vmax.xlane.f32.xlu0 %v7499
        %v7501 = vpop.xlane.xlu0 %7500
        %v7502 = vmax.f32 %v7373, %v7375
        %7503 = vmax.xlane.f32.xlu0 %v7502
        %v7504 = vpop.xlane.xlu0 %7503
        %v7505 = vmax.f32 %v7379, %v7381
        %7506 = vmax.xlane.f32.xlu0 %v7505
        %v7507 = vpop.xlane.xlu0 %7506
        %v7508 = vmax.f32 %v7383, %v7385
        %7509 = vmax.xlane.f32.xlu0 %v7508
        %v7510 = vpop.xlane.xlu0 %7509
        %v7511 = vmax.f32 %v7389, %v7391
        %7512 = vmax.xlane.f32.xlu0 %v7511
        %v7513 = vpop.xlane.xlu0 %7512
        %v7514 = vmax.f32 %v7393, %v7395
        %7515 = vmax.xlane.f32.xlu0 %v7514
        %v7516 = vpop.xlane.xlu0 %7515
        %v7517 = vmax.f32 %v7399, %v7401
        %7518 = vmax.xlane.f32.xlu0 %v7517
        %v7519 = vpop.xlane.xlu0 %7518
        %v7520 = vmax.f32 %v7403, %v7405
        %7521 = vmax.xlane.f32.xlu0 %v7520
        %v7522 = vpop.xlane.xlu0 %7521
        %v7523 = vmax.f32 %v7409, %v7411
        %7524 = vmax.xlane.f32.xlu0 %v7523
        %v7525 = vpop.xlane.xlu0 %7524
        %v7526 = vmax.f32 %v7413, %v7415
        %7527 = vmax.xlane.f32.xlu0 %v7526
        %v7528 = vpop.xlane.xlu0 %7527
        %v7529 = vmax.f32 %v7419, %v7421
        %7530 = vmax.xlane.f32.xlu0 %v7529
        %v7531 = vpop.xlane.xlu0 %7530
        %v7532 = vmax.f32 %v7423, %v7425
        %7533 = vmax.xlane.f32.xlu0 %v7532
        %v7534 = vpop.xlane.xlu0 %7533
        %v7535 = vmax.f32 %v7429, %v7431
        %7536 = vmax.xlane.f32.xlu0 %v7535
        %v7537 = vpop.xlane.xlu0 %7536
        %v7538 = vmax.f32 %v7433, %v7435
        %7539 = vmax.xlane.f32.xlu0 %v7538
        %v7540 = vpop.xlane.xlu0 %7539
        %v7541 = vmax.f32 %v7439, %v7441
        %7542 = vmax.xlane.f32.xlu0 %v7541
        %v7543 = vpop.xlane.xlu0 %7542
        %v7544 = vmax.f32 %v7443, %v7445
        %7545 = vmax.xlane.f32.xlu0 %v7544
        %v7546 = vpop.xlane.xlu0 %7545
        %v7547 = vmax.f32 %v7449, %v7451
        %7548 = vmax.xlane.f32.xlu0 %v7547
        %v7549 = vpop.xlane.xlu0 %7548
        %v7550 = vmax.f32 %v7453, %v7455
        %7551 = vmax.xlane.f32.xlu0 %v7550
        %v7552 = vpop.xlane.xlu0 %7551
        %v7553 = vsub.f32 %v7299, %v7459
        %v7554 = vsub.f32 %v7301, %v7459
        %v7555 = vsub.f32 %v7303, %v7462
        %v7556 = vsub.f32 %v7305, %v7462
        %v7557 = vsub.f32 %v7309, %v7465
        %v7558 = vsub.f32 %v7311, %v7465
        %v7559 = vsub.f32 %v7313, %v7468
        %v7560 = vsub.f32 %v7315, %v7468
        %v7561 = vsub.f32 %v7319, %v7471
        %v7562 = vsub.f32 %v7321, %v7471
        %v7563 = vsub.f32 %v7323, %v7474
        %v7564 = vsub.f32 %v7325, %v7474
        %v7565 = vsub.f32 %v7329, %v7477
        %v7566 = vsub.f32 %v7331, %v7477
        %v7567 = vsub.f32 %v7333, %v7480
        %v7568 = vsub.f32 %v7335, %v7480
        %v7569 = vsub.f32 %v7339, %v7483
        %v7570 = vsub.f32 %v7341, %v7483
        %v7571 = vsub.f32 %v7343, %v7486
        %v7572 = vsub.f32 %v7345, %v7486
        %v7573 = vsub.f32 %v7349, %v7489
        %v7574 = vsub.f32 %v7351, %v7489
        %v7575 = vsub.f32 %v7353, %v7492
        %v7576 = vsub.f32 %v7355, %v7492
        %v7577 = vsub.f32 %v7359, %v7495
        %v7578 = vsub.f32 %v7361, %v7495
        %v7579 = vsub.f32 %v7363, %v7498
        %v7580 = vsub.f32 %v7365, %v7498
        %v7581 = vsub.f32 %v7369, %v7501
        %v7582 = vsub.f32 %v7371, %v7501
        %v7583 = vsub.f32 %v7373, %v7504
        %v7584 = vsub.f32 %v7375, %v7504
        %v7585 = vsub.f32 %v7379, %v7507
        %v7586 = vsub.f32 %v7381, %v7507
        %v7587 = vsub.f32 %v7383, %v7510
        %v7588 = vsub.f32 %v7385, %v7510
        %v7589 = vsub.f32 %v7389, %v7513
        %v7590 = vsub.f32 %v7391, %v7513
        %v7591 = vsub.f32 %v7393, %v7516
        %v7592 = vsub.f32 %v7395, %v7516
        %v7593 = vsub.f32 %v7399, %v7519
        %v7594 = vsub.f32 %v7401, %v7519
        %v7595 = vsub.f32 %v7403, %v7522
        %v7596 = vsub.f32 %v7405, %v7522
        %v7597 = vsub.f32 %v7409, %v7525
        %v7598 = vsub.f32 %v7411, %v7525
        %v7599 = vsub.f32 %v7413, %v7528
        %v7600 = vsub.f32 %v7415, %v7528
        %v7601 = vsub.f32 %v7419, %v7531
        %v7602 = vsub.f32 %v7421, %v7531
        %v7603 = vsub.f32 %v7423, %v7534
        %v7604 = vsub.f32 %v7425, %v7534
        %v7605 = vsub.f32 %v7429, %v7537
        %v7606 = vsub.f32 %v7431, %v7537
        %v7607 = vsub.f32 %v7433, %v7540
        %v7608 = vsub.f32 %v7435, %v7540
        %v7609 = vsub.f32 %v7439, %v7543
        %v7610 = vsub.f32 %v7441, %v7543
        %v7611 = vsub.f32 %v7443, %v7546
        %v7612 = vsub.f32 %v7445, %v7546
        %v7613 = vsub.f32 %v7449, %v7549
        %v7614 = vsub.f32 %v7451, %v7549
        %v7615 = vsub.f32 %v7453, %v7552
        %v7616 = vsub.f32 %v7455, %v7552
        %v7617 = vmul.f32 %v7553, 1.442695
        %v7618 = vpow.pop %v7617
        %v7619 = vmul.f32 %v7554, 1.442695
        %v7620 = vpow.pop %v7619
        %v7621 = vmul.f32 %v7555, 1.442695
        %v7622 = vpow.pop %v7621
        %v7623 = vmul.f32 %v7556, 1.442695
        %v7624 = vpow.pop %v7623
        %v7625 = vmul.f32 %v7557, 1.442695
        %v7626 = vpow.pop %v7625
        %v7627 = vmul.f32 %v7558, 1.442695
        %v7628 = vpow.pop %v7627
        %v7629 = vmul.f32 %v7559, 1.442695
        %v7630 = vpow.pop %v7629
        %v7631 = vmul.f32 %v7560, 1.442695
        %v7632 = vpow.pop %v7631
        %v7633 = vmul.f32 %v7561, 1.442695
        %v7634 = vpow.pop %v7633
        %v7635 = vmul.f32 %v7562, 1.442695
        %v7636 = vpow.pop %v7635
        %v7637 = vmul.f32 %v7563, 1.442695
        %v7638 = vpow.pop %v7637
        %v7639 = vmul.f32 %v7564, 1.442695
        %v7640 = vpow.pop %v7639
        %v7641 = vmul.f32 %v7565, 1.442695
        %v7642 = vpow.pop %v7641
        %v7643 = vmul.f32 %v7566, 1.442695
        %v7644 = vpow.pop %v7643
        %v7645 = vmul.f32 %v7567, 1.442695
        %v7646 = vpow.pop %v7645
        %v7647 = vmul.f32 %v7568, 1.442695
        %v7648 = vpow.pop %v7647
        %v7649 = vmul.f32 %v7569, 1.442695
        %v7650 = vpow.pop %v7649
        %v7651 = vmul.f32 %v7570, 1.442695
        %v7652 = vpow.pop %v7651
        %v7653 = vmul.f32 %v7571, 1.442695
        %v7654 = vpow.pop %v7653
        %v7655 = vmul.f32 %v7572, 1.442695
        %v7656 = vpow.pop %v7655
        %v7657 = vmul.f32 %v7573, 1.442695
        %v7658 = vpow.pop %v7657
        %v7659 = vmul.f32 %v7574, 1.442695
        %v7660 = vpow.pop %v7659
        %v7661 = vmul.f32 %v7575, 1.442695
        %v7662 = vpow.pop %v7661
        %v7663 = vmul.f32 %v7576, 1.442695
        %v7664 = vpow.pop %v7663
        %v7665 = vmul.f32 %v7577, 1.442695
        %v7666 = vpow.pop %v7665
        %v7667 = vmul.f32 %v7578, 1.442695
        %v7668 = vpow.pop %v7667
        %v7669 = vmul.f32 %v7579, 1.442695
        %v7670 = vpow.pop %v7669
        %v7671 = vmul.f32 %v7580, 1.442695
        %v7672 = vpow.pop %v7671
        %v7673 = vmul.f32 %v7581, 1.442695
        %v7674 = vpow.pop %v7673
        %v7675 = vmul.f32 %v7582, 1.442695
        %v7676 = vpow.pop %v7675
        %v7677 = vmul.f32 %v7583, 1.442695
        %v7678 = vpow.pop %v7677
        %v7679 = vmul.f32 %v7584, 1.442695
        %v7680 = vpow.pop %v7679
        %v7681 = vmul.f32 %v7585, 1.442695
        %v7682 = vpow.pop %v7681
        %v7683 = vmul.f32 %v7586, 1.442695
        %v7684 = vpow.pop %v7683
        %v7685 = vmul.f32 %v7587, 1.442695
        %v7686 = vpow.pop %v7685
        %v7687 = vmul.f32 %v7588, 1.442695
        %v7688 = vpow.pop %v7687
        %v7689 = vmul.f32 %v7589, 1.442695
        %v7690 = vpow.pop %v7689
        %v7691 = vmul.f32 %v7590, 1.442695
        %v7692 = vpow.pop %v7691
        %v7693 = vmul.f32 %v7591, 1.442695
        %v7694 = vpow.pop %v7693
        %v7695 = vmul.f32 %v7592, 1.442695
        %v7696 = vpow.pop %v7695
        %v7697 = vmul.f32 %v7593, 1.442695
        %v7698 = vpow.pop %v7697
        %v7699 = vmul.f32 %v7594, 1.442695
        %v7700 = vpow.pop %v7699
        %v7701 = vmul.f32 %v7595, 1.442695
        %v7702 = vpow.pop %v7701
        %v7703 = vmul.f32 %v7596, 1.442695
        %v7704 = vpow.pop %v7703
        %v7705 = vmul.f32 %v7597, 1.442695
        %v7706 = vpow.pop %v7705
        %v7707 = vmul.f32 %v7598, 1.442695
        %v7708 = vpow.pop %v7707
        %v7709 = vmul.f32 %v7599, 1.442695
        %v7710 = vpow.pop %v7709
        %v7711 = vmul.f32 %v7600, 1.442695
        %v7712 = vpow.pop %v7711
        %v7713 = vmul.f32 %v7601, 1.442695
        %v7714 = vpow.pop %v7713
        %v7715 = vmul.f32 %v7602, 1.442695
        %v7716 = vpow.pop %v7715
        %v7717 = vmul.f32 %v7603, 1.442695
        %v7718 = vpow.pop %v7717
        %v7719 = vmul.f32 %v7604, 1.442695
        %v7720 = vpow.pop %v7719
        %v7721 = vmul.f32 %v7605, 1.442695
        %v7722 = vpow.pop %v7721
        %v7723 = vmul.f32 %v7606, 1.442695
        %v7724 = vpow.pop %v7723
        %v7725 = vmul.f32 %v7607, 1.442695
        %v7726 = vpow.pop %v7725
        %v7727 = vmul.f32 %v7608, 1.442695
        %v7728 = vpow.pop %v7727
        %v7729 = vmul.f32 %v7609, 1.442695
        %v7730 = vpow.pop %v7729
        %v7731 = vmul.f32 %v7610, 1.442695
        %v7732 = vpow.pop %v7731
        %v7733 = vmul.f32 %v7611, 1.442695
        %v7734 = vpow.pop %v7733
        %v7735 = vmul.f32 %v7612, 1.442695
        %v7736 = vpow.pop %v7735
        %v7737 = vmul.f32 %v7613, 1.442695
        %v7738 = vpow.pop %v7737
        %v7739 = vmul.f32 %v7614, 1.442695
        %v7740 = vpow.pop %v7739
        %v7741 = vmul.f32 %v7615, 1.442695
        %v7742 = vpow.pop %v7741
        %v7743 = vmul.f32 %v7616, 1.442695
        %v7744 = vpow.pop %v7743
        %v7745 = vadd.f32 %v7618, %v7620
        %7746 = vadd.xlane.f32.xlu0 %v7745
        %v7747 = vpop.xlane.xlu0 %7746
        %v7748 = vadd.f32 %v7622, %v7624
        %7749 = vadd.xlane.f32.xlu0 %v7748
        %v7750 = vpop.xlane.xlu0 %7749
        %v7751 = vadd.f32 %v7626, %v7628
        %7752 = vadd.xlane.f32.xlu0 %v7751
        %v7753 = vpop.xlane.xlu0 %7752
        %v7754 = vadd.f32 %v7630, %v7632
        %7755 = vadd.xlane.f32.xlu0 %v7754
        %v7756 = vpop.xlane.xlu0 %7755
        %v7757 = vadd.f32 %v7634, %v7636
        %7758 = vadd.xlane.f32.xlu0 %v7757
        %v7759 = vpop.xlane.xlu0 %7758
        %v7760 = vadd.f32 %v7638, %v7640
        %7761 = vadd.xlane.f32.xlu0 %v7760
        %v7762 = vpop.xlane.xlu0 %7761
        %v7763 = vadd.f32 %v7642, %v7644
        %7764 = vadd.xlane.f32.xlu0 %v7763
        %v7765 = vpop.xlane.xlu0 %7764
        %v7766 = vadd.f32 %v7646, %v7648
        %7767 = vadd.xlane.f32.xlu0 %v7766
        %v7768 = vpop.xlane.xlu0 %7767
        %v7769 = vadd.f32 %v7650, %v7652
        %7770 = vadd.xlane.f32.xlu0 %v7769
        %v7771 = vpop.xlane.xlu0 %7770
        %v7772 = vadd.f32 %v7654, %v7656
        %7773 = vadd.xlane.f32.xlu0 %v7772
        %v7774 = vpop.xlane.xlu0 %7773
        %v7775 = vadd.f32 %v7658, %v7660
        %7776 = vadd.xlane.f32.xlu0 %v7775
        %v7777 = vpop.xlane.xlu0 %7776
        %v7778 = vadd.f32 %v7662, %v7664
        %7779 = vadd.xlane.f32.xlu0 %v7778
        %v7780 = vpop.xlane.xlu0 %7779
        %v7781 = vadd.f32 %v7666, %v7668
        %7782 = vadd.xlane.f32.xlu0 %v7781
        %v7783 = vpop.xlane.xlu0 %7782
        %v7784 = vadd.f32 %v7670, %v7672
        %7785 = vadd.xlane.f32.xlu0 %v7784
        %v7786 = vpop.xlane.xlu0 %7785
        %v7787 = vadd.f32 %v7674, %v7676
        %7788 = vadd.xlane.f32.xlu0 %v7787
        %v7789 = vpop.xlane.xlu0 %7788
        %v7790 = vadd.f32 %v7678, %v7680
        %7791 = vadd.xlane.f32.xlu0 %v7790
        %v7792 = vpop.xlane.xlu0 %7791
        %v7793 = vadd.f32 %v7682, %v7684
        %7794 = vadd.xlane.f32.xlu0 %v7793
        %v7795 = vpop.xlane.xlu0 %7794
        %v7796 = vadd.f32 %v7686, %v7688
        %7797 = vadd.xlane.f32.xlu0 %v7796
        %v7798 = vpop.xlane.xlu0 %7797
        %v7799 = vadd.f32 %v7690, %v7692
        %7800 = vadd.xlane.f32.xlu0 %v7799
        %v7801 = vpop.xlane.xlu0 %7800
        %v7802 = vadd.f32 %v7694, %v7696
        %7803 = vadd.xlane.f32.xlu0 %v7802
        %v7804 = vpop.xlane.xlu0 %7803
        %v7805 = vadd.f32 %v7698, %v7700
        %7806 = vadd.xlane.f32.xlu0 %v7805
        %v7807 = vpop.xlane.xlu0 %7806
        %v7808 = vadd.f32 %v7702, %v7704
        %7809 = vadd.xlane.f32.xlu0 %v7808
        %v7810 = vpop.xlane.xlu0 %7809
        %v7811 = vadd.f32 %v7706, %v7708
        %7812 = vadd.xlane.f32.xlu0 %v7811
        %v7813 = vpop.xlane.xlu0 %7812
        %v7814 = vadd.f32 %v7710, %v7712
        %7815 = vadd.xlane.f32.xlu0 %v7814
        %v7816 = vpop.xlane.xlu0 %7815
        %v7817 = vadd.f32 %v7714, %v7716
        %7818 = vadd.xlane.f32.xlu0 %v7817
        %v7819 = vpop.xlane.xlu0 %7818
        %v7820 = vadd.f32 %v7718, %v7720
        %7821 = vadd.xlane.f32.xlu0 %v7820
        %v7822 = vpop.xlane.xlu0 %7821
        %v7823 = vadd.f32 %v7722, %v7724
        %7824 = vadd.xlane.f32.xlu0 %v7823
        %v7825 = vpop.xlane.xlu0 %7824
        %v7826 = vadd.f32 %v7726, %v7728
        %7827 = vadd.xlane.f32.xlu0 %v7826
        %v7828 = vpop.xlane.xlu0 %7827
        %v7829 = vadd.f32 %v7730, %v7732
        %7830 = vadd.xlane.f32.xlu0 %v7829
        %v7831 = vpop.xlane.xlu0 %7830
        %v7832 = vadd.f32 %v7734, %v7736
        %7833 = vadd.xlane.f32.xlu0 %v7832
        %v7834 = vpop.xlane.xlu0 %7833
        %v7835 = vadd.f32 %v7738, %v7740
        %7836 = vadd.xlane.f32.xlu0 %v7835
        %v7837 = vpop.xlane.xlu0 %7836
        %v7838 = vadd.f32 %v7742, %v7744
        %7839 = vadd.xlane.f32.xlu0 %v7838
        %v7840 = vpop.xlane.xlu0 %7839
        %v7841 = vpack.c.bf16 %v7622, %v7618
        %v7842 = vpack.c.bf16 %v7624, %v7620
        %v7843 = vpack.c.bf16 %v7630, %v7626
        %v7844 = vpack.c.bf16 %v7632, %v7628
        %v7845 = vpack.c.bf16 %v7638, %v7634
        %v7846 = vpack.c.bf16 %v7640, %v7636
        %v7847 = vpack.c.bf16 %v7646, %v7642
        %v7848 = vpack.c.bf16 %v7648, %v7644
        %v7849 = vpack.c.bf16 %v7654, %v7650
        %v7850 = vpack.c.bf16 %v7656, %v7652
        %v7851 = vpack.c.bf16 %v7662, %v7658
        %v7852 = vpack.c.bf16 %v7664, %v7660
        %v7853 = vpack.c.bf16 %v7670, %v7666
        %v7854 = vpack.c.bf16 %v7672, %v7668
        %v7855 = vpack.c.bf16 %v7678, %v7674
        %v7856 = vpack.c.bf16 %v7680, %v7676
        %v7857 = vpack.c.bf16 %v7686, %v7682
        %v7858 = vpack.c.bf16 %v7688, %v7684
        %v7859 = vpack.c.bf16 %v7694, %v7690
        %v7860 = vpack.c.bf16 %v7696, %v7692
        %v7861 = vpack.c.bf16 %v7702, %v7698
        %v7862 = vpack.c.bf16 %v7704, %v7700
        %v7863 = vpack.c.bf16 %v7710, %v7706
        %v7864 = vpack.c.bf16 %v7712, %v7708
        %v7865 = vpack.c.bf16 %v7718, %v7714
        %v7866 = vpack.c.bf16 %v7720, %v7716
        %v7867 = vpack.c.bf16 %v7726, %v7722
        %v7868 = vpack.c.bf16 %v7728, %v7724
        %v7869 = vpack.c.bf16 %v7734, %v7730
        %v7870 = vpack.c.bf16 %v7736, %v7732
        %v7871 = vpack.c.bf16 %v7742, %v7738
        %v7872 = vpack.c.bf16 %v7744, %v7740
        %7889 = vrot.lane.b32.xlu0 %v3833, 64
        %v7890 = vpop.permute.xlu0 %7889
        %7891 = vrot.lane.b32.xlu0 %v3835, 64
        %v7892 = vpop.permute.xlu0 %7891
        %7893 = vrot.lane.b32.xlu0 %v3837, 64
        %v7894 = vpop.permute.xlu0 %7893
        %7895 = vrot.lane.b32.xlu0 %v3839, 64
        %v7896 = vpop.permute.xlu0 %7895
        %7897 = vrot.lane.b32.xlu0 %v3841, 64
        %v7898 = vpop.permute.xlu0 %7897
        %7899 = vrot.lane.b32.xlu0 %v3843, 64
        %v7900 = vpop.permute.xlu0 %7899
        %7901 = vrot.lane.b32.xlu0 %v3845, 64
        %v7902 = vpop.permute.xlu0 %7901
        %7903 = vrot.lane.b32.xlu0 %v3847, 64
        %v7904 = vpop.permute.xlu0 %7903
        %7905 = vrot.lane.b32.xlu0 %v3849, 64
        %v7906 = vpop.permute.xlu0 %7905
        %7907 = vrot.lane.b32.xlu0 %v3851, 64
        %v7908 = vpop.permute.xlu0 %7907
        %7909 = vrot.lane.b32.xlu0 %v3853, 64
        %v7910 = vpop.permute.xlu0 %7909
        %7911 = vrot.lane.b32.xlu0 %v3855, 64
        %v7912 = vpop.permute.xlu0 %7911
        %7913 = vrot.lane.b32.xlu0 %v3857, 64
        %v7914 = vpop.permute.xlu0 %7913
        %7915 = vrot.lane.b32.xlu0 %v3859, 64
        %v7916 = vpop.permute.xlu0 %7915
        %7917 = vrot.lane.b32.xlu0 %v3861, 64
        %v7918 = vpop.permute.xlu0 %7917
        %7919 = vrot.lane.b32.xlu0 %v3863, 64
        %v7920 = vpop.permute.xlu0 %7919
        %7937 = vmatprep.subr.bf16.mxu0 0
        %7938 = vmatpush1.bf16.msra.mxu0 %v7904
        %7939 = vmatprep.subr.bf16.mxu0 0
        %7940 = vmatpush1.bf16.msra.mxu0 %v7902
        %7941 = vmatprep.subr.bf16.mxu0 0
        %7942 = vmatpush1.bf16.msra.mxu0 %v7900
        %7943 = vmatprep.subr.bf16.mxu0 0
        %7944 = vmatpush1.bf16.msra.mxu0 %v7898
        %7945 = vmatprep.subr.bf16.mxu0 0
        %7946 = vmatpush1.bf16.msra.mxu0 %v7896
        %7947 = vmatprep.subr.bf16.mxu0 0
        %7948 = vmatpush1.bf16.msra.mxu0 %v7894
        %7949 = vmatprep.subr.bf16.mxu0 0
        %7950 = vmatpush1.bf16.msra.mxu0 %v7892
        %7951 = vmatprep.subr.bf16.mxu0 0
        %7952 = vmatpush1.bf16.msra.mxu0 %v7890
        %7953 = vmatprep.subr.bf16.mxu0 0
        %7954 = vmatpush2.bf16.msra.mxu0 %v7920
        %7955 = vmatprep.subr.bf16.mxu0 0
        %7956 = vmatpush2.bf16.msra.mxu0 %v7918
        %7957 = vmatprep.subr.bf16.mxu0 0
        %7958 = vmatpush2.bf16.msra.mxu0 %v7916
        %7959 = vmatprep.subr.bf16.mxu0 0
        %7960 = vmatpush2.bf16.msra.mxu0 %v7914
        %7961 = vmatprep.subr.bf16.mxu0 0
        %7962 = vmatpush2.bf16.msra.mxu0 %v7912
        %7963 = vmatprep.subr.bf16.mxu0 0
        %7964 = vmatpush2.bf16.msra.mxu0 %v7910
        %7965 = vmatprep.subr.bf16.mxu0 0
        %7966 = vmatpush2.bf16.msra.mxu0 %v7908
        %7967 = vmatprep.subr.bf16.mxu0 0
        %7968 = vmatpush2.bf16.msra.mxu0 %v7906
        %7969 = vmatprep.mubr.bf16.mxu0 %v7842
        %7970 = vmatmul.mubr.bf16.gmra.mxu0 %v7841
        %v7971 = vpop.f32.mrf.mxu0
        %v7972 = vadd.f32 0.0, %v7971
        %v7973 = vpop.f32.mrf.mxu0
        %v7974 = vpop.f32.mrf.mxu0
        %v7975 = vadd.f32 0.0, %v7974
        %v7976 = vpop.f32.mrf.mxu0
        %7977 = vmatprep.mubr.bf16.mxu0 %v7844
        %7978 = vmatmul.mubr.bf16.gmra.mxu0 %v7843
        %v7979 = vpop.f32.mrf.mxu0
        %v7980 = vadd.f32 0.0, %v7979
        %v7981 = vpop.f32.mrf.mxu0
        %v7982 = vpop.f32.mrf.mxu0
        %v7983 = vadd.f32 0.0, %v7982
        %v7984 = vpop.f32.mrf.mxu0
        %7985 = vmatprep.mubr.bf16.mxu0 %v7846
        %7986 = vmatmul.mubr.bf16.gmra.mxu0 %v7845
        %v7987 = vpop.f32.mrf.mxu0
        %v7988 = vadd.f32 0.0, %v7987
        %v7989 = vpop.f32.mrf.mxu0
        %v7990 = vpop.f32.mrf.mxu0
        %v7991 = vadd.f32 0.0, %v7990
        %v7992 = vpop.f32.mrf.mxu0
        %7993 = vmatprep.mubr.bf16.mxu0 %v7848
        %7994 = vmatmul.mubr.bf16.gmra.mxu0 %v7847
        %v7995 = vpop.f32.mrf.mxu0
        %v7996 = vadd.f32 0.0, %v7995
        %v7997 = vpop.f32.mrf.mxu0
        %v7998 = vpop.f32.mrf.mxu0
        %v7999 = vadd.f32 0.0, %v7998
        %v8000 = vpop.f32.mrf.mxu0
        %8001 = vmatprep.mubr.bf16.mxu0 %v7850
        %8002 = vmatmul.mubr.bf16.gmra.mxu0 %v7849
        %v8003 = vpop.f32.mrf.mxu0
        %v8004 = vadd.f32 0.0, %v8003
        %v8005 = vpop.f32.mrf.mxu0
        %v8006 = vpop.f32.mrf.mxu0
        %v8007 = vadd.f32 0.0, %v8006
        %v8008 = vpop.f32.mrf.mxu0
        %8009 = vmatprep.mubr.bf16.mxu0 %v7852
        %8010 = vmatmul.mubr.bf16.gmra.mxu0 %v7851
        %v8011 = vpop.f32.mrf.mxu0
        %v8012 = vadd.f32 0.0, %v8011
        %v8013 = vpop.f32.mrf.mxu0
        %v8014 = vpop.f32.mrf.mxu0
        %v8015 = vadd.f32 0.0, %v8014
        %v8016 = vpop.f32.mrf.mxu0
        %8017 = vmatprep.mubr.bf16.mxu0 %v7854
        %8018 = vmatmul.mubr.bf16.gmra.mxu0 %v7853
        %v8019 = vpop.f32.mrf.mxu0
        %v8020 = vadd.f32 0.0, %v8019
        %v8021 = vpop.f32.mrf.mxu0
        %v8022 = vpop.f32.mrf.mxu0
        %v8023 = vadd.f32 0.0, %v8022
        %v8024 = vpop.f32.mrf.mxu0
        %8025 = vmatprep.mubr.bf16.mxu0 %v7856
        %8026 = vmatmul.mubr.bf16.gmra.mxu0 %v7855
        %v8027 = vpop.f32.mrf.mxu0
        %v8028 = vadd.f32 0.0, %v8027
        %v8029 = vpop.f32.mrf.mxu0
        %v8030 = vpop.f32.mrf.mxu0
        %v8031 = vadd.f32 0.0, %v8030
        %v8032 = vpop.f32.mrf.mxu0
        %8033 = vmatprep.mubr.bf16.mxu0 %v7858
        %8034 = vmatmul.mubr.bf16.gmra.mxu0 %v7857
        %v8035 = vpop.f32.mrf.mxu0
        %v8036 = vadd.f32 0.0, %v8035
        %v8037 = vpop.f32.mrf.mxu0
        %v8038 = vpop.f32.mrf.mxu0
        %v8039 = vadd.f32 0.0, %v8038
        %v8040 = vpop.f32.mrf.mxu0
        %8041 = vmatprep.mubr.bf16.mxu0 %v7860
        %8042 = vmatmul.mubr.bf16.gmra.mxu0 %v7859
        %v8043 = vpop.f32.mrf.mxu0
        %v8044 = vadd.f32 0.0, %v8043
        %v8045 = vpop.f32.mrf.mxu0
        %v8046 = vpop.f32.mrf.mxu0
        %v8047 = vadd.f32 0.0, %v8046
        %v8048 = vpop.f32.mrf.mxu0
        %8049 = vmatprep.mubr.bf16.mxu0 %v7862
        %8050 = vmatmul.mubr.bf16.gmra.mxu0 %v7861
        %v8051 = vpop.f32.mrf.mxu0
        %v8052 = vadd.f32 0.0, %v8051
        %v8053 = vpop.f32.mrf.mxu0
        %v8054 = vpop.f32.mrf.mxu0
        %v8055 = vadd.f32 0.0, %v8054
        %v8056 = vpop.f32.mrf.mxu0
        %8057 = vmatprep.mubr.bf16.mxu0 %v7864
        %8058 = vmatmul.mubr.bf16.gmra.mxu0 %v7863
        %v8059 = vpop.f32.mrf.mxu0
        %v8060 = vadd.f32 0.0, %v8059
        %v8061 = vpop.f32.mrf.mxu0
        %v8062 = vpop.f32.mrf.mxu0
        %v8063 = vadd.f32 0.0, %v8062
        %v8064 = vpop.f32.mrf.mxu0
        %8065 = vmatprep.mubr.bf16.mxu0 %v7866
        %8066 = vmatmul.mubr.bf16.gmra.mxu0 %v7865
        %v8067 = vpop.f32.mrf.mxu0
        %v8068 = vadd.f32 0.0, %v8067
        %v8069 = vpop.f32.mrf.mxu0
        %v8070 = vpop.f32.mrf.mxu0
        %v8071 = vadd.f32 0.0, %v8070
        %v8072 = vpop.f32.mrf.mxu0
        %8073 = vmatprep.mubr.bf16.mxu0 %v7868
        %8074 = vmatmul.mubr.bf16.gmra.mxu0 %v7867
        %v8075 = vpop.f32.mrf.mxu0
        %v8076 = vadd.f32 0.0, %v8075
        %v8077 = vpop.f32.mrf.mxu0
        %v8078 = vpop.f32.mrf.mxu0
        %v8079 = vadd.f32 0.0, %v8078
        %v8080 = vpop.f32.mrf.mxu0
        %8081 = vmatprep.mubr.bf16.mxu0 %v7870
        %8082 = vmatmul.mubr.bf16.gmra.mxu0 %v7869
        %v8083 = vpop.f32.mrf.mxu0
        %v8084 = vadd.f32 0.0, %v8083
        %v8085 = vpop.f32.mrf.mxu0
        %v8086 = vpop.f32.mrf.mxu0
        %v8087 = vadd.f32 0.0, %v8086
        %v8088 = vpop.f32.mrf.mxu0
        %8089 = vmatprep.mubr.bf16.mxu0 %v7872
        %8090 = vmatmul.mubr.bf16.gmra.mxu0 %v7871
        %v8091 = vpop.f32.mrf.mxu0
        %v8092 = vadd.f32 0.0, %v8091
        %v8093 = vpop.f32.mrf.mxu0
        %v8094 = vpop.f32.mrf.mxu0
        %v8095 = vadd.f32 0.0, %v8094
        %v8096 = vpop.f32.mrf.mxu0
        %8097 = vdwg.mxu0
        %v8098 = vrcp.pop %v7747
        %v8099 = vrcp.pop %v7750
        %v8100 = vrcp.pop %v7753
        %v8101 = vrcp.pop %v7756
        %v8102 = vrcp.pop %v7759
        %v8103 = vrcp.pop %v7762
        %v8104 = vrcp.pop %v7765
        %v8105 = vrcp.pop %v7768
        %v8106 = vrcp.pop %v7771
        %v8107 = vrcp.pop %v7774
        %v8108 = vrcp.pop %v7777
        %v8109 = vrcp.pop %v7780
        %v8110 = vrcp.pop %v7783
        %v8111 = vrcp.pop %v7786
        %v8112 = vrcp.pop %v7789
        %v8113 = vrcp.pop %v7792
        %v8114 = vrcp.pop %v7795
        %v8115 = vrcp.pop %v7798
        %v8116 = vrcp.pop %v7801
        %v8117 = vrcp.pop %v7804
        %v8118 = vrcp.pop %v7807
        %v8119 = vrcp.pop %v7810
        %v8120 = vrcp.pop %v7813
        %v8121 = vrcp.pop %v7816
        %v8122 = vrcp.pop %v7819
        %v8123 = vrcp.pop %v7822
        %v8124 = vrcp.pop %v7825
        %v8125 = vrcp.pop %v7828
        %v8126 = vrcp.pop %v7831
        %v8127 = vrcp.pop %v7834
        %v8128 = vrcp.pop %v7837
        %v8129 = vrcp.pop %v7840
        %v8130 = vmul.f32 %v7972, %v8098
        %v8131 = vmul.f32 %v7975, %v8099
        %v8132 = vmul.f32 %v7980, %v8100
        %v8133 = vmul.f32 %v7983, %v8101
        %v8134 = vmul.f32 %v7988, %v8102
        %v8135 = vmul.f32 %v7991, %v8103
        %v8136 = vmul.f32 %v7996, %v8104
        %v8137 = vmul.f32 %v7999, %v8105
        %v8138 = vmul.f32 %v8004, %v8106
        %v8139 = vmul.f32 %v8007, %v8107
        %v8140 = vmul.f32 %v8012, %v8108
        %v8141 = vmul.f32 %v8015, %v8109
        %v8142 = vmul.f32 %v8020, %v8110
        %v8143 = vmul.f32 %v8023, %v8111
        %v8144 = vmul.f32 %v8028, %v8112
        %v8145 = vmul.f32 %v8031, %v8113
        %v8146 = vmul.f32 %v8036, %v8114
        %v8147 = vmul.f32 %v8039, %v8115
        %v8148 = vmul.f32 %v8044, %v8116
        %v8149 = vmul.f32 %v8047, %v8117
        %v8150 = vmul.f32 %v8052, %v8118
        %v8151 = vmul.f32 %v8055, %v8119
        %v8152 = vmul.f32 %v8060, %v8120
        %v8153 = vmul.f32 %v8063, %v8121
        %v8154 = vmul.f32 %v8068, %v8122
        %v8155 = vmul.f32 %v8071, %v8123
        %v8156 = vmul.f32 %v8076, %v8124
        %v8157 = vmul.f32 %v8079, %v8125
        %v8158 = vmul.f32 %v8084, %v8126
        %v8159 = vmul.f32 %v8087, %v8127
        %v8160 = vmul.f32 %v8092, %v8128
        %v8161 = vmul.f32 %v8095, %v8129
        %v8162 = vpack.c.bf16 %v8131, %v8130
        %v8163 = vpack.c.bf16 %v8133, %v8132
        %v8164 = vpack.c.bf16 %v8135, %v8134
        %v8165 = vpack.c.bf16 %v8137, %v8136
        %v8166 = vpack.c.bf16 %v8139, %v8138
        %v8167 = vpack.c.bf16 %v8141, %v8140
        %v8168 = vpack.c.bf16 %v8143, %v8142
        %v8169 = vpack.c.bf16 %v8145, %v8144
        %v8170 = vpack.c.bf16 %v8147, %v8146
        %v8171 = vpack.c.bf16 %v8149, %v8148
        %v8172 = vpack.c.bf16 %v8151, %v8150
        %v8173 = vpack.c.bf16 %v8153, %v8152
        %v8174 = vpack.c.bf16 %v8155, %v8154
        %v8175 = vpack.c.bf16 %v8157, %v8156
        %v8176 = vpack.c.bf16 %v8159, %v8158
        %v8177 = vpack.c.bf16 %v8161, %v8160
        %v8194 = vunpack.c.l.b16 %v8162
        %v8195 = vunpack.c.h.b16 %v8162
        %v8196 = vunpack.c.l.b16 %v8163
        %v8197 = vunpack.c.h.b16 %v8163
        %v8198 = vunpack.c.l.b16 %v8164
        %v8199 = vunpack.c.h.b16 %v8164
        %v8200 = vunpack.c.l.b16 %v8165
        %v8201 = vunpack.c.h.b16 %v8165
        %v8202 = vunpack.c.l.b16 %v8166
        %v8203 = vunpack.c.h.b16 %v8166
        %v8204 = vunpack.c.l.b16 %v8167
        %v8205 = vunpack.c.h.b16 %v8167
        %v8206 = vunpack.c.l.b16 %v8168
        %v8207 = vunpack.c.h.b16 %v8168
        %v8208 = vunpack.c.l.b16 %v8169
        %v8209 = vunpack.c.h.b16 %v8169
        %v8210 = vunpack.c.l.b16 %v8170
        %v8211 = vunpack.c.h.b16 %v8170
        %v8212 = vunpack.c.l.b16 %v8171
        %v8213 = vunpack.c.h.b16 %v8171
        %v8214 = vunpack.c.l.b16 %v8172
        %v8215 = vunpack.c.h.b16 %v8172
        %v8216 = vunpack.c.l.b16 %v8173
        %v8217 = vunpack.c.h.b16 %v8173
        %v8218 = vunpack.c.l.b16 %v8174
        %v8219 = vunpack.c.h.b16 %v8174
        %v8220 = vunpack.c.l.b16 %v8175
        %v8221 = vunpack.c.h.b16 %v8175
        %v8222 = vunpack.c.l.b16 %v8176
        %v8223 = vunpack.c.h.b16 %v8176
        %v8224 = vunpack.c.l.b16 %v8177
        %v8225 = vunpack.c.h.b16 %v8177
        %v8226 = vpack.c.b16 %v8194, %v8194
        %v8227 = vpack.c.b16 %v8195, %v8195
        %v8228 = vpack.c.b16 %v8196, %v8196
        %v8229 = vpack.c.b16 %v8197, %v8197
        %v8230 = vpack.c.b16 %v8198, %v8198
        %v8231 = vpack.c.b16 %v8199, %v8199
        %v8232 = vpack.c.b16 %v8200, %v8200
        %v8233 = vpack.c.b16 %v8201, %v8201
        %v8234 = vpack.c.b16 %v8202, %v8202
        %v8235 = vpack.c.b16 %v8203, %v8203
        %v8236 = vpack.c.b16 %v8204, %v8204
        %v8237 = vpack.c.b16 %v8205, %v8205
        %v8238 = vpack.c.b16 %v8206, %v8206
        %v8239 = vpack.c.b16 %v8207, %v8207
        %v8240 = vpack.c.b16 %v8208, %v8208
        %v8241 = vpack.c.b16 %v8209, %v8209
        %v8242 = vpack.c.b16 %v8210, %v8210
        %v8243 = vpack.c.b16 %v8211, %v8211
        %v8244 = vpack.c.b16 %v8212, %v8212
        %v8245 = vpack.c.b16 %v8213, %v8213
        %v8246 = vpack.c.b16 %v8214, %v8214
        %v8247 = vpack.c.b16 %v8215, %v8215
        %v8248 = vpack.c.b16 %v8216, %v8216
        %v8249 = vpack.c.b16 %v8217, %v8217
        %v8250 = vpack.c.b16 %v8218, %v8218
        %v8251 = vpack.c.b16 %v8219, %v8219
        %v8252 = vpack.c.b16 %v8220, %v8220
        %v8253 = vpack.c.b16 %v8221, %v8221
        %v8254 = vpack.c.b16 %v8222, %v8222
        %v8255 = vpack.c.b16 %v8223, %v8223
        %v8256 = vpack.c.b16 %v8224, %v8224
        %v8257 = vpack.c.b16 %v8225, %v8225
        %8258 = vrot.lane.b32.xlu0 %v8226, 64
        %v8259 = vpop.permute.xlu0 %8258
        %8260 = vrot.lane.b32.xlu0 %v8227, 64
        %v8261 = vpop.permute.xlu0 %8260
        %8262 = vrot.lane.b32.xlu0 %v8228, 64
        %v8263 = vpop.permute.xlu0 %8262
        %8264 = vrot.lane.b32.xlu0 %v8229, 64
        %v8265 = vpop.permute.xlu0 %8264
        %8266 = vrot.lane.b32.xlu0 %v8230, 64
        %v8267 = vpop.permute.xlu0 %8266
        %8268 = vrot.lane.b32.xlu0 %v8231, 64
        %v8269 = vpop.permute.xlu0 %8268
        %8270 = vrot.lane.b32.xlu0 %v8232, 64
        %v8271 = vpop.permute.xlu0 %8270
        %8272 = vrot.lane.b32.xlu0 %v8233, 64
        %v8273 = vpop.permute.xlu0 %8272
        %8274 = vrot.lane.b32.xlu0 %v8234, 64
        %v8275 = vpop.permute.xlu0 %8274
        %8276 = vrot.lane.b32.xlu0 %v8235, 64
        %v8277 = vpop.permute.xlu0 %8276
        %8278 = vrot.lane.b32.xlu0 %v8236, 64
        %v8279 = vpop.permute.xlu0 %8278
        %8280 = vrot.lane.b32.xlu0 %v8237, 64
        %v8281 = vpop.permute.xlu0 %8280
        %8282 = vrot.lane.b32.xlu0 %v8238, 64
        %v8283 = vpop.permute.xlu0 %8282
        %8284 = vrot.lane.b32.xlu0 %v8239, 64
        %v8285 = vpop.permute.xlu0 %8284
        %8286 = vrot.lane.b32.xlu0 %v8240, 64
        %v8287 = vpop.permute.xlu0 %8286
        %8288 = vrot.lane.b32.xlu0 %v8241, 64
        %v8289 = vpop.permute.xlu0 %8288
        %8290 = vrot.lane.b32.xlu0 %v8242, 64
        %v8291 = vpop.permute.xlu0 %8290
        %8292 = vrot.lane.b32.xlu0 %v8243, 64
        %v8293 = vpop.permute.xlu0 %8292
        %8294 = vrot.lane.b32.xlu0 %v8244, 64
        %v8295 = vpop.permute.xlu0 %8294
        %8296 = vrot.lane.b32.xlu0 %v8245, 64
        %v8297 = vpop.permute.xlu0 %8296
        %8298 = vrot.lane.b32.xlu0 %v8246, 64
        %v8299 = vpop.permute.xlu0 %8298
        %8300 = vrot.lane.b32.xlu0 %v8247, 64
        %v8301 = vpop.permute.xlu0 %8300
        %8302 = vrot.lane.b32.xlu0 %v8248, 64
        %v8303 = vpop.permute.xlu0 %8302
        %8304 = vrot.lane.b32.xlu0 %v8249, 64
        %v8305 = vpop.permute.xlu0 %8304
        %8306 = vrot.lane.b32.xlu0 %v8250, 64
        %v8307 = vpop.permute.xlu0 %8306
        %8308 = vrot.lane.b32.xlu0 %v8251, 64
        %v8309 = vpop.permute.xlu0 %8308
        %8310 = vrot.lane.b32.xlu0 %v8252, 64
        %v8311 = vpop.permute.xlu0 %8310
        %8312 = vrot.lane.b32.xlu0 %v8253, 64
        %v8313 = vpop.permute.xlu0 %8312
        %8314 = vrot.lane.b32.xlu0 %v8254, 64
        %v8315 = vpop.permute.xlu0 %8314
        %8316 = vrot.lane.b32.xlu0 %v8255, 64
        %v8317 = vpop.permute.xlu0 %8316
        %8318 = vrot.lane.b32.xlu0 %v8256, 64
        %v8319 = vpop.permute.xlu0 %8318
        %8320 = vrot.lane.b32.xlu0 %v8257, 64
        %v8321 = vpop.permute.xlu0 %8320
        %8354 = vst.msk [vmem:[#allocation2 + $0x4] sm:$0xf] %vm6093, %v8259
        %8355 = vst.msk [vmem:[#allocation2 + $0xc] sm:$0xf] %vm6093, %v8261
        %8356 = vst.msk [vmem:[#allocation2 + $0x14] sm:$0xf] %vm6093, %v8263
        %8357 = vst.msk [vmem:[#allocation2 + $0x1c] sm:$0xf] %vm6093, %v8265
        %8358 = vst.msk [vmem:[#allocation2 + $0x24] sm:$0xf] %vm6093, %v8267
        %8359 = vst.msk [vmem:[#allocation2 + $0x2c] sm:$0xf] %vm6093, %v8269
        %8360 = vst.msk [vmem:[#allocation2 + $0x34] sm:$0xf] %vm6093, %v8271
        %8361 = vst.msk [vmem:[#allocation2 + $0x3c] sm:$0xf] %vm6093, %v8273
        %8362 = vst.msk [vmem:[#allocation2 + $0x44] sm:$0xf] %vm6093, %v8275
        %8363 = vst.msk [vmem:[#allocation2 + $0x4c] sm:$0xf] %vm6093, %v8277
        %8364 = vst.msk [vmem:[#allocation2 + $0x54] sm:$0xf] %vm6093, %v8279
        %8365 = vst.msk [vmem:[#allocation2 + $0x5c] sm:$0xf] %vm6093, %v8281
        %8366 = vst.msk [vmem:[#allocation2 + $0x64] sm:$0xf] %vm6093, %v8283
        %8367 = vst.msk [vmem:[#allocation2 + $0x6c] sm:$0xf] %vm6093, %v8285
        %8368 = vst.msk [vmem:[#allocation2 + $0x74] sm:$0xf] %vm6093, %v8287
        %8369 = vst.msk [vmem:[#allocation2 + $0x7c] sm:$0xf] %vm6093, %v8289
        %8370 = vst.msk [vmem:[#allocation2 + $0x84] sm:$0xf] %vm6093, %v8291
        %8371 = vst.msk [vmem:[#allocation2 + $0x8c] sm:$0xf] %vm6093, %v8293
        %8372 = vst.msk [vmem:[#allocation2 + $0x94] sm:$0xf] %vm6093, %v8295
        %8373 = vst.msk [vmem:[#allocation2 + $0x9c] sm:$0xf] %vm6093, %v8297
        %8374 = vst.msk [vmem:[#allocation2 + $0xa4] sm:$0xf] %vm6093, %v8299
        %8375 = vst.msk [vmem:[#allocation2 + $0xac] sm:$0xf] %vm6093, %v8301
        %8376 = vst.msk [vmem:[#allocation2 + $0xb4] sm:$0xf] %vm6093, %v8303
        %8377 = vst.msk [vmem:[#allocation2 + $0xbc] sm:$0xf] %vm6093, %v8305
        %8378 = vst.msk [vmem:[#allocation2 + $0xc4] sm:$0xf] %vm6093, %v8307
        %8379 = vst.msk [vmem:[#allocation2 + $0xcc] sm:$0xf] %vm6093, %v8309
        %8380 = vst.msk [vmem:[#allocation2 + $0xd4] sm:$0xf] %vm6093, %v8311
        %8381 = vst.msk [vmem:[#allocation2 + $0xdc] sm:$0xf] %vm6093, %v8313
        %8382 = vst.msk [vmem:[#allocation2 + $0xe4] sm:$0xf] %vm6093, %v8315
        %8383 = vst.msk [vmem:[#allocation2 + $0xec] sm:$0xf] %vm6093, %v8317
        %8384 = vst.msk [vmem:[#allocation2 + $0xf4] sm:$0xf] %vm6093, %v8319
        %8385 = vst.msk [vmem:[#allocation2 + $0xfc] sm:$0xf] %vm6093, %v8321
        %v8386 = vld [vmem:[#allocation2] sm:$0xff]
        %v8387 = vld [vmem:[#allocation2 + $0x8] sm:$0xff]
        %v8388 = vld [vmem:[#allocation2 + $0x10] sm:$0xff]
        %v8389 = vld [vmem:[#allocation2 + $0x18] sm:$0xff]
        %v8390 = vld [vmem:[#allocation2 + $0x20] sm:$0xff]
        %v8391 = vld [vmem:[#allocation2 + $0x28] sm:$0xff]
        %v8392 = vld [vmem:[#allocation2 + $0x30] sm:$0xff]
        %v8393 = vld [vmem:[#allocation2 + $0x38] sm:$0xff]
        %v8394 = vld [vmem:[#allocation2 + $0x40] sm:$0xff]
        %v8395 = vld [vmem:[#allocation2 + $0x48] sm:$0xff]
        %v8396 = vld [vmem:[#allocation2 + $0x50] sm:$0xff]
        %v8397 = vld [vmem:[#allocation2 + $0x58] sm:$0xff]
        %v8398 = vld [vmem:[#allocation2 + $0x60] sm:$0xff]
        %v8399 = vld [vmem:[#allocation2 + $0x68] sm:$0xff]
        %v8400 = vld [vmem:[#allocation2 + $0x70] sm:$0xff]
        %v8401 = vld [vmem:[#allocation2 + $0x78] sm:$0xff]
        %v8402 = vld [vmem:[#allocation2 + $0x80] sm:$0xff]
        %v8403 = vld [vmem:[#allocation2 + $0x88] sm:$0xff]
        %v8404 = vld [vmem:[#allocation2 + $0x90] sm:$0xff]
        %v8405 = vld [vmem:[#allocation2 + $0x98] sm:$0xff]
        %v8406 = vld [vmem:[#allocation2 + $0xa0] sm:$0xff]
        %v8407 = vld [vmem:[#allocation2 + $0xa8] sm:$0xff]
        %v8408 = vld [vmem:[#allocation2 + $0xb0] sm:$0xff]
        %v8409 = vld [vmem:[#allocation2 + $0xb8] sm:$0xff]
        %v8410 = vld [vmem:[#allocation2 + $0xc0] sm:$0xff]
        %v8411 = vld [vmem:[#allocation2 + $0xc8] sm:$0xff]
        %v8412 = vld [vmem:[#allocation2 + $0xd0] sm:$0xff]
        %v8413 = vld [vmem:[#allocation2 + $0xd8] sm:$0xff]
        %v8414 = vld [vmem:[#allocation2 + $0xe0] sm:$0xff]
        %v8415 = vld [vmem:[#allocation2 + $0xe8] sm:$0xff]
        %v8416 = vld [vmem:[#allocation2 + $0xf0] sm:$0xff]
        %v8417 = vld [vmem:[#allocation2 + $0xf8] sm:$0xff]
        %v8418 = vld [vmem:[%s9] sm:$0xf]
        %v8419 = vld [vmem:[%s9 + $0x4] sm:$0xf]
        %v8420 = vld [vmem:[%s9 + $0x8] sm:$0xf]
        %v8421 = vld [vmem:[%s9 + $0xc] sm:$0xf]
        %v8422 = vld [vmem:[%s9 + $0x10] sm:$0xf]
        %v8423 = vld [vmem:[%s9 + $0x14] sm:$0xf]
        %v8424 = vld [vmem:[%s9 + $0x18] sm:$0xf]
        %v8425 = vld [vmem:[%s9 + $0x1c] sm:$0xf]
        %v8426 = vld [vmem:[%s9 + $0x20] sm:$0xf]
        %v8427 = vld [vmem:[%s9 + $0x24] sm:$0xf]
        %v8428 = vld [vmem:[%s9 + $0x28] sm:$0xf]
        %v8429 = vld [vmem:[%s9 + $0x2c] sm:$0xf]
        %v8430 = vld [vmem:[%s9 + $0x30] sm:$0xf]
        %v8431 = vld [vmem:[%s9 + $0x34] sm:$0xf]
        %v8432 = vld [vmem:[%s9 + $0x38] sm:$0xf]
        %v8433 = vld [vmem:[%s9 + $0x3c] sm:$0xf]
        %v8434 = vld [vmem:[%s9 + $0x40] sm:$0xf]
        %v8435 = vld [vmem:[%s9 + $0x44] sm:$0xf]
        %v8436 = vld [vmem:[%s9 + $0x48] sm:$0xf]
        %v8437 = vld [vmem:[%s9 + $0x4c] sm:$0xf]
        %v8438 = vld [vmem:[%s9 + $0x50] sm:$0xf]
        %v8439 = vld [vmem:[%s9 + $0x54] sm:$0xf]
        %v8440 = vld [vmem:[%s9 + $0x58] sm:$0xf]
        %v8441 = vld [vmem:[%s9 + $0x5c] sm:$0xf]
        %v8442 = vld [vmem:[%s9 + $0x60] sm:$0xf]
        %v8443 = vld [vmem:[%s9 + $0x64] sm:$0xf]
        %v8444 = vld [vmem:[%s9 + $0x68] sm:$0xf]
        %v8445 = vld [vmem:[%s9 + $0x6c] sm:$0xf]
        %v8446 = vld [vmem:[%s9 + $0x70] sm:$0xf]
        %v8447 = vld [vmem:[%s9 + $0x74] sm:$0xf]
        %v8448 = vld [vmem:[%s9 + $0x78] sm:$0xf]
        %v8449 = vld [vmem:[%s9 + $0x7c] sm:$0xf]
        %v8450 = vld [vmem:[%s10] sm:$0x1]
        %v8452 = vlaneseq
        %v8453 = vshrl.u32 %v8452, 7
        %v8454 = vsub.s32 0, %v8453
        %v8455 = vrot.slane %v8450, %v8454
        %v8489 = vunpack.c.l.b16 %v8386
        %v8490 = vunpack.c.h.b16 %v8386
        %v8491 = vunpack.c.l.b16 %v8387
        %v8492 = vunpack.c.h.b16 %v8387
        %v8493 = vunpack.c.l.b16 %v8388
        %v8494 = vunpack.c.h.b16 %v8388
        %v8495 = vunpack.c.l.b16 %v8389
        %v8496 = vunpack.c.h.b16 %v8389
        %v8497 = vunpack.c.l.b16 %v8390
        %v8498 = vunpack.c.h.b16 %v8390
        %v8499 = vunpack.c.l.b16 %v8391
        %v8500 = vunpack.c.h.b16 %v8391
        %v8501 = vunpack.c.l.b16 %v8392
        %v8502 = vunpack.c.h.b16 %v8392
        %v8503 = vunpack.c.l.b16 %v8393
        %v8504 = vunpack.c.h.b16 %v8393
        %v8505 = vunpack.c.l.b16 %v8394
        %v8506 = vunpack.c.h.b16 %v8394
        %v8507 = vunpack.c.l.b16 %v8395
        %v8508 = vunpack.c.h.b16 %v8395
        %v8509 = vunpack.c.l.b16 %v8396
        %v8510 = vunpack.c.h.b16 %v8396
        %v8511 = vunpack.c.l.b16 %v8397
        %v8512 = vunpack.c.h.b16 %v8397
        %v8513 = vunpack.c.l.b16 %v8398
        %v8514 = vunpack.c.h.b16 %v8398
        %v8515 = vunpack.c.l.b16 %v8399
        %v8516 = vunpack.c.h.b16 %v8399
        %v8517 = vunpack.c.l.b16 %v8400
        %v8518 = vunpack.c.h.b16 %v8400
        %v8519 = vunpack.c.l.b16 %v8401
        %v8520 = vunpack.c.h.b16 %v8401
        %v8521 = vunpack.c.l.b16 %v8402
        %v8522 = vunpack.c.h.b16 %v8402
        %v8523 = vunpack.c.l.b16 %v8403
        %v8524 = vunpack.c.h.b16 %v8403
        %v8525 = vunpack.c.l.b16 %v8404
        %v8526 = vunpack.c.h.b16 %v8404
        %v8527 = vunpack.c.l.b16 %v8405
        %v8528 = vunpack.c.h.b16 %v8405
        %v8529 = vunpack.c.l.b16 %v8406
        %v8530 = vunpack.c.h.b16 %v8406
        %v8531 = vunpack.c.l.b16 %v8407
        %v8532 = vunpack.c.h.b16 %v8407
        %v8533 = vunpack.c.l.b16 %v8408
        %v8534 = vunpack.c.h.b16 %v8408
        %v8535 = vunpack.c.l.b16 %v8409
        %v8536 = vunpack.c.h.b16 %v8409
        %v8537 = vunpack.c.l.b16 %v8410
        %v8538 = vunpack.c.h.b16 %v8410
        %v8539 = vunpack.c.l.b16 %v8411
        %v8540 = vunpack.c.h.b16 %v8411
        %v8541 = vunpack.c.l.b16 %v8412
        %v8542 = vunpack.c.h.b16 %v8412
        %v8543 = vunpack.c.l.b16 %v8413
        %v8544 = vunpack.c.h.b16 %v8413
        %v8545 = vunpack.c.l.b16 %v8414
        %v8546 = vunpack.c.h.b16 %v8414
        %v8547 = vunpack.c.l.b16 %v8415
        %v8548 = vunpack.c.h.b16 %v8415
        %v8549 = vunpack.c.l.b16 %v8416
        %v8550 = vunpack.c.h.b16 %v8416
        %v8551 = vunpack.c.l.b16 %v8417
        %v8552 = vunpack.c.h.b16 %v8417
        %v8553 = vpack.c.b16 %v8491, %v8489
        %v8554 = vpack.c.b16 %v8492, %v8490
        %v8555 = vpack.c.b16 %v8495, %v8493
        %v8556 = vpack.c.b16 %v8496, %v8494
        %v8557 = vpack.c.b16 %v8499, %v8497
        %v8558 = vpack.c.b16 %v8500, %v8498
        %v8559 = vpack.c.b16 %v8503, %v8501
        %v8560 = vpack.c.b16 %v8504, %v8502
        %v8561 = vpack.c.b16 %v8507, %v8505
        %v8562 = vpack.c.b16 %v8508, %v8506
        %v8563 = vpack.c.b16 %v8511, %v8509
        %v8564 = vpack.c.b16 %v8512, %v8510
        %v8565 = vpack.c.b16 %v8515, %v8513
        %v8566 = vpack.c.b16 %v8516, %v8514
        %v8567 = vpack.c.b16 %v8519, %v8517
        %v8568 = vpack.c.b16 %v8520, %v8518
        %v8569 = vpack.c.b16 %v8523, %v8521
        %v8570 = vpack.c.b16 %v8524, %v8522
        %v8571 = vpack.c.b16 %v8527, %v8525
        %v8572 = vpack.c.b16 %v8528, %v8526
        %v8573 = vpack.c.b16 %v8531, %v8529
        %v8574 = vpack.c.b16 %v8532, %v8530
        %v8575 = vpack.c.b16 %v8535, %v8533
        %v8576 = vpack.c.b16 %v8536, %v8534
        %v8577 = vpack.c.b16 %v8539, %v8537
        %v8578 = vpack.c.b16 %v8540, %v8538
        %v8579 = vpack.c.b16 %v8543, %v8541
        %v8580 = vpack.c.b16 %v8544, %v8542
        %v8581 = vpack.c.b16 %v8547, %v8545
        %v8582 = vpack.c.b16 %v8548, %v8546
        %v8583 = vpack.c.b16 %v8551, %v8549
        %v8584 = vpack.c.b16 %v8552, %v8550
        %v8649 = vunpack.c.l.b16 %v8418
        %v8650 = vunpack.c.l.b16 %v8419
        %v8651 = vunpack.c.l.b16 %v8420
        %v8652 = vunpack.c.l.b16 %v8421
        %v8653 = vunpack.c.l.b16 %v8422
        %v8654 = vunpack.c.l.b16 %v8423
        %v8655 = vunpack.c.l.b16 %v8424
        %v8656 = vunpack.c.l.b16 %v8425
        %v8657 = vunpack.c.l.b16 %v8426
        %v8658 = vunpack.c.l.b16 %v8427
        %v8659 = vunpack.c.l.b16 %v8428
        %v8660 = vunpack.c.l.b16 %v8429
        %v8661 = vunpack.c.l.b16 %v8430
        %v8662 = vunpack.c.l.b16 %v8431
        %v8663 = vunpack.c.l.b16 %v8432
        %v8664 = vunpack.c.l.b16 %v8433
        %v8665 = vunpack.c.l.b16 %v8434
        %v8666 = vunpack.c.l.b16 %v8435
        %v8667 = vunpack.c.l.b16 %v8436
        %v8668 = vunpack.c.l.b16 %v8437
        %v8669 = vunpack.c.l.b16 %v8438
        %v8670 = vunpack.c.l.b16 %v8439
        %v8671 = vunpack.c.l.b16 %v8440
        %v8672 = vunpack.c.l.b16 %v8441
        %v8673 = vunpack.c.l.b16 %v8442
        %v8674 = vunpack.c.l.b16 %v8443
        %v8675 = vunpack.c.l.b16 %v8444
        %v8676 = vunpack.c.l.b16 %v8445
        %v8677 = vunpack.c.l.b16 %v8446
        %v8678 = vunpack.c.l.b16 %v8447
        %v8679 = vunpack.c.l.b16 %v8448
        %v8680 = vunpack.c.l.b16 %v8449
        %v8681 = vpack.c.b16 %v8650, %v8649
        %v8682 = vpack.c.b16 %v8652, %v8651
        %v8683 = vpack.c.b16 %v8654, %v8653
        %v8684 = vpack.c.b16 %v8656, %v8655
        %v8685 = vpack.c.b16 %v8658, %v8657
        %v8686 = vpack.c.b16 %v8660, %v8659
        %v8687 = vpack.c.b16 %v8662, %v8661
        %v8688 = vpack.c.b16 %v8664, %v8663
        %v8689 = vpack.c.b16 %v8666, %v8665
        %v8690 = vpack.c.b16 %v8668, %v8667
        %v8691 = vpack.c.b16 %v8670, %v8669
        %v8692 = vpack.c.b16 %v8672, %v8671
        %v8693 = vpack.c.b16 %v8674, %v8673
        %v8694 = vpack.c.b16 %v8676, %v8675
        %v8695 = vpack.c.b16 %v8678, %v8677
        %v8696 = vpack.c.b16 %v8680, %v8679
        %8713 = vmatprep.subr.bf16.mxu0 0
        %8714 = vmatpush1.bf16.msra.mxu0 %v8688
        %8715 = vmatprep.subr.bf16.mxu0 0
        %8716 = vmatpush1.bf16.msra.mxu0 %v8687
        %8717 = vmatprep.subr.bf16.mxu0 0
        %8718 = vmatpush1.bf16.msra.mxu0 %v8686
        %8719 = vmatprep.subr.bf16.mxu0 0
        %8720 = vmatpush1.bf16.msra.mxu0 %v8685
        %8721 = vmatprep.subr.bf16.mxu0 0
        %8722 = vmatpush1.bf16.msra.mxu0 %v8684
        %8723 = vmatprep.subr.bf16.mxu0 0
        %8724 = vmatpush1.bf16.msra.mxu0 %v8683
        %8725 = vmatprep.subr.bf16.mxu0 0
        %8726 = vmatpush1.bf16.msra.mxu0 %v8682
        %8727 = vmatprep.subr.bf16.mxu0 0
        %8728 = vmatpush1.bf16.msra.mxu0 %v8681
        %8729 = vmatprep.subr.bf16.mxu0 0
        %8730 = vmatpush2.bf16.msra.mxu0 %v8696
        %8731 = vmatprep.subr.bf16.mxu0 0
        %8732 = vmatpush2.bf16.msra.mxu0 %v8695
        %8733 = vmatprep.subr.bf16.mxu0 0
        %8734 = vmatpush2.bf16.msra.mxu0 %v8694
        %8735 = vmatprep.subr.bf16.mxu0 0
        %8736 = vmatpush2.bf16.msra.mxu0 %v8693
        %8737 = vmatprep.subr.bf16.mxu0 0
        %8738 = vmatpush2.bf16.msra.mxu0 %v8692
        %8739 = vmatprep.subr.bf16.mxu0 0
        %8740 = vmatpush2.bf16.msra.mxu0 %v8691
        %8741 = vmatprep.subr.bf16.mxu0 0
        %8742 = vmatpush2.bf16.msra.mxu0 %v8690
        %8743 = vmatprep.subr.bf16.mxu0 0
        %8744 = vmatpush2.bf16.msra.mxu0 %v8689
        %8745 = vmatprep.mubr.bf16.mxu0 %v8554
        %8746 = vmatmul.mubr.bf16.gmra.mxu0 %v8553
        %v8747 = vpop.f32.mrf.mxu0
        %v8748 = vadd.f32 %v8455, %v8747
        %v8749 = vpop.f32.mrf.mxu0
        %v8750 = vpop.f32.mrf.mxu0
        %v8751 = vadd.f32 %v8455, %v8750
        %v8752 = vpop.f32.mrf.mxu0
        %8753 = vmatprep.mubr.bf16.mxu0 %v8556
        %8754 = vmatmul.mubr.bf16.gmra.mxu0 %v8555
        %v8755 = vpop.f32.mrf.mxu0
        %v8756 = vadd.f32 %v8455, %v8755
        %v8757 = vpop.f32.mrf.mxu0
        %v8758 = vpop.f32.mrf.mxu0
        %v8759 = vadd.f32 %v8455, %v8758
        %v8760 = vpop.f32.mrf.mxu0
        %8761 = vmatprep.mubr.bf16.mxu0 %v8558
        %8762 = vmatmul.mubr.bf16.gmra.mxu0 %v8557
        %v8763 = vpop.f32.mrf.mxu0
        %v8764 = vadd.f32 %v8455, %v8763
        %v8765 = vpop.f32.mrf.mxu0
        %v8766 = vpop.f32.mrf.mxu0
        %v8767 = vadd.f32 %v8455, %v8766
        %v8768 = vpop.f32.mrf.mxu0
        %8769 = vmatprep.mubr.bf16.mxu0 %v8560
        %8770 = vmatmul.mubr.bf16.gmra.mxu0 %v8559
        %v8771 = vpop.f32.mrf.mxu0
        %v8772 = vadd.f32 %v8455, %v8771
        %v8773 = vpop.f32.mrf.mxu0
        %v8774 = vpop.f32.mrf.mxu0
        %v8775 = vadd.f32 %v8455, %v8774
        %v8776 = vpop.f32.mrf.mxu0
        %8777 = vmatprep.mubr.bf16.mxu0 %v8562
        %8778 = vmatmul.mubr.bf16.gmra.mxu0 %v8561
        %v8779 = vpop.f32.mrf.mxu0
        %v8780 = vadd.f32 %v8455, %v8779
        %v8781 = vpop.f32.mrf.mxu0
        %v8782 = vpop.f32.mrf.mxu0
        %v8783 = vadd.f32 %v8455, %v8782
        %v8784 = vpop.f32.mrf.mxu0
        %8785 = vmatprep.mubr.bf16.mxu0 %v8564
        %8786 = vmatmul.mubr.bf16.gmra.mxu0 %v8563
        %v8787 = vpop.f32.mrf.mxu0
        %v8788 = vadd.f32 %v8455, %v8787
        %v8789 = vpop.f32.mrf.mxu0
        %v8790 = vpop.f32.mrf.mxu0
        %v8791 = vadd.f32 %v8455, %v8790
        %v8792 = vpop.f32.mrf.mxu0
        %8793 = vmatprep.mubr.bf16.mxu0 %v8566
        %8794 = vmatmul.mubr.bf16.gmra.mxu0 %v8565
        %v8795 = vpop.f32.mrf.mxu0
        %v8796 = vadd.f32 %v8455, %v8795
        %v8797 = vpop.f32.mrf.mxu0
        %v8798 = vpop.f32.mrf.mxu0
        %v8799 = vadd.f32 %v8455, %v8798
        %v8800 = vpop.f32.mrf.mxu0
        %8801 = vmatprep.mubr.bf16.mxu0 %v8568
        %8802 = vmatmul.mubr.bf16.gmra.mxu0 %v8567
        %v8803 = vpop.f32.mrf.mxu0
        %v8804 = vadd.f32 %v8455, %v8803
        %v8805 = vpop.f32.mrf.mxu0
        %v8806 = vpop.f32.mrf.mxu0
        %v8807 = vadd.f32 %v8455, %v8806
        %v8808 = vpop.f32.mrf.mxu0
        %8809 = vmatprep.mubr.bf16.mxu0 %v8570
        %8810 = vmatmul.mubr.bf16.gmra.mxu0 %v8569
        %v8811 = vpop.f32.mrf.mxu0
        %v8812 = vadd.f32 %v8455, %v8811
        %v8813 = vpop.f32.mrf.mxu0
        %v8814 = vpop.f32.mrf.mxu0
        %v8815 = vadd.f32 %v8455, %v8814
        %v8816 = vpop.f32.mrf.mxu0
        %8817 = vmatprep.mubr.bf16.mxu0 %v8572
        %8818 = vmatmul.mubr.bf16.gmra.mxu0 %v8571
        %v8819 = vpop.f32.mrf.mxu0
        %v8820 = vadd.f32 %v8455, %v8819
        %v8821 = vpop.f32.mrf.mxu0
        %v8822 = vpop.f32.mrf.mxu0
        %v8823 = vadd.f32 %v8455, %v8822
        %v8824 = vpop.f32.mrf.mxu0
        %8825 = vmatprep.mubr.bf16.mxu0 %v8574
        %8826 = vmatmul.mubr.bf16.gmra.mxu0 %v8573
        %v8827 = vpop.f32.mrf.mxu0
        %v8828 = vadd.f32 %v8455, %v8827
        %v8829 = vpop.f32.mrf.mxu0
        %v8830 = vpop.f32.mrf.mxu0
        %v8831 = vadd.f32 %v8455, %v8830
        %v8832 = vpop.f32.mrf.mxu0
        %8833 = vmatprep.mubr.bf16.mxu0 %v8576
        %8834 = vmatmul.mubr.bf16.gmra.mxu0 %v8575
        %v8835 = vpop.f32.mrf.mxu0
        %v8836 = vadd.f32 %v8455, %v8835
        %v8837 = vpop.f32.mrf.mxu0
        %v8838 = vpop.f32.mrf.mxu0
        %v8839 = vadd.f32 %v8455, %v8838
        %v8840 = vpop.f32.mrf.mxu0
        %8841 = vmatprep.mubr.bf16.mxu0 %v8578
        %8842 = vmatmul.mubr.bf16.gmra.mxu0 %v8577
        %v8843 = vpop.f32.mrf.mxu0
        %v8844 = vadd.f32 %v8455, %v8843
        %v8845 = vpop.f32.mrf.mxu0
        %v8846 = vpop.f32.mrf.mxu0
        %v8847 = vadd.f32 %v8455, %v8846
        %v8848 = vpop.f32.mrf.mxu0
        %8849 = vmatprep.mubr.bf16.mxu0 %v8580
        %8850 = vmatmul.mubr.bf16.gmra.mxu0 %v8579
        %v8851 = vpop.f32.mrf.mxu0
        %v8852 = vadd.f32 %v8455, %v8851
        %v8853 = vpop.f32.mrf.mxu0
        %v8854 = vpop.f32.mrf.mxu0
        %v8855 = vadd.f32 %v8455, %v8854
        %v8856 = vpop.f32.mrf.mxu0
        %8857 = vmatprep.mubr.bf16.mxu0 %v8582
        %8858 = vmatmul.mubr.bf16.gmra.mxu0 %v8581
        %v8859 = vpop.f32.mrf.mxu0
        %v8860 = vadd.f32 %v8455, %v8859
        %v8861 = vpop.f32.mrf.mxu0
        %v8862 = vpop.f32.mrf.mxu0
        %v8863 = vadd.f32 %v8455, %v8862
        %v8864 = vpop.f32.mrf.mxu0
        %8865 = vmatprep.mubr.bf16.mxu0 %v8584
        %8866 = vmatmul.mubr.bf16.gmra.mxu0 %v8583
        %v8867 = vpop.f32.mrf.mxu0
        %v8868 = vadd.f32 %v8455, %v8867
        %v8869 = vpop.f32.mrf.mxu0
        %v8870 = vpop.f32.mrf.mxu0
        %v8871 = vadd.f32 %v8455, %v8870
        %v8872 = vpop.f32.mrf.mxu0
        %8873 = vdwg.mxu0
        %v8874 = vpack.c.bf16 %v8751, %v8748
        %v8875 = vpack.c.bf16 %v8759, %v8756
        %v8876 = vpack.c.bf16 %v8767, %v8764
        %v8877 = vpack.c.bf16 %v8775, %v8772
        %v8878 = vpack.c.bf16 %v8783, %v8780
        %v8879 = vpack.c.bf16 %v8791, %v8788
        %v8880 = vpack.c.bf16 %v8799, %v8796
        %v8881 = vpack.c.bf16 %v8807, %v8804
        %v8882 = vpack.c.bf16 %v8815, %v8812
        %v8883 = vpack.c.bf16 %v8823, %v8820
        %v8884 = vpack.c.bf16 %v8831, %v8828
        %v8885 = vpack.c.bf16 %v8839, %v8836
        %v8886 = vpack.c.bf16 %v8847, %v8844
        %v8887 = vpack.c.bf16 %v8855, %v8852
        %v8888 = vpack.c.bf16 %v8863, %v8860
        %v8889 = vpack.c.bf16 %v8871, %v8868
        %v8890 = vld [vmem:[%s11] sm:$0xf]
        %v8891 = vld [vmem:[%s11 + $0x4] sm:$0xf]
        %v8892 = vld [vmem:[%s12] sm:$0x1]
        %v8894 = vlaneseq
        %v8895 = vshrl.u32 %v8894, 7
        %v8896 = vsub.s32 0, %v8895
        %v8897 = vrot.slane %v8892, %v8896
        %v8901 = vunpack.c.l.b16 %v8890
        %v8902 = vunpack.c.l.b16 %v8891
        %v8903 = vpack.c.b16 %v8902, %v8901
        %v8906 = vsel %vm2968, %v8874, 0
        %v8909 = vsel %vm2968, %v8875, 0
        %v8912 = vsel %vm2968, %v8876, 0
        %v8915 = vsel %vm2968, %v8877, 0
        %v8918 = vsel %vm2968, %v8878, 0
        %v8921 = vsel %vm2968, %v8879, 0
        %v8924 = vsel %vm2968, %v8880, 0
        %v8927 = vsel %vm2968, %v8881, 0
        %v8930 = vsel %vm2968, %v8882, 0
        %v8933 = vsel %vm2968, %v8883, 0
        %v8936 = vsel %vm2968, %v8884, 0
        %v8939 = vsel %vm2968, %v8885, 0
        %v8942 = vsel %vm2968, %v8886, 0
        %v8945 = vsel %vm2968, %v8887, 0
        %v8948 = vsel %vm2968, %v8888, 0
        %v8951 = vsel %vm2968, %v8889, 0
        %8953 = vmatprep.subr.bf16.mxu0 0
        %8954 = vmatpush1.bf16.msra.mxu0 0
        %8955 = vmatprep.subr.bf16.mxu0 0
        %8956 = vmatpush1.bf16.msra.mxu0 0
        %8957 = vmatprep.subr.bf16.mxu0 0
        %8958 = vmatpush1.bf16.msra.mxu0 0
        %8959 = vmatprep.subr.bf16.mxu0 0
        %8960 = vmatpush1.bf16.msra.mxu0 0
        %8961 = vmatprep.subr.bf16.mxu0 0
        %8962 = vmatpush1.bf16.msra.mxu0 0
        %8963 = vmatprep.subr.bf16.mxu0 0
        %8964 = vmatpush1.bf16.msra.mxu0 0
        %8965 = vmatprep.subr.bf16.mxu0 0
        %8966 = vmatpush1.bf16.msra.mxu0 0
        %8967 = vmatprep.subr.bf16.mxu0 0
        %8968 = vmatpush1.bf16.msra.mxu0 %v8903
        %8969 = vmatprep.subr.bf16.mxu0 0
        %8970 = vmatpush2.bf16.msra.mxu0 0
        %8971 = vmatprep.subr.bf16.mxu0 0
        %8972 = vmatpush2.bf16.msra.mxu0 0
        %8973 = vmatprep.subr.bf16.mxu0 0
        %8974 = vmatpush2.bf16.msra.mxu0 0
        %8975 = vmatprep.subr.bf16.mxu0 0
        %8976 = vmatpush2.bf16.msra.mxu0 0
        %8977 = vmatprep.subr.bf16.mxu0 0
        %8978 = vmatpush2.bf16.msra.mxu0 0
        %8979 = vmatprep.subr.bf16.mxu0 0
        %8980 = vmatpush2.bf16.msra.mxu0 0
        %8981 = vmatprep.subr.bf16.mxu0 0
        %8982 = vmatpush2.bf16.msra.mxu0 0
        %8983 = vmatprep.subr.bf16.mxu0 0
        %8984 = vmatpush2.bf16.msra.mxu0 0
        %8985 = vmatprep.mubr.bf16.mxu0 0
        %8986 = vmatmul.mubr.bf16.gmra.mxu0 %v8906
        %v8987 = vpop.f32.mrf.mxu0
        %v8988 = vadd.f32 %v8897, %v8987
        %v8989 = vpop.f32.mrf.mxu0
        %v8990 = vpop.f32.mrf.mxu0
        %v8991 = vadd.f32 %v8897, %v8990
        %v8992 = vpop.f32.mrf.mxu0
        %8993 = vmatprep.mubr.bf16.mxu0 0
        %8994 = vmatmul.mubr.bf16.gmra.mxu0 %v8909
        %v8995 = vpop.f32.mrf.mxu0
        %v8996 = vadd.f32 %v8897, %v8995
        %v8997 = vpop.f32.mrf.mxu0
        %v8998 = vpop.f32.mrf.mxu0
        %v8999 = vadd.f32 %v8897, %v8998
        %v9000 = vpop.f32.mrf.mxu0
        %9001 = vmatprep.mubr.bf16.mxu0 0
        %9002 = vmatmul.mubr.bf16.gmra.mxu0 %v8912
        %v9003 = vpop.f32.mrf.mxu0
        %v9004 = vadd.f32 %v8897, %v9003
        %v9005 = vpop.f32.mrf.mxu0
        %v9006 = vpop.f32.mrf.mxu0
        %v9007 = vadd.f32 %v8897, %v9006
        %v9008 = vpop.f32.mrf.mxu0
        %9009 = vmatprep.mubr.bf16.mxu0 0
        %9010 = vmatmul.mubr.bf16.gmra.mxu0 %v8915
        %v9011 = vpop.f32.mrf.mxu0
        %v9012 = vadd.f32 %v8897, %v9011
        %v9013 = vpop.f32.mrf.mxu0
        %v9014 = vpop.f32.mrf.mxu0
        %v9015 = vadd.f32 %v8897, %v9014
        %v9016 = vpop.f32.mrf.mxu0
        %9017 = vmatprep.mubr.bf16.mxu0 0
        %9018 = vmatmul.mubr.bf16.gmra.mxu0 %v8918
        %v9019 = vpop.f32.mrf.mxu0
        %v9020 = vadd.f32 %v8897, %v9019
        %v9021 = vpop.f32.mrf.mxu0
        %v9022 = vpop.f32.mrf.mxu0
        %v9023 = vadd.f32 %v8897, %v9022
        %v9024 = vpop.f32.mrf.mxu0
        %9025 = vmatprep.mubr.bf16.mxu0 0
        %9026 = vmatmul.mubr.bf16.gmra.mxu0 %v8921
        %v9027 = vpop.f32.mrf.mxu0
        %v9028 = vadd.f32 %v8897, %v9027
        %v9029 = vpop.f32.mrf.mxu0
        %v9030 = vpop.f32.mrf.mxu0
        %v9031 = vadd.f32 %v8897, %v9030
        %v9032 = vpop.f32.mrf.mxu0
        %9033 = vmatprep.mubr.bf16.mxu0 0
        %9034 = vmatmul.mubr.bf16.gmra.mxu0 %v8924
        %v9035 = vpop.f32.mrf.mxu0
        %v9036 = vadd.f32 %v8897, %v9035
        %v9037 = vpop.f32.mrf.mxu0
        %v9038 = vpop.f32.mrf.mxu0
        %v9039 = vadd.f32 %v8897, %v9038
        %v9040 = vpop.f32.mrf.mxu0
        %9041 = vmatprep.mubr.bf16.mxu0 0
        %9042 = vmatmul.mubr.bf16.gmra.mxu0 %v8927
        %v9043 = vpop.f32.mrf.mxu0
        %v9044 = vadd.f32 %v8897, %v9043
        %v9045 = vpop.f32.mrf.mxu0
        %v9046 = vpop.f32.mrf.mxu0
        %v9047 = vadd.f32 %v8897, %v9046
        %v9048 = vpop.f32.mrf.mxu0
        %9049 = vmatprep.mubr.bf16.mxu0 0
        %9050 = vmatmul.mubr.bf16.gmra.mxu0 %v8930
        %v9051 = vpop.f32.mrf.mxu0
        %v9052 = vadd.f32 %v8897, %v9051
        %v9053 = vpop.f32.mrf.mxu0
        %v9054 = vpop.f32.mrf.mxu0
        %v9055 = vadd.f32 %v8897, %v9054
        %v9056 = vpop.f32.mrf.mxu0
        %9057 = vmatprep.mubr.bf16.mxu0 0
        %9058 = vmatmul.mubr.bf16.gmra.mxu0 %v8933
        %v9059 = vpop.f32.mrf.mxu0
        %v9060 = vadd.f32 %v8897, %v9059
        %v9061 = vpop.f32.mrf.mxu0
        %v9062 = vpop.f32.mrf.mxu0
        %v9063 = vadd.f32 %v8897, %v9062
        %v9064 = vpop.f32.mrf.mxu0
        %9065 = vmatprep.mubr.bf16.mxu0 0
        %9066 = vmatmul.mubr.bf16.gmra.mxu0 %v8936
        %v9067 = vpop.f32.mrf.mxu0
        %v9068 = vadd.f32 %v8897, %v9067
        %v9069 = vpop.f32.mrf.mxu0
        %v9070 = vpop.f32.mrf.mxu0
        %v9071 = vadd.f32 %v8897, %v9070
        %v9072 = vpop.f32.mrf.mxu0
        %9073 = vmatprep.mubr.bf16.mxu0 0
        %9074 = vmatmul.mubr.bf16.gmra.mxu0 %v8939
        %v9075 = vpop.f32.mrf.mxu0
        %v9076 = vadd.f32 %v8897, %v9075
        %v9077 = vpop.f32.mrf.mxu0
        %v9078 = vpop.f32.mrf.mxu0
        %v9079 = vadd.f32 %v8897, %v9078
        %v9080 = vpop.f32.mrf.mxu0
        %9081 = vmatprep.mubr.bf16.mxu0 0
        %9082 = vmatmul.mubr.bf16.gmra.mxu0 %v8942
        %v9083 = vpop.f32.mrf.mxu0
        %v9084 = vadd.f32 %v8897, %v9083
        %v9085 = vpop.f32.mrf.mxu0
        %v9086 = vpop.f32.mrf.mxu0
        %v9087 = vadd.f32 %v8897, %v9086
        %v9088 = vpop.f32.mrf.mxu0
        %9089 = vmatprep.mubr.bf16.mxu0 0
        %9090 = vmatmul.mubr.bf16.gmra.mxu0 %v8945
        %v9091 = vpop.f32.mrf.mxu0
        %v9092 = vadd.f32 %v8897, %v9091
        %v9093 = vpop.f32.mrf.mxu0
        %v9094 = vpop.f32.mrf.mxu0
        %v9095 = vadd.f32 %v8897, %v9094
        %v9096 = vpop.f32.mrf.mxu0
        %9097 = vmatprep.mubr.bf16.mxu0 0
        %9098 = vmatmul.mubr.bf16.gmra.mxu0 %v8948
        %v9099 = vpop.f32.mrf.mxu0
        %v9100 = vadd.f32 %v8897, %v9099
        %v9101 = vpop.f32.mrf.mxu0
        %v9102 = vpop.f32.mrf.mxu0
        %v9103 = vadd.f32 %v8897, %v9102
        %v9104 = vpop.f32.mrf.mxu0
        %9105 = vmatprep.mubr.bf16.mxu0 0
        %9106 = vmatmul.mubr.bf16.gmra.mxu0 %v8951
        %v9107 = vpop.f32.mrf.mxu0
        %v9108 = vadd.f32 %v8897, %v9107
        %v9109 = vpop.f32.mrf.mxu0
        %v9110 = vpop.f32.mrf.mxu0
        %v9111 = vadd.f32 %v8897, %v9110
        %v9112 = vpop.f32.mrf.mxu0
        %9113 = vdwg.mxu0
        %v9114 = vsel %vm664, %v577, 0.0
        %v9115 = vsel %vm664, %v578, 0.0
        %v9116 = vadd.f32 %v9114, %v9115
        %v9117 = vsel %vm664, %v579, 0.0
        %v9118 = vadd.f32 %v9116, %v9117
        %v9119 = vsel %vm664, %v580, 0.0
        %v9120 = vadd.f32 %v9118, %v9119
        %v9121 = vsel %vm664, %v581, 0.0
        %v9122 = vadd.f32 %v9120, %v9121
        %v9123 = vsel %vm664, %v582, 0.0
        %v9124 = vadd.f32 %v9122, %v9123
        %v9125 = vsel %vm664, %v583, 0.0
        %v9126 = vadd.f32 %v9124, %v9125
        %v9127 = vsel %vm664, %v584, 0.0
        %v9128 = vadd.f32 %v9126, %v9127
        %v9129 = vsel %vm664, %v585, 0.0
        %v9130 = vadd.f32 %v9128, %v9129
        %v9131 = vsel %vm664, %v586, 0.0
        %v9132 = vadd.f32 %v9130, %v9131
        %v9133 = vsel %vm664, %v587, 0.0
        %v9134 = vadd.f32 %v9132, %v9133
        %v9135 = vsel %vm664, %v588, 0.0
        %v9136 = vadd.f32 %v9134, %v9135
        %v9137 = vsel %vm664, %v589, 0.0
        %v9138 = vadd.f32 %v9136, %v9137
        %v9139 = vsel %vm664, %v590, 0.0
        %v9140 = vadd.f32 %v9138, %v9139
        %v9141 = vsel %vm664, %v591, 0.0
        %v9142 = vadd.f32 %v9140, %v9141
        %v9143 = vsel %vm664, %v592, 0.0
        %v9144 = vadd.f32 %v9142, %v9143
        %v9145 = vsel %vm664, %v593, 0.0
        %v9146 = vadd.f32 %v9144, %v9145
        %v9147 = vsel %vm664, %v594, 0.0
        %v9148 = vadd.f32 %v9146, %v9147
        %v9149 = vsel %vm664, %v595, 0.0
        %v9150 = vadd.f32 %v9148, %v9149
        %v9151 = vsel %vm664, %v596, 0.0
        %v9152 = vadd.f32 %v9150, %v9151
        %v9153 = vsel %vm664, %v597, 0.0
        %v9154 = vadd.f32 %v9152, %v9153
        %v9155 = vsel %vm664, %v598, 0.0
        %v9156 = vadd.f32 %v9154, %v9155
        %v9157 = vsel %vm664, %v599, 0.0
        %v9158 = vadd.f32 %v9156, %v9157
        %v9159 = vsel %vm664, %v600, 0.0
        %v9160 = vadd.f32 %v9158, %v9159
        %v9161 = vsel %vm664, %v601, 0.0
        %v9162 = vadd.f32 %v9160, %v9161
        %v9163 = vsel %vm664, %v602, 0.0
        %v9164 = vadd.f32 %v9162, %v9163
        %v9165 = vsel %vm664, %v603, 0.0
        %v9166 = vadd.f32 %v9164, %v9165
        %v9167 = vsel %vm664, %v604, 0.0
        %v9168 = vadd.f32 %v9166, %v9167
        %v9169 = vsel %vm664, %v605, 0.0
        %v9170 = vadd.f32 %v9168, %v9169
        %v9171 = vsel %vm664, %v606, 0.0
        %v9172 = vadd.f32 %v9170, %v9171
        %v9173 = vsel %vm664, %v607, 0.0
        %v9174 = vadd.f32 %v9172, %v9173
        %v9175 = vsel %vm664, %v608, 0.0
        %v9176 = vadd.f32 %v9174, %v9175
        %v9177 = vrot.slane %v9176, 4
        %v9178 = vadd.f32 %v9176, %v9177
        %v9179 = vrot.slane %v9178, 2
        %v9180 = vadd.f32 %v9178, %v9179
        %v9181 = vrot.slane %v9180, 1
        %v9182 = vadd.f32 %v9180, %v9181
        %v9183 = vrcp.pop 256.0
        %v9184 = vmul.f32 %v9182, %v9183
        %v9185 = vld [vmem:[%s13] sm:$0xff]
        %v9186 = vld [vmem:[%s13 + $0x8] sm:$0xff]
        %v9187 = vld [vmem:[%s13 + $0x10] sm:$0xff]
        %v9188 = vld [vmem:[%s13 + $0x18] sm:$0xff]
        %v9189 = vld [vmem:[%s13 + $0x20] sm:$0xff]
        %v9190 = vld [vmem:[%s13 + $0x28] sm:$0xff]
        %v9191 = vld [vmem:[%s13 + $0x30] sm:$0xff]
        %v9192 = vld [vmem:[%s13 + $0x38] sm:$0xff]
        %v9193 = vld [vmem:[%s14] sm:$0x1]
        %v9195 = vsel %vm664, %v9184, 0
        %9197 = vmatprep.subr.mxu0 0.0
        %9198 = vmatpush1.msra.mxu0 0.0
        %9199 = vmatprep.subr.mxu0 0.0
        %9200 = vmatpush1.msra.mxu0 0.0
        %9201 = vmatprep.subr.mxu0 0.0
        %9202 = vmatpush1.msra.mxu0 0.0
        %9203 = vmatprep.subr.mxu0 0.0
        %9204 = vmatpush1.msra.mxu0 0.0
        %9205 = vmatprep.subr.mxu0 0.0
        %9206 = vmatpush1.msra.mxu0 0.0
        %9207 = vmatprep.subr.mxu0 0.0
        %9208 = vmatpush1.msra.mxu0 0.0
        %9209 = vmatprep.subr.mxu0 0.0
        %9210 = vmatpush1.msra.mxu0 0.0
        %9211 = vmatprep.subr.mxu0 0.0
        %9212 = vmatpush1.msra.mxu0 0.0
        %9213 = vmatprep.subr.mxu0 0.0
        %9214 = vmatpush1.msra.mxu0 %v9192
        %9215 = vmatprep.subr.mxu0 0.0
        %9216 = vmatpush1.msra.mxu0 %v9191
        %9217 = vmatprep.subr.mxu0 0.0
        %9218 = vmatpush1.msra.mxu0 %v9190
        %9219 = vmatprep.subr.mxu0 0.0
        %9220 = vmatpush1.msra.mxu0 %v9189
        %9221 = vmatprep.subr.mxu0 0.0
        %9222 = vmatpush1.msra.mxu0 %v9188
        %9223 = vmatprep.subr.mxu0 0.0
        %9224 = vmatpush1.msra.mxu0 %v9187
        %9225 = vmatprep.subr.mxu0 0.0
        %9226 = vmatpush1.msra.mxu0 %v9186
        %9227 = vmatprep.subr.mxu0 0.0
        %9228 = vmatpush1.msra.mxu0 %v9185
        %9229 = vmatprep.subr.mxu0 0.0
        %9230 = vmatpush2.msra.mxu0 0.0
        %9231 = vmatprep.subr.mxu0 0.0
        %9232 = vmatpush2.msra.mxu0 0.0
        %9233 = vmatprep.subr.mxu0 0.0
        %9234 = vmatpush2.msra.mxu0 0.0
        %9235 = vmatprep.subr.mxu0 0.0
        %9236 = vmatpush2.msra.mxu0 0.0
        %9237 = vmatprep.subr.mxu0 0.0
        %9238 = vmatpush2.msra.mxu0 0.0
        %9239 = vmatprep.subr.mxu0 0.0
        %9240 = vmatpush2.msra.mxu0 0.0
        %9241 = vmatprep.subr.mxu0 0.0
        %9242 = vmatpush2.msra.mxu0 0.0
        %9243 = vmatprep.subr.mxu0 0.0
        %9244 = vmatpush2.msra.mxu0 0.0
        %9245 = vmatprep.subr.mxu0 0.0
        %9246 = vmatpush2.msra.mxu0 0.0
        %9247 = vmatprep.subr.mxu0 0.0
        %9248 = vmatpush2.msra.mxu0 0.0
        %9249 = vmatprep.subr.mxu0 0.0
        %9250 = vmatpush2.msra.mxu0 0.0
        %9251 = vmatprep.subr.mxu0 0.0
        %9252 = vmatpush2.msra.mxu0 0.0
        %9253 = vmatprep.subr.mxu0 0.0
        %9254 = vmatpush2.msra.mxu0 0.0
        %9255 = vmatprep.subr.mxu0 0.0
        %9256 = vmatpush2.msra.mxu0 0.0
        %9257 = vmatprep.subr.mxu0 0.0
        %9258 = vmatpush2.msra.mxu0 0.0
        %9259 = vmatprep.subr.mxu0 0.0
        %9260 = vmatpush2.msra.mxu0 0.0
        %9261 = vmatprep.mubr.f32.mxu0 0.0
        %9262 = vmatmul.mubr.f32.gmra.mxu0 %v9195
        %v9263 = vpop.f32.mrf.mxu0
        %v9264 = vadd.f32 %v9193, %v9263
        %v9265 = vpop.f32.mrf.mxu0
        %9266 = vdwg.mxu0
        %v9267 = vmul.f32 %v9264, 0.5
        %v9268 = vmul.f32 %v9264, %v9264
        %v9269 = vmul.f32 %v9268, %v9264
        %v9270 = vmul.f32 %v9269, 0.044715
        %v9271 = vadd.f32 %v9264, %v9270
        %v9272 = vmul.f32 %v9271, 0.7978846
        %v9273 = vtanh.pop %v9272
        %v9274 = vadd.f32 %v9273, 1.0
        %v9275 = vmul.f32 %v9267, %v9274
        %v9276 = vld [vmem:[%s15] sm:$0xff]
        %v9277 = vld [vmem:[%s15 + $0x8] sm:$0xff]
        %v9278 = vld [vmem:[%s16] sm:$0x1]
        %v9280 = vsel %vm2968, %v9275, 0
        %9282 = vmatprep.subr.mxu0 0.0
        %9283 = vmatpush1.msra.mxu0 0.0
        %9284 = vmatprep.subr.mxu0 0.0
        %9285 = vmatpush1.msra.mxu0 0.0
        %9286 = vmatprep.subr.mxu0 0.0
        %9287 = vmatpush1.msra.mxu0 0.0
        %9288 = vmatprep.subr.mxu0 0.0
        %9289 = vmatpush1.msra.mxu0 0.0
        %9290 = vmatprep.subr.mxu0 0.0
        %9291 = vmatpush1.msra.mxu0 0.0
        %9292 = vmatprep.subr.mxu0 0.0
        %9293 = vmatpush1.msra.mxu0 0.0
        %9294 = vmatprep.subr.mxu0 0.0
        %9295 = vmatpush1.msra.mxu0 0.0
        %9296 = vmatprep.subr.mxu0 0.0
        %9297 = vmatpush1.msra.mxu0 0.0
        %9298 = vmatprep.subr.mxu0 0.0
        %9299 = vmatpush1.msra.mxu0 0.0
        %9300 = vmatprep.subr.mxu0 0.0
        %9301 = vmatpush1.msra.mxu0 0.0
        %9302 = vmatprep.subr.mxu0 0.0
        %9303 = vmatpush1.msra.mxu0 0.0
        %9304 = vmatprep.subr.mxu0 0.0
        %9305 = vmatpush1.msra.mxu0 0.0
        %9306 = vmatprep.subr.mxu0 0.0
        %9307 = vmatpush1.msra.mxu0 0.0
        %9308 = vmatprep.subr.mxu0 0.0
        %9309 = vmatpush1.msra.mxu0 0.0
        %9310 = vmatprep.subr.mxu0 0.0
        %9311 = vmatpush1.msra.mxu0 %v9277
        %9312 = vmatprep.subr.mxu0 0.0
        %9313 = vmatpush1.msra.mxu0 %v9276
        %9314 = vmatprep.subr.mxu0 0.0
        %9315 = vmatpush2.msra.mxu0 0.0
        %9316 = vmatprep.subr.mxu0 0.0
        %9317 = vmatpush2.msra.mxu0 0.0
        %9318 = vmatprep.subr.mxu0 0.0
        %9319 = vmatpush2.msra.mxu0 0.0
        %9320 = vmatprep.subr.mxu0 0.0
        %9321 = vmatpush2.msra.mxu0 0.0
        %9322 = vmatprep.subr.mxu0 0.0
        %9323 = vmatpush2.msra.mxu0 0.0
        %9324 = vmatprep.subr.mxu0 0.0
        %9325 = vmatpush2.msra.mxu0 0.0
        %9326 = vmatprep.subr.mxu0 0.0
        %9327 = vmatpush2.msra.mxu0 0.0
        %9328 = vmatprep.subr.mxu0 0.0
        %9329 = vmatpush2.msra.mxu0 0.0
        %9330 = vmatprep.subr.mxu0 0.0
        %9331 = vmatpush2.msra.mxu0 0.0
        %9332 = vmatprep.subr.mxu0 0.0
        %9333 = vmatpush2.msra.mxu0 0.0
        %9334 = vmatprep.subr.mxu0 0.0
        %9335 = vmatpush2.msra.mxu0 0.0
        %9336 = vmatprep.subr.mxu0 0.0
        %9337 = vmatpush2.msra.mxu0 0.0
        %9338 = vmatprep.subr.mxu0 0.0
        %9339 = vmatpush2.msra.mxu0 0.0
        %9340 = vmatprep.subr.mxu0 0.0
        %9341 = vmatpush2.msra.mxu0 0.0
        %9342 = vmatprep.subr.mxu0 0.0
        %9343 = vmatpush2.msra.mxu0 0.0
        %9344 = vmatprep.subr.mxu0 0.0
        %9345 = vmatpush2.msra.mxu0 0.0
        %9346 = vmatprep.mubr.f32.mxu0 0.0
        %9347 = vmatmul.mubr.f32.gmra.mxu0 %v9280
        %v9348 = vpop.f32.mrf.mxu0
        %v9349 = vadd.f32 %v9278, %v9348
        %v9350 = vpop.f32.mrf.mxu0
        %9351 = vdwg.mxu0
        %v9352 = vxor.u32 %v9349, 2147483648
        %v9353 = vmul.f32 %v9352, 1.442695
        %v9354 = vpow.pop %v9353
        %v9355 = vadd.f32 %v9354, 1.0
        %v9356 = vrcp.pop %v9355
        %v9357 = vmul.f32 1.0, %v9356
        %v9358 = vld [vmem:[#allocation3] sm:$0x1]
        %9360 = vset.pattern.permute.xlu0 0
        %9361 = vperm.xlu0 %9360, %v9358
        %v9362 = vpop.permute.xlu0 %9361
        %v9364 = vlaneseq
        %v9365 = vshrl.u32 %v9364, 7
        %v9366 = vsub.s32 0, %v9365
        %v9367 = vrot.slane %v9362, %v9366
        %v9368 = vmul.f32 %v9357, %v9367
        %v9369 = vlaneseq
        %v9370 = vshrl.u32 %v9369, 7
        %v9371 = vsub.s32 0, %v9370
        %v9372 = vrot.slane %v9368, %v9371
        %v9373 = vmul.f32 %v8988, %v9372
        %v9374 = vmul.f32 %v8991, %v9372
        %v9375 = vmul.f32 %v8996, %v9372
        %v9376 = vmul.f32 %v8999, %v9372
        %v9377 = vmul.f32 %v9004, %v9372
        %v9378 = vmul.f32 %v9007, %v9372
        %v9379 = vmul.f32 %v9012, %v9372
        %v9380 = vmul.f32 %v9015, %v9372
        %v9381 = vmul.f32 %v9020, %v9372
        %v9382 = vmul.f32 %v9023, %v9372
        %v9383 = vmul.f32 %v9028, %v9372
        %v9384 = vmul.f32 %v9031, %v9372
        %v9385 = vmul.f32 %v9036, %v9372
        %v9386 = vmul.f32 %v9039, %v9372
        %v9387 = vmul.f32 %v9044, %v9372
        %v9388 = vmul.f32 %v9047, %v9372
        %v9389 = vmul.f32 %v9052, %v9372
        %v9390 = vmul.f32 %v9055, %v9372
        %v9391 = vmul.f32 %v9060, %v9372
        %v9392 = vmul.f32 %v9063, %v9372
        %v9393 = vmul.f32 %v9068, %v9372
        %v9394 = vmul.f32 %v9071, %v9372
        %v9395 = vmul.f32 %v9076, %v9372
        %v9396 = vmul.f32 %v9079, %v9372
        %v9397 = vmul.f32 %v9084, %v9372
        %v9398 = vmul.f32 %v9087, %v9372
        %v9399 = vmul.f32 %v9092, %v9372
        %v9400 = vmul.f32 %v9095, %v9372
        %v9401 = vmul.f32 %v9100, %v9372
        %v9402 = vmul.f32 %v9103, %v9372
        %v9403 = vmul.f32 %v9108, %v9372
        %v9404 = vmul.f32 %v9111, %v9372
        %v9405 = vadd.f32 %v577, %v9373
        %v9406 = vadd.f32 %v578, %v9374
        %v9407 = vadd.f32 %v579, %v9375
        %v9408 = vadd.f32 %v580, %v9376
        %v9409 = vadd.f32 %v581, %v9377
        %v9410 = vadd.f32 %v582, %v9378
        %v9411 = vadd.f32 %v583, %v9379
        %v9412 = vadd.f32 %v584, %v9380
        %v9413 = vadd.f32 %v585, %v9381
        %v9414 = vadd.f32 %v586, %v9382
        %v9415 = vadd.f32 %v587, %v9383
        %v9416 = vadd.f32 %v588, %v9384
        %v9417 = vadd.f32 %v589, %v9385
        %v9418 = vadd.f32 %v590, %v9386
        %v9419 = vadd.f32 %v591, %v9387
        %v9420 = vadd.f32 %v592, %v9388
        %v9421 = vadd.f32 %v593, %v9389
        %v9422 = vadd.f32 %v594, %v9390
        %v9423 = vadd.f32 %v595, %v9391
        %v9424 = vadd.f32 %v596, %v9392
        %v9425 = vadd.f32 %v597, %v9393
        %v9426 = vadd.f32 %v598, %v9394
        %v9427 = vadd.f32 %v599, %v9395
        %v9428 = vadd.f32 %v600, %v9396
        %v9429 = vadd.f32 %v601, %v9397
        %v9430 = vadd.f32 %v602, %v9398
        %v9431 = vadd.f32 %v603, %v9399
        %v9432 = vadd.f32 %v604, %v9400
        %v9433 = vadd.f32 %v605, %v9401
        %v9434 = vadd.f32 %v606, %v9402
        %v9435 = vadd.f32 %v607, %v9403
        %v9436 = vadd.f32 %v608, %v9404
        %9437 = vst.msk [vmem:[%s570] sm:$0xff] %vm664, %v9405
        %9438 = vst.msk [vmem:[%s570 + $0x8] sm:$0xff] %vm664, %v9406
        %9439 = vst.msk [vmem:[%s570 + $0x10] sm:$0xff] %vm664, %v9407
        %9440 = vst.msk [vmem:[%s570 + $0x18] sm:$0xff] %vm664, %v9408
        %9441 = vst.msk [vmem:[%s570 + $0x20] sm:$0xff] %vm664, %v9409
        %9442 = vst.msk [vmem:[%s570 + $0x28] sm:$0xff] %vm664, %v9410
        %9443 = vst.msk [vmem:[%s570 + $0x30] sm:$0xff] %vm664, %v9411
        %9444 = vst.msk [vmem:[%s570 + $0x38] sm:$0xff] %vm664, %v9412
        %9445 = vst.msk [vmem:[%s570 + $0x40] sm:$0xff] %vm664, %v9413
        %9446 = vst.msk [vmem:[%s570 + $0x48] sm:$0xff] %vm664, %v9414
        %9447 = vst.msk [vmem:[%s570 + $0x50] sm:$0xff] %vm664, %v9415
        %9448 = vst.msk [vmem:[%s570 + $0x58] sm:$0xff] %vm664, %v9416
        %9449 = vst.msk [vmem:[%s570 + $0x60] sm:$0xff] %vm664, %v9417
        %9450 = vst.msk [vmem:[%s570 + $0x68] sm:$0xff] %vm664, %v9418
        %9451 = vst.msk [vmem:[%s570 + $0x70] sm:$0xff] %vm664, %v9419
        %9452 = vst.msk [vmem:[%s570 + $0x78] sm:$0xff] %vm664, %v9420
        %9453 = vst.msk [vmem:[%s570 + $0x80] sm:$0xff] %vm664, %v9421
        %9454 = vst.msk [vmem:[%s570 + $0x88] sm:$0xff] %vm664, %v9422
        %9455 = vst.msk [vmem:[%s570 + $0x90] sm:$0xff] %vm664, %v9423
        %9456 = vst.msk [vmem:[%s570 + $0x98] sm:$0xff] %vm664, %v9424
        %9457 = vst.msk [vmem:[%s570 + $0xa0] sm:$0xff] %vm664, %v9425
        %9458 = vst.msk [vmem:[%s570 + $0xa8] sm:$0xff] %vm664, %v9426
        %9459 = vst.msk [vmem:[%s570 + $0xb0] sm:$0xff] %vm664, %v9427
        %9460 = vst.msk [vmem:[%s570 + $0xb8] sm:$0xff] %vm664, %v9428
        %9461 = vst.msk [vmem:[%s570 + $0xc0] sm:$0xff] %vm664, %v9429
        %9462 = vst.msk [vmem:[%s570 + $0xc8] sm:$0xff] %vm664, %v9430
        %9463 = vst.msk [vmem:[%s570 + $0xd0] sm:$0xff] %vm664, %v9431
        %9464 = vst.msk [vmem:[%s570 + $0xd8] sm:$0xff] %vm664, %v9432
        %9465 = vst.msk [vmem:[%s570 + $0xe0] sm:$0xff] %vm664, %v9433
        %9466 = vst.msk [vmem:[%s570 + $0xe8] sm:$0xff] %vm664, %v9434
        %9467 = vst.msk [vmem:[%s570 + $0xf0] sm:$0xff] %vm664, %v9435
        %9468 = vst.msk [vmem:[%s570 + $0xf8] sm:$0xff] %vm664, %v9436
        %s9469 = sand.u32 %s425, 1
        %s9470 = scalar_lea.sflag [#allocation5], %s9469
        %s9471 = sand.u32 %s425, 1
        %s9472 = smul.addr %s9471, 256
        %s9473 = scalar_lea.vmem [#allocation4], %s9472
        // Predicated region
        $region93: #{illumination_aware_block.1} parent=91 // pred_check
          %p9474 = pneg %p435
        $region94: #{illumination_aware_block.1} parent=91 // pred_check_branch
          %9476 = sbr.rel (%p9474) target = $region96
        $region95: #{illumination_aware_block.1} parent=91 // pred_region
          %s9478 = ssub.s32 4096, 4096
          %9479 = vsyncadd %s9470, %s9478
          %s9480 = smul.addr %s34, 32
          %s9481 = smul.addr %s9480, 128
          %s9482 = scalar_lea.hbm %s18, %s9481
          %s9483 = sshll.u32 %s9473, 4
          %s9484 = int_to_ptr.vmem [resolvable:$true] %s9483
          %9489 = dma.vmem_to_hbm [thread:$0]  %s9484, 4096, %s9482, %s9470, 128, 128, 8
        $region96: #{illumination_aware_block.1} parent=91 // pred_fallthru
          _
      $region92: #{illumination_aware_block.1} parent=5 // pred_fallthru
        _
      %p9490 = scmp.le.s32.totalorder 2, %s29
      // Predicated region
      $region97: #{illumination_aware_block.1} parent=5 // pred_check
        %p9491 = pneg %p9490
      $region98: #{illumination_aware_block.1} parent=5 // pred_check_branch
        %9493 = sbr.rel (%p9491) target = $region100
      $region99: #{illumination_aware_block.1} parent=5 // pred_region
        %s9494 = ssub.s32 %s29, 2
        // Predicated region
        $region101: #{illumination_aware_block.1} parent=99 // pred_check
          %p9495 = pneg %p441
        $region102: #{illumination_aware_block.1} parent=99 // pred_check_branch
          %9497 = sbr.rel (%p9495) target = $region104
        $region103: #{illumination_aware_block.1} parent=99 // pred_region
          %s9498 = sand.u32 %s426, 1
          %s9499 = scalar_lea.sflag [#allocation5], %s9498
          %s9500 = sand.u32 %s426, 1
          %s9501 = smul.addr %s9500, 256
          %s9502 = scalar_lea.vmem [#allocation4], %s9501
          %9503 = dma.done %s9499, 4096
        $region104: #{illumination_aware_block.1} parent=99 // pred_fallthru
          _
      $region100: #{illumination_aware_block.1} parent=5 // pred_fallthru
        _
    $region6: #{illumination_aware_block.1} parent=1 // loop_footer
      %s33 = sadd.s32 1, %s29
    $region7: #{illumination_aware_block.1} parent=1 // loop_footer_branch
      %28 = sbr.rel target = $region3
    $region8: #{illumination_aware_block.1} parent=1 // loop_exit
      _
    %9504 = vsyncpa [#allocation5], 1
    %s9505 = scalar_lea.sflag [#allocation5], 1
    %9506 = vsyncpa %s9505, 1

</llo_original>
